<compile_context>
chip_gen: v5e
topology: v5e:2x2
jax: 0.10.0
libtpu: 0.0.40
codegen_flags: <defaults>
</compile_context>

<pallas_src>
import math

import jax
import jax.numpy as jnp
from jax.experimental import pallas as pl
from jax.experimental.pallas import tpu as pltpu


def _fs_attention_kernel(q_ref, k_ref, v_ref, wo_ref, bo_ref, o_ref,
                         m_scr, l_scr, acc_scr):
    # q_ref  : (1, H, tq, dh) bf16, pre-scaled by dh**-0.5
    # k_ref  : (1, H, tk, dh) bf16
    # v_ref  : (1, H, tk, dh) bf16
    # wo_ref : (H, dh, dim)   bf16
    # bo_ref : (1, dim)       f32
    # o_ref  : (1, tq, dim)
    # m_scr/l_scr: (H, tq, 1) f32 ; acc_scr: (H, tq, dh) f32
    ki = pl.program_id(2)

    @pl.when(ki == 0)
    def _init():
        m_scr[...] = jnp.full_like(m_scr, -jnp.inf)
        l_scr[...] = jnp.zeros_like(l_scr)
        acc_scr[...] = jnp.zeros_like(acc_scr)

    q = q_ref[0]                                        # (H, tq, dh) bf16
    k = k_ref[0]                                        # (H, tk, dh) bf16
    v = v_ref[0]                                        # (H, tk, dh) bf16

    # Scores, batched over heads, f32 MXU accumulation: (H, tq, tk).
    s = jnp.einsum("hqd,hkd->hqk", q, k, preferred_element_type=jnp.float32)

    m_prev = m_scr[...]                                 # (H, tq, 1)
    m_new = jnp.maximum(m_prev, s.max(axis=-1, keepdims=True))
    alpha = jnp.exp(m_prev - m_new)
    p = jnp.exp(s - m_new)                              # (H, tq, tk) f32
    l_scr[...] = alpha * l_scr[...] + p.sum(axis=-1, keepdims=True)
    pv = jnp.einsum("hqk,hkd->hqd", p.astype(v.dtype), v,
                    preferred_element_type=jnp.float32)  # (H, tq, dh) f32
    acc_scr[...] = alpha * acc_scr[...] + pv
    m_scr[...] = m_new

    @pl.when(ki == pl.num_programs(2) - 1)
    def _finalize():
        H, tq, dh = acc_scr.shape
        dim = wo_ref.shape[2]
        # Fused output projection: y = sum_h (acc_h / l_h) @ Wo_h + b_o.
        y = jnp.zeros((tq, dim), jnp.float32)
        for h in range(H):                              # static unroll, H is small
            o_h = acc_scr[h] * pl.reciprocal(l_scr[h], approx=True)
            y = y + jnp.dot(o_h.astype(wo_ref.dtype), wo_ref[h],
                            preferred_element_type=jnp.float32)
        o_ref[0] = (y + bo_ref[...]).astype(o_ref.dtype)


def fs_attention(x, w_qkv, w_o, b_o, *, heads, dim_head, tq=256, tk=256):
    """FSAttention forward.

    x: (B, N, dim).  w_qkv: (dim, 3*heads*dim_head) (JAX convention y = x @ w).
    w_o: (heads*dim_head, dim).  b_o: (dim,).  Returns (B, N, dim).
    Note: use tk=128 on v5e (128-wide MXU); defaults target v6e/v7x.
    """
    B, N, dim = x.shape
    inner = heads * dim_head
    assert w_qkv.shape == (dim, 3 * inner)
    assert w_o.shape == (inner, dim)
    tq = min(tq, N)
    tk = min(tk, N)
    # TODO(synk): ragged N needs padding + masking (mask before the row max).
    assert N % tq == 0 and N % tk == 0, "N must be divisible by the q/kv tiles"
    scale = float(dim_head) ** -0.5

    # --- QKV projection: one lane-dense GEMM, exact f32 (XLA is at roofline). ---
    qkv = jnp.dot(x.reshape(B * N, dim), w_qkv).reshape(B, N, 3, heads, dim_head)
    # (B, H, N, dh); fold the softmax scale into q, cast MXU operands to bf16.
    q = (qkv[:, :, 0].transpose(0, 2, 1, 3) * scale).astype(jnp.bfloat16)
    k = qkv[:, :, 1].transpose(0, 2, 1, 3).astype(jnp.bfloat16)
    v = qkv[:, :, 2].transpose(0, 2, 1, 3).astype(jnp.bfloat16)

    wo = w_o.reshape(heads, dim_head, dim).astype(jnp.bfloat16)
    bo = b_o.reshape(1, dim).astype(jnp.float32)

    grid = (B, N // tq, N // tk)

    # Kernel-only cost (QKV projection handled by XLA outside the kernel).
    flops = (4 * B * heads * N * N * dim_head        # scores + attn @ v
             + 2 * B * N * inner * dim)              # fused output projection
    bytes_accessed = int(2 * q.size                  # bf16 q (read once per qi)
                         + (N // tq) * 2 * (k.size + v.size)  # k/v re-read per qi pass
                         + 2 * wo.size + 4 * bo.size
                         + 4 * B * N * dim)          # f32 output
    cost = pl.CostEstimate(flops=flops,
                           transcendentals=B * heads * N * N,
                           bytes_accessed=bytes_accessed)

    out = pl.pallas_call(
        _fs_attention_kernel,
        out_shape=jax.ShapeDtypeStruct((B, N, dim), x.dtype),
        grid_spec=pltpu.PrefetchScalarGridSpec(
            num_scalar_prefetch=0,
            grid=grid,
            in_specs=[
                pl.BlockSpec((1, heads, tq, dim_head),
                             lambda b, qi, ki: (b, 0, qi, 0)),   # q (pre-scaled)
                pl.BlockSpec((1, heads, tk, dim_head),
                             lambda b, qi, ki: (b, 0, ki, 0)),   # k
                pl.BlockSpec((1, heads, tk, dim_head),
                             lambda b, qi, ki: (b, 0, ki, 0)),   # v
                pl.BlockSpec((heads, dim_head, dim),
                             lambda b, qi, ki: (0, 0, 0)),       # Wo (constant)
                pl.BlockSpec((1, dim),
                             lambda b, qi, ki: (0, 0)),          # bo (constant)
            ],
            out_specs=pl.BlockSpec((1, tq, dim), lambda b, qi, ki: (b, qi, 0)),
            scratch_shapes=[
                pltpu.VMEM((heads, tq, 1), jnp.float32),          # running max
                pltpu.VMEM((heads, tq, 1), jnp.float32),          # running denom
                pltpu.VMEM((heads, tq, dim_head), jnp.float32),   # output accumulator
            ],
        ),
        compiler_params=pltpu.CompilerParams(
            dimension_semantics=("parallel", "parallel", "arbitrary")),
        cost_estimate=cost,
    )(q, k, v, wo, bo)
    return out


def _reference(x, w_qkv, w_o, b_o, heads, dim_head):
    B, N, dim = x.shape
    inner = heads * dim_head
    qkv = x @ w_qkv
    q, k, v = jnp.split(qkv, 3, axis=-1)

    def split_heads(t):
        return t.reshape(B, N, heads, dim_head).transpose(0, 2, 1, 3)

    q, k, v = map(split_heads, (q, k, v))
    dots = jnp.einsum("bhid,bhjd->bhij", q, k) * (float(dim_head) ** -0.5)
    attn = jax.nn.softmax(dots, axis=-1)
    out = jnp.einsum("bhij,bhjd->bhid", attn, v)
    out = out.transpose(0, 2, 1, 3).reshape(B, N, inner)
    return out @ w_o + b_o


if __name__ == "__main__":
    # Small shapes consistent with the module defaults: heads=3, dim_head=64.
    # N=512 with tq=tk=256 exercises init / accumulate / finalize over 2 kv steps.
    B, N, dim = 2, 512, 128
    heads, dim_head = 3, 64
    inner = heads * dim_head

    key = jax.random.PRNGKey(0)
    kx, kqkv, kwo, kbo = jax.random.split(key, 4)

    x = jax.random.normal(kx, (B, N, dim), dtype=jnp.float32)

    # PyTorch-Linear-like uniform init (JAX convention: y = x @ w + b).
    lim_qkv = 1.0 / math.sqrt(dim)
    lim_o = 1.0 / math.sqrt(inner)
    w_qkv = jax.random.uniform(kqkv, (dim, 3 * inner), jnp.float32, -lim_qkv, lim_qkv)
    w_o = jax.random.uniform(kwo, (inner, dim), jnp.float32, -lim_o, lim_o)
    b_o = jax.random.uniform(kbo, (dim,), jnp.float32, -lim_o, lim_o)

    y = fs_attention(x, w_qkv, w_o, b_o, heads=heads, dim_head=dim_head)
    y = jax.block_until_ready(y)

    y_ref = _reference(x, w_qkv, w_o, b_o, heads, dim_head)
    assert y.shape == (B, N, dim)
    err = float(jnp.max(jnp.abs(y - y_ref)))
    # bf16 MXU operands + approx reciprocal vs. a pure-f32 reference.
    assert err < 2e-2, f"max abs err {err}"

    print("KERNEL_OK")
</pallas_src>

<mosaic_0001>
module attributes {stable_mosaic.version = 11 : i64} {
  func.func @_fs_attention_kernel(%arg0: i32, %arg1: i32, %arg2: i32, %arg3: memref<1x3x256x64xbf16, #tpu.memory_space<vmem>>, %arg4: memref<1x3x256x64xbf16, #tpu.memory_space<vmem>>, %arg5: memref<1x3x256x64xbf16, #tpu.memory_space<vmem>>, %arg6: memref<3x64x128xbf16, #tpu.memory_space<vmem>>, %arg7: memref<1x128xf32, #tpu.memory_space<vmem>>, %arg8: memref<1x256x128xf32, #tpu.memory_space<vmem>>, %arg9: memref<3x256x1xf32, #tpu.memory_space<vmem>>, %arg10: memref<3x256x1xf32, #tpu.memory_space<vmem>>, %arg11: memref<3x256x64xf32, #tpu.memory_space<vmem>>) attributes {dimension_semantics = [#tpu.dimension_semantics<parallel>, #tpu.dimension_semantics<parallel>, #tpu.dimension_semantics<arbitrary>], iteration_bounds = array<i64: 2, 2, 2>, scalar_prefetch = 0 : i64, scratch_operands = 3 : i64, tpu.core_type = #tpu.core_type<tc>, window_params = [{transform_indices = @transform_0, window_bounds = array<i64: 1, 3, 256, 64>}, {transform_indices = @transform_1, window_bounds = array<i64: 1, 3, 256, 64>}, {transform_indices = @transform_2, window_bounds = array<i64: 1, 3, 256, 64>}, {pipeline_mode = #tpu.pipeline_mode<synchronous>, transform_indices = @transform_3, window_bounds = array<i64: 3, 64, 128>}, {pipeline_mode = #tpu.pipeline_mode<synchronous>, transform_indices = @transform_4, window_bounds = array<i64: 1, 128>}, {transform_indices = @transform_5, window_bounds = array<i64: 1, 256, 128>}]} {
    %c0_i32 = arith.constant 0 : i32
    %0 = arith.cmpi eq, %arg2, %c0_i32 : i32
    %1 = arith.extui %0 : i1 to i32
    %c0_i32_0 = arith.constant 0 : i32
    %2 = arith.cmpi ne, %1, %c0_i32_0 : i32
    scf.if %2 {
      %cst_34 = arith.constant 0xFF800000 : f32
      %36 = vector.broadcast %cst_34 : f32 to vector<3x256x1xf32>
      %c0_35 = arith.constant 0 : index
      %c0_36 = arith.constant 0 : index
      %c0_37 = arith.constant 0 : index
      %37 = vector.load %arg9[%c0_35, %c0_36, %c0_37] : memref<3x256x1xf32, #tpu.memory_space<vmem>>, vector<3x256x1xf32>
      tpu.vector_store %arg9[%c0_35, %c0_36, %c0_37], %36 {strides = array<i32>} : memref<3x256x1xf32, #tpu.memory_space<vmem>>, vector<3x256x1xf32>,
      %cst_38 = arith.constant 0.000000e+00 : f32
      %38 = vector.broadcast %cst_38 : f32 to vector<3x256x1xf32>
      %c0_39 = arith.constant 0 : index
      %c0_40 = arith.constant 0 : index
      %c0_41 = arith.constant 0 : index
      %39 = vector.load %arg10[%c0_39, %c0_40, %c0_41] : memref<3x256x1xf32, #tpu.memory_space<vmem>>, vector<3x256x1xf32>
      tpu.vector_store %arg10[%c0_39, %c0_40, %c0_41], %38 {strides = array<i32>} : memref<3x256x1xf32, #tpu.memory_space<vmem>>, vector<3x256x1xf32>,
      %cst_42 = arith.constant 0.000000e+00 : f32
      %40 = vector.broadcast %cst_42 : f32 to vector<3x256x64xf32>
      %c0_43 = arith.constant 0 : index
      %c0_44 = arith.constant 0 : index
      %c0_45 = arith.constant 0 : index
      %41 = vector.load %arg11[%c0_43, %c0_44, %c0_45] : memref<3x256x64xf32, #tpu.memory_space<vmem>>, vector<3x256x64xf32>
      tpu.vector_store %arg11[%c0_43, %c0_44, %c0_45], %40 {strides = array<i32>} : memref<3x256x64xf32, #tpu.memory_space<vmem>>, vector<3x256x64xf32>,
    } else {
    }
    %c0 = arith.constant 0 : index
    %c0_1 = arith.constant 0 : index
    %c0_2 = arith.constant 0 : index
    %c0_3 = arith.constant 0 : index
    %3 = vector.load %arg3[%c0, %c0_1, %c0_2, %c0_3] : memref<1x3x256x64xbf16, #tpu.memory_space<vmem>>, vector<1x3x256x64xbf16>
    %4 = vector.shape_cast %3 : vector<1x3x256x64xbf16> to vector<3x256x64xbf16>
    %c0_4 = arith.constant 0 : index
    %c0_5 = arith.constant 0 : index
    %c0_6 = arith.constant 0 : index
    %c0_7 = arith.constant 0 : index
    %5 = vector.load %arg4[%c0_4, %c0_5, %c0_6, %c0_7] : memref<1x3x256x64xbf16, #tpu.memory_space<vmem>>, vector<1x3x256x64xbf16>
    %6 = vector.shape_cast %5 : vector<1x3x256x64xbf16> to vector<3x256x64xbf16>
    %c0_8 = arith.constant 0 : index
    %c0_9 = arith.constant 0 : index
    %c0_10 = arith.constant 0 : index
    %c0_11 = arith.constant 0 : index
    %7 = vector.load %arg5[%c0_8, %c0_9, %c0_10, %c0_11] : memref<1x3x256x64xbf16, #tpu.memory_space<vmem>>, vector<1x3x256x64xbf16>
    %8 = vector.shape_cast %7 : vector<1x3x256x64xbf16> to vector<3x256x64xbf16>
    "tpu.trace_start"() <{level = 10 : i32, message = "hqd,hkd->hqk"}> : () -> ()
    %cst = arith.constant dense<0.000000e+00> : vector<3x256x256xf32>
    %9 = tpu.matmul %4, %6, %cst {dimension_numbers = #tpu.dot_dimension_numbers<[2], [2], [1], [1], [0, 0, 0, 1, 1, 1], [0], [0]>} : vector<3x256x64xbf16>, vector<3x256x64xbf16>, vector<3x256x256xf32> -> vector<3x256x256xf32>
    "tpu.trace_stop"() : () -> ()
    %c0_12 = arith.constant 0 : index
    %c0_13 = arith.constant 0 : index
    %c0_14 = arith.constant 0 : index
    %10 = vector.load %arg9[%c0_12, %c0_13, %c0_14] : memref<3x256x1xf32, #tpu.memory_space<vmem>>, vector<3x256x1xf32>
    %cst_15 = arith.constant dense<0xFF800000> : vector<3x256xf32>
    %11 = vector.multi_reduction <maximumf>, %9, %cst_15 [2] : vector<3x256x256xf32> to vector<3x256xf32>
    %12 = vector.shape_cast %11 : vector<3x256xf32> to vector<3x256x1xf32>
    %13 = arith.maximumf %10, %12 : vector<3x256x1xf32>
    %14 = arith.subf %10, %13 : vector<3x256x1xf32>
    %15 = math.exp %14 : vector<3x256x1xf32>
    %16 = vector.broadcast %13 : vector<3x256x1xf32> to vector<3x256x256xf32>
    %17 = arith.subf %9, %16 : vector<3x256x256xf32>
    %18 = math.exp %17 : vector<3x256x256xf32>
    %c0_16 = arith.constant 0 : index
    %c0_17 = arith.constant 0 : index
    %c0_18 = arith.constant 0 : index
    %19 = vector.load %arg10[%c0_16, %c0_17, %c0_18] : memref<3x256x1xf32, #tpu.memory_space<vmem>>, vector<3x256x1xf32>
    %20 = arith.mulf %15, %19 : vector<3x256x1xf32>
    %cst_19 = arith.constant dense<0.000000e+00> : vector<3x256xf32>
    %21 = vector.multi_reduction <add>, %18, %cst_19 [2] : vector<3x256x256xf32> to vector<3x256xf32>
    %22 = vector.shape_cast %21 : vector<3x256xf32> to vector<3x256x1xf32>
    %23 = arith.addf %20, %22 : vector<3x256x1xf32>
    %c0_20 = arith.constant 0 : index
    %c0_21 = arith.constant 0 : index
    %c0_22 = arith.constant 0 : index
    %24 = vector.load %arg10[%c0_20, %c0_21, %c0_22] : memref<3x256x1xf32, #tpu.memory_space<vmem>>, vector<3x256x1xf32>
    tpu.vector_store %arg10[%c0_20, %c0_21, %c0_22], %23 {strides = array<i32>} : memref<3x256x1xf32, #tpu.memory_space<vmem>>, vector<3x256x1xf32>,
    %25 = arith.truncf %18 : vector<3x256x256xf32> to vector<3x256x256xbf16>
    "tpu.trace_start"() <{level = 10 : i32, message = "hqk,hkd->hqd"}> : () -> ()
    %cst_23 = arith.constant dense<0.000000e+00> : vector<3x256x64xf32>
    %26 = tpu.matmul %25, %8, %cst_23 {dimension_numbers = #tpu.dot_dimension_numbers<[2], [1], [1], [2], [0, 0, 0, 1, 1, 2], [0], [0]>} : vector<3x256x256xbf16>, vector<3x256x64xbf16>, vector<3x256x64xf32> -> vector<3x256x64xf32>
    "tpu.trace_stop"() : () -> ()
    %c0_24 = arith.constant 0 : index
    %c0_25 = arith.constant 0 : index
    %c0_26 = arith.constant 0 : index
    %27 = vector.load %arg11[%c0_24, %c0_25, %c0_26] : memref<3x256x64xf32, #tpu.memory_space<vmem>>, vector<3x256x64xf32>
    %28 = vector.broadcast %15 : vector<3x256x1xf32> to vector<3x256x64xf32>
    %29 = arith.mulf %28, %27 : vector<3x256x64xf32>
    %30 = arith.addf %29, %26 : vector<3x256x64xf32>
    %c0_27 = arith.constant 0 : index
    %c0_28 = arith.constant 0 : index
    %c0_29 = arith.constant 0 : index
    %31 = vector.load %arg11[%c0_27, %c0_28, %c0_29] : memref<3x256x64xf32, #tpu.memory_space<vmem>>, vector<3x256x64xf32>
    tpu.vector_store %arg11[%c0_27, %c0_28, %c0_29], %30 {strides = array<i32>} : memref<3x256x64xf32, #tpu.memory_space<vmem>>, vector<3x256x64xf32>,
    %c0_30 = arith.constant 0 : index
    %c0_31 = arith.constant 0 : index
    %c0_32 = arith.constant 0 : index
    %32 = vector.load %arg9[%c0_30, %c0_31, %c0_32] : memref<3x256x1xf32, #tpu.memory_space<vmem>>, vector<3x256x1xf32>
    tpu.vector_store %arg9[%c0_30, %c0_31, %c0_32], %13 {strides = array<i32>} : memref<3x256x1xf32, #tpu.memory_space<vmem>>, vector<3x256x1xf32>,
    %c1_i32 = arith.constant 1 : i32
    %33 = arith.cmpi eq, %arg2, %c1_i32 : i32
    %34 = arith.extui %33 : i1 to i32
    %c0_i32_33 = arith.constant 0 : i32
    %35 = arith.cmpi ne, %34, %c0_i32_33 : i32
    scf.if %35 {
      %cst_34 = arith.constant 0.000000e+00 : f32
      %36 = vector.broadcast %cst_34 : f32 to vector<256x128xf32>
      %c0_35 = arith.constant 0 : index
      %c0_36 = arith.constant 0 : index
      %c0_37 = arith.constant 0 : index
      %37 = vector.load %arg11[%c0_35, %c0_36, %c0_37] : memref<3x256x64xf32, #tpu.memory_space<vmem>>, vector<1x256x64xf32>
      %38 = vector.shape_cast %37 : vector<1x256x64xf32> to vector<256x64xf32>
      %c0_38 = arith.constant 0 : index
      %c0_39 = arith.constant 0 : index
      %c0_40 = arith.constant 0 : index
      %39 = vector.load %arg10[%c0_38, %c0_39, %c0_40] : memref<3x256x1xf32, #tpu.memory_space<vmem>>, vector<1x256x1xf32>
      %40 = vector.shape_cast %39 : vector<1x256x1xf32> to vector<256x1xf32>
      %41 = tpu.reciprocal %40 {approx = true} : vector<256x1xf32> -> vector<256x1xf32>
      %42 = vector.broadcast %41 : vector<256x1xf32> to vector<256x64xf32>
      %43 = arith.mulf %38, %42 : vector<256x64xf32>
      %44 = arith.truncf %43 : vector<256x64xf32> to vector<256x64xbf16>
      %c0_41 = arith.constant 0 : index
      %c0_42 = arith.constant 0 : index
      %c0_43 = arith.constant 0 : index
      %45 = vector.load %arg6[%c0_41, %c0_42, %c0_43] : memref<3x64x128xbf16, #tpu.memory_space<vmem>>, vector<1x64x128xbf16>
      %46 = vector.shape_cast %45 : vector<1x64x128xbf16> to vector<64x128xbf16>
      %cst_44 = arith.constant dense<0.000000e+00> : vector<256x128xf32>
      %47 = tpu.matmul %44, %46, %cst_44 {dimension_numbers = #tpu.dot_dimension_numbers<[1], [0], [0], [1], [0, 0, 1, 1], [], []>} : vector<256x64xbf16>, vector<64x128xbf16>, vector<256x128xf32> -> vector<256x128xf32>
      %48 = arith.addf %36, %47 : vector<256x128xf32>
      %c1 = arith.constant 1 : index
      %c0_45 = arith.constant 0 : index
      %c0_46 = arith.constant 0 : index
      %49 = vector.load %arg11[%c1, %c0_45, %c0_46] : memref<3x256x64xf32, #tpu.memory_space<vmem>>, vector<1x256x64xf32>
      %50 = vector.shape_cast %49 : vector<1x256x64xf32> to vector<256x64xf32>
      %c1_47 = arith.constant 1 : index
      %c0_48 = arith.constant 0 : index
      %c0_49 = arith.constant 0 : index
      %51 = vector.load %arg10[%c1_47, %c0_48, %c0_49] : memref<3x256x1xf32, #tpu.memory_space<vmem>>, vector<1x256x1xf32>
      %52 = vector.shape_cast %51 : vector<1x256x1xf32> to vector<256x1xf32>
      %53 = tpu.reciprocal %52 {approx = true} : vector<256x1xf32> -> vector<256x1xf32>
      %54 = vector.broadcast %53 : vector<256x1xf32> to vector<256x64xf32>
      %55 = arith.mulf %50, %54 : vector<256x64xf32>
      %56 = arith.truncf %55 : vector<256x64xf32> to vector<256x64xbf16>
      %c1_50 = arith.constant 1 : index
      %c0_51 = arith.constant 0 : index
      %c0_52 = arith.constant 0 : index
      %57 = vector.load %arg6[%c1_50, %c0_51, %c0_52] : memref<3x64x128xbf16, #tpu.memory_space<vmem>>, vector<1x64x128xbf16>
      %58 = vector.shape_cast %57 : vector<1x64x128xbf16> to vector<64x128xbf16>
      %cst_53 = arith.constant dense<0.000000e+00> : vector<256x128xf32>
      %59 = tpu.matmul %56, %58, %cst_53 {dimension_numbers = #tpu.dot_dimension_numbers<[1], [0], [0], [1], [0, 0, 1, 1], [], []>} : vector<256x64xbf16>, vector<64x128xbf16>, vector<256x128xf32> -> vector<256x128xf32>
      %60 = arith.addf %48, %59 : vector<256x128xf32>
      %c2 = arith.constant 2 : index
      %c0_54 = arith.constant 0 : index
      %c0_55 = arith.constant 0 : index
      %61 = vector.load %arg11[%c2, %c0_54, %c0_55] : memref<3x256x64xf32, #tpu.memory_space<vmem>>, vector<1x256x64xf32>
      %62 = vector.shape_cast %61 : vector<1x256x64xf32> to vector<256x64xf32>
      %c2_56 = arith.constant 2 : index
      %c0_57 = arith.constant 0 : index
      %c0_58 = arith.constant 0 : index
      %63 = vector.load %arg10[%c2_56, %c0_57, %c0_58] : memref<3x256x1xf32, #tpu.memory_space<vmem>>, vector<1x256x1xf32>
      %64 = vector.shape_cast %63 : vector<1x256x1xf32> to vector<256x1xf32>
      %65 = tpu.reciprocal %64 {approx = true} : vector<256x1xf32> -> vector<256x1xf32>
      %66 = vector.broadcast %65 : vector<256x1xf32> to vector<256x64xf32>
      %67 = arith.mulf %62, %66 : vector<256x64xf32>
      %68 = arith.truncf %67 : vector<256x64xf32> to vector<256x64xbf16>
      %c2_59 = arith.constant 2 : index
      %c0_60 = arith.constant 0 : index
      %c0_61 = arith.constant 0 : index
      %69 = vector.load %arg6[%c2_59, %c0_60, %c0_61] : memref<3x64x128xbf16, #tpu.memory_space<vmem>>, vector<1x64x128xbf16>
      %70 = vector.shape_cast %69 : vector<1x64x128xbf16> to vector<64x128xbf16>
      %cst_62 = arith.constant dense<0.000000e+00> : vector<256x128xf32>
      %71 = tpu.matmul %68, %70, %cst_62 {dimension_numbers = #tpu.dot_dimension_numbers<[1], [0], [0], [1], [0, 0, 1, 1], [], []>} : vector<256x64xbf16>, vector<64x128xbf16>, vector<256x128xf32> -> vector<256x128xf32>
      %72 = arith.addf %60, %71 : vector<256x128xf32>
      %c0_63 = arith.constant 0 : index
      %c0_64 = arith.constant 0 : index
      %73 = vector.load %arg7[%c0_63, %c0_64] : memref<1x128xf32, #tpu.memory_space<vmem>>, vector<1x128xf32>
      %74 = vector.broadcast %73 : vector<1x128xf32> to vector<256x128xf32>
      %75 = arith.addf %72, %74 : vector<256x128xf32>
      %c0_65 = arith.constant 0 : index
      %c0_66 = arith.constant 0 : index
      %c0_67 = arith.constant 0 : index
      %76 = vector.load %arg8[%c0_65, %c0_66, %c0_67] : memref<1x256x128xf32, #tpu.memory_space<vmem>>, vector<1x256x128xf32>
      %77 = vector.shape_cast %76 : vector<1x256x128xf32> to vector<256x128xf32>
      %78 = vector.shape_cast %75 : vector<256x128xf32> to vector<1x256x128xf32>
      tpu.vector_store %arg8[%c0_65, %c0_66, %c0_67], %78 {strides = array<i32>} : memref<1x256x128xf32, #tpu.memory_space<vmem>>, vector<1x256x128xf32>,
    } else {
    }
    return
  }
  func.func @transform_0(%arg0: i32, %arg1: i32, %arg2: i32) -> (i32, i32, i32, i32) {
    %c0_i32 = arith.constant 0 : i32
    %c0_i32_0 = arith.constant 0 : i32
    %c0_i32_1 = arith.constant 0 : i32
    return %arg0, %c0_i32, %arg1, %c0_i32_0 : i32, i32, i32, i32
  }
  func.func @transform_1(%arg0: i32, %arg1: i32, %arg2: i32) -> (i32, i32, i32, i32) {
    %c0_i32 = arith.constant 0 : i32
    %c0_i32_0 = arith.constant 0 : i32
    %c0_i32_1 = arith.constant 0 : i32
    return %arg0, %c0_i32, %arg2, %c0_i32_0 : i32, i32, i32, i32
  }
  func.func @transform_2(%arg0: i32, %arg1: i32, %arg2: i32) -> (i32, i32, i32, i32) {
    %c0_i32 = arith.constant 0 : i32
    %c0_i32_0 = arith.constant 0 : i32
    %c0_i32_1 = arith.constant 0 : i32
    return %arg0, %c0_i32, %arg2, %c0_i32_0 : i32, i32, i32, i32
  }
  func.func @transform_3(%arg0: i32, %arg1: i32, %arg2: i32) -> (i32, i32, i32) {
    %c0_i32 = arith.constant 0 : i32
    %c0_i32_0 = arith.constant 0 : i32
    %c0_i32_1 = arith.constant 0 : i32
    %c0_i32_2 = arith.constant 0 : i32
    return %c0_i32, %c0_i32_0, %c0_i32_1 : i32, i32, i32
  }
  func.func @transform_4(%arg0: i32, %arg1: i32, %arg2: i32) -> (i32, i32) {
    %c0_i32 = arith.constant 0 : i32
    %c0_i32_0 = arith.constant 0 : i32
    %c0_i32_1 = arith.constant 0 : i32
    return %c0_i32, %c0_i32_0 : i32, i32
  }
  func.func @transform_5(%arg0: i32, %arg1: i32, %arg2: i32) -> (i32, i32, i32) {
    %c0_i32 = arith.constant 0 : i32
    %c0_i32_0 = arith.constant 0 : i32
    return %arg0, %arg1, %c0_i32 : i32, i32, i32
  }
}

</mosaic_0001>

<llo_original>
// kernel: tpu_custom_call.1
$region0: #{tpu_custom_call.1}
  #allocation0 [shape = 'u32[]', space=smem, size = 0x4, offset = 0x4, fixed_abs, tag = 'smem constant byte address 0x4 - core index']
  #allocation1 [shape = 'u32[72,128]{1,0:T(1,128)}', space=vmem, size = 0x9000, scoped, tag = 'internal scratch']
  #allocation2 [shape = 'f32[3,256,1]{2,1,0:T(8,128)}', space=vmem, size = 0x60000, scoped, tag = 'scratch operand']
  #allocation3 [shape = 'f32[3,256,1]{2,1,0:T(8,128)}', space=vmem, size = 0x60000, scoped, tag = 'scratch operand']
  #allocation4 [shape = 'f32[3,256,64]{2,1,0:T(8,128)}', space=vmem, size = 0x60000, scoped, tag = 'scratch operand']
  %s0 = inlined_call_operand.vmem [shape: bf16[2,3,512,64], index: 0, kind: input, shape index: {}]
  %s1 = inlined_call_operand.vmem [shape: bf16[2,3,512,64], index: 1, kind: input, shape index: {}]
  %s2 = inlined_call_operand.vmem [shape: bf16[2,3,512,64], index: 2, kind: input, shape index: {}]
  %s3 = inlined_call_operand.vmem [shape: bf16[3,64,128], index: 3, kind: input, shape index: {}]
  %s4 = inlined_call_operand.vmem [shape: f32[1,128], index: 4, kind: input, shape index: {}]
  %s5 = inlined_call_operand.hbm [shape: f32[2,512,128], index: 5, kind: output, shape index: {}]
  %s6 = sld [smem:[#allocation0]]
  $region184: #{tpu_custom_call.1} parent=0
    _
  %s8 = ssub.s32 1, %s6
  %s9 = scalar_select 0, %s8, %s6
  $region1: #{tpu_custom_call.1} parent=0
    #allocation5 [shape = 'u8[393216]{0}', space=vmem, size = 0x60000, scoped, tag = 'input window, operand 0']
    #allocation6 [shape = 'u8[393216]{0}', space=vmem, size = 0x60000, scoped, tag = 'input window, operand 1']
    #allocation7 [shape = 'u8[393216]{0}', space=vmem, size = 0x60000, scoped, tag = 'input window, operand 2']
    #allocation8 [shape = 'u8[262144]{0}', space=vmem, size = 0x40000, scoped, tag = 'output window, operand 0']
    #allocation9 [shape = 's32[2]{0}', space=sflag, size = 0x8, scoped, tag = 'scoped memory for tpu_custom_call.1']
    %10 = vsyncpa [#allocation9], 0
    %s11 = scalar_lea.sflag [#allocation9], 1
    %12 = vsyncpa %s11, 0
    loop: start=0, step=1, limit=10
    $region2: #{tpu_custom_call.1} parent=1 // loop_pre_header
      _
    $region3: #{tpu_custom_call.1} parent=1 // loop_header
      %s14 = sphi 0, %s18
      %p15 = scmp.ge.s32.totalorder %s14, 10
      %s21 = sphi 0, %s40
      %s22 = sphi 0, %s36
      %s23 = sphi 0, %s32
      %s24 = sphi 0, %s21
      %s25 = sphi 0, %s22
      %s26 = sphi 0, %s23
      %s27 = sphi 0, %s24
      %s28 = sphi 0, %s25
      %s29 = sphi 0, %s26
      %s45 = sphi 0, %s47
      %s48 = sphi 0, %s45
      %s49 = sphi 0, %s48
      %s65 = sphi 0, %s49
      %s73 = sphi 0, %s75
      %s76 = sphi 0, %s73
      %s77 = sphi 0, %s76
      %s93 = sphi 0, %s77
      %s101 = sphi 0, %s103
      %s104 = sphi 0, %s101
      %s105 = sphi 0, %s104
      %s121 = sphi 0, %s105
      %s125 = sphi 0, %s125
      %s127 = sphi 0, %s125
      %s128 = sphi 0, %s127
      %s142 = sphi 0, %s128
      %s146 = sphi 0, %s146
      %s148 = sphi 0, %s146
      %s149 = sphi 0, %s148
      %s163 = sphi 0, %s149
      %s171 = sphi 0, %s173
      %s174 = sphi 0, %s171
      %s175 = sphi 0, %s174
      %s191 = sphi 0, %s175
    $region4: #{tpu_custom_call.1} parent=1 // loop_header_branch
      %17 = sbr.rel (%p15) target = $region8
    $region5: #{tpu_custom_call.1} parent=1 // loop_body
      %s19 = ssub.s32 %s14, 1
      %s20 = ssub.s32 %s14, 2
      %s30 = sadd.s32 1, %s23
      %p31 = scmp.ge.s32.totalorder %s30, 2
      %s32 = scalar_select %p31, 0, %s30
      %s33 = sadd.s32 1, %s22
      %s34 = scalar_select %p31, %s33, %s22
      %p35 = scmp.ge.s32.totalorder %s34, 2
      %s36 = scalar_select %p35, 0, %s34
      %s37 = sadd.s32 1, %s21
      %s38 = scalar_select %p35, %s37, %s21
      %p39 = scmp.ge.s32.totalorder %s38, 2
      %s40 = scalar_select %p39, 0, %s38
      %s41 = ssub.s32 %s21, %s40
      %s42 = ssub.s32 %s22, %s36
      %s43 = sor.u32 %s41, %s42
      %p44 = scmp.eq.s32.totalorder %s43, 0
      %s46 = sadd.s32 %s45, 1
      %s47 = scalar_select %p44, %s45, %s46
      %p50 = pneg %p44
      %p51 = scmp.eq.s32.totalorder %s14, 7
      %p52 = por %p50, %p51
      %p53 = scmp.ne.s32.totalorder %s45, %s48
      %p54 = scmp.eq.s32.totalorder %s14, 0
      %p55 = por %p53, %p54
      %p56 = scmp.ne.s32.totalorder %s45, %s48
      %p57 = scmp.eq.s32.totalorder %s19, 7
      %p58 = por %p56, %p57
      %p59 = scmp.ne.s32.totalorder %s48, %s49
      %p60 = scmp.eq.s32.totalorder %s19, 0
      %p61 = por %p59, %p60
      %p62 = scmp.ne.s32.totalorder %s48, %s49
      %p63 = scmp.eq.s32.totalorder %s20, 7
      %p64 = por %p62, %p63
      %p66 = scmp.ne.s32.totalorder %s49, %s65
      %p67 = scmp.eq.s32.totalorder %s20, 0
      %p68 = por %p66, %p67
      %s69 = ssub.s32 %s21, %s40
      %s70 = ssub.s32 %s23, %s32
      %s71 = sor.u32 %s69, %s70
      %p72 = scmp.eq.s32.totalorder %s71, 0
      %s74 = sadd.s32 %s73, 1
      %s75 = scalar_select %p72, %s73, %s74
      %p78 = pneg %p72
      %p79 = scmp.eq.s32.totalorder %s14, 7
      %p80 = por %p78, %p79
      %p81 = scmp.ne.s32.totalorder %s73, %s76
      %p82 = scmp.eq.s32.totalorder %s14, 0
      %p83 = por %p81, %p82
      %p84 = scmp.ne.s32.totalorder %s73, %s76
      %p85 = scmp.eq.s32.totalorder %s19, 7
      %p86 = por %p84, %p85
      %p87 = scmp.ne.s32.totalorder %s76, %s77
      %p88 = scmp.eq.s32.totalorder %s19, 0
      %p89 = por %p87, %p88
      %p90 = scmp.ne.s32.totalorder %s76, %s77
      %p91 = scmp.eq.s32.totalorder %s20, 7
      %p92 = por %p90, %p91
      %p94 = scmp.ne.s32.totalorder %s77, %s93
      %p95 = scmp.eq.s32.totalorder %s20, 0
      %p96 = por %p94, %p95
      %s97 = ssub.s32 %s21, %s40
      %s98 = ssub.s32 %s23, %s32
      %s99 = sor.u32 %s97, %s98
      %p100 = scmp.eq.s32.totalorder %s99, 0
      %s102 = sadd.s32 %s101, 1
      %s103 = scalar_select %p100, %s101, %s102
      %p106 = pneg %p100
      %p107 = scmp.eq.s32.totalorder %s14, 7
      %p108 = por %p106, %p107
      %p109 = scmp.ne.s32.totalorder %s101, %s104
      %p110 = scmp.eq.s32.totalorder %s14, 0
      %p111 = por %p109, %p110
      %p112 = scmp.ne.s32.totalorder %s101, %s104
      %p113 = scmp.eq.s32.totalorder %s19, 7
      %p114 = por %p112, %p113
      %p115 = scmp.ne.s32.totalorder %s104, %s105
      %p116 = scmp.eq.s32.totalorder %s19, 0
      %p117 = por %p115, %p116
      %p118 = scmp.ne.s32.totalorder %s104, %s105
      %p119 = scmp.eq.s32.totalorder %s20, 7
      %p120 = por %p118, %p119
      %p122 = scmp.ne.s32.totalorder %s105, %s121
      %p123 = scmp.eq.s32.totalorder %s20, 0
      %p124 = por %p122, %p123
      %s126 = sadd.s32 %s125, 1
      %p129 = scmp.eq.s32.totalorder %s14, 7
      %p130 = scmp.ne.s32.totalorder %s125, %s127
      %p131 = scmp.eq.s32.totalorder %s14, 0
      %p132 = por %p130, %p131
      %p133 = scmp.ne.s32.totalorder %s125, %s127
      %p134 = scmp.eq.s32.totalorder %s19, 7
      %p135 = por %p133, %p134
      %p136 = scmp.ne.s32.totalorder %s127, %s128
      %p137 = scmp.eq.s32.totalorder %s19, 0
      %p138 = por %p136, %p137
      %p139 = scmp.ne.s32.totalorder %s127, %s128
      %p140 = scmp.eq.s32.totalorder %s20, 7
      %p141 = por %p139, %p140
      %p143 = scmp.ne.s32.totalorder %s128, %s142
      %p144 = scmp.eq.s32.totalorder %s20, 0
      %p145 = por %p143, %p144
      %s147 = sadd.s32 %s146, 1
      %p150 = scmp.eq.s32.totalorder %s14, 7
      %p151 = scmp.ne.s32.totalorder %s146, %s148
      %p152 = scmp.eq.s32.totalorder %s14, 0
      %p153 = por %p151, %p152
      %p154 = scmp.ne.s32.totalorder %s146, %s148
      %p155 = scmp.eq.s32.totalorder %s19, 7
      %p156 = por %p154, %p155
      %p157 = scmp.ne.s32.totalorder %s148, %s149
      %p158 = scmp.eq.s32.totalorder %s19, 0
      %p159 = por %p157, %p158
      %p160 = scmp.ne.s32.totalorder %s148, %s149
      %p161 = scmp.eq.s32.totalorder %s20, 7
      %p162 = por %p160, %p161
      %p164 = scmp.ne.s32.totalorder %s149, %s163
      %p165 = scmp.eq.s32.totalorder %s20, 0
      %p166 = por %p164, %p165
      %s167 = ssub.s32 %s21, %s40
      %s168 = ssub.s32 %s22, %s36
      %s169 = sor.u32 %s167, %s168
      %p170 = scmp.eq.s32.totalorder %s169, 0
      %s172 = sadd.s32 %s171, 1
      %s173 = scalar_select %p170, %s171, %s172
      %p176 = pneg %p170
      %p177 = scmp.eq.s32.totalorder %s14, 7
      %p178 = por %p176, %p177
      %p179 = scmp.ne.s32.totalorder %s171, %s174
      %p180 = scmp.eq.s32.totalorder %s14, 0
      %p181 = por %p179, %p180
      %p182 = scmp.ne.s32.totalorder %s171, %s174
      %p183 = scmp.eq.s32.totalorder %s19, 7
      %p184 = por %p182, %p183
      %p185 = scmp.ne.s32.totalorder %s174, %s175
      %p186 = scmp.eq.s32.totalorder %s19, 0
      %p187 = por %p185, %p186
      %p188 = scmp.ne.s32.totalorder %s174, %s175
      %p189 = scmp.eq.s32.totalorder %s20, 7
      %p190 = por %p188, %p189
      %p192 = scmp.ne.s32.totalorder %s175, %s191
      %p193 = scmp.eq.s32.totalorder %s20, 0
      %p194 = por %p192, %p193
      %p195 = scmp.le.s32.totalorder 1, %s14
      %p196 = scmp.lt.s32.totalorder %s14, 9
      %p197 = pnand %p195, %p196
      %p198 = pneg %p197
      // Predicated region
      $region9: #{tpu_custom_call.1} parent=5 // pred_check
        _
      $region10: #{tpu_custom_call.1} parent=5 // pred_check_branch
        %200 = sbr.rel (%p197) target = $region12
      $region11: #{tpu_custom_call.1} parent=5 // pred_region
        %s201 = ssub.s32 %s14, 1
        // Predicated region
        $region13: #{tpu_custom_call.1} parent=11 // pred_check
          %p202 = pneg %p138
        $region14: #{tpu_custom_call.1} parent=11 // pred_check_branch
          %204 = sbr.rel (%p202) target = $region16
        $region15: #{tpu_custom_call.1} parent=11 // pred_region
          _
        $region16: #{tpu_custom_call.1} parent=11 // pred_fallthru
          _
        // Predicated region
        $region17: #{tpu_custom_call.1} parent=11 // pred_check
          %p205 = pneg %p159
        $region18: #{tpu_custom_call.1} parent=11 // pred_check_branch
          %207 = sbr.rel (%p205) target = $region20
        $region19: #{tpu_custom_call.1} parent=11 // pred_region
          _
        $region20: #{tpu_custom_call.1} parent=11 // pred_fallthru
          _
      $region12: #{tpu_custom_call.1} parent=5 // pred_fallthru
        _
      %p208 = scmp.lt.s32.totalorder %s14, 8
      // Predicated region
      $region21: #{tpu_custom_call.1} parent=5 // pred_check
        %p209 = pneg %p208
      $region22: #{tpu_custom_call.1} parent=5 // pred_check_branch
        %211 = sbr.rel (%p209) target = $region24
      $region23: #{tpu_custom_call.1} parent=5 // pred_region
        // Predicated region
        $region25: #{tpu_custom_call.1} parent=23 // pred_check
          %p212 = pneg %p55
        $region26: #{tpu_custom_call.1} parent=23 // pred_check_branch
          %214 = sbr.rel (%p212) target = $region28
        $region27: #{tpu_custom_call.1} parent=23 // pred_region
          %s215 = sand.u32 %s45, 1
          %s216 = sand.u32 %s45, 1
          %s217 = smul.addr %s216, 384
          %s218 = scalar_lea.vmem [#allocation5], %s217
          %s219 = smul.u32 32, %s22
          %s220 = smul.addr %s21, 192
          %s221 = sadd.s32 %s219, %s220
          %s222 = smul.addr %s221, 4
          %s223 = scalar_lea.vmem %s0, %s222
          // Predicated region
          $region29: #{tpu_custom_call.1} parent=27 // pred_check
            _
          $region30: #{tpu_custom_call.1} parent=27 // pred_check_branch
            %225 = sbr.rel (0) target = $region32
          $region31: #{tpu_custom_call.1} parent=27 // pred_region
            // Predicated region
            $region33: #{tpu_custom_call.1} parent=31 // pred_check
              _
            $region34: #{tpu_custom_call.1} parent=31 // pred_check_branch
              %227 = sbr.rel target = $region36
            $region35: #{tpu_custom_call.1} parent=31 // pred_region
              // Predicated region
              $region48: #{tpu_custom_call.1} parent=35 // pred_check
                _
              $region49: #{tpu_custom_call.1} parent=35 // pred_check_branch
                %433 = sbr.rel (0) target = $region51
              $region50: #{tpu_custom_call.1} parent=35 // pred_region
                loop: start=0, step=1, limit=1
                $region52: #{tpu_custom_call.1} parent=50 // loop_pre_header
                  _
                $region53: #{tpu_custom_call.1} parent=50 // loop_header
                  %s435 = sphi 0, %s439
                  %p436 = scmp.ge.s32.totalorder %s435, 1
                  %s440 = sphi %s223, %s223
                  %s441 = sphi %s218, %s218
                $region54: #{tpu_custom_call.1} parent=50 // loop_header_branch
                  %438 = sbr.rel (%p436) target = $region58
                $region55: #{tpu_custom_call.1} parent=50 // loop_body
                  _
                $region56: #{tpu_custom_call.1} parent=50 // loop_footer
                  %s439 = sadd.s32 1, %s435
                $region57: #{tpu_custom_call.1} parent=50 // loop_footer_branch
                  %434 = sbr.rel target = $region53
                $region58: #{tpu_custom_call.1} parent=50 // loop_exit
                  _
                %s443 = ssub.s32 16, 1
                loop: start=0, step=1, limit=1
                $region59: #{tpu_custom_call.1} parent=50 // loop_pre_header
                  _
                $region60: #{tpu_custom_call.1} parent=50 // loop_header
                  %s445 = sphi 0, %s449
                  %p446 = scmp.ge.s32.totalorder %s445, 1
                  %s450 = sphi %s223, %s223
                  %s451 = sphi %s218, %s218
                $region61: #{tpu_custom_call.1} parent=50 // loop_header_branch
                  %448 = sbr.rel (%p446) target = $region65
                $region62: #{tpu_custom_call.1} parent=50 // loop_body
                  %v452 = vld [vmem:[%s450] sm:%s443]
                  %453 = vst [vmem:[%s451] sm:%s443] %v452
                  %v454 = vld [vmem:[%s450 + $0x4] sm:%s443]
                  %455 = vst [vmem:[%s451 + $0x4] sm:%s443] %v454
                  %v456 = vld [vmem:[%s450 + $0x8] sm:%s443]
                  %457 = vst [vmem:[%s451 + $0x8] sm:%s443] %v456
                  %v458 = vld [vmem:[%s450 + $0xc] sm:%s443]
                  %459 = vst [vmem:[%s451 + $0xc] sm:%s443] %v458
                  %v460 = vld [vmem:[%s450 + $0x10] sm:%s443]
                  %461 = vst [vmem:[%s451 + $0x10] sm:%s443] %v460
                  %v462 = vld [vmem:[%s450 + $0x14] sm:%s443]
                  %463 = vst [vmem:[%s451 + $0x14] sm:%s443] %v462
                  %v464 = vld [vmem:[%s450 + $0x18] sm:%s443]
                  %465 = vst [vmem:[%s451 + $0x18] sm:%s443] %v464
                  %v466 = vld [vmem:[%s450 + $0x1c] sm:%s443]
                  %467 = vst [vmem:[%s451 + $0x1c] sm:%s443] %v466
                  %v468 = vld [vmem:[%s450 + $0x20] sm:%s443]
                  %469 = vst [vmem:[%s451 + $0x20] sm:%s443] %v468
                  %v470 = vld [vmem:[%s450 + $0x24] sm:%s443]
                  %471 = vst [vmem:[%s451 + $0x24] sm:%s443] %v470
                  %v472 = vld [vmem:[%s450 + $0x28] sm:%s443]
                  %473 = vst [vmem:[%s451 + $0x28] sm:%s443] %v472
                  %v474 = vld [vmem:[%s450 + $0x2c] sm:%s443]
                  %475 = vst [vmem:[%s451 + $0x2c] sm:%s443] %v474
                  %v476 = vld [vmem:[%s450 + $0x30] sm:%s443]
                  %477 = vst [vmem:[%s451 + $0x30] sm:%s443] %v476
                  %v478 = vld [vmem:[%s450 + $0x34] sm:%s443]
                  %479 = vst [vmem:[%s451 + $0x34] sm:%s443] %v478
                  %v480 = vld [vmem:[%s450 + $0x38] sm:%s443]
                  %481 = vst [vmem:[%s451 + $0x38] sm:%s443] %v480
                  %v482 = vld [vmem:[%s450 + $0x3c] sm:%s443]
                  %483 = vst [vmem:[%s451 + $0x3c] sm:%s443] %v482
                  %v484 = vld [vmem:[%s450 + $0x40] sm:%s443]
                  %485 = vst [vmem:[%s451 + $0x40] sm:%s443] %v484
                  %v486 = vld [vmem:[%s450 + $0x44] sm:%s443]
                  %487 = vst [vmem:[%s451 + $0x44] sm:%s443] %v486
                  %v488 = vld [vmem:[%s450 + $0x48] sm:%s443]
                  %489 = vst [vmem:[%s451 + $0x48] sm:%s443] %v488
                  %v490 = vld [vmem:[%s450 + $0x4c] sm:%s443]
                  %491 = vst [vmem:[%s451 + $0x4c] sm:%s443] %v490
                  %v492 = vld [vmem:[%s450 + $0x50] sm:%s443]
                  %493 = vst [vmem:[%s451 + $0x50] sm:%s443] %v492
                  %v494 = vld [vmem:[%s450 + $0x54] sm:%s443]
                  %495 = vst [vmem:[%s451 + $0x54] sm:%s443] %v494
                  %v496 = vld [vmem:[%s450 + $0x58] sm:%s443]
                  %497 = vst [vmem:[%s451 + $0x58] sm:%s443] %v496
                  %v498 = vld [vmem:[%s450 + $0x5c] sm:%s443]
                  %499 = vst [vmem:[%s451 + $0x5c] sm:%s443] %v498
                  %v500 = vld [vmem:[%s450 + $0x60] sm:%s443]
                  %501 = vst [vmem:[%s451 + $0x60] sm:%s443] %v500
                  %v502 = vld [vmem:[%s450 + $0x64] sm:%s443]
                  %503 = vst [vmem:[%s451 + $0x64] sm:%s443] %v502
                  %v504 = vld [vmem:[%s450 + $0x68] sm:%s443]
                  %505 = vst [vmem:[%s451 + $0x68] sm:%s443] %v504
                  %v506 = vld [vmem:[%s450 + $0x6c] sm:%s443]
                  %507 = vst [vmem:[%s451 + $0x6c] sm:%s443] %v506
                  %v508 = vld [vmem:[%s450 + $0x70] sm:%s443]
                  %509 = vst [vmem:[%s451 + $0x70] sm:%s443] %v508
                  %v510 = vld [vmem:[%s450 + $0x74] sm:%s443]
                  %511 = vst [vmem:[%s451 + $0x74] sm:%s443] %v510
                  %v512 = vld [vmem:[%s450 + $0x78] sm:%s443]
                  %513 = vst [vmem:[%s451 + $0x78] sm:%s443] %v512
                  %v514 = vld [vmem:[%s450 + $0x7c] sm:%s443]
                  %515 = vst [vmem:[%s451 + $0x7c] sm:%s443] %v514
                  %v516 = vld [vmem:[%s450 + $0x100] sm:%s443]
                  %517 = vst [vmem:[%s451 + $0x80] sm:%s443] %v516
                  %v518 = vld [vmem:[%s450 + $0x104] sm:%s443]
                  %519 = vst [vmem:[%s451 + $0x84] sm:%s443] %v518
                  %v520 = vld [vmem:[%s450 + $0x108] sm:%s443]
                  %521 = vst [vmem:[%s451 + $0x88] sm:%s443] %v520
                  %v522 = vld [vmem:[%s450 + $0x10c] sm:%s443]
                  %523 = vst [vmem:[%s451 + $0x8c] sm:%s443] %v522
                  %v524 = vld [vmem:[%s450 + $0x110] sm:%s443]
                  %525 = vst [vmem:[%s451 + $0x90] sm:%s443] %v524
                  %v526 = vld [vmem:[%s450 + $0x114] sm:%s443]
                  %527 = vst [vmem:[%s451 + $0x94] sm:%s443] %v526
                  %v528 = vld [vmem:[%s450 + $0x118] sm:%s443]
                  %529 = vst [vmem:[%s451 + $0x98] sm:%s443] %v528
                  %v530 = vld [vmem:[%s450 + $0x11c] sm:%s443]
                  %531 = vst [vmem:[%s451 + $0x9c] sm:%s443] %v530
                  %v532 = vld [vmem:[%s450 + $0x120] sm:%s443]
                  %533 = vst [vmem:[%s451 + $0xa0] sm:%s443] %v532
                  %v534 = vld [vmem:[%s450 + $0x124] sm:%s443]
                  %535 = vst [vmem:[%s451 + $0xa4] sm:%s443] %v534
                  %v536 = vld [vmem:[%s450 + $0x128] sm:%s443]
                  %537 = vst [vmem:[%s451 + $0xa8] sm:%s443] %v536
                  %v538 = vld [vmem:[%s450 + $0x12c] sm:%s443]
                  %539 = vst [vmem:[%s451 + $0xac] sm:%s443] %v538
                  %v540 = vld [vmem:[%s450 + $0x130] sm:%s443]
                  %541 = vst [vmem:[%s451 + $0xb0] sm:%s443] %v540
                  %v542 = vld [vmem:[%s450 + $0x134] sm:%s443]
                  %543 = vst [vmem:[%s451 + $0xb4] sm:%s443] %v542
                  %v544 = vld [vmem:[%s450 + $0x138] sm:%s443]
                  %545 = vst [vmem:[%s451 + $0xb8] sm:%s443] %v544
                  %v546 = vld [vmem:[%s450 + $0x13c] sm:%s443]
                  %547 = vst [vmem:[%s451 + $0xbc] sm:%s443] %v546
                  %v548 = vld [vmem:[%s450 + $0x140] sm:%s443]
                  %549 = vst [vmem:[%s451 + $0xc0] sm:%s443] %v548
                  %v550 = vld [vmem:[%s450 + $0x144] sm:%s443]
                  %551 = vst [vmem:[%s451 + $0xc4] sm:%s443] %v550
                  %v552 = vld [vmem:[%s450 + $0x148] sm:%s443]
                  %553 = vst [vmem:[%s451 + $0xc8] sm:%s443] %v552
                  %v554 = vld [vmem:[%s450 + $0x14c] sm:%s443]
                  %555 = vst [vmem:[%s451 + $0xcc] sm:%s443] %v554
                  %v556 = vld [vmem:[%s450 + $0x150] sm:%s443]
                  %557 = vst [vmem:[%s451 + $0xd0] sm:%s443] %v556
                  %v558 = vld [vmem:[%s450 + $0x154] sm:%s443]
                  %559 = vst [vmem:[%s451 + $0xd4] sm:%s443] %v558
                  %v560 = vld [vmem:[%s450 + $0x158] sm:%s443]
                  %561 = vst [vmem:[%s451 + $0xd8] sm:%s443] %v560
                  %v562 = vld [vmem:[%s450 + $0x15c] sm:%s443]
                  %563 = vst [vmem:[%s451 + $0xdc] sm:%s443] %v562
                  %v564 = vld [vmem:[%s450 + $0x160] sm:%s443]
                  %565 = vst [vmem:[%s451 + $0xe0] sm:%s443] %v564
                  %v566 = vld [vmem:[%s450 + $0x164] sm:%s443]
                  %567 = vst [vmem:[%s451 + $0xe4] sm:%s443] %v566
                  %v568 = vld [vmem:[%s450 + $0x168] sm:%s443]
                  %569 = vst [vmem:[%s451 + $0xe8] sm:%s443] %v568
                  %v570 = vld [vmem:[%s450 + $0x16c] sm:%s443]
                  %571 = vst [vmem:[%s451 + $0xec] sm:%s443] %v570
                  %v572 = vld [vmem:[%s450 + $0x170] sm:%s443]
                  %573 = vst [vmem:[%s451 + $0xf0] sm:%s443] %v572
                  %v574 = vld [vmem:[%s450 + $0x174] sm:%s443]
                  %575 = vst [vmem:[%s451 + $0xf4] sm:%s443] %v574
                  %v576 = vld [vmem:[%s450 + $0x178] sm:%s443]
                  %577 = vst [vmem:[%s451 + $0xf8] sm:%s443] %v576
                  %v578 = vld [vmem:[%s450 + $0x17c] sm:%s443]
                  %579 = vst [vmem:[%s451 + $0xfc] sm:%s443] %v578
                  %v580 = vld [vmem:[%s450 + $0x200] sm:%s443]
                  %581 = vst [vmem:[%s451 + $0x100] sm:%s443] %v580
                  %v582 = vld [vmem:[%s450 + $0x204] sm:%s443]
                  %583 = vst [vmem:[%s451 + $0x104] sm:%s443] %v582
                  %v584 = vld [vmem:[%s450 + $0x208] sm:%s443]
                  %585 = vst [vmem:[%s451 + $0x108] sm:%s443] %v584
                  %v586 = vld [vmem:[%s450 + $0x20c] sm:%s443]
                  %587 = vst [vmem:[%s451 + $0x10c] sm:%s443] %v586
                  %v588 = vld [vmem:[%s450 + $0x210] sm:%s443]
                  %589 = vst [vmem:[%s451 + $0x110] sm:%s443] %v588
                  %v590 = vld [vmem:[%s450 + $0x214] sm:%s443]
                  %591 = vst [vmem:[%s451 + $0x114] sm:%s443] %v590
                  %v592 = vld [vmem:[%s450 + $0x218] sm:%s443]
                  %593 = vst [vmem:[%s451 + $0x118] sm:%s443] %v592
                  %v594 = vld [vmem:[%s450 + $0x21c] sm:%s443]
                  %595 = vst [vmem:[%s451 + $0x11c] sm:%s443] %v594
                  %v596 = vld [vmem:[%s450 + $0x220] sm:%s443]
                  %597 = vst [vmem:[%s451 + $0x120] sm:%s443] %v596
                  %v598 = vld [vmem:[%s450 + $0x224] sm:%s443]
                  %599 = vst [vmem:[%s451 + $0x124] sm:%s443] %v598
                  %v600 = vld [vmem:[%s450 + $0x228] sm:%s443]
                  %601 = vst [vmem:[%s451 + $0x128] sm:%s443] %v600
                  %v602 = vld [vmem:[%s450 + $0x22c] sm:%s443]
                  %603 = vst [vmem:[%s451 + $0x12c] sm:%s443] %v602
                  %v604 = vld [vmem:[%s450 + $0x230] sm:%s443]
                  %605 = vst [vmem:[%s451 + $0x130] sm:%s443] %v604
                  %v606 = vld [vmem:[%s450 + $0x234] sm:%s443]
                  %607 = vst [vmem:[%s451 + $0x134] sm:%s443] %v606
                  %v608 = vld [vmem:[%s450 + $0x238] sm:%s443]
                  %609 = vst [vmem:[%s451 + $0x138] sm:%s443] %v608
                  %v610 = vld [vmem:[%s450 + $0x23c] sm:%s443]
                  %611 = vst [vmem:[%s451 + $0x13c] sm:%s443] %v610
                  %v612 = vld [vmem:[%s450 + $0x240] sm:%s443]
                  %613 = vst [vmem:[%s451 + $0x140] sm:%s443] %v612
                  %v614 = vld [vmem:[%s450 + $0x244] sm:%s443]
                  %615 = vst [vmem:[%s451 + $0x144] sm:%s443] %v614
                  %v616 = vld [vmem:[%s450 + $0x248] sm:%s443]
                  %617 = vst [vmem:[%s451 + $0x148] sm:%s443] %v616
                  %v618 = vld [vmem:[%s450 + $0x24c] sm:%s443]
                  %619 = vst [vmem:[%s451 + $0x14c] sm:%s443] %v618
                  %v620 = vld [vmem:[%s450 + $0x250] sm:%s443]
                  %621 = vst [vmem:[%s451 + $0x150] sm:%s443] %v620
                  %v622 = vld [vmem:[%s450 + $0x254] sm:%s443]
                  %623 = vst [vmem:[%s451 + $0x154] sm:%s443] %v622
                  %v624 = vld [vmem:[%s450 + $0x258] sm:%s443]
                  %625 = vst [vmem:[%s451 + $0x158] sm:%s443] %v624
                  %v626 = vld [vmem:[%s450 + $0x25c] sm:%s443]
                  %627 = vst [vmem:[%s451 + $0x15c] sm:%s443] %v626
                  %v628 = vld [vmem:[%s450 + $0x260] sm:%s443]
                  %629 = vst [vmem:[%s451 + $0x160] sm:%s443] %v628
                  %v630 = vld [vmem:[%s450 + $0x264] sm:%s443]
                  %631 = vst [vmem:[%s451 + $0x164] sm:%s443] %v630
                  %v632 = vld [vmem:[%s450 + $0x268] sm:%s443]
                  %633 = vst [vmem:[%s451 + $0x168] sm:%s443] %v632
                  %v634 = vld [vmem:[%s450 + $0x26c] sm:%s443]
                  %635 = vst [vmem:[%s451 + $0x16c] sm:%s443] %v634
                  %v636 = vld [vmem:[%s450 + $0x270] sm:%s443]
                  %637 = vst [vmem:[%s451 + $0x170] sm:%s443] %v636
                  %v638 = vld [vmem:[%s450 + $0x274] sm:%s443]
                  %639 = vst [vmem:[%s451 + $0x174] sm:%s443] %v638
                  %v640 = vld [vmem:[%s450 + $0x278] sm:%s443]
                  %641 = vst [vmem:[%s451 + $0x178] sm:%s443] %v640
                  %v642 = vld [vmem:[%s450 + $0x27c] sm:%s443]
                  %643 = vst [vmem:[%s451 + $0x17c] sm:%s443] %v642
                $region63: #{tpu_custom_call.1} parent=50 // loop_footer
                  %s449 = sadd.s32 1, %s445
                $region64: #{tpu_custom_call.1} parent=50 // loop_footer_branch
                  %444 = sbr.rel target = $region60
                $region65: #{tpu_custom_call.1} parent=50 // loop_exit
                  _
              $region51: #{tpu_custom_call.1} parent=35 // pred_fallthru
                _
            $region36: #{tpu_custom_call.1} parent=31 // pred_fallthru
              _
            // Predicated region
            $region37: #{tpu_custom_call.1} parent=31 // pred_check
              _
            $region38: #{tpu_custom_call.1} parent=31 // pred_check_branch
              %229 = sbr.rel (0) target = $region40
            $region39: #{tpu_custom_call.1} parent=31 // pred_region
              %s231 = ssub.s32 16, 1
              loop: start=0, step=1, limit=1
              $region41: #{tpu_custom_call.1} parent=39 // loop_pre_header
                _
              $region42: #{tpu_custom_call.1} parent=39 // loop_header
                %s233 = sphi 0, %s237
                %p234 = scmp.ge.s32.totalorder %s233, 1
                %s238 = sphi %s223, %s223
                %s239 = sphi %s218, %s218
              $region43: #{tpu_custom_call.1} parent=39 // loop_header_branch
                %236 = sbr.rel (%p234) target = $region47
              $region44: #{tpu_custom_call.1} parent=39 // loop_body
                %v240 = vld [vmem:[%s238] sm:%s231]
                %241 = vst [vmem:[%s239] sm:%s231] %v240
                %v242 = vld [vmem:[%s238 + $0x4] sm:%s231]
                %243 = vst [vmem:[%s239 + $0x4] sm:%s231] %v242
                %v244 = vld [vmem:[%s238 + $0x8] sm:%s231]
                %245 = vst [vmem:[%s239 + $0x8] sm:%s231] %v244
                %v246 = vld [vmem:[%s238 + $0xc] sm:%s231]
                %247 = vst [vmem:[%s239 + $0xc] sm:%s231] %v246
                %v248 = vld [vmem:[%s238 + $0x10] sm:%s231]
                %249 = vst [vmem:[%s239 + $0x10] sm:%s231] %v248
                %v250 = vld [vmem:[%s238 + $0x14] sm:%s231]
                %251 = vst [vmem:[%s239 + $0x14] sm:%s231] %v250
                %v252 = vld [vmem:[%s238 + $0x18] sm:%s231]
                %253 = vst [vmem:[%s239 + $0x18] sm:%s231] %v252
                %v254 = vld [vmem:[%s238 + $0x1c] sm:%s231]
                %255 = vst [vmem:[%s239 + $0x1c] sm:%s231] %v254
                %v256 = vld [vmem:[%s238 + $0x20] sm:%s231]
                %257 = vst [vmem:[%s239 + $0x20] sm:%s231] %v256
                %v258 = vld [vmem:[%s238 + $0x24] sm:%s231]
                %259 = vst [vmem:[%s239 + $0x24] sm:%s231] %v258
                %v260 = vld [vmem:[%s238 + $0x28] sm:%s231]
                %261 = vst [vmem:[%s239 + $0x28] sm:%s231] %v260
                %v262 = vld [vmem:[%s238 + $0x2c] sm:%s231]
                %263 = vst [vmem:[%s239 + $0x2c] sm:%s231] %v262
                %v264 = vld [vmem:[%s238 + $0x30] sm:%s231]
                %265 = vst [vmem:[%s239 + $0x30] sm:%s231] %v264
                %v266 = vld [vmem:[%s238 + $0x34] sm:%s231]
                %267 = vst [vmem:[%s239 + $0x34] sm:%s231] %v266
                %v268 = vld [vmem:[%s238 + $0x38] sm:%s231]
                %269 = vst [vmem:[%s239 + $0x38] sm:%s231] %v268
                %v270 = vld [vmem:[%s238 + $0x3c] sm:%s231]
                %271 = vst [vmem:[%s239 + $0x3c] sm:%s231] %v270
                %v272 = vld [vmem:[%s238 + $0x40] sm:%s231]
                %273 = vst [vmem:[%s239 + $0x40] sm:%s231] %v272
                %v274 = vld [vmem:[%s238 + $0x44] sm:%s231]
                %275 = vst [vmem:[%s239 + $0x44] sm:%s231] %v274
                %v276 = vld [vmem:[%s238 + $0x48] sm:%s231]
                %277 = vst [vmem:[%s239 + $0x48] sm:%s231] %v276
                %v278 = vld [vmem:[%s238 + $0x4c] sm:%s231]
                %279 = vst [vmem:[%s239 + $0x4c] sm:%s231] %v278
                %v280 = vld [vmem:[%s238 + $0x50] sm:%s231]
                %281 = vst [vmem:[%s239 + $0x50] sm:%s231] %v280
                %v282 = vld [vmem:[%s238 + $0x54] sm:%s231]
                %283 = vst [vmem:[%s239 + $0x54] sm:%s231] %v282
                %v284 = vld [vmem:[%s238 + $0x58] sm:%s231]
                %285 = vst [vmem:[%s239 + $0x58] sm:%s231] %v284
                %v286 = vld [vmem:[%s238 + $0x5c] sm:%s231]
                %287 = vst [vmem:[%s239 + $0x5c] sm:%s231] %v286
                %v288 = vld [vmem:[%s238 + $0x60] sm:%s231]
                %289 = vst [vmem:[%s239 + $0x60] sm:%s231] %v288
                %v290 = vld [vmem:[%s238 + $0x64] sm:%s231]
                %291 = vst [vmem:[%s239 + $0x64] sm:%s231] %v290
                %v292 = vld [vmem:[%s238 + $0x68] sm:%s231]
                %293 = vst [vmem:[%s239 + $0x68] sm:%s231] %v292
                %v294 = vld [vmem:[%s238 + $0x6c] sm:%s231]
                %295 = vst [vmem:[%s239 + $0x6c] sm:%s231] %v294
                %v296 = vld [vmem:[%s238 + $0x70] sm:%s231]
                %297 = vst [vmem:[%s239 + $0x70] sm:%s231] %v296
                %v298 = vld [vmem:[%s238 + $0x74] sm:%s231]
                %299 = vst [vmem:[%s239 + $0x74] sm:%s231] %v298
                %v300 = vld [vmem:[%s238 + $0x78] sm:%s231]
                %301 = vst [vmem:[%s239 + $0x78] sm:%s231] %v300
                %v302 = vld [vmem:[%s238 + $0x7c] sm:%s231]
                %303 = vst [vmem:[%s239 + $0x7c] sm:%s231] %v302
                %v304 = vld [vmem:[%s238 + $0x100] sm:%s231]
                %305 = vst [vmem:[%s239 + $0x80] sm:%s231] %v304
                %v306 = vld [vmem:[%s238 + $0x104] sm:%s231]
                %307 = vst [vmem:[%s239 + $0x84] sm:%s231] %v306
                %v308 = vld [vmem:[%s238 + $0x108] sm:%s231]
                %309 = vst [vmem:[%s239 + $0x88] sm:%s231] %v308
                %v310 = vld [vmem:[%s238 + $0x10c] sm:%s231]
                %311 = vst [vmem:[%s239 + $0x8c] sm:%s231] %v310
                %v312 = vld [vmem:[%s238 + $0x110] sm:%s231]
                %313 = vst [vmem:[%s239 + $0x90] sm:%s231] %v312
                %v314 = vld [vmem:[%s238 + $0x114] sm:%s231]
                %315 = vst [vmem:[%s239 + $0x94] sm:%s231] %v314
                %v316 = vld [vmem:[%s238 + $0x118] sm:%s231]
                %317 = vst [vmem:[%s239 + $0x98] sm:%s231] %v316
                %v318 = vld [vmem:[%s238 + $0x11c] sm:%s231]
                %319 = vst [vmem:[%s239 + $0x9c] sm:%s231] %v318
                %v320 = vld [vmem:[%s238 + $0x120] sm:%s231]
                %321 = vst [vmem:[%s239 + $0xa0] sm:%s231] %v320
                %v322 = vld [vmem:[%s238 + $0x124] sm:%s231]
                %323 = vst [vmem:[%s239 + $0xa4] sm:%s231] %v322
                %v324 = vld [vmem:[%s238 + $0x128] sm:%s231]
                %325 = vst [vmem:[%s239 + $0xa8] sm:%s231] %v324
                %v326 = vld [vmem:[%s238 + $0x12c] sm:%s231]
                %327 = vst [vmem:[%s239 + $0xac] sm:%s231] %v326
                %v328 = vld [vmem:[%s238 + $0x130] sm:%s231]
                %329 = vst [vmem:[%s239 + $0xb0] sm:%s231] %v328
                %v330 = vld [vmem:[%s238 + $0x134] sm:%s231]
                %331 = vst [vmem:[%s239 + $0xb4] sm:%s231] %v330
                %v332 = vld [vmem:[%s238 + $0x138] sm:%s231]
                %333 = vst [vmem:[%s239 + $0xb8] sm:%s231] %v332
                %v334 = vld [vmem:[%s238 + $0x13c] sm:%s231]
                %335 = vst [vmem:[%s239 + $0xbc] sm:%s231] %v334
                %v336 = vld [vmem:[%s238 + $0x140] sm:%s231]
                %337 = vst [vmem:[%s239 + $0xc0] sm:%s231] %v336
                %v338 = vld [vmem:[%s238 + $0x144] sm:%s231]
                %339 = vst [vmem:[%s239 + $0xc4] sm:%s231] %v338
                %v340 = vld [vmem:[%s238 + $0x148] sm:%s231]
                %341 = vst [vmem:[%s239 + $0xc8] sm:%s231] %v340
                %v342 = vld [vmem:[%s238 + $0x14c] sm:%s231]
                %343 = vst [vmem:[%s239 + $0xcc] sm:%s231] %v342
                %v344 = vld [vmem:[%s238 + $0x150] sm:%s231]
                %345 = vst [vmem:[%s239 + $0xd0] sm:%s231] %v344
                %v346 = vld [vmem:[%s238 + $0x154] sm:%s231]
                %347 = vst [vmem:[%s239 + $0xd4] sm:%s231] %v346
                %v348 = vld [vmem:[%s238 + $0x158] sm:%s231]
                %349 = vst [vmem:[%s239 + $0xd8] sm:%s231] %v348
                %v350 = vld [vmem:[%s238 + $0x15c] sm:%s231]
                %351 = vst [vmem:[%s239 + $0xdc] sm:%s231] %v350
                %v352 = vld [vmem:[%s238 + $0x160] sm:%s231]
                %353 = vst [vmem:[%s239 + $0xe0] sm:%s231] %v352
                %v354 = vld [vmem:[%s238 + $0x164] sm:%s231]
                %355 = vst [vmem:[%s239 + $0xe4] sm:%s231] %v354
                %v356 = vld [vmem:[%s238 + $0x168] sm:%s231]
                %357 = vst [vmem:[%s239 + $0xe8] sm:%s231] %v356
                %v358 = vld [vmem:[%s238 + $0x16c] sm:%s231]
                %359 = vst [vmem:[%s239 + $0xec] sm:%s231] %v358
                %v360 = vld [vmem:[%s238 + $0x170] sm:%s231]
                %361 = vst [vmem:[%s239 + $0xf0] sm:%s231] %v360
                %v362 = vld [vmem:[%s238 + $0x174] sm:%s231]
                %363 = vst [vmem:[%s239 + $0xf4] sm:%s231] %v362
                %v364 = vld [vmem:[%s238 + $0x178] sm:%s231]
                %365 = vst [vmem:[%s239 + $0xf8] sm:%s231] %v364
                %v366 = vld [vmem:[%s238 + $0x17c] sm:%s231]
                %367 = vst [vmem:[%s239 + $0xfc] sm:%s231] %v366
                %v368 = vld [vmem:[%s238 + $0x200] sm:%s231]
                %369 = vst [vmem:[%s239 + $0x100] sm:%s231] %v368
                %v370 = vld [vmem:[%s238 + $0x204] sm:%s231]
                %371 = vst [vmem:[%s239 + $0x104] sm:%s231] %v370
                %v372 = vld [vmem:[%s238 + $0x208] sm:%s231]
                %373 = vst [vmem:[%s239 + $0x108] sm:%s231] %v372
                %v374 = vld [vmem:[%s238 + $0x20c] sm:%s231]
                %375 = vst [vmem:[%s239 + $0x10c] sm:%s231] %v374
                %v376 = vld [vmem:[%s238 + $0x210] sm:%s231]
                %377 = vst [vmem:[%s239 + $0x110] sm:%s231] %v376
                %v378 = vld [vmem:[%s238 + $0x214] sm:%s231]
                %379 = vst [vmem:[%s239 + $0x114] sm:%s231] %v378
                %v380 = vld [vmem:[%s238 + $0x218] sm:%s231]
                %381 = vst [vmem:[%s239 + $0x118] sm:%s231] %v380
                %v382 = vld [vmem:[%s238 + $0x21c] sm:%s231]
                %383 = vst [vmem:[%s239 + $0x11c] sm:%s231] %v382
                %v384 = vld [vmem:[%s238 + $0x220] sm:%s231]
                %385 = vst [vmem:[%s239 + $0x120] sm:%s231] %v384
                %v386 = vld [vmem:[%s238 + $0x224] sm:%s231]
                %387 = vst [vmem:[%s239 + $0x124] sm:%s231] %v386
                %v388 = vld [vmem:[%s238 + $0x228] sm:%s231]
                %389 = vst [vmem:[%s239 + $0x128] sm:%s231] %v388
                %v390 = vld [vmem:[%s238 + $0x22c] sm:%s231]
                %391 = vst [vmem:[%s239 + $0x12c] sm:%s231] %v390
                %v392 = vld [vmem:[%s238 + $0x230] sm:%s231]
                %393 = vst [vmem:[%s239 + $0x130] sm:%s231] %v392
                %v394 = vld [vmem:[%s238 + $0x234] sm:%s231]
                %395 = vst [vmem:[%s239 + $0x134] sm:%s231] %v394
                %v396 = vld [vmem:[%s238 + $0x238] sm:%s231]
                %397 = vst [vmem:[%s239 + $0x138] sm:%s231] %v396
                %v398 = vld [vmem:[%s238 + $0x23c] sm:%s231]
                %399 = vst [vmem:[%s239 + $0x13c] sm:%s231] %v398
                %v400 = vld [vmem:[%s238 + $0x240] sm:%s231]
                %401 = vst [vmem:[%s239 + $0x140] sm:%s231] %v400
                %v402 = vld [vmem:[%s238 + $0x244] sm:%s231]
                %403 = vst [vmem:[%s239 + $0x144] sm:%s231] %v402
                %v404 = vld [vmem:[%s238 + $0x248] sm:%s231]
                %405 = vst [vmem:[%s239 + $0x148] sm:%s231] %v404
                %v406 = vld [vmem:[%s238 + $0x24c] sm:%s231]
                %407 = vst [vmem:[%s239 + $0x14c] sm:%s231] %v406
                %v408 = vld [vmem:[%s238 + $0x250] sm:%s231]
                %409 = vst [vmem:[%s239 + $0x150] sm:%s231] %v408
                %v410 = vld [vmem:[%s238 + $0x254] sm:%s231]
                %411 = vst [vmem:[%s239 + $0x154] sm:%s231] %v410
                %v412 = vld [vmem:[%s238 + $0x258] sm:%s231]
                %413 = vst [vmem:[%s239 + $0x158] sm:%s231] %v412
                %v414 = vld [vmem:[%s238 + $0x25c] sm:%s231]
                %415 = vst [vmem:[%s239 + $0x15c] sm:%s231] %v414
                %v416 = vld [vmem:[%s238 + $0x260] sm:%s231]
                %417 = vst [vmem:[%s239 + $0x160] sm:%s231] %v416
                %v418 = vld [vmem:[%s238 + $0x264] sm:%s231]
                %419 = vst [vmem:[%s239 + $0x164] sm:%s231] %v418
                %v420 = vld [vmem:[%s238 + $0x268] sm:%s231]
                %421 = vst [vmem:[%s239 + $0x168] sm:%s231] %v420
                %v422 = vld [vmem:[%s238 + $0x26c] sm:%s231]
                %423 = vst [vmem:[%s239 + $0x16c] sm:%s231] %v422
                %v424 = vld [vmem:[%s238 + $0x270] sm:%s231]
                %425 = vst [vmem:[%s239 + $0x170] sm:%s231] %v424
                %v426 = vld [vmem:[%s238 + $0x274] sm:%s231]
                %427 = vst [vmem:[%s239 + $0x174] sm:%s231] %v426
                %v428 = vld [vmem:[%s238 + $0x278] sm:%s231]
                %429 = vst [vmem:[%s239 + $0x178] sm:%s231] %v428
                %v430 = vld [vmem:[%s238 + $0x27c] sm:%s231]
                %431 = vst [vmem:[%s239 + $0x17c] sm:%s231] %v430
              $region45: #{tpu_custom_call.1} parent=39 // loop_footer
                %s237 = sadd.s32 1, %s233
              $region46: #{tpu_custom_call.1} parent=39 // loop_footer_branch
                %232 = sbr.rel target = $region42
              $region47: #{tpu_custom_call.1} parent=39 // loop_exit
                _
            $region40: #{tpu_custom_call.1} parent=31 // pred_fallthru
              _
          $region32: #{tpu_custom_call.1} parent=27 // pred_fallthru
            _
          %644 = vnop
        $region28: #{tpu_custom_call.1} parent=23 // pred_fallthru
          _
        // Predicated region
        $region66: #{tpu_custom_call.1} parent=23 // pred_check
          %p645 = pneg %p83
        $region67: #{tpu_custom_call.1} parent=23 // pred_check_branch
          %647 = sbr.rel (%p645) target = $region69
        $region68: #{tpu_custom_call.1} parent=23 // pred_region
          %s648 = sand.u32 %s73, 1
          %s649 = sand.u32 %s73, 1
          %s650 = smul.addr %s649, 384
          %s651 = scalar_lea.vmem [#allocation6], %s650
          %s652 = smul.u32 32, %s23
          %s653 = smul.addr %s21, 192
          %s654 = sadd.s32 %s652, %s653
          %s655 = smul.addr %s654, 4
          %s656 = scalar_lea.vmem %s1, %s655
          // Predicated region
          $region70: #{tpu_custom_call.1} parent=68 // pred_check
            _
          $region71: #{tpu_custom_call.1} parent=68 // pred_check_branch
            %658 = sbr.rel (0) target = $region73
          $region72: #{tpu_custom_call.1} parent=68 // pred_region
            // Predicated region
            $region74: #{tpu_custom_call.1} parent=72 // pred_check
              _
            $region75: #{tpu_custom_call.1} parent=72 // pred_check_branch
              %660 = sbr.rel target = $region77
            $region76: #{tpu_custom_call.1} parent=72 // pred_region
              // Predicated region
              $region89: #{tpu_custom_call.1} parent=76 // pred_check
                _
              $region90: #{tpu_custom_call.1} parent=76 // pred_check_branch
                %866 = sbr.rel (0) target = $region92
              $region91: #{tpu_custom_call.1} parent=76 // pred_region
                loop: start=0, step=1, limit=1
                $region93: #{tpu_custom_call.1} parent=91 // loop_pre_header
                  _
                $region94: #{tpu_custom_call.1} parent=91 // loop_header
                  %s868 = sphi 0, %s872
                  %p869 = scmp.ge.s32.totalorder %s868, 1
                  %s873 = sphi %s656, %s656
                  %s874 = sphi %s651, %s651
                $region95: #{tpu_custom_call.1} parent=91 // loop_header_branch
                  %871 = sbr.rel (%p869) target = $region99
                $region96: #{tpu_custom_call.1} parent=91 // loop_body
                  _
                $region97: #{tpu_custom_call.1} parent=91 // loop_footer
                  %s872 = sadd.s32 1, %s868
                $region98: #{tpu_custom_call.1} parent=91 // loop_footer_branch
                  %867 = sbr.rel target = $region94
                $region99: #{tpu_custom_call.1} parent=91 // loop_exit
                  _
                %s876 = ssub.s32 16, 1
                loop: start=0, step=1, limit=1
                $region100: #{tpu_custom_call.1} parent=91 // loop_pre_header
                  _
                $region101: #{tpu_custom_call.1} parent=91 // loop_header
                  %s878 = sphi 0, %s882
                  %p879 = scmp.ge.s32.totalorder %s878, 1
                  %s883 = sphi %s656, %s656
                  %s884 = sphi %s651, %s651
                $region102: #{tpu_custom_call.1} parent=91 // loop_header_branch
                  %881 = sbr.rel (%p879) target = $region106
                $region103: #{tpu_custom_call.1} parent=91 // loop_body
                  %v885 = vld [vmem:[%s883] sm:%s876]
                  %886 = vst [vmem:[%s884] sm:%s876] %v885
                  %v887 = vld [vmem:[%s883 + $0x4] sm:%s876]
                  %888 = vst [vmem:[%s884 + $0x4] sm:%s876] %v887
                  %v889 = vld [vmem:[%s883 + $0x8] sm:%s876]
                  %890 = vst [vmem:[%s884 + $0x8] sm:%s876] %v889
                  %v891 = vld [vmem:[%s883 + $0xc] sm:%s876]
                  %892 = vst [vmem:[%s884 + $0xc] sm:%s876] %v891
                  %v893 = vld [vmem:[%s883 + $0x10] sm:%s876]
                  %894 = vst [vmem:[%s884 + $0x10] sm:%s876] %v893
                  %v895 = vld [vmem:[%s883 + $0x14] sm:%s876]
                  %896 = vst [vmem:[%s884 + $0x14] sm:%s876] %v895
                  %v897 = vld [vmem:[%s883 + $0x18] sm:%s876]
                  %898 = vst [vmem:[%s884 + $0x18] sm:%s876] %v897
                  %v899 = vld [vmem:[%s883 + $0x1c] sm:%s876]
                  %900 = vst [vmem:[%s884 + $0x1c] sm:%s876] %v899
                  %v901 = vld [vmem:[%s883 + $0x20] sm:%s876]
                  %902 = vst [vmem:[%s884 + $0x20] sm:%s876] %v901
                  %v903 = vld [vmem:[%s883 + $0x24] sm:%s876]
                  %904 = vst [vmem:[%s884 + $0x24] sm:%s876] %v903
                  %v905 = vld [vmem:[%s883 + $0x28] sm:%s876]
                  %906 = vst [vmem:[%s884 + $0x28] sm:%s876] %v905
                  %v907 = vld [vmem:[%s883 + $0x2c] sm:%s876]
                  %908 = vst [vmem:[%s884 + $0x2c] sm:%s876] %v907
                  %v909 = vld [vmem:[%s883 + $0x30] sm:%s876]
                  %910 = vst [vmem:[%s884 + $0x30] sm:%s876] %v909
                  %v911 = vld [vmem:[%s883 + $0x34] sm:%s876]
                  %912 = vst [vmem:[%s884 + $0x34] sm:%s876] %v911
                  %v913 = vld [vmem:[%s883 + $0x38] sm:%s876]
                  %914 = vst [vmem:[%s884 + $0x38] sm:%s876] %v913
                  %v915 = vld [vmem:[%s883 + $0x3c] sm:%s876]
                  %916 = vst [vmem:[%s884 + $0x3c] sm:%s876] %v915
                  %v917 = vld [vmem:[%s883 + $0x40] sm:%s876]
                  %918 = vst [vmem:[%s884 + $0x40] sm:%s876] %v917
                  %v919 = vld [vmem:[%s883 + $0x44] sm:%s876]
                  %920 = vst [vmem:[%s884 + $0x44] sm:%s876] %v919
                  %v921 = vld [vmem:[%s883 + $0x48] sm:%s876]
                  %922 = vst [vmem:[%s884 + $0x48] sm:%s876] %v921
                  %v923 = vld [vmem:[%s883 + $0x4c] sm:%s876]
                  %924 = vst [vmem:[%s884 + $0x4c] sm:%s876] %v923
                  %v925 = vld [vmem:[%s883 + $0x50] sm:%s876]
                  %926 = vst [vmem:[%s884 + $0x50] sm:%s876] %v925
                  %v927 = vld [vmem:[%s883 + $0x54] sm:%s876]
                  %928 = vst [vmem:[%s884 + $0x54] sm:%s876] %v927
                  %v929 = vld [vmem:[%s883 + $0x58] sm:%s876]
                  %930 = vst [vmem:[%s884 + $0x58] sm:%s876] %v929
                  %v931 = vld [vmem:[%s883 + $0x5c] sm:%s876]
                  %932 = vst [vmem:[%s884 + $0x5c] sm:%s876] %v931
                  %v933 = vld [vmem:[%s883 + $0x60] sm:%s876]
                  %934 = vst [vmem:[%s884 + $0x60] sm:%s876] %v933
                  %v935 = vld [vmem:[%s883 + $0x64] sm:%s876]
                  %936 = vst [vmem:[%s884 + $0x64] sm:%s876] %v935
                  %v937 = vld [vmem:[%s883 + $0x68] sm:%s876]
                  %938 = vst [vmem:[%s884 + $0x68] sm:%s876] %v937
                  %v939 = vld [vmem:[%s883 + $0x6c] sm:%s876]
                  %940 = vst [vmem:[%s884 + $0x6c] sm:%s876] %v939
                  %v941 = vld [vmem:[%s883 + $0x70] sm:%s876]
                  %942 = vst [vmem:[%s884 + $0x70] sm:%s876] %v941
                  %v943 = vld [vmem:[%s883 + $0x74] sm:%s876]
                  %944 = vst [vmem:[%s884 + $0x74] sm:%s876] %v943
                  %v945 = vld [vmem:[%s883 + $0x78] sm:%s876]
                  %946 = vst [vmem:[%s884 + $0x78] sm:%s876] %v945
                  %v947 = vld [vmem:[%s883 + $0x7c] sm:%s876]
                  %948 = vst [vmem:[%s884 + $0x7c] sm:%s876] %v947
                  %v949 = vld [vmem:[%s883 + $0x100] sm:%s876]
                  %950 = vst [vmem:[%s884 + $0x80] sm:%s876] %v949
                  %v951 = vld [vmem:[%s883 + $0x104] sm:%s876]
                  %952 = vst [vmem:[%s884 + $0x84] sm:%s876] %v951
                  %v953 = vld [vmem:[%s883 + $0x108] sm:%s876]
                  %954 = vst [vmem:[%s884 + $0x88] sm:%s876] %v953
                  %v955 = vld [vmem:[%s883 + $0x10c] sm:%s876]
                  %956 = vst [vmem:[%s884 + $0x8c] sm:%s876] %v955
                  %v957 = vld [vmem:[%s883 + $0x110] sm:%s876]
                  %958 = vst [vmem:[%s884 + $0x90] sm:%s876] %v957
                  %v959 = vld [vmem:[%s883 + $0x114] sm:%s876]
                  %960 = vst [vmem:[%s884 + $0x94] sm:%s876] %v959
                  %v961 = vld [vmem:[%s883 + $0x118] sm:%s876]
                  %962 = vst [vmem:[%s884 + $0x98] sm:%s876] %v961
                  %v963 = vld [vmem:[%s883 + $0x11c] sm:%s876]
                  %964 = vst [vmem:[%s884 + $0x9c] sm:%s876] %v963
                  %v965 = vld [vmem:[%s883 + $0x120] sm:%s876]
                  %966 = vst [vmem:[%s884 + $0xa0] sm:%s876] %v965
                  %v967 = vld [vmem:[%s883 + $0x124] sm:%s876]
                  %968 = vst [vmem:[%s884 + $0xa4] sm:%s876] %v967
                  %v969 = vld [vmem:[%s883 + $0x128] sm:%s876]
                  %970 = vst [vmem:[%s884 + $0xa8] sm:%s876] %v969
                  %v971 = vld [vmem:[%s883 + $0x12c] sm:%s876]
                  %972 = vst [vmem:[%s884 + $0xac] sm:%s876] %v971
                  %v973 = vld [vmem:[%s883 + $0x130] sm:%s876]
                  %974 = vst [vmem:[%s884 + $0xb0] sm:%s876] %v973
                  %v975 = vld [vmem:[%s883 + $0x134] sm:%s876]
                  %976 = vst [vmem:[%s884 + $0xb4] sm:%s876] %v975
                  %v977 = vld [vmem:[%s883 + $0x138] sm:%s876]
                  %978 = vst [vmem:[%s884 + $0xb8] sm:%s876] %v977
                  %v979 = vld [vmem:[%s883 + $0x13c] sm:%s876]
                  %980 = vst [vmem:[%s884 + $0xbc] sm:%s876] %v979
                  %v981 = vld [vmem:[%s883 + $0x140] sm:%s876]
                  %982 = vst [vmem:[%s884 + $0xc0] sm:%s876] %v981
                  %v983 = vld [vmem:[%s883 + $0x144] sm:%s876]
                  %984 = vst [vmem:[%s884 + $0xc4] sm:%s876] %v983
                  %v985 = vld [vmem:[%s883 + $0x148] sm:%s876]
                  %986 = vst [vmem:[%s884 + $0xc8] sm:%s876] %v985
                  %v987 = vld [vmem:[%s883 + $0x14c] sm:%s876]
                  %988 = vst [vmem:[%s884 + $0xcc] sm:%s876] %v987
                  %v989 = vld [vmem:[%s883 + $0x150] sm:%s876]
                  %990 = vst [vmem:[%s884 + $0xd0] sm:%s876] %v989
                  %v991 = vld [vmem:[%s883 + $0x154] sm:%s876]
                  %992 = vst [vmem:[%s884 + $0xd4] sm:%s876] %v991
                  %v993 = vld [vmem:[%s883 + $0x158] sm:%s876]
                  %994 = vst [vmem:[%s884 + $0xd8] sm:%s876] %v993
                  %v995 = vld [vmem:[%s883 + $0x15c] sm:%s876]
                  %996 = vst [vmem:[%s884 + $0xdc] sm:%s876] %v995
                  %v997 = vld [vmem:[%s883 + $0x160] sm:%s876]
                  %998 = vst [vmem:[%s884 + $0xe0] sm:%s876] %v997
                  %v999 = vld [vmem:[%s883 + $0x164] sm:%s876]
                  %1000 = vst [vmem:[%s884 + $0xe4] sm:%s876] %v999
                  %v1001 = vld [vmem:[%s883 + $0x168] sm:%s876]
                  %1002 = vst [vmem:[%s884 + $0xe8] sm:%s876] %v1001
                  %v1003 = vld [vmem:[%s883 + $0x16c] sm:%s876]
                  %1004 = vst [vmem:[%s884 + $0xec] sm:%s876] %v1003
                  %v1005 = vld [vmem:[%s883 + $0x170] sm:%s876]
                  %1006 = vst [vmem:[%s884 + $0xf0] sm:%s876] %v1005
                  %v1007 = vld [vmem:[%s883 + $0x174] sm:%s876]
                  %1008 = vst [vmem:[%s884 + $0xf4] sm:%s876] %v1007
                  %v1009 = vld [vmem:[%s883 + $0x178] sm:%s876]
                  %1010 = vst [vmem:[%s884 + $0xf8] sm:%s876] %v1009
                  %v1011 = vld [vmem:[%s883 + $0x17c] sm:%s876]
                  %1012 = vst [vmem:[%s884 + $0xfc] sm:%s876] %v1011
                  %v1013 = vld [vmem:[%s883 + $0x200] sm:%s876]
                  %1014 = vst [vmem:[%s884 + $0x100] sm:%s876] %v1013
                  %v1015 = vld [vmem:[%s883 + $0x204] sm:%s876]
                  %1016 = vst [vmem:[%s884 + $0x104] sm:%s876] %v1015
                  %v1017 = vld [vmem:[%s883 + $0x208] sm:%s876]
                  %1018 = vst [vmem:[%s884 + $0x108] sm:%s876] %v1017
                  %v1019 = vld [vmem:[%s883 + $0x20c] sm:%s876]
                  %1020 = vst [vmem:[%s884 + $0x10c] sm:%s876] %v1019
                  %v1021 = vld [vmem:[%s883 + $0x210] sm:%s876]
                  %1022 = vst [vmem:[%s884 + $0x110] sm:%s876] %v1021
                  %v1023 = vld [vmem:[%s883 + $0x214] sm:%s876]
                  %1024 = vst [vmem:[%s884 + $0x114] sm:%s876] %v1023
                  %v1025 = vld [vmem:[%s883 + $0x218] sm:%s876]
                  %1026 = vst [vmem:[%s884 + $0x118] sm:%s876] %v1025
                  %v1027 = vld [vmem:[%s883 + $0x21c] sm:%s876]
                  %1028 = vst [vmem:[%s884 + $0x11c] sm:%s876] %v1027
                  %v1029 = vld [vmem:[%s883 + $0x220] sm:%s876]
                  %1030 = vst [vmem:[%s884 + $0x120] sm:%s876] %v1029
                  %v1031 = vld [vmem:[%s883 + $0x224] sm:%s876]
                  %1032 = vst [vmem:[%s884 + $0x124] sm:%s876] %v1031
                  %v1033 = vld [vmem:[%s883 + $0x228] sm:%s876]
                  %1034 = vst [vmem:[%s884 + $0x128] sm:%s876] %v1033
                  %v1035 = vld [vmem:[%s883 + $0x22c] sm:%s876]
                  %1036 = vst [vmem:[%s884 + $0x12c] sm:%s876] %v1035
                  %v1037 = vld [vmem:[%s883 + $0x230] sm:%s876]
                  %1038 = vst [vmem:[%s884 + $0x130] sm:%s876] %v1037
                  %v1039 = vld [vmem:[%s883 + $0x234] sm:%s876]
                  %1040 = vst [vmem:[%s884 + $0x134] sm:%s876] %v1039
                  %v1041 = vld [vmem:[%s883 + $0x238] sm:%s876]
                  %1042 = vst [vmem:[%s884 + $0x138] sm:%s876] %v1041
                  %v1043 = vld [vmem:[%s883 + $0x23c] sm:%s876]
                  %1044 = vst [vmem:[%s884 + $0x13c] sm:%s876] %v1043
                  %v1045 = vld [vmem:[%s883 + $0x240] sm:%s876]
                  %1046 = vst [vmem:[%s884 + $0x140] sm:%s876] %v1045
                  %v1047 = vld [vmem:[%s883 + $0x244] sm:%s876]
                  %1048 = vst [vmem:[%s884 + $0x144] sm:%s876] %v1047
                  %v1049 = vld [vmem:[%s883 + $0x248] sm:%s876]
                  %1050 = vst [vmem:[%s884 + $0x148] sm:%s876] %v1049
                  %v1051 = vld [vmem:[%s883 + $0x24c] sm:%s876]
                  %1052 = vst [vmem:[%s884 + $0x14c] sm:%s876] %v1051
                  %v1053 = vld [vmem:[%s883 + $0x250] sm:%s876]
                  %1054 = vst [vmem:[%s884 + $0x150] sm:%s876] %v1053
                  %v1055 = vld [vmem:[%s883 + $0x254] sm:%s876]
                  %1056 = vst [vmem:[%s884 + $0x154] sm:%s876] %v1055
                  %v1057 = vld [vmem:[%s883 + $0x258] sm:%s876]
                  %1058 = vst [vmem:[%s884 + $0x158] sm:%s876] %v1057
                  %v1059 = vld [vmem:[%s883 + $0x25c] sm:%s876]
                  %1060 = vst [vmem:[%s884 + $0x15c] sm:%s876] %v1059
                  %v1061 = vld [vmem:[%s883 + $0x260] sm:%s876]
                  %1062 = vst [vmem:[%s884 + $0x160] sm:%s876] %v1061
                  %v1063 = vld [vmem:[%s883 + $0x264] sm:%s876]
                  %1064 = vst [vmem:[%s884 + $0x164] sm:%s876] %v1063
                  %v1065 = vld [vmem:[%s883 + $0x268] sm:%s876]
                  %1066 = vst [vmem:[%s884 + $0x168] sm:%s876] %v1065
                  %v1067 = vld [vmem:[%s883 + $0x26c] sm:%s876]
                  %1068 = vst [vmem:[%s884 + $0x16c] sm:%s876] %v1067
                  %v1069 = vld [vmem:[%s883 + $0x270] sm:%s876]
                  %1070 = vst [vmem:[%s884 + $0x170] sm:%s876] %v1069
                  %v1071 = vld [vmem:[%s883 + $0x274] sm:%s876]
                  %1072 = vst [vmem:[%s884 + $0x174] sm:%s876] %v1071
                  %v1073 = vld [vmem:[%s883 + $0x278] sm:%s876]
                  %1074 = vst [vmem:[%s884 + $0x178] sm:%s876] %v1073
                  %v1075 = vld [vmem:[%s883 + $0x27c] sm:%s876]
                  %1076 = vst [vmem:[%s884 + $0x17c] sm:%s876] %v1075
                $region104: #{tpu_custom_call.1} parent=91 // loop_footer
                  %s882 = sadd.s32 1, %s878
                $region105: #{tpu_custom_call.1} parent=91 // loop_footer_branch
                  %877 = sbr.rel target = $region101
                $region106: #{tpu_custom_call.1} parent=91 // loop_exit
                  _
              $region92: #{tpu_custom_call.1} parent=76 // pred_fallthru
                _
            $region77: #{tpu_custom_call.1} parent=72 // pred_fallthru
              _
            // Predicated region
            $region78: #{tpu_custom_call.1} parent=72 // pred_check
              _
            $region79: #{tpu_custom_call.1} parent=72 // pred_check_branch
              %662 = sbr.rel (0) target = $region81
            $region80: #{tpu_custom_call.1} parent=72 // pred_region
              %s664 = ssub.s32 16, 1
              loop: start=0, step=1, limit=1
              $region82: #{tpu_custom_call.1} parent=80 // loop_pre_header
                _
              $region83: #{tpu_custom_call.1} parent=80 // loop_header
                %s666 = sphi 0, %s670
                %p667 = scmp.ge.s32.totalorder %s666, 1
                %s671 = sphi %s656, %s656
                %s672 = sphi %s651, %s651
              $region84: #{tpu_custom_call.1} parent=80 // loop_header_branch
                %669 = sbr.rel (%p667) target = $region88
              $region85: #{tpu_custom_call.1} parent=80 // loop_body
                %v673 = vld [vmem:[%s671] sm:%s664]
                %674 = vst [vmem:[%s672] sm:%s664] %v673
                %v675 = vld [vmem:[%s671 + $0x4] sm:%s664]
                %676 = vst [vmem:[%s672 + $0x4] sm:%s664] %v675
                %v677 = vld [vmem:[%s671 + $0x8] sm:%s664]
                %678 = vst [vmem:[%s672 + $0x8] sm:%s664] %v677
                %v679 = vld [vmem:[%s671 + $0xc] sm:%s664]
                %680 = vst [vmem:[%s672 + $0xc] sm:%s664] %v679
                %v681 = vld [vmem:[%s671 + $0x10] sm:%s664]
                %682 = vst [vmem:[%s672 + $0x10] sm:%s664] %v681
                %v683 = vld [vmem:[%s671 + $0x14] sm:%s664]
                %684 = vst [vmem:[%s672 + $0x14] sm:%s664] %v683
                %v685 = vld [vmem:[%s671 + $0x18] sm:%s664]
                %686 = vst [vmem:[%s672 + $0x18] sm:%s664] %v685
                %v687 = vld [vmem:[%s671 + $0x1c] sm:%s664]
                %688 = vst [vmem:[%s672 + $0x1c] sm:%s664] %v687
                %v689 = vld [vmem:[%s671 + $0x20] sm:%s664]
                %690 = vst [vmem:[%s672 + $0x20] sm:%s664] %v689
                %v691 = vld [vmem:[%s671 + $0x24] sm:%s664]
                %692 = vst [vmem:[%s672 + $0x24] sm:%s664] %v691
                %v693 = vld [vmem:[%s671 + $0x28] sm:%s664]
                %694 = vst [vmem:[%s672 + $0x28] sm:%s664] %v693
                %v695 = vld [vmem:[%s671 + $0x2c] sm:%s664]
                %696 = vst [vmem:[%s672 + $0x2c] sm:%s664] %v695
                %v697 = vld [vmem:[%s671 + $0x30] sm:%s664]
                %698 = vst [vmem:[%s672 + $0x30] sm:%s664] %v697
                %v699 = vld [vmem:[%s671 + $0x34] sm:%s664]
                %700 = vst [vmem:[%s672 + $0x34] sm:%s664] %v699
                %v701 = vld [vmem:[%s671 + $0x38] sm:%s664]
                %702 = vst [vmem:[%s672 + $0x38] sm:%s664] %v701
                %v703 = vld [vmem:[%s671 + $0x3c] sm:%s664]
                %704 = vst [vmem:[%s672 + $0x3c] sm:%s664] %v703
                %v705 = vld [vmem:[%s671 + $0x40] sm:%s664]
                %706 = vst [vmem:[%s672 + $0x40] sm:%s664] %v705
                %v707 = vld [vmem:[%s671 + $0x44] sm:%s664]
                %708 = vst [vmem:[%s672 + $0x44] sm:%s664] %v707
                %v709 = vld [vmem:[%s671 + $0x48] sm:%s664]
                %710 = vst [vmem:[%s672 + $0x48] sm:%s664] %v709
                %v711 = vld [vmem:[%s671 + $0x4c] sm:%s664]
                %712 = vst [vmem:[%s672 + $0x4c] sm:%s664] %v711
                %v713 = vld [vmem:[%s671 + $0x50] sm:%s664]
                %714 = vst [vmem:[%s672 + $0x50] sm:%s664] %v713
                %v715 = vld [vmem:[%s671 + $0x54] sm:%s664]
                %716 = vst [vmem:[%s672 + $0x54] sm:%s664] %v715
                %v717 = vld [vmem:[%s671 + $0x58] sm:%s664]
                %718 = vst [vmem:[%s672 + $0x58] sm:%s664] %v717
                %v719 = vld [vmem:[%s671 + $0x5c] sm:%s664]
                %720 = vst [vmem:[%s672 + $0x5c] sm:%s664] %v719
                %v721 = vld [vmem:[%s671 + $0x60] sm:%s664]
                %722 = vst [vmem:[%s672 + $0x60] sm:%s664] %v721
                %v723 = vld [vmem:[%s671 + $0x64] sm:%s664]
                %724 = vst [vmem:[%s672 + $0x64] sm:%s664] %v723
                %v725 = vld [vmem:[%s671 + $0x68] sm:%s664]
                %726 = vst [vmem:[%s672 + $0x68] sm:%s664] %v725
                %v727 = vld [vmem:[%s671 + $0x6c] sm:%s664]
                %728 = vst [vmem:[%s672 + $0x6c] sm:%s664] %v727
                %v729 = vld [vmem:[%s671 + $0x70] sm:%s664]
                %730 = vst [vmem:[%s672 + $0x70] sm:%s664] %v729
                %v731 = vld [vmem:[%s671 + $0x74] sm:%s664]
                %732 = vst [vmem:[%s672 + $0x74] sm:%s664] %v731
                %v733 = vld [vmem:[%s671 + $0x78] sm:%s664]
                %734 = vst [vmem:[%s672 + $0x78] sm:%s664] %v733
                %v735 = vld [vmem:[%s671 + $0x7c] sm:%s664]
                %736 = vst [vmem:[%s672 + $0x7c] sm:%s664] %v735
                %v737 = vld [vmem:[%s671 + $0x100] sm:%s664]
                %738 = vst [vmem:[%s672 + $0x80] sm:%s664] %v737
                %v739 = vld [vmem:[%s671 + $0x104] sm:%s664]
                %740 = vst [vmem:[%s672 + $0x84] sm:%s664] %v739
                %v741 = vld [vmem:[%s671 + $0x108] sm:%s664]
                %742 = vst [vmem:[%s672 + $0x88] sm:%s664] %v741
                %v743 = vld [vmem:[%s671 + $0x10c] sm:%s664]
                %744 = vst [vmem:[%s672 + $0x8c] sm:%s664] %v743
                %v745 = vld [vmem:[%s671 + $0x110] sm:%s664]
                %746 = vst [vmem:[%s672 + $0x90] sm:%s664] %v745
                %v747 = vld [vmem:[%s671 + $0x114] sm:%s664]
                %748 = vst [vmem:[%s672 + $0x94] sm:%s664] %v747
                %v749 = vld [vmem:[%s671 + $0x118] sm:%s664]
                %750 = vst [vmem:[%s672 + $0x98] sm:%s664] %v749
                %v751 = vld [vmem:[%s671 + $0x11c] sm:%s664]
                %752 = vst [vmem:[%s672 + $0x9c] sm:%s664] %v751
                %v753 = vld [vmem:[%s671 + $0x120] sm:%s664]
                %754 = vst [vmem:[%s672 + $0xa0] sm:%s664] %v753
                %v755 = vld [vmem:[%s671 + $0x124] sm:%s664]
                %756 = vst [vmem:[%s672 + $0xa4] sm:%s664] %v755
                %v757 = vld [vmem:[%s671 + $0x128] sm:%s664]
                %758 = vst [vmem:[%s672 + $0xa8] sm:%s664] %v757
                %v759 = vld [vmem:[%s671 + $0x12c] sm:%s664]
                %760 = vst [vmem:[%s672 + $0xac] sm:%s664] %v759
                %v761 = vld [vmem:[%s671 + $0x130] sm:%s664]
                %762 = vst [vmem:[%s672 + $0xb0] sm:%s664] %v761
                %v763 = vld [vmem:[%s671 + $0x134] sm:%s664]
                %764 = vst [vmem:[%s672 + $0xb4] sm:%s664] %v763
                %v765 = vld [vmem:[%s671 + $0x138] sm:%s664]
                %766 = vst [vmem:[%s672 + $0xb8] sm:%s664] %v765
                %v767 = vld [vmem:[%s671 + $0x13c] sm:%s664]
                %768 = vst [vmem:[%s672 + $0xbc] sm:%s664] %v767
                %v769 = vld [vmem:[%s671 + $0x140] sm:%s664]
                %770 = vst [vmem:[%s672 + $0xc0] sm:%s664] %v769
                %v771 = vld [vmem:[%s671 + $0x144] sm:%s664]
                %772 = vst [vmem:[%s672 + $0xc4] sm:%s664] %v771
                %v773 = vld [vmem:[%s671 + $0x148] sm:%s664]
                %774 = vst [vmem:[%s672 + $0xc8] sm:%s664] %v773
                %v775 = vld [vmem:[%s671 + $0x14c] sm:%s664]
                %776 = vst [vmem:[%s672 + $0xcc] sm:%s664] %v775
                %v777 = vld [vmem:[%s671 + $0x150] sm:%s664]
                %778 = vst [vmem:[%s672 + $0xd0] sm:%s664] %v777
                %v779 = vld [vmem:[%s671 + $0x154] sm:%s664]
                %780 = vst [vmem:[%s672 + $0xd4] sm:%s664] %v779
                %v781 = vld [vmem:[%s671 + $0x158] sm:%s664]
                %782 = vst [vmem:[%s672 + $0xd8] sm:%s664] %v781
                %v783 = vld [vmem:[%s671 + $0x15c] sm:%s664]
                %784 = vst [vmem:[%s672 + $0xdc] sm:%s664] %v783
                %v785 = vld [vmem:[%s671 + $0x160] sm:%s664]
                %786 = vst [vmem:[%s672 + $0xe0] sm:%s664] %v785
                %v787 = vld [vmem:[%s671 + $0x164] sm:%s664]
                %788 = vst [vmem:[%s672 + $0xe4] sm:%s664] %v787
                %v789 = vld [vmem:[%s671 + $0x168] sm:%s664]
                %790 = vst [vmem:[%s672 + $0xe8] sm:%s664] %v789
                %v791 = vld [vmem:[%s671 + $0x16c] sm:%s664]
                %792 = vst [vmem:[%s672 + $0xec] sm:%s664] %v791
                %v793 = vld [vmem:[%s671 + $0x170] sm:%s664]
                %794 = vst [vmem:[%s672 + $0xf0] sm:%s664] %v793
                %v795 = vld [vmem:[%s671 + $0x174] sm:%s664]
                %796 = vst [vmem:[%s672 + $0xf4] sm:%s664] %v795
                %v797 = vld [vmem:[%s671 + $0x178] sm:%s664]
                %798 = vst [vmem:[%s672 + $0xf8] sm:%s664] %v797
                %v799 = vld [vmem:[%s671 + $0x17c] sm:%s664]
                %800 = vst [vmem:[%s672 + $0xfc] sm:%s664] %v799
                %v801 = vld [vmem:[%s671 + $0x200] sm:%s664]
                %802 = vst [vmem:[%s672 + $0x100] sm:%s664] %v801
                %v803 = vld [vmem:[%s671 + $0x204] sm:%s664]
                %804 = vst [vmem:[%s672 + $0x104] sm:%s664] %v803
                %v805 = vld [vmem:[%s671 + $0x208] sm:%s664]
                %806 = vst [vmem:[%s672 + $0x108] sm:%s664] %v805
                %v807 = vld [vmem:[%s671 + $0x20c] sm:%s664]
                %808 = vst [vmem:[%s672 + $0x10c] sm:%s664] %v807
                %v809 = vld [vmem:[%s671 + $0x210] sm:%s664]
                %810 = vst [vmem:[%s672 + $0x110] sm:%s664] %v809
                %v811 = vld [vmem:[%s671 + $0x214] sm:%s664]
                %812 = vst [vmem:[%s672 + $0x114] sm:%s664] %v811
                %v813 = vld [vmem:[%s671 + $0x218] sm:%s664]
                %814 = vst [vmem:[%s672 + $0x118] sm:%s664] %v813
                %v815 = vld [vmem:[%s671 + $0x21c] sm:%s664]
                %816 = vst [vmem:[%s672 + $0x11c] sm:%s664] %v815
                %v817 = vld [vmem:[%s671 + $0x220] sm:%s664]
                %818 = vst [vmem:[%s672 + $0x120] sm:%s664] %v817
                %v819 = vld [vmem:[%s671 + $0x224] sm:%s664]
                %820 = vst [vmem:[%s672 + $0x124] sm:%s664] %v819
                %v821 = vld [vmem:[%s671 + $0x228] sm:%s664]
                %822 = vst [vmem:[%s672 + $0x128] sm:%s664] %v821
                %v823 = vld [vmem:[%s671 + $0x22c] sm:%s664]
                %824 = vst [vmem:[%s672 + $0x12c] sm:%s664] %v823
                %v825 = vld [vmem:[%s671 + $0x230] sm:%s664]
                %826 = vst [vmem:[%s672 + $0x130] sm:%s664] %v825
                %v827 = vld [vmem:[%s671 + $0x234] sm:%s664]
                %828 = vst [vmem:[%s672 + $0x134] sm:%s664] %v827
                %v829 = vld [vmem:[%s671 + $0x238] sm:%s664]
                %830 = vst [vmem:[%s672 + $0x138] sm:%s664] %v829
                %v831 = vld [vmem:[%s671 + $0x23c] sm:%s664]
                %832 = vst [vmem:[%s672 + $0x13c] sm:%s664] %v831
                %v833 = vld [vmem:[%s671 + $0x240] sm:%s664]
                %834 = vst [vmem:[%s672 + $0x140] sm:%s664] %v833
                %v835 = vld [vmem:[%s671 + $0x244] sm:%s664]
                %836 = vst [vmem:[%s672 + $0x144] sm:%s664] %v835
                %v837 = vld [vmem:[%s671 + $0x248] sm:%s664]
                %838 = vst [vmem:[%s672 + $0x148] sm:%s664] %v837
                %v839 = vld [vmem:[%s671 + $0x24c] sm:%s664]
                %840 = vst [vmem:[%s672 + $0x14c] sm:%s664] %v839
                %v841 = vld [vmem:[%s671 + $0x250] sm:%s664]
                %842 = vst [vmem:[%s672 + $0x150] sm:%s664] %v841
                %v843 = vld [vmem:[%s671 + $0x254] sm:%s664]
                %844 = vst [vmem:[%s672 + $0x154] sm:%s664] %v843
                %v845 = vld [vmem:[%s671 + $0x258] sm:%s664]
                %846 = vst [vmem:[%s672 + $0x158] sm:%s664] %v845
                %v847 = vld [vmem:[%s671 + $0x25c] sm:%s664]
                %848 = vst [vmem:[%s672 + $0x15c] sm:%s664] %v847
                %v849 = vld [vmem:[%s671 + $0x260] sm:%s664]
                %850 = vst [vmem:[%s672 + $0x160] sm:%s664] %v849
                %v851 = vld [vmem:[%s671 + $0x264] sm:%s664]
                %852 = vst [vmem:[%s672 + $0x164] sm:%s664] %v851
                %v853 = vld [vmem:[%s671 + $0x268] sm:%s664]
                %854 = vst [vmem:[%s672 + $0x168] sm:%s664] %v853
                %v855 = vld [vmem:[%s671 + $0x26c] sm:%s664]
                %856 = vst [vmem:[%s672 + $0x16c] sm:%s664] %v855
                %v857 = vld [vmem:[%s671 + $0x270] sm:%s664]
                %858 = vst [vmem:[%s672 + $0x170] sm:%s664] %v857
                %v859 = vld [vmem:[%s671 + $0x274] sm:%s664]
                %860 = vst [vmem:[%s672 + $0x174] sm:%s664] %v859
                %v861 = vld [vmem:[%s671 + $0x278] sm:%s664]
                %862 = vst [vmem:[%s672 + $0x178] sm:%s664] %v861
                %v863 = vld [vmem:[%s671 + $0x27c] sm:%s664]
                %864 = vst [vmem:[%s672 + $0x17c] sm:%s664] %v863
              $region86: #{tpu_custom_call.1} parent=80 // loop_footer
                %s670 = sadd.s32 1, %s666
              $region87: #{tpu_custom_call.1} parent=80 // loop_footer_branch
                %665 = sbr.rel target = $region83
              $region88: #{tpu_custom_call.1} parent=80 // loop_exit
                _
            $region81: #{tpu_custom_call.1} parent=72 // pred_fallthru
              _
          $region73: #{tpu_custom_call.1} parent=68 // pred_fallthru
            _
          %1077 = vnop
        $region69: #{tpu_custom_call.1} parent=23 // pred_fallthru
          _
        // Predicated region
        $region107: #{tpu_custom_call.1} parent=23 // pred_check
          %p1078 = pneg %p111
        $region108: #{tpu_custom_call.1} parent=23 // pred_check_branch
          %1080 = sbr.rel (%p1078) target = $region110
        $region109: #{tpu_custom_call.1} parent=23 // pred_region
          %s1081 = sand.u32 %s101, 1
          %s1082 = sand.u32 %s101, 1
          %s1083 = smul.addr %s1082, 384
          %s1084 = scalar_lea.vmem [#allocation7], %s1083
          %s1085 = smul.u32 32, %s23
          %s1086 = smul.addr %s21, 192
          %s1087 = sadd.s32 %s1085, %s1086
          %s1088 = smul.addr %s1087, 4
          %s1089 = scalar_lea.vmem %s2, %s1088
          // Predicated region
          $region111: #{tpu_custom_call.1} parent=109 // pred_check
            _
          $region112: #{tpu_custom_call.1} parent=109 // pred_check_branch
            %1091 = sbr.rel (0) target = $region114
          $region113: #{tpu_custom_call.1} parent=109 // pred_region
            // Predicated region
            $region115: #{tpu_custom_call.1} parent=113 // pred_check
              _
            $region116: #{tpu_custom_call.1} parent=113 // pred_check_branch
              %1093 = sbr.rel target = $region118
            $region117: #{tpu_custom_call.1} parent=113 // pred_region
              // Predicated region
              $region130: #{tpu_custom_call.1} parent=117 // pred_check
                _
              $region131: #{tpu_custom_call.1} parent=117 // pred_check_branch
                %1299 = sbr.rel (0) target = $region133
              $region132: #{tpu_custom_call.1} parent=117 // pred_region
                loop: start=0, step=1, limit=1
                $region134: #{tpu_custom_call.1} parent=132 // loop_pre_header
                  _
                $region135: #{tpu_custom_call.1} parent=132 // loop_header
                  %s1301 = sphi 0, %s1305
                  %p1302 = scmp.ge.s32.totalorder %s1301, 1
                  %s1306 = sphi %s1089, %s1089
                  %s1307 = sphi %s1084, %s1084
                $region136: #{tpu_custom_call.1} parent=132 // loop_header_branch
                  %1304 = sbr.rel (%p1302) target = $region140
                $region137: #{tpu_custom_call.1} parent=132 // loop_body
                  _
                $region138: #{tpu_custom_call.1} parent=132 // loop_footer
                  %s1305 = sadd.s32 1, %s1301
                $region139: #{tpu_custom_call.1} parent=132 // loop_footer_branch
                  %1300 = sbr.rel target = $region135
                $region140: #{tpu_custom_call.1} parent=132 // loop_exit
                  _
                %s1309 = ssub.s32 16, 1
                loop: start=0, step=1, limit=1
                $region141: #{tpu_custom_call.1} parent=132 // loop_pre_header
                  _
                $region142: #{tpu_custom_call.1} parent=132 // loop_header
                  %s1311 = sphi 0, %s1315
                  %p1312 = scmp.ge.s32.totalorder %s1311, 1
                  %s1316 = sphi %s1089, %s1089
                  %s1317 = sphi %s1084, %s1084
                $region143: #{tpu_custom_call.1} parent=132 // loop_header_branch
                  %1314 = sbr.rel (%p1312) target = $region147
                $region144: #{tpu_custom_call.1} parent=132 // loop_body
                  %v1318 = vld [vmem:[%s1316] sm:%s1309]
                  %1319 = vst [vmem:[%s1317] sm:%s1309] %v1318
                  %v1320 = vld [vmem:[%s1316 + $0x4] sm:%s1309]
                  %1321 = vst [vmem:[%s1317 + $0x4] sm:%s1309] %v1320
                  %v1322 = vld [vmem:[%s1316 + $0x8] sm:%s1309]
                  %1323 = vst [vmem:[%s1317 + $0x8] sm:%s1309] %v1322
                  %v1324 = vld [vmem:[%s1316 + $0xc] sm:%s1309]
                  %1325 = vst [vmem:[%s1317 + $0xc] sm:%s1309] %v1324
                  %v1326 = vld [vmem:[%s1316 + $0x10] sm:%s1309]
                  %1327 = vst [vmem:[%s1317 + $0x10] sm:%s1309] %v1326
                  %v1328 = vld [vmem:[%s1316 + $0x14] sm:%s1309]
                  %1329 = vst [vmem:[%s1317 + $0x14] sm:%s1309] %v1328
                  %v1330 = vld [vmem:[%s1316 + $0x18] sm:%s1309]
                  %1331 = vst [vmem:[%s1317 + $0x18] sm:%s1309] %v1330
                  %v1332 = vld [vmem:[%s1316 + $0x1c] sm:%s1309]
                  %1333 = vst [vmem:[%s1317 + $0x1c] sm:%s1309] %v1332
                  %v1334 = vld [vmem:[%s1316 + $0x20] sm:%s1309]
                  %1335 = vst [vmem:[%s1317 + $0x20] sm:%s1309] %v1334
                  %v1336 = vld [vmem:[%s1316 + $0x24] sm:%s1309]
                  %1337 = vst [vmem:[%s1317 + $0x24] sm:%s1309] %v1336
                  %v1338 = vld [vmem:[%s1316 + $0x28] sm:%s1309]
                  %1339 = vst [vmem:[%s1317 + $0x28] sm:%s1309] %v1338
                  %v1340 = vld [vmem:[%s1316 + $0x2c] sm:%s1309]
                  %1341 = vst [vmem:[%s1317 + $0x2c] sm:%s1309] %v1340
                  %v1342 = vld [vmem:[%s1316 + $0x30] sm:%s1309]
                  %1343 = vst [vmem:[%s1317 + $0x30] sm:%s1309] %v1342
                  %v1344 = vld [vmem:[%s1316 + $0x34] sm:%s1309]
                  %1345 = vst [vmem:[%s1317 + $0x34] sm:%s1309] %v1344
                  %v1346 = vld [vmem:[%s1316 + $0x38] sm:%s1309]
                  %1347 = vst [vmem:[%s1317 + $0x38] sm:%s1309] %v1346
                  %v1348 = vld [vmem:[%s1316 + $0x3c] sm:%s1309]
                  %1349 = vst [vmem:[%s1317 + $0x3c] sm:%s1309] %v1348
                  %v1350 = vld [vmem:[%s1316 + $0x40] sm:%s1309]
                  %1351 = vst [vmem:[%s1317 + $0x40] sm:%s1309] %v1350
                  %v1352 = vld [vmem:[%s1316 + $0x44] sm:%s1309]
                  %1353 = vst [vmem:[%s1317 + $0x44] sm:%s1309] %v1352
                  %v1354 = vld [vmem:[%s1316 + $0x48] sm:%s1309]
                  %1355 = vst [vmem:[%s1317 + $0x48] sm:%s1309] %v1354
                  %v1356 = vld [vmem:[%s1316 + $0x4c] sm:%s1309]
                  %1357 = vst [vmem:[%s1317 + $0x4c] sm:%s1309] %v1356
                  %v1358 = vld [vmem:[%s1316 + $0x50] sm:%s1309]
                  %1359 = vst [vmem:[%s1317 + $0x50] sm:%s1309] %v1358
                  %v1360 = vld [vmem:[%s1316 + $0x54] sm:%s1309]
                  %1361 = vst [vmem:[%s1317 + $0x54] sm:%s1309] %v1360
                  %v1362 = vld [vmem:[%s1316 + $0x58] sm:%s1309]
                  %1363 = vst [vmem:[%s1317 + $0x58] sm:%s1309] %v1362
                  %v1364 = vld [vmem:[%s1316 + $0x5c] sm:%s1309]
                  %1365 = vst [vmem:[%s1317 + $0x5c] sm:%s1309] %v1364
                  %v1366 = vld [vmem:[%s1316 + $0x60] sm:%s1309]
                  %1367 = vst [vmem:[%s1317 + $0x60] sm:%s1309] %v1366
                  %v1368 = vld [vmem:[%s1316 + $0x64] sm:%s1309]
                  %1369 = vst [vmem:[%s1317 + $0x64] sm:%s1309] %v1368
                  %v1370 = vld [vmem:[%s1316 + $0x68] sm:%s1309]
                  %1371 = vst [vmem:[%s1317 + $0x68] sm:%s1309] %v1370
                  %v1372 = vld [vmem:[%s1316 + $0x6c] sm:%s1309]
                  %1373 = vst [vmem:[%s1317 + $0x6c] sm:%s1309] %v1372
                  %v1374 = vld [vmem:[%s1316 + $0x70] sm:%s1309]
                  %1375 = vst [vmem:[%s1317 + $0x70] sm:%s1309] %v1374
                  %v1376 = vld [vmem:[%s1316 + $0x74] sm:%s1309]
                  %1377 = vst [vmem:[%s1317 + $0x74] sm:%s1309] %v1376
                  %v1378 = vld [vmem:[%s1316 + $0x78] sm:%s1309]
                  %1379 = vst [vmem:[%s1317 + $0x78] sm:%s1309] %v1378
                  %v1380 = vld [vmem:[%s1316 + $0x7c] sm:%s1309]
                  %1381 = vst [vmem:[%s1317 + $0x7c] sm:%s1309] %v1380
                  %v1382 = vld [vmem:[%s1316 + $0x100] sm:%s1309]
                  %1383 = vst [vmem:[%s1317 + $0x80] sm:%s1309] %v1382
                  %v1384 = vld [vmem:[%s1316 + $0x104] sm:%s1309]
                  %1385 = vst [vmem:[%s1317 + $0x84] sm:%s1309] %v1384
                  %v1386 = vld [vmem:[%s1316 + $0x108] sm:%s1309]
                  %1387 = vst [vmem:[%s1317 + $0x88] sm:%s1309] %v1386
                  %v1388 = vld [vmem:[%s1316 + $0x10c] sm:%s1309]
                  %1389 = vst [vmem:[%s1317 + $0x8c] sm:%s1309] %v1388
                  %v1390 = vld [vmem:[%s1316 + $0x110] sm:%s1309]
                  %1391 = vst [vmem:[%s1317 + $0x90] sm:%s1309] %v1390
                  %v1392 = vld [vmem:[%s1316 + $0x114] sm:%s1309]
                  %1393 = vst [vmem:[%s1317 + $0x94] sm:%s1309] %v1392
                  %v1394 = vld [vmem:[%s1316 + $0x118] sm:%s1309]
                  %1395 = vst [vmem:[%s1317 + $0x98] sm:%s1309] %v1394
                  %v1396 = vld [vmem:[%s1316 + $0x11c] sm:%s1309]
                  %1397 = vst [vmem:[%s1317 + $0x9c] sm:%s1309] %v1396
                  %v1398 = vld [vmem:[%s1316 + $0x120] sm:%s1309]
                  %1399 = vst [vmem:[%s1317 + $0xa0] sm:%s1309] %v1398
                  %v1400 = vld [vmem:[%s1316 + $0x124] sm:%s1309]
                  %1401 = vst [vmem:[%s1317 + $0xa4] sm:%s1309] %v1400
                  %v1402 = vld [vmem:[%s1316 + $0x128] sm:%s1309]
                  %1403 = vst [vmem:[%s1317 + $0xa8] sm:%s1309] %v1402
                  %v1404 = vld [vmem:[%s1316 + $0x12c] sm:%s1309]
                  %1405 = vst [vmem:[%s1317 + $0xac] sm:%s1309] %v1404
                  %v1406 = vld [vmem:[%s1316 + $0x130] sm:%s1309]
                  %1407 = vst [vmem:[%s1317 + $0xb0] sm:%s1309] %v1406
                  %v1408 = vld [vmem:[%s1316 + $0x134] sm:%s1309]
                  %1409 = vst [vmem:[%s1317 + $0xb4] sm:%s1309] %v1408
                  %v1410 = vld [vmem:[%s1316 + $0x138] sm:%s1309]
                  %1411 = vst [vmem:[%s1317 + $0xb8] sm:%s1309] %v1410
                  %v1412 = vld [vmem:[%s1316 + $0x13c] sm:%s1309]
                  %1413 = vst [vmem:[%s1317 + $0xbc] sm:%s1309] %v1412
                  %v1414 = vld [vmem:[%s1316 + $0x140] sm:%s1309]
                  %1415 = vst [vmem:[%s1317 + $0xc0] sm:%s1309] %v1414
                  %v1416 = vld [vmem:[%s1316 + $0x144] sm:%s1309]
                  %1417 = vst [vmem:[%s1317 + $0xc4] sm:%s1309] %v1416
                  %v1418 = vld [vmem:[%s1316 + $0x148] sm:%s1309]
                  %1419 = vst [vmem:[%s1317 + $0xc8] sm:%s1309] %v1418
                  %v1420 = vld [vmem:[%s1316 + $0x14c] sm:%s1309]
                  %1421 = vst [vmem:[%s1317 + $0xcc] sm:%s1309] %v1420
                  %v1422 = vld [vmem:[%s1316 + $0x150] sm:%s1309]
                  %1423 = vst [vmem:[%s1317 + $0xd0] sm:%s1309] %v1422
                  %v1424 = vld [vmem:[%s1316 + $0x154] sm:%s1309]
                  %1425 = vst [vmem:[%s1317 + $0xd4] sm:%s1309] %v1424
                  %v1426 = vld [vmem:[%s1316 + $0x158] sm:%s1309]
                  %1427 = vst [vmem:[%s1317 + $0xd8] sm:%s1309] %v1426
                  %v1428 = vld [vmem:[%s1316 + $0x15c] sm:%s1309]
                  %1429 = vst [vmem:[%s1317 + $0xdc] sm:%s1309] %v1428
                  %v1430 = vld [vmem:[%s1316 + $0x160] sm:%s1309]
                  %1431 = vst [vmem:[%s1317 + $0xe0] sm:%s1309] %v1430
                  %v1432 = vld [vmem:[%s1316 + $0x164] sm:%s1309]
                  %1433 = vst [vmem:[%s1317 + $0xe4] sm:%s1309] %v1432
                  %v1434 = vld [vmem:[%s1316 + $0x168] sm:%s1309]
                  %1435 = vst [vmem:[%s1317 + $0xe8] sm:%s1309] %v1434
                  %v1436 = vld [vmem:[%s1316 + $0x16c] sm:%s1309]
                  %1437 = vst [vmem:[%s1317 + $0xec] sm:%s1309] %v1436
                  %v1438 = vld [vmem:[%s1316 + $0x170] sm:%s1309]
                  %1439 = vst [vmem:[%s1317 + $0xf0] sm:%s1309] %v1438
                  %v1440 = vld [vmem:[%s1316 + $0x174] sm:%s1309]
                  %1441 = vst [vmem:[%s1317 + $0xf4] sm:%s1309] %v1440
                  %v1442 = vld [vmem:[%s1316 + $0x178] sm:%s1309]
                  %1443 = vst [vmem:[%s1317 + $0xf8] sm:%s1309] %v1442
                  %v1444 = vld [vmem:[%s1316 + $0x17c] sm:%s1309]
                  %1445 = vst [vmem:[%s1317 + $0xfc] sm:%s1309] %v1444
                  %v1446 = vld [vmem:[%s1316 + $0x200] sm:%s1309]
                  %1447 = vst [vmem:[%s1317 + $0x100] sm:%s1309] %v1446
                  %v1448 = vld [vmem:[%s1316 + $0x204] sm:%s1309]
                  %1449 = vst [vmem:[%s1317 + $0x104] sm:%s1309] %v1448
                  %v1450 = vld [vmem:[%s1316 + $0x208] sm:%s1309]
                  %1451 = vst [vmem:[%s1317 + $0x108] sm:%s1309] %v1450
                  %v1452 = vld [vmem:[%s1316 + $0x20c] sm:%s1309]
                  %1453 = vst [vmem:[%s1317 + $0x10c] sm:%s1309] %v1452
                  %v1454 = vld [vmem:[%s1316 + $0x210] sm:%s1309]
                  %1455 = vst [vmem:[%s1317 + $0x110] sm:%s1309] %v1454
                  %v1456 = vld [vmem:[%s1316 + $0x214] sm:%s1309]
                  %1457 = vst [vmem:[%s1317 + $0x114] sm:%s1309] %v1456
                  %v1458 = vld [vmem:[%s1316 + $0x218] sm:%s1309]
                  %1459 = vst [vmem:[%s1317 + $0x118] sm:%s1309] %v1458
                  %v1460 = vld [vmem:[%s1316 + $0x21c] sm:%s1309]
                  %1461 = vst [vmem:[%s1317 + $0x11c] sm:%s1309] %v1460
                  %v1462 = vld [vmem:[%s1316 + $0x220] sm:%s1309]
                  %1463 = vst [vmem:[%s1317 + $0x120] sm:%s1309] %v1462
                  %v1464 = vld [vmem:[%s1316 + $0x224] sm:%s1309]
                  %1465 = vst [vmem:[%s1317 + $0x124] sm:%s1309] %v1464
                  %v1466 = vld [vmem:[%s1316 + $0x228] sm:%s1309]
                  %1467 = vst [vmem:[%s1317 + $0x128] sm:%s1309] %v1466
                  %v1468 = vld [vmem:[%s1316 + $0x22c] sm:%s1309]
                  %1469 = vst [vmem:[%s1317 + $0x12c] sm:%s1309] %v1468
                  %v1470 = vld [vmem:[%s1316 + $0x230] sm:%s1309]
                  %1471 = vst [vmem:[%s1317 + $0x130] sm:%s1309] %v1470
                  %v1472 = vld [vmem:[%s1316 + $0x234] sm:%s1309]
                  %1473 = vst [vmem:[%s1317 + $0x134] sm:%s1309] %v1472
                  %v1474 = vld [vmem:[%s1316 + $0x238] sm:%s1309]
                  %1475 = vst [vmem:[%s1317 + $0x138] sm:%s1309] %v1474
                  %v1476 = vld [vmem:[%s1316 + $0x23c] sm:%s1309]
                  %1477 = vst [vmem:[%s1317 + $0x13c] sm:%s1309] %v1476
                  %v1478 = vld [vmem:[%s1316 + $0x240] sm:%s1309]
                  %1479 = vst [vmem:[%s1317 + $0x140] sm:%s1309] %v1478
                  %v1480 = vld [vmem:[%s1316 + $0x244] sm:%s1309]
                  %1481 = vst [vmem:[%s1317 + $0x144] sm:%s1309] %v1480
                  %v1482 = vld [vmem:[%s1316 + $0x248] sm:%s1309]
                  %1483 = vst [vmem:[%s1317 + $0x148] sm:%s1309] %v1482
                  %v1484 = vld [vmem:[%s1316 + $0x24c] sm:%s1309]
                  %1485 = vst [vmem:[%s1317 + $0x14c] sm:%s1309] %v1484
                  %v1486 = vld [vmem:[%s1316 + $0x250] sm:%s1309]
                  %1487 = vst [vmem:[%s1317 + $0x150] sm:%s1309] %v1486
                  %v1488 = vld [vmem:[%s1316 + $0x254] sm:%s1309]
                  %1489 = vst [vmem:[%s1317 + $0x154] sm:%s1309] %v1488
                  %v1490 = vld [vmem:[%s1316 + $0x258] sm:%s1309]
                  %1491 = vst [vmem:[%s1317 + $0x158] sm:%s1309] %v1490
                  %v1492 = vld [vmem:[%s1316 + $0x25c] sm:%s1309]
                  %1493 = vst [vmem:[%s1317 + $0x15c] sm:%s1309] %v1492
                  %v1494 = vld [vmem:[%s1316 + $0x260] sm:%s1309]
                  %1495 = vst [vmem:[%s1317 + $0x160] sm:%s1309] %v1494
                  %v1496 = vld [vmem:[%s1316 + $0x264] sm:%s1309]
                  %1497 = vst [vmem:[%s1317 + $0x164] sm:%s1309] %v1496
                  %v1498 = vld [vmem:[%s1316 + $0x268] sm:%s1309]
                  %1499 = vst [vmem:[%s1317 + $0x168] sm:%s1309] %v1498
                  %v1500 = vld [vmem:[%s1316 + $0x26c] sm:%s1309]
                  %1501 = vst [vmem:[%s1317 + $0x16c] sm:%s1309] %v1500
                  %v1502 = vld [vmem:[%s1316 + $0x270] sm:%s1309]
                  %1503 = vst [vmem:[%s1317 + $0x170] sm:%s1309] %v1502
                  %v1504 = vld [vmem:[%s1316 + $0x274] sm:%s1309]
                  %1505 = vst [vmem:[%s1317 + $0x174] sm:%s1309] %v1504
                  %v1506 = vld [vmem:[%s1316 + $0x278] sm:%s1309]
                  %1507 = vst [vmem:[%s1317 + $0x178] sm:%s1309] %v1506
                  %v1508 = vld [vmem:[%s1316 + $0x27c] sm:%s1309]
                  %1509 = vst [vmem:[%s1317 + $0x17c] sm:%s1309] %v1508
                $region145: #{tpu_custom_call.1} parent=132 // loop_footer
                  %s1315 = sadd.s32 1, %s1311
                $region146: #{tpu_custom_call.1} parent=132 // loop_footer_branch
                  %1310 = sbr.rel target = $region142
                $region147: #{tpu_custom_call.1} parent=132 // loop_exit
                  _
              $region133: #{tpu_custom_call.1} parent=117 // pred_fallthru
                _
            $region118: #{tpu_custom_call.1} parent=113 // pred_fallthru
              _
            // Predicated region
            $region119: #{tpu_custom_call.1} parent=113 // pred_check
              _
            $region120: #{tpu_custom_call.1} parent=113 // pred_check_branch
              %1095 = sbr.rel (0) target = $region122
            $region121: #{tpu_custom_call.1} parent=113 // pred_region
              %s1097 = ssub.s32 16, 1
              loop: start=0, step=1, limit=1
              $region123: #{tpu_custom_call.1} parent=121 // loop_pre_header
                _
              $region124: #{tpu_custom_call.1} parent=121 // loop_header
                %s1099 = sphi 0, %s1103
                %p1100 = scmp.ge.s32.totalorder %s1099, 1
                %s1104 = sphi %s1089, %s1089
                %s1105 = sphi %s1084, %s1084
              $region125: #{tpu_custom_call.1} parent=121 // loop_header_branch
                %1102 = sbr.rel (%p1100) target = $region129
              $region126: #{tpu_custom_call.1} parent=121 // loop_body
                %v1106 = vld [vmem:[%s1104] sm:%s1097]
                %1107 = vst [vmem:[%s1105] sm:%s1097] %v1106
                %v1108 = vld [vmem:[%s1104 + $0x4] sm:%s1097]
                %1109 = vst [vmem:[%s1105 + $0x4] sm:%s1097] %v1108
                %v1110 = vld [vmem:[%s1104 + $0x8] sm:%s1097]
                %1111 = vst [vmem:[%s1105 + $0x8] sm:%s1097] %v1110
                %v1112 = vld [vmem:[%s1104 + $0xc] sm:%s1097]
                %1113 = vst [vmem:[%s1105 + $0xc] sm:%s1097] %v1112
                %v1114 = vld [vmem:[%s1104 + $0x10] sm:%s1097]
                %1115 = vst [vmem:[%s1105 + $0x10] sm:%s1097] %v1114
                %v1116 = vld [vmem:[%s1104 + $0x14] sm:%s1097]
                %1117 = vst [vmem:[%s1105 + $0x14] sm:%s1097] %v1116
                %v1118 = vld [vmem:[%s1104 + $0x18] sm:%s1097]
                %1119 = vst [vmem:[%s1105 + $0x18] sm:%s1097] %v1118
                %v1120 = vld [vmem:[%s1104 + $0x1c] sm:%s1097]
                %1121 = vst [vmem:[%s1105 + $0x1c] sm:%s1097] %v1120
                %v1122 = vld [vmem:[%s1104 + $0x20] sm:%s1097]
                %1123 = vst [vmem:[%s1105 + $0x20] sm:%s1097] %v1122
                %v1124 = vld [vmem:[%s1104 + $0x24] sm:%s1097]
                %1125 = vst [vmem:[%s1105 + $0x24] sm:%s1097] %v1124
                %v1126 = vld [vmem:[%s1104 + $0x28] sm:%s1097]
                %1127 = vst [vmem:[%s1105 + $0x28] sm:%s1097] %v1126
                %v1128 = vld [vmem:[%s1104 + $0x2c] sm:%s1097]
                %1129 = vst [vmem:[%s1105 + $0x2c] sm:%s1097] %v1128
                %v1130 = vld [vmem:[%s1104 + $0x30] sm:%s1097]
                %1131 = vst [vmem:[%s1105 + $0x30] sm:%s1097] %v1130
                %v1132 = vld [vmem:[%s1104 + $0x34] sm:%s1097]
                %1133 = vst [vmem:[%s1105 + $0x34] sm:%s1097] %v1132
                %v1134 = vld [vmem:[%s1104 + $0x38] sm:%s1097]
                %1135 = vst [vmem:[%s1105 + $0x38] sm:%s1097] %v1134
                %v1136 = vld [vmem:[%s1104 + $0x3c] sm:%s1097]
                %1137 = vst [vmem:[%s1105 + $0x3c] sm:%s1097] %v1136
                %v1138 = vld [vmem:[%s1104 + $0x40] sm:%s1097]
                %1139 = vst [vmem:[%s1105 + $0x40] sm:%s1097] %v1138
                %v1140 = vld [vmem:[%s1104 + $0x44] sm:%s1097]
                %1141 = vst [vmem:[%s1105 + $0x44] sm:%s1097] %v1140
                %v1142 = vld [vmem:[%s1104 + $0x48] sm:%s1097]
                %1143 = vst [vmem:[%s1105 + $0x48] sm:%s1097] %v1142
                %v1144 = vld [vmem:[%s1104 + $0x4c] sm:%s1097]
                %1145 = vst [vmem:[%s1105 + $0x4c] sm:%s1097] %v1144
                %v1146 = vld [vmem:[%s1104 + $0x50] sm:%s1097]
                %1147 = vst [vmem:[%s1105 + $0x50] sm:%s1097] %v1146
                %v1148 = vld [vmem:[%s1104 + $0x54] sm:%s1097]
                %1149 = vst [vmem:[%s1105 + $0x54] sm:%s1097] %v1148
                %v1150 = vld [vmem:[%s1104 + $0x58] sm:%s1097]
                %1151 = vst [vmem:[%s1105 + $0x58] sm:%s1097] %v1150
                %v1152 = vld [vmem:[%s1104 + $0x5c] sm:%s1097]
                %1153 = vst [vmem:[%s1105 + $0x5c] sm:%s1097] %v1152
                %v1154 = vld [vmem:[%s1104 + $0x60] sm:%s1097]
                %1155 = vst [vmem:[%s1105 + $0x60] sm:%s1097] %v1154
                %v1156 = vld [vmem:[%s1104 + $0x64] sm:%s1097]
                %1157 = vst [vmem:[%s1105 + $0x64] sm:%s1097] %v1156
                %v1158 = vld [vmem:[%s1104 + $0x68] sm:%s1097]
                %1159 = vst [vmem:[%s1105 + $0x68] sm:%s1097] %v1158
                %v1160 = vld [vmem:[%s1104 + $0x6c] sm:%s1097]
                %1161 = vst [vmem:[%s1105 + $0x6c] sm:%s1097] %v1160
                %v1162 = vld [vmem:[%s1104 + $0x70] sm:%s1097]
                %1163 = vst [vmem:[%s1105 + $0x70] sm:%s1097] %v1162
                %v1164 = vld [vmem:[%s1104 + $0x74] sm:%s1097]
                %1165 = vst [vmem:[%s1105 + $0x74] sm:%s1097] %v1164
                %v1166 = vld [vmem:[%s1104 + $0x78] sm:%s1097]
                %1167 = vst [vmem:[%s1105 + $0x78] sm:%s1097] %v1166
                %v1168 = vld [vmem:[%s1104 + $0x7c] sm:%s1097]
                %1169 = vst [vmem:[%s1105 + $0x7c] sm:%s1097] %v1168
                %v1170 = vld [vmem:[%s1104 + $0x100] sm:%s1097]
                %1171 = vst [vmem:[%s1105 + $0x80] sm:%s1097] %v1170
                %v1172 = vld [vmem:[%s1104 + $0x104] sm:%s1097]
                %1173 = vst [vmem:[%s1105 + $0x84] sm:%s1097] %v1172
                %v1174 = vld [vmem:[%s1104 + $0x108] sm:%s1097]
                %1175 = vst [vmem:[%s1105 + $0x88] sm:%s1097] %v1174
                %v1176 = vld [vmem:[%s1104 + $0x10c] sm:%s1097]
                %1177 = vst [vmem:[%s1105 + $0x8c] sm:%s1097] %v1176
                %v1178 = vld [vmem:[%s1104 + $0x110] sm:%s1097]
                %1179 = vst [vmem:[%s1105 + $0x90] sm:%s1097] %v1178
                %v1180 = vld [vmem:[%s1104 + $0x114] sm:%s1097]
                %1181 = vst [vmem:[%s1105 + $0x94] sm:%s1097] %v1180
                %v1182 = vld [vmem:[%s1104 + $0x118] sm:%s1097]
                %1183 = vst [vmem:[%s1105 + $0x98] sm:%s1097] %v1182
                %v1184 = vld [vmem:[%s1104 + $0x11c] sm:%s1097]
                %1185 = vst [vmem:[%s1105 + $0x9c] sm:%s1097] %v1184
                %v1186 = vld [vmem:[%s1104 + $0x120] sm:%s1097]
                %1187 = vst [vmem:[%s1105 + $0xa0] sm:%s1097] %v1186
                %v1188 = vld [vmem:[%s1104 + $0x124] sm:%s1097]
                %1189 = vst [vmem:[%s1105 + $0xa4] sm:%s1097] %v1188
                %v1190 = vld [vmem:[%s1104 + $0x128] sm:%s1097]
                %1191 = vst [vmem:[%s1105 + $0xa8] sm:%s1097] %v1190
                %v1192 = vld [vmem:[%s1104 + $0x12c] sm:%s1097]
                %1193 = vst [vmem:[%s1105 + $0xac] sm:%s1097] %v1192
                %v1194 = vld [vmem:[%s1104 + $0x130] sm:%s1097]
                %1195 = vst [vmem:[%s1105 + $0xb0] sm:%s1097] %v1194
                %v1196 = vld [vmem:[%s1104 + $0x134] sm:%s1097]
                %1197 = vst [vmem:[%s1105 + $0xb4] sm:%s1097] %v1196
                %v1198 = vld [vmem:[%s1104 + $0x138] sm:%s1097]
                %1199 = vst [vmem:[%s1105 + $0xb8] sm:%s1097] %v1198
                %v1200 = vld [vmem:[%s1104 + $0x13c] sm:%s1097]
                %1201 = vst [vmem:[%s1105 + $0xbc] sm:%s1097] %v1200
                %v1202 = vld [vmem:[%s1104 + $0x140] sm:%s1097]
                %1203 = vst [vmem:[%s1105 + $0xc0] sm:%s1097] %v1202
                %v1204 = vld [vmem:[%s1104 + $0x144] sm:%s1097]
                %1205 = vst [vmem:[%s1105 + $0xc4] sm:%s1097] %v1204
                %v1206 = vld [vmem:[%s1104 + $0x148] sm:%s1097]
                %1207 = vst [vmem:[%s1105 + $0xc8] sm:%s1097] %v1206
                %v1208 = vld [vmem:[%s1104 + $0x14c] sm:%s1097]
                %1209 = vst [vmem:[%s1105 + $0xcc] sm:%s1097] %v1208
                %v1210 = vld [vmem:[%s1104 + $0x150] sm:%s1097]
                %1211 = vst [vmem:[%s1105 + $0xd0] sm:%s1097] %v1210
                %v1212 = vld [vmem:[%s1104 + $0x154] sm:%s1097]
                %1213 = vst [vmem:[%s1105 + $0xd4] sm:%s1097] %v1212
                %v1214 = vld [vmem:[%s1104 + $0x158] sm:%s1097]
                %1215 = vst [vmem:[%s1105 + $0xd8] sm:%s1097] %v1214
                %v1216 = vld [vmem:[%s1104 + $0x15c] sm:%s1097]
                %1217 = vst [vmem:[%s1105 + $0xdc] sm:%s1097] %v1216
                %v1218 = vld [vmem:[%s1104 + $0x160] sm:%s1097]
                %1219 = vst [vmem:[%s1105 + $0xe0] sm:%s1097] %v1218
                %v1220 = vld [vmem:[%s1104 + $0x164] sm:%s1097]
                %1221 = vst [vmem:[%s1105 + $0xe4] sm:%s1097] %v1220
                %v1222 = vld [vmem:[%s1104 + $0x168] sm:%s1097]
                %1223 = vst [vmem:[%s1105 + $0xe8] sm:%s1097] %v1222
                %v1224 = vld [vmem:[%s1104 + $0x16c] sm:%s1097]
                %1225 = vst [vmem:[%s1105 + $0xec] sm:%s1097] %v1224
                %v1226 = vld [vmem:[%s1104 + $0x170] sm:%s1097]
                %1227 = vst [vmem:[%s1105 + $0xf0] sm:%s1097] %v1226
                %v1228 = vld [vmem:[%s1104 + $0x174] sm:%s1097]
                %1229 = vst [vmem:[%s1105 + $0xf4] sm:%s1097] %v1228
                %v1230 = vld [vmem:[%s1104 + $0x178] sm:%s1097]
                %1231 = vst [vmem:[%s1105 + $0xf8] sm:%s1097] %v1230
                %v1232 = vld [vmem:[%s1104 + $0x17c] sm:%s1097]
                %1233 = vst [vmem:[%s1105 + $0xfc] sm:%s1097] %v1232
                %v1234 = vld [vmem:[%s1104 + $0x200] sm:%s1097]
                %1235 = vst [vmem:[%s1105 + $0x100] sm:%s1097] %v1234
                %v1236 = vld [vmem:[%s1104 + $0x204] sm:%s1097]
                %1237 = vst [vmem:[%s1105 + $0x104] sm:%s1097] %v1236
                %v1238 = vld [vmem:[%s1104 + $0x208] sm:%s1097]
                %1239 = vst [vmem:[%s1105 + $0x108] sm:%s1097] %v1238
                %v1240 = vld [vmem:[%s1104 + $0x20c] sm:%s1097]
                %1241 = vst [vmem:[%s1105 + $0x10c] sm:%s1097] %v1240
                %v1242 = vld [vmem:[%s1104 + $0x210] sm:%s1097]
                %1243 = vst [vmem:[%s1105 + $0x110] sm:%s1097] %v1242
                %v1244 = vld [vmem:[%s1104 + $0x214] sm:%s1097]
                %1245 = vst [vmem:[%s1105 + $0x114] sm:%s1097] %v1244
                %v1246 = vld [vmem:[%s1104 + $0x218] sm:%s1097]
                %1247 = vst [vmem:[%s1105 + $0x118] sm:%s1097] %v1246
                %v1248 = vld [vmem:[%s1104 + $0x21c] sm:%s1097]
                %1249 = vst [vmem:[%s1105 + $0x11c] sm:%s1097] %v1248
                %v1250 = vld [vmem:[%s1104 + $0x220] sm:%s1097]
                %1251 = vst [vmem:[%s1105 + $0x120] sm:%s1097] %v1250
                %v1252 = vld [vmem:[%s1104 + $0x224] sm:%s1097]
                %1253 = vst [vmem:[%s1105 + $0x124] sm:%s1097] %v1252
                %v1254 = vld [vmem:[%s1104 + $0x228] sm:%s1097]
                %1255 = vst [vmem:[%s1105 + $0x128] sm:%s1097] %v1254
                %v1256 = vld [vmem:[%s1104 + $0x22c] sm:%s1097]
                %1257 = vst [vmem:[%s1105 + $0x12c] sm:%s1097] %v1256
                %v1258 = vld [vmem:[%s1104 + $0x230] sm:%s1097]
                %1259 = vst [vmem:[%s1105 + $0x130] sm:%s1097] %v1258
                %v1260 = vld [vmem:[%s1104 + $0x234] sm:%s1097]
                %1261 = vst [vmem:[%s1105 + $0x134] sm:%s1097] %v1260
                %v1262 = vld [vmem:[%s1104 + $0x238] sm:%s1097]
                %1263 = vst [vmem:[%s1105 + $0x138] sm:%s1097] %v1262
                %v1264 = vld [vmem:[%s1104 + $0x23c] sm:%s1097]
                %1265 = vst [vmem:[%s1105 + $0x13c] sm:%s1097] %v1264
                %v1266 = vld [vmem:[%s1104 + $0x240] sm:%s1097]
                %1267 = vst [vmem:[%s1105 + $0x140] sm:%s1097] %v1266
                %v1268 = vld [vmem:[%s1104 + $0x244] sm:%s1097]
                %1269 = vst [vmem:[%s1105 + $0x144] sm:%s1097] %v1268
                %v1270 = vld [vmem:[%s1104 + $0x248] sm:%s1097]
                %1271 = vst [vmem:[%s1105 + $0x148] sm:%s1097] %v1270
                %v1272 = vld [vmem:[%s1104 + $0x24c] sm:%s1097]
                %1273 = vst [vmem:[%s1105 + $0x14c] sm:%s1097] %v1272
                %v1274 = vld [vmem:[%s1104 + $0x250] sm:%s1097]
                %1275 = vst [vmem:[%s1105 + $0x150] sm:%s1097] %v1274
                %v1276 = vld [vmem:[%s1104 + $0x254] sm:%s1097]
                %1277 = vst [vmem:[%s1105 + $0x154] sm:%s1097] %v1276
                %v1278 = vld [vmem:[%s1104 + $0x258] sm:%s1097]
                %1279 = vst [vmem:[%s1105 + $0x158] sm:%s1097] %v1278
                %v1280 = vld [vmem:[%s1104 + $0x25c] sm:%s1097]
                %1281 = vst [vmem:[%s1105 + $0x15c] sm:%s1097] %v1280
                %v1282 = vld [vmem:[%s1104 + $0x260] sm:%s1097]
                %1283 = vst [vmem:[%s1105 + $0x160] sm:%s1097] %v1282
                %v1284 = vld [vmem:[%s1104 + $0x264] sm:%s1097]
                %1285 = vst [vmem:[%s1105 + $0x164] sm:%s1097] %v1284
                %v1286 = vld [vmem:[%s1104 + $0x268] sm:%s1097]
                %1287 = vst [vmem:[%s1105 + $0x168] sm:%s1097] %v1286
                %v1288 = vld [vmem:[%s1104 + $0x26c] sm:%s1097]
                %1289 = vst [vmem:[%s1105 + $0x16c] sm:%s1097] %v1288
                %v1290 = vld [vmem:[%s1104 + $0x270] sm:%s1097]
                %1291 = vst [vmem:[%s1105 + $0x170] sm:%s1097] %v1290
                %v1292 = vld [vmem:[%s1104 + $0x274] sm:%s1097]
                %1293 = vst [vmem:[%s1105 + $0x174] sm:%s1097] %v1292
                %v1294 = vld [vmem:[%s1104 + $0x278] sm:%s1097]
                %1295 = vst [vmem:[%s1105 + $0x178] sm:%s1097] %v1294
                %v1296 = vld [vmem:[%s1104 + $0x27c] sm:%s1097]
                %1297 = vst [vmem:[%s1105 + $0x17c] sm:%s1097] %v1296
              $region127: #{tpu_custom_call.1} parent=121 // loop_footer
                %s1103 = sadd.s32 1, %s1099
              $region128: #{tpu_custom_call.1} parent=121 // loop_footer_branch
                %1098 = sbr.rel target = $region124
              $region129: #{tpu_custom_call.1} parent=121 // loop_exit
                _
            $region122: #{tpu_custom_call.1} parent=113 // pred_fallthru
              _
          $region114: #{tpu_custom_call.1} parent=109 // pred_fallthru
            _
          %1510 = vnop
        $region110: #{tpu_custom_call.1} parent=23 // pred_fallthru
          _
      $region24: #{tpu_custom_call.1} parent=5 // pred_fallthru
        _
      %p1511 = scmp.le.s32.totalorder 1, %s14
      %p1512 = scmp.lt.s32.totalorder %s14, 9
      %p1513 = pnand %p1511, %p1512
      %p1514 = pneg %p1513
      // Predicated region
      $region148: #{tpu_custom_call.1} parent=5 // pred_check
        _
      $region149: #{tpu_custom_call.1} parent=5 // pred_check_branch
        %1516 = sbr.rel (%p1513) target = $region151
      $region150: #{tpu_custom_call.1} parent=5 // pred_region
        %s1517 = ssub.s32 %s14, 1
        %s1518 = sand.u32 %s48, 1
        %s1519 = sand.u32 %s48, 1
        %s1520 = smul.addr %s1519, 384
        %s1521 = scalar_lea.vmem [#allocation5], %s1520
        // Predicated region
        $region152: #{tpu_custom_call.1} parent=150 // pred_check
          %p1522 = pneg %p61
        $region153: #{tpu_custom_call.1} parent=150 // pred_check_branch
          %1524 = sbr.rel (%p1522) target = $region155
        $region154: #{tpu_custom_call.1} parent=150 // pred_region
          _
        $region155: #{tpu_custom_call.1} parent=150 // pred_fallthru
          _
        %s1525 = sand.u32 %s76, 1
        %s1526 = sand.u32 %s76, 1
        %s1527 = smul.addr %s1526, 384
        %s1528 = scalar_lea.vmem [#allocation6], %s1527
        // Predicated region
        $region156: #{tpu_custom_call.1} parent=150 // pred_check
          %p1529 = pneg %p89
        $region157: #{tpu_custom_call.1} parent=150 // pred_check_branch
          %1531 = sbr.rel (%p1529) target = $region159
        $region158: #{tpu_custom_call.1} parent=150 // pred_region
          _
        $region159: #{tpu_custom_call.1} parent=150 // pred_fallthru
          _
        %s1532 = sand.u32 %s104, 1
        %s1533 = sand.u32 %s104, 1
        %s1534 = smul.addr %s1533, 384
        %s1535 = scalar_lea.vmem [#allocation7], %s1534
        // Predicated region
        $region160: #{tpu_custom_call.1} parent=150 // pred_check
          %p1536 = pneg %p117
        $region161: #{tpu_custom_call.1} parent=150 // pred_check_branch
          %1538 = sbr.rel (%p1536) target = $region163
        $region162: #{tpu_custom_call.1} parent=150 // pred_region
          _
        $region163: #{tpu_custom_call.1} parent=150 // pred_fallthru
          _
        %s1539 = sand.u32 %s48, 1
        %s1540 = sand.u32 %s48, 1
        %s1541 = smul.addr %s1540, 384
        %s1542 = scalar_lea.vmem [#allocation5], %s1541
        %p1543 = pneg %p61
        %p1544 = pneg %p58
        %s1545 = sand.u32 %s76, 1
        %s1546 = sand.u32 %s76, 1
        %s1547 = smul.addr %s1546, 384
        %s1548 = scalar_lea.vmem [#allocation6], %s1547
        %p1549 = pneg %p89
        %p1550 = pneg %p86
        %s1551 = sand.u32 %s104, 1
        %s1552 = sand.u32 %s104, 1
        %s1553 = smul.addr %s1552, 384
        %s1554 = scalar_lea.vmem [#allocation7], %s1553
        %p1555 = pneg %p117
        %p1556 = pneg %p114
        %p1557 = pneg %p138
        %p1558 = pneg %p135
        %p1559 = pneg %p159
        %p1560 = pneg %p156
        %p1561 = pneg %p187
        %p1562 = pneg %p184
        %s1563 = sand.u32 %s174, 1
        %s1564 = scalar_lea.sflag [#allocation9], %s1563
        %s1565 = sand.u32 %s174, 1
        %s1566 = smul.addr %s1565, 256
        %s1567 = scalar_lea.vmem [#allocation8], %s1566
        %s1568 = smul.u32 32, %s25
        %s1569 = smul.u32 32, %s26
        %s1570 = smul.u32 32, %s26
        %s1571 = smul.u32 32, %s25
        %p1573 = scmp.eq.s32.totalorder %s26, 0
        // Predicated region
        $region164: #{tpu_custom_call.1} parent=150 // pred_check
          %p1574 = pneg %p1573
        $region165: #{tpu_custom_call.1} parent=150 // pred_check_branch
          %1576 = sbr.rel (%p1574) target = $region167
        $region166: #{tpu_custom_call.1} parent=150 // pred_region
          %vm1577 = vcmask 7168
          %1578 = vst.msk [vmem:[#allocation2] sm:$0xff] %vm1577, -inf
          %1579 = vst.msk [vmem:[#allocation2 + $0x8] sm:$0xff] %vm1577, -inf
          %1580 = vst.msk [vmem:[#allocation2 + $0x10] sm:$0xff] %vm1577, -inf
          %1581 = vst.msk [vmem:[#allocation2 + $0x18] sm:$0xff] %vm1577, -inf
          %1582 = vst.msk [vmem:[#allocation2 + $0x20] sm:$0xff] %vm1577, -inf
          %1583 = vst.msk [vmem:[#allocation2 + $0x28] sm:$0xff] %vm1577, -inf
          %1584 = vst.msk [vmem:[#allocation2 + $0x30] sm:$0xff] %vm1577, -inf
          %1585 = vst.msk [vmem:[#allocation2 + $0x38] sm:$0xff] %vm1577, -inf
          %1586 = vst.msk [vmem:[#allocation2 + $0x40] sm:$0xff] %vm1577, -inf
          %1587 = vst.msk [vmem:[#allocation2 + $0x48] sm:$0xff] %vm1577, -inf
          %1588 = vst.msk [vmem:[#allocation2 + $0x50] sm:$0xff] %vm1577, -inf
          %1589 = vst.msk [vmem:[#allocation2 + $0x58] sm:$0xff] %vm1577, -inf
          %1590 = vst.msk [vmem:[#allocation2 + $0x60] sm:$0xff] %vm1577, -inf
          %1591 = vst.msk [vmem:[#allocation2 + $0x68] sm:$0xff] %vm1577, -inf
          %1592 = vst.msk [vmem:[#allocation2 + $0x70] sm:$0xff] %vm1577, -inf
          %1593 = vst.msk [vmem:[#allocation2 + $0x78] sm:$0xff] %vm1577, -inf
          %1594 = vst.msk [vmem:[#allocation2 + $0x80] sm:$0xff] %vm1577, -inf
          %1595 = vst.msk [vmem:[#allocation2 + $0x88] sm:$0xff] %vm1577, -inf
          %1596 = vst.msk [vmem:[#allocation2 + $0x90] sm:$0xff] %vm1577, -inf
          %1597 = vst.msk [vmem:[#allocation2 + $0x98] sm:$0xff] %vm1577, -inf
          %1598 = vst.msk [vmem:[#allocation2 + $0xa0] sm:$0xff] %vm1577, -inf
          %1599 = vst.msk [vmem:[#allocation2 + $0xa8] sm:$0xff] %vm1577, -inf
          %1600 = vst.msk [vmem:[#allocation2 + $0xb0] sm:$0xff] %vm1577, -inf
          %1601 = vst.msk [vmem:[#allocation2 + $0xb8] sm:$0xff] %vm1577, -inf
          %1602 = vst.msk [vmem:[#allocation2 + $0xc0] sm:$0xff] %vm1577, -inf
          %1603 = vst.msk [vmem:[#allocation2 + $0xc8] sm:$0xff] %vm1577, -inf
          %1604 = vst.msk [vmem:[#allocation2 + $0xd0] sm:$0xff] %vm1577, -inf
          %1605 = vst.msk [vmem:[#allocation2 + $0xd8] sm:$0xff] %vm1577, -inf
          %1606 = vst.msk [vmem:[#allocation2 + $0xe0] sm:$0xff] %vm1577, -inf
          %1607 = vst.msk [vmem:[#allocation2 + $0xe8] sm:$0xff] %vm1577, -inf
          %1608 = vst.msk [vmem:[#allocation2 + $0xf0] sm:$0xff] %vm1577, -inf
          %1609 = vst.msk [vmem:[#allocation2 + $0xf8] sm:$0xff] %vm1577, -inf
          %1610 = vst.msk [vmem:[#allocation2 + $0x100] sm:$0xff] %vm1577, -inf
          %1611 = vst.msk [vmem:[#allocation2 + $0x108] sm:$0xff] %vm1577, -inf
          %1612 = vst.msk [vmem:[#allocation2 + $0x110] sm:$0xff] %vm1577, -inf
          %1613 = vst.msk [vmem:[#allocation2 + $0x118] sm:$0xff] %vm1577, -inf
          %1614 = vst.msk [vmem:[#allocation2 + $0x120] sm:$0xff] %vm1577, -inf
          %1615 = vst.msk [vmem:[#allocation2 + $0x128] sm:$0xff] %vm1577, -inf
          %1616 = vst.msk [vmem:[#allocation2 + $0x130] sm:$0xff] %vm1577, -inf
          %1617 = vst.msk [vmem:[#allocation2 + $0x138] sm:$0xff] %vm1577, -inf
          %1618 = vst.msk [vmem:[#allocation2 + $0x140] sm:$0xff] %vm1577, -inf
          %1619 = vst.msk [vmem:[#allocation2 + $0x148] sm:$0xff] %vm1577, -inf
          %1620 = vst.msk [vmem:[#allocation2 + $0x150] sm:$0xff] %vm1577, -inf
          %1621 = vst.msk [vmem:[#allocation2 + $0x158] sm:$0xff] %vm1577, -inf
          %1622 = vst.msk [vmem:[#allocation2 + $0x160] sm:$0xff] %vm1577, -inf
          %1623 = vst.msk [vmem:[#allocation2 + $0x168] sm:$0xff] %vm1577, -inf
          %1624 = vst.msk [vmem:[#allocation2 + $0x170] sm:$0xff] %vm1577, -inf
          %1625 = vst.msk [vmem:[#allocation2 + $0x178] sm:$0xff] %vm1577, -inf
          %1626 = vst.msk [vmem:[#allocation2 + $0x180] sm:$0xff] %vm1577, -inf
          %1627 = vst.msk [vmem:[#allocation2 + $0x188] sm:$0xff] %vm1577, -inf
          %1628 = vst.msk [vmem:[#allocation2 + $0x190] sm:$0xff] %vm1577, -inf
          %1629 = vst.msk [vmem:[#allocation2 + $0x198] sm:$0xff] %vm1577, -inf
          %1630 = vst.msk [vmem:[#allocation2 + $0x1a0] sm:$0xff] %vm1577, -inf
          %1631 = vst.msk [vmem:[#allocation2 + $0x1a8] sm:$0xff] %vm1577, -inf
          %1632 = vst.msk [vmem:[#allocation2 + $0x1b0] sm:$0xff] %vm1577, -inf
          %1633 = vst.msk [vmem:[#allocation2 + $0x1b8] sm:$0xff] %vm1577, -inf
          %1634 = vst.msk [vmem:[#allocation2 + $0x1c0] sm:$0xff] %vm1577, -inf
          %1635 = vst.msk [vmem:[#allocation2 + $0x1c8] sm:$0xff] %vm1577, -inf
          %1636 = vst.msk [vmem:[#allocation2 + $0x1d0] sm:$0xff] %vm1577, -inf
          %1637 = vst.msk [vmem:[#allocation2 + $0x1d8] sm:$0xff] %vm1577, -inf
          %1638 = vst.msk [vmem:[#allocation2 + $0x1e0] sm:$0xff] %vm1577, -inf
          %1639 = vst.msk [vmem:[#allocation2 + $0x1e8] sm:$0xff] %vm1577, -inf
          %1640 = vst.msk [vmem:[#allocation2 + $0x1f0] sm:$0xff] %vm1577, -inf
          %1641 = vst.msk [vmem:[#allocation2 + $0x1f8] sm:$0xff] %vm1577, -inf
          %1642 = vst.msk [vmem:[#allocation2 + $0x200] sm:$0xff] %vm1577, -inf
          %1643 = vst.msk [vmem:[#allocation2 + $0x208] sm:$0xff] %vm1577, -inf
          %1644 = vst.msk [vmem:[#allocation2 + $0x210] sm:$0xff] %vm1577, -inf
          %1645 = vst.msk [vmem:[#allocation2 + $0x218] sm:$0xff] %vm1577, -inf
          %1646 = vst.msk [vmem:[#allocation2 + $0x220] sm:$0xff] %vm1577, -inf
          %1647 = vst.msk [vmem:[#allocation2 + $0x228] sm:$0xff] %vm1577, -inf
          %1648 = vst.msk [vmem:[#allocation2 + $0x230] sm:$0xff] %vm1577, -inf
          %1649 = vst.msk [vmem:[#allocation2 + $0x238] sm:$0xff] %vm1577, -inf
          %1650 = vst.msk [vmem:[#allocation2 + $0x240] sm:$0xff] %vm1577, -inf
          %1651 = vst.msk [vmem:[#allocation2 + $0x248] sm:$0xff] %vm1577, -inf
          %1652 = vst.msk [vmem:[#allocation2 + $0x250] sm:$0xff] %vm1577, -inf
          %1653 = vst.msk [vmem:[#allocation2 + $0x258] sm:$0xff] %vm1577, -inf
          %1654 = vst.msk [vmem:[#allocation2 + $0x260] sm:$0xff] %vm1577, -inf
          %1655 = vst.msk [vmem:[#allocation2 + $0x268] sm:$0xff] %vm1577, -inf
          %1656 = vst.msk [vmem:[#allocation2 + $0x270] sm:$0xff] %vm1577, -inf
          %1657 = vst.msk [vmem:[#allocation2 + $0x278] sm:$0xff] %vm1577, -inf
          %1658 = vst.msk [vmem:[#allocation2 + $0x280] sm:$0xff] %vm1577, -inf
          %1659 = vst.msk [vmem:[#allocation2 + $0x288] sm:$0xff] %vm1577, -inf
          %1660 = vst.msk [vmem:[#allocation2 + $0x290] sm:$0xff] %vm1577, -inf
          %1661 = vst.msk [vmem:[#allocation2 + $0x298] sm:$0xff] %vm1577, -inf
          %1662 = vst.msk [vmem:[#allocation2 + $0x2a0] sm:$0xff] %vm1577, -inf
          %1663 = vst.msk [vmem:[#allocation2 + $0x2a8] sm:$0xff] %vm1577, -inf
          %1664 = vst.msk [vmem:[#allocation2 + $0x2b0] sm:$0xff] %vm1577, -inf
          %1665 = vst.msk [vmem:[#allocation2 + $0x2b8] sm:$0xff] %vm1577, -inf
          %1666 = vst.msk [vmem:[#allocation2 + $0x2c0] sm:$0xff] %vm1577, -inf
          %1667 = vst.msk [vmem:[#allocation2 + $0x2c8] sm:$0xff] %vm1577, -inf
          %1668 = vst.msk [vmem:[#allocation2 + $0x2d0] sm:$0xff] %vm1577, -inf
          %1669 = vst.msk [vmem:[#allocation2 + $0x2d8] sm:$0xff] %vm1577, -inf
          %1670 = vst.msk [vmem:[#allocation2 + $0x2e0] sm:$0xff] %vm1577, -inf
          %1671 = vst.msk [vmem:[#allocation2 + $0x2e8] sm:$0xff] %vm1577, -inf
          %1672 = vst.msk [vmem:[#allocation2 + $0x2f0] sm:$0xff] %vm1577, -inf
          %1673 = vst.msk [vmem:[#allocation2 + $0x2f8] sm:$0xff] %vm1577, -inf
          %1674 = vst.msk [vmem:[#allocation3] sm:$0xff] %vm1577, 0.0
          %1675 = vst.msk [vmem:[#allocation3 + $0x8] sm:$0xff] %vm1577, 0.0
          %1676 = vst.msk [vmem:[#allocation3 + $0x10] sm:$0xff] %vm1577, 0.0
          %1677 = vst.msk [vmem:[#allocation3 + $0x18] sm:$0xff] %vm1577, 0.0
          %1678 = vst.msk [vmem:[#allocation3 + $0x20] sm:$0xff] %vm1577, 0.0
          %1679 = vst.msk [vmem:[#allocation3 + $0x28] sm:$0xff] %vm1577, 0.0
          %1680 = vst.msk [vmem:[#allocation3 + $0x30] sm:$0xff] %vm1577, 0.0
          %1681 = vst.msk [vmem:[#allocation3 + $0x38] sm:$0xff] %vm1577, 0.0
          %1682 = vst.msk [vmem:[#allocation3 + $0x40] sm:$0xff] %vm1577, 0.0
          %1683 = vst.msk [vmem:[#allocation3 + $0x48] sm:$0xff] %vm1577, 0.0
          %1684 = vst.msk [vmem:[#allocation3 + $0x50] sm:$0xff] %vm1577, 0.0
          %1685 = vst.msk [vmem:[#allocation3 + $0x58] sm:$0xff] %vm1577, 0.0
          %1686 = vst.msk [vmem:[#allocation3 + $0x60] sm:$0xff] %vm1577, 0.0
          %1687 = vst.msk [vmem:[#allocation3 + $0x68] sm:$0xff] %vm1577, 0.0
          %1688 = vst.msk [vmem:[#allocation3 + $0x70] sm:$0xff] %vm1577, 0.0
          %1689 = vst.msk [vmem:[#allocation3 + $0x78] sm:$0xff] %vm1577, 0.0
          %1690 = vst.msk [vmem:[#allocation3 + $0x80] sm:$0xff] %vm1577, 0.0
          %1691 = vst.msk [vmem:[#allocation3 + $0x88] sm:$0xff] %vm1577, 0.0
          %1692 = vst.msk [vmem:[#allocation3 + $0x90] sm:$0xff] %vm1577, 0.0
          %1693 = vst.msk [vmem:[#allocation3 + $0x98] sm:$0xff] %vm1577, 0.0
          %1694 = vst.msk [vmem:[#allocation3 + $0xa0] sm:$0xff] %vm1577, 0.0
          %1695 = vst.msk [vmem:[#allocation3 + $0xa8] sm:$0xff] %vm1577, 0.0
          %1696 = vst.msk [vmem:[#allocation3 + $0xb0] sm:$0xff] %vm1577, 0.0
          %1697 = vst.msk [vmem:[#allocation3 + $0xb8] sm:$0xff] %vm1577, 0.0
          %1698 = vst.msk [vmem:[#allocation3 + $0xc0] sm:$0xff] %vm1577, 0.0
          %1699 = vst.msk [vmem:[#allocation3 + $0xc8] sm:$0xff] %vm1577, 0.0
          %1700 = vst.msk [vmem:[#allocation3 + $0xd0] sm:$0xff] %vm1577, 0.0
          %1701 = vst.msk [vmem:[#allocation3 + $0xd8] sm:$0xff] %vm1577, 0.0
          %1702 = vst.msk [vmem:[#allocation3 + $0xe0] sm:$0xff] %vm1577, 0.0
          %1703 = vst.msk [vmem:[#allocation3 + $0xe8] sm:$0xff] %vm1577, 0.0
          %1704 = vst.msk [vmem:[#allocation3 + $0xf0] sm:$0xff] %vm1577, 0.0
          %1705 = vst.msk [vmem:[#allocation3 + $0xf8] sm:$0xff] %vm1577, 0.0
          %1706 = vst.msk [vmem:[#allocation3 + $0x100] sm:$0xff] %vm1577, 0.0
          %1707 = vst.msk [vmem:[#allocation3 + $0x108] sm:$0xff] %vm1577, 0.0
          %1708 = vst.msk [vmem:[#allocation3 + $0x110] sm:$0xff] %vm1577, 0.0
          %1709 = vst.msk [vmem:[#allocation3 + $0x118] sm:$0xff] %vm1577, 0.0
          %1710 = vst.msk [vmem:[#allocation3 + $0x120] sm:$0xff] %vm1577, 0.0
          %1711 = vst.msk [vmem:[#allocation3 + $0x128] sm:$0xff] %vm1577, 0.0
          %1712 = vst.msk [vmem:[#allocation3 + $0x130] sm:$0xff] %vm1577, 0.0
          %1713 = vst.msk [vmem:[#allocation3 + $0x138] sm:$0xff] %vm1577, 0.0
          %1714 = vst.msk [vmem:[#allocation3 + $0x140] sm:$0xff] %vm1577, 0.0
          %1715 = vst.msk [vmem:[#allocation3 + $0x148] sm:$0xff] %vm1577, 0.0
          %1716 = vst.msk [vmem:[#allocation3 + $0x150] sm:$0xff] %vm1577, 0.0
          %1717 = vst.msk [vmem:[#allocation3 + $0x158] sm:$0xff] %vm1577, 0.0
          %1718 = vst.msk [vmem:[#allocation3 + $0x160] sm:$0xff] %vm1577, 0.0
          %1719 = vst.msk [vmem:[#allocation3 + $0x168] sm:$0xff] %vm1577, 0.0
          %1720 = vst.msk [vmem:[#allocation3 + $0x170] sm:$0xff] %vm1577, 0.0
          %1721 = vst.msk [vmem:[#allocation3 + $0x178] sm:$0xff] %vm1577, 0.0
          %1722 = vst.msk [vmem:[#allocation3 + $0x180] sm:$0xff] %vm1577, 0.0
          %1723 = vst.msk [vmem:[#allocation3 + $0x188] sm:$0xff] %vm1577, 0.0
          %1724 = vst.msk [vmem:[#allocation3 + $0x190] sm:$0xff] %vm1577, 0.0
          %1725 = vst.msk [vmem:[#allocation3 + $0x198] sm:$0xff] %vm1577, 0.0
          %1726 = vst.msk [vmem:[#allocation3 + $0x1a0] sm:$0xff] %vm1577, 0.0
          %1727 = vst.msk [vmem:[#allocation3 + $0x1a8] sm:$0xff] %vm1577, 0.0
          %1728 = vst.msk [vmem:[#allocation3 + $0x1b0] sm:$0xff] %vm1577, 0.0
          %1729 = vst.msk [vmem:[#allocation3 + $0x1b8] sm:$0xff] %vm1577, 0.0
          %1730 = vst.msk [vmem:[#allocation3 + $0x1c0] sm:$0xff] %vm1577, 0.0
          %1731 = vst.msk [vmem:[#allocation3 + $0x1c8] sm:$0xff] %vm1577, 0.0
          %1732 = vst.msk [vmem:[#allocation3 + $0x1d0] sm:$0xff] %vm1577, 0.0
          %1733 = vst.msk [vmem:[#allocation3 + $0x1d8] sm:$0xff] %vm1577, 0.0
          %1734 = vst.msk [vmem:[#allocation3 + $0x1e0] sm:$0xff] %vm1577, 0.0
          %1735 = vst.msk [vmem:[#allocation3 + $0x1e8] sm:$0xff] %vm1577, 0.0
          %1736 = vst.msk [vmem:[#allocation3 + $0x1f0] sm:$0xff] %vm1577, 0.0
          %1737 = vst.msk [vmem:[#allocation3 + $0x1f8] sm:$0xff] %vm1577, 0.0
          %1738 = vst.msk [vmem:[#allocation3 + $0x200] sm:$0xff] %vm1577, 0.0
          %1739 = vst.msk [vmem:[#allocation3 + $0x208] sm:$0xff] %vm1577, 0.0
          %1740 = vst.msk [vmem:[#allocation3 + $0x210] sm:$0xff] %vm1577, 0.0
          %1741 = vst.msk [vmem:[#allocation3 + $0x218] sm:$0xff] %vm1577, 0.0
          %1742 = vst.msk [vmem:[#allocation3 + $0x220] sm:$0xff] %vm1577, 0.0
          %1743 = vst.msk [vmem:[#allocation3 + $0x228] sm:$0xff] %vm1577, 0.0
          %1744 = vst.msk [vmem:[#allocation3 + $0x230] sm:$0xff] %vm1577, 0.0
          %1745 = vst.msk [vmem:[#allocation3 + $0x238] sm:$0xff] %vm1577, 0.0
          %1746 = vst.msk [vmem:[#allocation3 + $0x240] sm:$0xff] %vm1577, 0.0
          %1747 = vst.msk [vmem:[#allocation3 + $0x248] sm:$0xff] %vm1577, 0.0
          %1748 = vst.msk [vmem:[#allocation3 + $0x250] sm:$0xff] %vm1577, 0.0
          %1749 = vst.msk [vmem:[#allocation3 + $0x258] sm:$0xff] %vm1577, 0.0
          %1750 = vst.msk [vmem:[#allocation3 + $0x260] sm:$0xff] %vm1577, 0.0
          %1751 = vst.msk [vmem:[#allocation3 + $0x268] sm:$0xff] %vm1577, 0.0
          %1752 = vst.msk [vmem:[#allocation3 + $0x270] sm:$0xff] %vm1577, 0.0
          %1753 = vst.msk [vmem:[#allocation3 + $0x278] sm:$0xff] %vm1577, 0.0
          %1754 = vst.msk [vmem:[#allocation3 + $0x280] sm:$0xff] %vm1577, 0.0
          %1755 = vst.msk [vmem:[#allocation3 + $0x288] sm:$0xff] %vm1577, 0.0
          %1756 = vst.msk [vmem:[#allocation3 + $0x290] sm:$0xff] %vm1577, 0.0
          %1757 = vst.msk [vmem:[#allocation3 + $0x298] sm:$0xff] %vm1577, 0.0
          %1758 = vst.msk [vmem:[#allocation3 + $0x2a0] sm:$0xff] %vm1577, 0.0
          %1759 = vst.msk [vmem:[#allocation3 + $0x2a8] sm:$0xff] %vm1577, 0.0
          %1760 = vst.msk [vmem:[#allocation3 + $0x2b0] sm:$0xff] %vm1577, 0.0
          %1761 = vst.msk [vmem:[#allocation3 + $0x2b8] sm:$0xff] %vm1577, 0.0
          %1762 = vst.msk [vmem:[#allocation3 + $0x2c0] sm:$0xff] %vm1577, 0.0
          %1763 = vst.msk [vmem:[#allocation3 + $0x2c8] sm:$0xff] %vm1577, 0.0
          %1764 = vst.msk [vmem:[#allocation3 + $0x2d0] sm:$0xff] %vm1577, 0.0
          %1765 = vst.msk [vmem:[#allocation3 + $0x2d8] sm:$0xff] %vm1577, 0.0
          %1766 = vst.msk [vmem:[#allocation3 + $0x2e0] sm:$0xff] %vm1577, 0.0
          %1767 = vst.msk [vmem:[#allocation3 + $0x2e8] sm:$0xff] %vm1577, 0.0
          %1768 = vst.msk [vmem:[#allocation3 + $0x2f0] sm:$0xff] %vm1577, 0.0
          %1769 = vst.msk [vmem:[#allocation3 + $0x2f8] sm:$0xff] %vm1577, 0.0
          %vm1770 = vcmask 523264
          %1771 = vst.msk [vmem:[#allocation4] sm:$0xff] %vm1770, 0.0
          %1772 = vst.msk [vmem:[#allocation4 + $0x8] sm:$0xff] %vm1770, 0.0
          %1773 = vst.msk [vmem:[#allocation4 + $0x10] sm:$0xff] %vm1770, 0.0
          %1774 = vst.msk [vmem:[#allocation4 + $0x18] sm:$0xff] %vm1770, 0.0
          %1775 = vst.msk [vmem:[#allocation4 + $0x20] sm:$0xff] %vm1770, 0.0
          %1776 = vst.msk [vmem:[#allocation4 + $0x28] sm:$0xff] %vm1770, 0.0
          %1777 = vst.msk [vmem:[#allocation4 + $0x30] sm:$0xff] %vm1770, 0.0
          %1778 = vst.msk [vmem:[#allocation4 + $0x38] sm:$0xff] %vm1770, 0.0
          %1779 = vst.msk [vmem:[#allocation4 + $0x40] sm:$0xff] %vm1770, 0.0
          %1780 = vst.msk [vmem:[#allocation4 + $0x48] sm:$0xff] %vm1770, 0.0
          %1781 = vst.msk [vmem:[#allocation4 + $0x50] sm:$0xff] %vm1770, 0.0
          %1782 = vst.msk [vmem:[#allocation4 + $0x58] sm:$0xff] %vm1770, 0.0
          %1783 = vst.msk [vmem:[#allocation4 + $0x60] sm:$0xff] %vm1770, 0.0
          %1784 = vst.msk [vmem:[#allocation4 + $0x68] sm:$0xff] %vm1770, 0.0
          %1785 = vst.msk [vmem:[#allocation4 + $0x70] sm:$0xff] %vm1770, 0.0
          %1786 = vst.msk [vmem:[#allocation4 + $0x78] sm:$0xff] %vm1770, 0.0
          %1787 = vst.msk [vmem:[#allocation4 + $0x80] sm:$0xff] %vm1770, 0.0
          %1788 = vst.msk [vmem:[#allocation4 + $0x88] sm:$0xff] %vm1770, 0.0
          %1789 = vst.msk [vmem:[#allocation4 + $0x90] sm:$0xff] %vm1770, 0.0
          %1790 = vst.msk [vmem:[#allocation4 + $0x98] sm:$0xff] %vm1770, 0.0
          %1791 = vst.msk [vmem:[#allocation4 + $0xa0] sm:$0xff] %vm1770, 0.0
          %1792 = vst.msk [vmem:[#allocation4 + $0xa8] sm:$0xff] %vm1770, 0.0
          %1793 = vst.msk [vmem:[#allocation4 + $0xb0] sm:$0xff] %vm1770, 0.0
          %1794 = vst.msk [vmem:[#allocation4 + $0xb8] sm:$0xff] %vm1770, 0.0
          %1795 = vst.msk [vmem:[#allocation4 + $0xc0] sm:$0xff] %vm1770, 0.0
          %1796 = vst.msk [vmem:[#allocation4 + $0xc8] sm:$0xff] %vm1770, 0.0
          %1797 = vst.msk [vmem:[#allocation4 + $0xd0] sm:$0xff] %vm1770, 0.0
          %1798 = vst.msk [vmem:[#allocation4 + $0xd8] sm:$0xff] %vm1770, 0.0
          %1799 = vst.msk [vmem:[#allocation4 + $0xe0] sm:$0xff] %vm1770, 0.0
          %1800 = vst.msk [vmem:[#allocation4 + $0xe8] sm:$0xff] %vm1770, 0.0
          %1801 = vst.msk [vmem:[#allocation4 + $0xf0] sm:$0xff] %vm1770, 0.0
          %1802 = vst.msk [vmem:[#allocation4 + $0xf8] sm:$0xff] %vm1770, 0.0
          %1803 = vst.msk [vmem:[#allocation4 + $0x100] sm:$0xff] %vm1770, 0.0
          %1804 = vst.msk [vmem:[#allocation4 + $0x108] sm:$0xff] %vm1770, 0.0
          %1805 = vst.msk [vmem:[#allocation4 + $0x110] sm:$0xff] %vm1770, 0.0
          %1806 = vst.msk [vmem:[#allocation4 + $0x118] sm:$0xff] %vm1770, 0.0
          %1807 = vst.msk [vmem:[#allocation4 + $0x120] sm:$0xff] %vm1770, 0.0
          %1808 = vst.msk [vmem:[#allocation4 + $0x128] sm:$0xff] %vm1770, 0.0
          %1809 = vst.msk [vmem:[#allocation4 + $0x130] sm:$0xff] %vm1770, 0.0
          %1810 = vst.msk [vmem:[#allocation4 + $0x138] sm:$0xff] %vm1770, 0.0
          %1811 = vst.msk [vmem:[#allocation4 + $0x140] sm:$0xff] %vm1770, 0.0
          %1812 = vst.msk [vmem:[#allocation4 + $0x148] sm:$0xff] %vm1770, 0.0
          %1813 = vst.msk [vmem:[#allocation4 + $0x150] sm:$0xff] %vm1770, 0.0
          %1814 = vst.msk [vmem:[#allocation4 + $0x158] sm:$0xff] %vm1770, 0.0
          %1815 = vst.msk [vmem:[#allocation4 + $0x160] sm:$0xff] %vm1770, 0.0
          %1816 = vst.msk [vmem:[#allocation4 + $0x168] sm:$0xff] %vm1770, 0.0
          %1817 = vst.msk [vmem:[#allocation4 + $0x170] sm:$0xff] %vm1770, 0.0
          %1818 = vst.msk [vmem:[#allocation4 + $0x178] sm:$0xff] %vm1770, 0.0
          %1819 = vst.msk [vmem:[#allocation4 + $0x180] sm:$0xff] %vm1770, 0.0
          %1820 = vst.msk [vmem:[#allocation4 + $0x188] sm:$0xff] %vm1770, 0.0
          %1821 = vst.msk [vmem:[#allocation4 + $0x190] sm:$0xff] %vm1770, 0.0
          %1822 = vst.msk [vmem:[#allocation4 + $0x198] sm:$0xff] %vm1770, 0.0
          %1823 = vst.msk [vmem:[#allocation4 + $0x1a0] sm:$0xff] %vm1770, 0.0
          %1824 = vst.msk [vmem:[#allocation4 + $0x1a8] sm:$0xff] %vm1770, 0.0
          %1825 = vst.msk [vmem:[#allocation4 + $0x1b0] sm:$0xff] %vm1770, 0.0
          %1826 = vst.msk [vmem:[#allocation4 + $0x1b8] sm:$0xff] %vm1770, 0.0
          %1827 = vst.msk [vmem:[#allocation4 + $0x1c0] sm:$0xff] %vm1770, 0.0
          %1828 = vst.msk [vmem:[#allocation4 + $0x1c8] sm:$0xff] %vm1770, 0.0
          %1829 = vst.msk [vmem:[#allocation4 + $0x1d0] sm:$0xff] %vm1770, 0.0
          %1830 = vst.msk [vmem:[#allocation4 + $0x1d8] sm:$0xff] %vm1770, 0.0
          %1831 = vst.msk [vmem:[#allocation4 + $0x1e0] sm:$0xff] %vm1770, 0.0
          %1832 = vst.msk [vmem:[#allocation4 + $0x1e8] sm:$0xff] %vm1770, 0.0
          %1833 = vst.msk [vmem:[#allocation4 + $0x1f0] sm:$0xff] %vm1770, 0.0
          %1834 = vst.msk [vmem:[#allocation4 + $0x1f8] sm:$0xff] %vm1770, 0.0
          %1835 = vst.msk [vmem:[#allocation4 + $0x200] sm:$0xff] %vm1770, 0.0
          %1836 = vst.msk [vmem:[#allocation4 + $0x208] sm:$0xff] %vm1770, 0.0
          %1837 = vst.msk [vmem:[#allocation4 + $0x210] sm:$0xff] %vm1770, 0.0
          %1838 = vst.msk [vmem:[#allocation4 + $0x218] sm:$0xff] %vm1770, 0.0
          %1839 = vst.msk [vmem:[#allocation4 + $0x220] sm:$0xff] %vm1770, 0.0
          %1840 = vst.msk [vmem:[#allocation4 + $0x228] sm:$0xff] %vm1770, 0.0
          %1841 = vst.msk [vmem:[#allocation4 + $0x230] sm:$0xff] %vm1770, 0.0
          %1842 = vst.msk [vmem:[#allocation4 + $0x238] sm:$0xff] %vm1770, 0.0
          %1843 = vst.msk [vmem:[#allocation4 + $0x240] sm:$0xff] %vm1770, 0.0
          %1844 = vst.msk [vmem:[#allocation4 + $0x248] sm:$0xff] %vm1770, 0.0
          %1845 = vst.msk [vmem:[#allocation4 + $0x250] sm:$0xff] %vm1770, 0.0
          %1846 = vst.msk [vmem:[#allocation4 + $0x258] sm:$0xff] %vm1770, 0.0
          %1847 = vst.msk [vmem:[#allocation4 + $0x260] sm:$0xff] %vm1770, 0.0
          %1848 = vst.msk [vmem:[#allocation4 + $0x268] sm:$0xff] %vm1770, 0.0
          %1849 = vst.msk [vmem:[#allocation4 + $0x270] sm:$0xff] %vm1770, 0.0
          %1850 = vst.msk [vmem:[#allocation4 + $0x278] sm:$0xff] %vm1770, 0.0
          %1851 = vst.msk [vmem:[#allocation4 + $0x280] sm:$0xff] %vm1770, 0.0
          %1852 = vst.msk [vmem:[#allocation4 + $0x288] sm:$0xff] %vm1770, 0.0
          %1853 = vst.msk [vmem:[#allocation4 + $0x290] sm:$0xff] %vm1770, 0.0
          %1854 = vst.msk [vmem:[#allocation4 + $0x298] sm:$0xff] %vm1770, 0.0
          %1855 = vst.msk [vmem:[#allocation4 + $0x2a0] sm:$0xff] %vm1770, 0.0
          %1856 = vst.msk [vmem:[#allocation4 + $0x2a8] sm:$0xff] %vm1770, 0.0
          %1857 = vst.msk [vmem:[#allocation4 + $0x2b0] sm:$0xff] %vm1770, 0.0
          %1858 = vst.msk [vmem:[#allocation4 + $0x2b8] sm:$0xff] %vm1770, 0.0
          %1859 = vst.msk [vmem:[#allocation4 + $0x2c0] sm:$0xff] %vm1770, 0.0
          %1860 = vst.msk [vmem:[#allocation4 + $0x2c8] sm:$0xff] %vm1770, 0.0
          %1861 = vst.msk [vmem:[#allocation4 + $0x2d0] sm:$0xff] %vm1770, 0.0
          %1862 = vst.msk [vmem:[#allocation4 + $0x2d8] sm:$0xff] %vm1770, 0.0
          %1863 = vst.msk [vmem:[#allocation4 + $0x2e0] sm:$0xff] %vm1770, 0.0
          %1864 = vst.msk [vmem:[#allocation4 + $0x2e8] sm:$0xff] %vm1770, 0.0
          %1865 = vst.msk [vmem:[#allocation4 + $0x2f0] sm:$0xff] %vm1770, 0.0
          %1866 = vst.msk [vmem:[#allocation4 + $0x2f8] sm:$0xff] %vm1770, 0.0
        $region167: #{tpu_custom_call.1} parent=150 // pred_fallthru
          _
        %v1867 = vld [vmem:[%s1521] sm:$0xf]
        %v1868 = vld [vmem:[%s1521 + $0x4] sm:$0xf]
        %v1869 = vld [vmem:[%s1521 + $0x8] sm:$0xf]
        %v1870 = vld [vmem:[%s1521 + $0xc] sm:$0xf]
        %v1871 = vld [vmem:[%s1521 + $0x10] sm:$0xf]
        %v1872 = vld [vmem:[%s1521 + $0x14] sm:$0xf]
        %v1873 = vld [vmem:[%s1521 + $0x18] sm:$0xf]
        %v1874 = vld [vmem:[%s1521 + $0x1c] sm:$0xf]
        %v1875 = vld [vmem:[%s1521 + $0x20] sm:$0xf]
        %v1876 = vld [vmem:[%s1521 + $0x24] sm:$0xf]
        %v1877 = vld [vmem:[%s1521 + $0x28] sm:$0xf]
        %v1878 = vld [vmem:[%s1521 + $0x2c] sm:$0xf]
        %v1879 = vld [vmem:[%s1521 + $0x30] sm:$0xf]
        %v1880 = vld [vmem:[%s1521 + $0x34] sm:$0xf]
        %v1881 = vld [vmem:[%s1521 + $0x38] sm:$0xf]
        %v1882 = vld [vmem:[%s1521 + $0x3c] sm:$0xf]
        %v1883 = vld [vmem:[%s1521 + $0x40] sm:$0xf]
        %v1884 = vld [vmem:[%s1521 + $0x44] sm:$0xf]
        %v1885 = vld [vmem:[%s1521 + $0x48] sm:$0xf]
        %v1886 = vld [vmem:[%s1521 + $0x4c] sm:$0xf]
        %v1887 = vld [vmem:[%s1521 + $0x50] sm:$0xf]
        %v1888 = vld [vmem:[%s1521 + $0x54] sm:$0xf]
        %v1889 = vld [vmem:[%s1521 + $0x58] sm:$0xf]
        %v1890 = vld [vmem:[%s1521 + $0x5c] sm:$0xf]
        %v1891 = vld [vmem:[%s1521 + $0x60] sm:$0xf]
        %v1892 = vld [vmem:[%s1521 + $0x64] sm:$0xf]
        %v1893 = vld [vmem:[%s1521 + $0x68] sm:$0xf]
        %v1894 = vld [vmem:[%s1521 + $0x6c] sm:$0xf]
        %v1895 = vld [vmem:[%s1521 + $0x70] sm:$0xf]
        %v1896 = vld [vmem:[%s1521 + $0x74] sm:$0xf]
        %v1897 = vld [vmem:[%s1521 + $0x78] sm:$0xf]
        %v1898 = vld [vmem:[%s1521 + $0x7c] sm:$0xf]
        %v1899 = vld [vmem:[%s1521 + $0x80] sm:$0xf]
        %v1900 = vld [vmem:[%s1521 + $0x84] sm:$0xf]
        %v1901 = vld [vmem:[%s1521 + $0x88] sm:$0xf]
        %v1902 = vld [vmem:[%s1521 + $0x8c] sm:$0xf]
        %v1903 = vld [vmem:[%s1521 + $0x90] sm:$0xf]
        %v1904 = vld [vmem:[%s1521 + $0x94] sm:$0xf]
        %v1905 = vld [vmem:[%s1521 + $0x98] sm:$0xf]
        %v1906 = vld [vmem:[%s1521 + $0x9c] sm:$0xf]
        %v1907 = vld [vmem:[%s1521 + $0xa0] sm:$0xf]
        %v1908 = vld [vmem:[%s1521 + $0xa4] sm:$0xf]
        %v1909 = vld [vmem:[%s1521 + $0xa8] sm:$0xf]
        %v1910 = vld [vmem:[%s1521 + $0xac] sm:$0xf]
        %v1911 = vld [vmem:[%s1521 + $0xb0] sm:$0xf]
        %v1912 = vld [vmem:[%s1521 + $0xb4] sm:$0xf]
        %v1913 = vld [vmem:[%s1521 + $0xb8] sm:$0xf]
        %v1914 = vld [vmem:[%s1521 + $0xbc] sm:$0xf]
        %v1915 = vld [vmem:[%s1521 + $0xc0] sm:$0xf]
        %v1916 = vld [vmem:[%s1521 + $0xc4] sm:$0xf]
        %v1917 = vld [vmem:[%s1521 + $0xc8] sm:$0xf]
        %v1918 = vld [vmem:[%s1521 + $0xcc] sm:$0xf]
        %v1919 = vld [vmem:[%s1521 + $0xd0] sm:$0xf]
        %v1920 = vld [vmem:[%s1521 + $0xd4] sm:$0xf]
        %v1921 = vld [vmem:[%s1521 + $0xd8] sm:$0xf]
        %v1922 = vld [vmem:[%s1521 + $0xdc] sm:$0xf]
        %v1923 = vld [vmem:[%s1521 + $0xe0] sm:$0xf]
        %v1924 = vld [vmem:[%s1521 + $0xe4] sm:$0xf]
        %v1925 = vld [vmem:[%s1521 + $0xe8] sm:$0xf]
        %v1926 = vld [vmem:[%s1521 + $0xec] sm:$0xf]
        %v1927 = vld [vmem:[%s1521 + $0xf0] sm:$0xf]
        %v1928 = vld [vmem:[%s1521 + $0xf4] sm:$0xf]
        %v1929 = vld [vmem:[%s1521 + $0xf8] sm:$0xf]
        %v1930 = vld [vmem:[%s1521 + $0xfc] sm:$0xf]
        %v1931 = vld [vmem:[%s1521 + $0x100] sm:$0xf]
        %v1932 = vld [vmem:[%s1521 + $0x104] sm:$0xf]
        %v1933 = vld [vmem:[%s1521 + $0x108] sm:$0xf]
        %v1934 = vld [vmem:[%s1521 + $0x10c] sm:$0xf]
        %v1935 = vld [vmem:[%s1521 + $0x110] sm:$0xf]
        %v1936 = vld [vmem:[%s1521 + $0x114] sm:$0xf]
        %v1937 = vld [vmem:[%s1521 + $0x118] sm:$0xf]
        %v1938 = vld [vmem:[%s1521 + $0x11c] sm:$0xf]
        %v1939 = vld [vmem:[%s1521 + $0x120] sm:$0xf]
        %v1940 = vld [vmem:[%s1521 + $0x124] sm:$0xf]
        %v1941 = vld [vmem:[%s1521 + $0x128] sm:$0xf]
        %v1942 = vld [vmem:[%s1521 + $0x12c] sm:$0xf]
        %v1943 = vld [vmem:[%s1521 + $0x130] sm:$0xf]
        %v1944 = vld [vmem:[%s1521 + $0x134] sm:$0xf]
        %v1945 = vld [vmem:[%s1521 + $0x138] sm:$0xf]
        %v1946 = vld [vmem:[%s1521 + $0x13c] sm:$0xf]
        %v1947 = vld [vmem:[%s1521 + $0x140] sm:$0xf]
        %v1948 = vld [vmem:[%s1521 + $0x144] sm:$0xf]
        %v1949 = vld [vmem:[%s1521 + $0x148] sm:$0xf]
        %v1950 = vld [vmem:[%s1521 + $0x14c] sm:$0xf]
        %v1951 = vld [vmem:[%s1521 + $0x150] sm:$0xf]
        %v1952 = vld [vmem:[%s1521 + $0x154] sm:$0xf]
        %v1953 = vld [vmem:[%s1521 + $0x158] sm:$0xf]
        %v1954 = vld [vmem:[%s1521 + $0x15c] sm:$0xf]
        %v1955 = vld [vmem:[%s1521 + $0x160] sm:$0xf]
        %v1956 = vld [vmem:[%s1521 + $0x164] sm:$0xf]
        %v1957 = vld [vmem:[%s1521 + $0x168] sm:$0xf]
        %v1958 = vld [vmem:[%s1521 + $0x16c] sm:$0xf]
        %v1959 = vld [vmem:[%s1521 + $0x170] sm:$0xf]
        %v1960 = vld [vmem:[%s1521 + $0x174] sm:$0xf]
        %v1961 = vld [vmem:[%s1521 + $0x178] sm:$0xf]
        %v1962 = vld [vmem:[%s1521 + $0x17c] sm:$0xf]
        %v1963 = vld [vmem:[%s1528] sm:$0xf]
        %v1964 = vld [vmem:[%s1528 + $0x4] sm:$0xf]
        %v1965 = vld [vmem:[%s1528 + $0x8] sm:$0xf]
        %v1966 = vld [vmem:[%s1528 + $0xc] sm:$0xf]
        %v1967 = vld [vmem:[%s1528 + $0x10] sm:$0xf]
        %v1968 = vld [vmem:[%s1528 + $0x14] sm:$0xf]
        %v1969 = vld [vmem:[%s1528 + $0x18] sm:$0xf]
        %v1970 = vld [vmem:[%s1528 + $0x1c] sm:$0xf]
        %v1971 = vld [vmem:[%s1528 + $0x20] sm:$0xf]
        %v1972 = vld [vmem:[%s1528 + $0x24] sm:$0xf]
        %v1973 = vld [vmem:[%s1528 + $0x28] sm:$0xf]
        %v1974 = vld [vmem:[%s1528 + $0x2c] sm:$0xf]
        %v1975 = vld [vmem:[%s1528 + $0x30] sm:$0xf]
        %v1976 = vld [vmem:[%s1528 + $0x34] sm:$0xf]
        %v1977 = vld [vmem:[%s1528 + $0x38] sm:$0xf]
        %v1978 = vld [vmem:[%s1528 + $0x3c] sm:$0xf]
        %v1979 = vld [vmem:[%s1528 + $0x40] sm:$0xf]
        %v1980 = vld [vmem:[%s1528 + $0x44] sm:$0xf]
        %v1981 = vld [vmem:[%s1528 + $0x48] sm:$0xf]
        %v1982 = vld [vmem:[%s1528 + $0x4c] sm:$0xf]
        %v1983 = vld [vmem:[%s1528 + $0x50] sm:$0xf]
        %v1984 = vld [vmem:[%s1528 + $0x54] sm:$0xf]
        %v1985 = vld [vmem:[%s1528 + $0x58] sm:$0xf]
        %v1986 = vld [vmem:[%s1528 + $0x5c] sm:$0xf]
        %v1987 = vld [vmem:[%s1528 + $0x60] sm:$0xf]
        %v1988 = vld [vmem:[%s1528 + $0x64] sm:$0xf]
        %v1989 = vld [vmem:[%s1528 + $0x68] sm:$0xf]
        %v1990 = vld [vmem:[%s1528 + $0x6c] sm:$0xf]
        %v1991 = vld [vmem:[%s1528 + $0x70] sm:$0xf]
        %v1992 = vld [vmem:[%s1528 + $0x74] sm:$0xf]
        %v1993 = vld [vmem:[%s1528 + $0x78] sm:$0xf]
        %v1994 = vld [vmem:[%s1528 + $0x7c] sm:$0xf]
        %v1995 = vld [vmem:[%s1528 + $0x80] sm:$0xf]
        %v1996 = vld [vmem:[%s1528 + $0x84] sm:$0xf]
        %v1997 = vld [vmem:[%s1528 + $0x88] sm:$0xf]
        %v1998 = vld [vmem:[%s1528 + $0x8c] sm:$0xf]
        %v1999 = vld [vmem:[%s1528 + $0x90] sm:$0xf]
        %v2000 = vld [vmem:[%s1528 + $0x94] sm:$0xf]
        %v2001 = vld [vmem:[%s1528 + $0x98] sm:$0xf]
        %v2002 = vld [vmem:[%s1528 + $0x9c] sm:$0xf]
        %v2003 = vld [vmem:[%s1528 + $0xa0] sm:$0xf]
        %v2004 = vld [vmem:[%s1528 + $0xa4] sm:$0xf]
        %v2005 = vld [vmem:[%s1528 + $0xa8] sm:$0xf]
        %v2006 = vld [vmem:[%s1528 + $0xac] sm:$0xf]
        %v2007 = vld [vmem:[%s1528 + $0xb0] sm:$0xf]
        %v2008 = vld [vmem:[%s1528 + $0xb4] sm:$0xf]
        %v2009 = vld [vmem:[%s1528 + $0xb8] sm:$0xf]
        %v2010 = vld [vmem:[%s1528 + $0xbc] sm:$0xf]
        %v2011 = vld [vmem:[%s1528 + $0xc0] sm:$0xf]
        %v2012 = vld [vmem:[%s1528 + $0xc4] sm:$0xf]
        %v2013 = vld [vmem:[%s1528 + $0xc8] sm:$0xf]
        %v2014 = vld [vmem:[%s1528 + $0xcc] sm:$0xf]
        %v2015 = vld [vmem:[%s1528 + $0xd0] sm:$0xf]
        %v2016 = vld [vmem:[%s1528 + $0xd4] sm:$0xf]
        %v2017 = vld [vmem:[%s1528 + $0xd8] sm:$0xf]
        %v2018 = vld [vmem:[%s1528 + $0xdc] sm:$0xf]
        %v2019 = vld [vmem:[%s1528 + $0xe0] sm:$0xf]
        %v2020 = vld [vmem:[%s1528 + $0xe4] sm:$0xf]
        %v2021 = vld [vmem:[%s1528 + $0xe8] sm:$0xf]
        %v2022 = vld [vmem:[%s1528 + $0xec] sm:$0xf]
        %v2023 = vld [vmem:[%s1528 + $0xf0] sm:$0xf]
        %v2024 = vld [vmem:[%s1528 + $0xf4] sm:$0xf]
        %v2025 = vld [vmem:[%s1528 + $0xf8] sm:$0xf]
        %v2026 = vld [vmem:[%s1528 + $0xfc] sm:$0xf]
        %v2027 = vld [vmem:[%s1528 + $0x100] sm:$0xf]
        %v2028 = vld [vmem:[%s1528 + $0x104] sm:$0xf]
        %v2029 = vld [vmem:[%s1528 + $0x108] sm:$0xf]
        %v2030 = vld [vmem:[%s1528 + $0x10c] sm:$0xf]
        %v2031 = vld [vmem:[%s1528 + $0x110] sm:$0xf]
        %v2032 = vld [vmem:[%s1528 + $0x114] sm:$0xf]
        %v2033 = vld [vmem:[%s1528 + $0x118] sm:$0xf]
        %v2034 = vld [vmem:[%s1528 + $0x11c] sm:$0xf]
        %v2035 = vld [vmem:[%s1528 + $0x120] sm:$0xf]
        %v2036 = vld [vmem:[%s1528 + $0x124] sm:$0xf]
        %v2037 = vld [vmem:[%s1528 + $0x128] sm:$0xf]
        %v2038 = vld [vmem:[%s1528 + $0x12c] sm:$0xf]
        %v2039 = vld [vmem:[%s1528 + $0x130] sm:$0xf]
        %v2040 = vld [vmem:[%s1528 + $0x134] sm:$0xf]
        %v2041 = vld [vmem:[%s1528 + $0x138] sm:$0xf]
        %v2042 = vld [vmem:[%s1528 + $0x13c] sm:$0xf]
        %v2043 = vld [vmem:[%s1528 + $0x140] sm:$0xf]
        %v2044 = vld [vmem:[%s1528 + $0x144] sm:$0xf]
        %v2045 = vld [vmem:[%s1528 + $0x148] sm:$0xf]
        %v2046 = vld [vmem:[%s1528 + $0x14c] sm:$0xf]
        %v2047 = vld [vmem:[%s1528 + $0x150] sm:$0xf]
        %v2048 = vld [vmem:[%s1528 + $0x154] sm:$0xf]
        %v2049 = vld [vmem:[%s1528 + $0x158] sm:$0xf]
        %v2050 = vld [vmem:[%s1528 + $0x15c] sm:$0xf]
        %v2051 = vld [vmem:[%s1528 + $0x160] sm:$0xf]
        %v2052 = vld [vmem:[%s1528 + $0x164] sm:$0xf]
        %v2053 = vld [vmem:[%s1528 + $0x168] sm:$0xf]
        %v2054 = vld [vmem:[%s1528 + $0x16c] sm:$0xf]
        %v2055 = vld [vmem:[%s1528 + $0x170] sm:$0xf]
        %v2056 = vld [vmem:[%s1528 + $0x174] sm:$0xf]
        %v2057 = vld [vmem:[%s1528 + $0x178] sm:$0xf]
        %v2058 = vld [vmem:[%s1528 + $0x17c] sm:$0xf]
        %v2059 = vld [vmem:[%s1535] sm:$0xf]
        %v2060 = vld [vmem:[%s1535 + $0x4] sm:$0xf]
        %v2061 = vld [vmem:[%s1535 + $0x8] sm:$0xf]
        %v2062 = vld [vmem:[%s1535 + $0xc] sm:$0xf]
        %v2063 = vld [vmem:[%s1535 + $0x10] sm:$0xf]
        %v2064 = vld [vmem:[%s1535 + $0x14] sm:$0xf]
        %v2065 = vld [vmem:[%s1535 + $0x18] sm:$0xf]
        %v2066 = vld [vmem:[%s1535 + $0x1c] sm:$0xf]
        %v2067 = vld [vmem:[%s1535 + $0x20] sm:$0xf]
        %v2068 = vld [vmem:[%s1535 + $0x24] sm:$0xf]
        %v2069 = vld [vmem:[%s1535 + $0x28] sm:$0xf]
        %v2070 = vld [vmem:[%s1535 + $0x2c] sm:$0xf]
        %v2071 = vld [vmem:[%s1535 + $0x30] sm:$0xf]
        %v2072 = vld [vmem:[%s1535 + $0x34] sm:$0xf]
        %v2073 = vld [vmem:[%s1535 + $0x38] sm:$0xf]
        %v2074 = vld [vmem:[%s1535 + $0x3c] sm:$0xf]
        %v2075 = vld [vmem:[%s1535 + $0x40] sm:$0xf]
        %v2076 = vld [vmem:[%s1535 + $0x44] sm:$0xf]
        %v2077 = vld [vmem:[%s1535 + $0x48] sm:$0xf]
        %v2078 = vld [vmem:[%s1535 + $0x4c] sm:$0xf]
        %v2079 = vld [vmem:[%s1535 + $0x50] sm:$0xf]
        %v2080 = vld [vmem:[%s1535 + $0x54] sm:$0xf]
        %v2081 = vld [vmem:[%s1535 + $0x58] sm:$0xf]
        %v2082 = vld [vmem:[%s1535 + $0x5c] sm:$0xf]
        %v2083 = vld [vmem:[%s1535 + $0x60] sm:$0xf]
        %v2084 = vld [vmem:[%s1535 + $0x64] sm:$0xf]
        %v2085 = vld [vmem:[%s1535 + $0x68] sm:$0xf]
        %v2086 = vld [vmem:[%s1535 + $0x6c] sm:$0xf]
        %v2087 = vld [vmem:[%s1535 + $0x70] sm:$0xf]
        %v2088 = vld [vmem:[%s1535 + $0x74] sm:$0xf]
        %v2089 = vld [vmem:[%s1535 + $0x78] sm:$0xf]
        %v2090 = vld [vmem:[%s1535 + $0x7c] sm:$0xf]
        %v2091 = vld [vmem:[%s1535 + $0x80] sm:$0xf]
        %v2092 = vld [vmem:[%s1535 + $0x84] sm:$0xf]
        %v2093 = vld [vmem:[%s1535 + $0x88] sm:$0xf]
        %v2094 = vld [vmem:[%s1535 + $0x8c] sm:$0xf]
        %v2095 = vld [vmem:[%s1535 + $0x90] sm:$0xf]
        %v2096 = vld [vmem:[%s1535 + $0x94] sm:$0xf]
        %v2097 = vld [vmem:[%s1535 + $0x98] sm:$0xf]
        %v2098 = vld [vmem:[%s1535 + $0x9c] sm:$0xf]
        %v2099 = vld [vmem:[%s1535 + $0xa0] sm:$0xf]
        %v2100 = vld [vmem:[%s1535 + $0xa4] sm:$0xf]
        %v2101 = vld [vmem:[%s1535 + $0xa8] sm:$0xf]
        %v2102 = vld [vmem:[%s1535 + $0xac] sm:$0xf]
        %v2103 = vld [vmem:[%s1535 + $0xb0] sm:$0xf]
        %v2104 = vld [vmem:[%s1535 + $0xb4] sm:$0xf]
        %v2105 = vld [vmem:[%s1535 + $0xb8] sm:$0xf]
        %v2106 = vld [vmem:[%s1535 + $0xbc] sm:$0xf]
        %v2107 = vld [vmem:[%s1535 + $0xc0] sm:$0xf]
        %v2108 = vld [vmem:[%s1535 + $0xc4] sm:$0xf]
        %v2109 = vld [vmem:[%s1535 + $0xc8] sm:$0xf]
        %v2110 = vld [vmem:[%s1535 + $0xcc] sm:$0xf]
        %v2111 = vld [vmem:[%s1535 + $0xd0] sm:$0xf]
        %v2112 = vld [vmem:[%s1535 + $0xd4] sm:$0xf]
        %v2113 = vld [vmem:[%s1535 + $0xd8] sm:$0xf]
        %v2114 = vld [vmem:[%s1535 + $0xdc] sm:$0xf]
        %v2115 = vld [vmem:[%s1535 + $0xe0] sm:$0xf]
        %v2116 = vld [vmem:[%s1535 + $0xe4] sm:$0xf]
        %v2117 = vld [vmem:[%s1535 + $0xe8] sm:$0xf]
        %v2118 = vld [vmem:[%s1535 + $0xec] sm:$0xf]
        %v2119 = vld [vmem:[%s1535 + $0xf0] sm:$0xf]
        %v2120 = vld [vmem:[%s1535 + $0xf4] sm:$0xf]
        %v2121 = vld [vmem:[%s1535 + $0xf8] sm:$0xf]
        %v2122 = vld [vmem:[%s1535 + $0xfc] sm:$0xf]
        %v2123 = vld [vmem:[%s1535 + $0x100] sm:$0xf]
        %v2124 = vld [vmem:[%s1535 + $0x104] sm:$0xf]
        %v2125 = vld [vmem:[%s1535 + $0x108] sm:$0xf]
        %v2126 = vld [vmem:[%s1535 + $0x10c] sm:$0xf]
        %v2127 = vld [vmem:[%s1535 + $0x110] sm:$0xf]
        %v2128 = vld [vmem:[%s1535 + $0x114] sm:$0xf]
        %v2129 = vld [vmem:[%s1535 + $0x118] sm:$0xf]
        %v2130 = vld [vmem:[%s1535 + $0x11c] sm:$0xf]
        %v2131 = vld [vmem:[%s1535 + $0x120] sm:$0xf]
        %v2132 = vld [vmem:[%s1535 + $0x124] sm:$0xf]
        %v2133 = vld [vmem:[%s1535 + $0x128] sm:$0xf]
        %v2134 = vld [vmem:[%s1535 + $0x12c] sm:$0xf]
        %v2135 = vld [vmem:[%s1535 + $0x130] sm:$0xf]
        %v2136 = vld [vmem:[%s1535 + $0x134] sm:$0xf]
        %v2137 = vld [vmem:[%s1535 + $0x138] sm:$0xf]
        %v2138 = vld [vmem:[%s1535 + $0x13c] sm:$0xf]
        %v2139 = vld [vmem:[%s1535 + $0x140] sm:$0xf]
        %v2140 = vld [vmem:[%s1535 + $0x144] sm:$0xf]
        %v2141 = vld [vmem:[%s1535 + $0x148] sm:$0xf]
        %v2142 = vld [vmem:[%s1535 + $0x14c] sm:$0xf]
        %v2143 = vld [vmem:[%s1535 + $0x150] sm:$0xf]
        %v2144 = vld [vmem:[%s1535 + $0x154] sm:$0xf]
        %v2145 = vld [vmem:[%s1535 + $0x158] sm:$0xf]
        %v2146 = vld [vmem:[%s1535 + $0x15c] sm:$0xf]
        %v2147 = vld [vmem:[%s1535 + $0x160] sm:$0xf]
        %v2148 = vld [vmem:[%s1535 + $0x164] sm:$0xf]
        %v2149 = vld [vmem:[%s1535 + $0x168] sm:$0xf]
        %v2150 = vld [vmem:[%s1535 + $0x16c] sm:$0xf]
        %v2151 = vld [vmem:[%s1535 + $0x170] sm:$0xf]
        %v2152 = vld [vmem:[%s1535 + $0x174] sm:$0xf]
        %v2153 = vld [vmem:[%s1535 + $0x178] sm:$0xf]
        %v2154 = vld [vmem:[%s1535 + $0x17c] sm:$0xf]
        %v2187 = vunpack.c.l.b16 %v1867
        %v2188 = vunpack.c.l.b16 %v1868
        %v2189 = vunpack.c.l.b16 %v1869
        %v2190 = vunpack.c.l.b16 %v1870
        %v2191 = vunpack.c.l.b16 %v1871
        %v2192 = vunpack.c.l.b16 %v1872
        %v2193 = vunpack.c.l.b16 %v1873
        %v2194 = vunpack.c.l.b16 %v1874
        %v2195 = vunpack.c.l.b16 %v1875
        %v2196 = vunpack.c.l.b16 %v1876
        %v2197 = vunpack.c.l.b16 %v1877
        %v2198 = vunpack.c.l.b16 %v1878
        %v2199 = vunpack.c.l.b16 %v1879
        %v2200 = vunpack.c.l.b16 %v1880
        %v2201 = vunpack.c.l.b16 %v1881
        %v2202 = vunpack.c.l.b16 %v1882
        %v2203 = vunpack.c.l.b16 %v1883
        %v2204 = vunpack.c.l.b16 %v1884
        %v2205 = vunpack.c.l.b16 %v1885
        %v2206 = vunpack.c.l.b16 %v1886
        %v2207 = vunpack.c.l.b16 %v1887
        %v2208 = vunpack.c.l.b16 %v1888
        %v2209 = vunpack.c.l.b16 %v1889
        %v2210 = vunpack.c.l.b16 %v1890
        %v2211 = vunpack.c.l.b16 %v1891
        %v2212 = vunpack.c.l.b16 %v1892
        %v2213 = vunpack.c.l.b16 %v1893
        %v2214 = vunpack.c.l.b16 %v1894
        %v2215 = vunpack.c.l.b16 %v1895
        %v2216 = vunpack.c.l.b16 %v1896
        %v2217 = vunpack.c.l.b16 %v1897
        %v2218 = vunpack.c.l.b16 %v1898
        %v2219 = vpack.c.b16 %v2188, %v2187
        %v2220 = vpack.c.b16 %v2190, %v2189
        %v2221 = vpack.c.b16 %v2192, %v2191
        %v2222 = vpack.c.b16 %v2194, %v2193
        %v2223 = vpack.c.b16 %v2196, %v2195
        %v2224 = vpack.c.b16 %v2198, %v2197
        %v2225 = vpack.c.b16 %v2200, %v2199
        %v2226 = vpack.c.b16 %v2202, %v2201
        %v2227 = vpack.c.b16 %v2204, %v2203
        %v2228 = vpack.c.b16 %v2206, %v2205
        %v2229 = vpack.c.b16 %v2208, %v2207
        %v2230 = vpack.c.b16 %v2210, %v2209
        %v2231 = vpack.c.b16 %v2212, %v2211
        %v2232 = vpack.c.b16 %v2214, %v2213
        %v2233 = vpack.c.b16 %v2216, %v2215
        %v2234 = vpack.c.b16 %v2218, %v2217
        %v2267 = vunpack.c.l.b16 %v1963
        %v2268 = vunpack.c.l.b16 %v1964
        %v2269 = vunpack.c.l.b16 %v1965
        %v2270 = vunpack.c.l.b16 %v1966
        %v2271 = vunpack.c.l.b16 %v1967
        %v2272 = vunpack.c.l.b16 %v1968
        %v2273 = vunpack.c.l.b16 %v1969
        %v2274 = vunpack.c.l.b16 %v1970
        %v2275 = vunpack.c.l.b16 %v1971
        %v2276 = vunpack.c.l.b16 %v1972
        %v2277 = vunpack.c.l.b16 %v1973
        %v2278 = vunpack.c.l.b16 %v1974
        %v2279 = vunpack.c.l.b16 %v1975
        %v2280 = vunpack.c.l.b16 %v1976
        %v2281 = vunpack.c.l.b16 %v1977
        %v2282 = vunpack.c.l.b16 %v1978
        %v2283 = vunpack.c.l.b16 %v1979
        %v2284 = vunpack.c.l.b16 %v1980
        %v2285 = vunpack.c.l.b16 %v1981
        %v2286 = vunpack.c.l.b16 %v1982
        %v2287 = vunpack.c.l.b16 %v1983
        %v2288 = vunpack.c.l.b16 %v1984
        %v2289 = vunpack.c.l.b16 %v1985
        %v2290 = vunpack.c.l.b16 %v1986
        %v2291 = vunpack.c.l.b16 %v1987
        %v2292 = vunpack.c.l.b16 %v1988
        %v2293 = vunpack.c.l.b16 %v1989
        %v2294 = vunpack.c.l.b16 %v1990
        %v2295 = vunpack.c.l.b16 %v1991
        %v2296 = vunpack.c.l.b16 %v1992
        %v2297 = vunpack.c.l.b16 %v1993
        %v2298 = vunpack.c.l.b16 %v1994
        %v2299 = vpack.c.b16 %v2268, %v2267
        %v2300 = vpack.c.b16 %v2270, %v2269
        %v2301 = vpack.c.b16 %v2272, %v2271
        %v2302 = vpack.c.b16 %v2274, %v2273
        %v2303 = vpack.c.b16 %v2276, %v2275
        %v2304 = vpack.c.b16 %v2278, %v2277
        %v2305 = vpack.c.b16 %v2280, %v2279
        %v2306 = vpack.c.b16 %v2282, %v2281
        %v2307 = vpack.c.b16 %v2284, %v2283
        %v2308 = vpack.c.b16 %v2286, %v2285
        %v2309 = vpack.c.b16 %v2288, %v2287
        %v2310 = vpack.c.b16 %v2290, %v2289
        %v2311 = vpack.c.b16 %v2292, %v2291
        %v2312 = vpack.c.b16 %v2294, %v2293
        %v2313 = vpack.c.b16 %v2296, %v2295
        %v2314 = vpack.c.b16 %v2298, %v2297
        %vm2315 = vcmask 523264
        %v2317 = vsel %vm2315, %v2219, 0
        %v2320 = vsel %vm2315, %v2220, 0
        %v2323 = vsel %vm2315, %v2221, 0
        %v2326 = vsel %vm2315, %v2222, 0
        %v2329 = vsel %vm2315, %v2223, 0
        %v2332 = vsel %vm2315, %v2224, 0
        %v2335 = vsel %vm2315, %v2225, 0
        %v2338 = vsel %vm2315, %v2226, 0
        %v2341 = vsel %vm2315, %v2227, 0
        %v2344 = vsel %vm2315, %v2228, 0
        %v2347 = vsel %vm2315, %v2229, 0
        %v2350 = vsel %vm2315, %v2230, 0
        %v2353 = vsel %vm2315, %v2231, 0
        %v2356 = vsel %vm2315, %v2232, 0
        %v2359 = vsel %vm2315, %v2233, 0
        %v2362 = vsel %vm2315, %v2234, 0
        %v2365 = vsel %vm2315, %v2299, 0
        %v2368 = vsel %vm2315, %v2300, 0
        %v2371 = vsel %vm2315, %v2301, 0
        %v2374 = vsel %vm2315, %v2302, 0
        %v2377 = vsel %vm2315, %v2303, 0
        %v2380 = vsel %vm2315, %v2304, 0
        %v2383 = vsel %vm2315, %v2305, 0
        %v2386 = vsel %vm2315, %v2306, 0
        %v2389 = vsel %vm2315, %v2307, 0
        %v2392 = vsel %vm2315, %v2308, 0
        %v2395 = vsel %vm2315, %v2309, 0
        %v2398 = vsel %vm2315, %v2310, 0
        %v2401 = vsel %vm2315, %v2311, 0
        %v2404 = vsel %vm2315, %v2312, 0
        %v2407 = vsel %vm2315, %v2313, 0
        %v2410 = vsel %vm2315, %v2314, 0
        %2412 = vmatpush.bf16.xpose.msra.mxu0 %v2386
        %2413 = vmatpush.bf16.xpose.msra.mxu0 %v2383
        %2414 = vmatpush.bf16.xpose.msra.mxu0 %v2380
        %2415 = vmatpush.bf16.xpose.msra.mxu0 %v2377
        %2416 = vmatpush.bf16.xpose.msra.mxu0 %v2374
        %2417 = vmatpush.bf16.xpose.msra.mxu0 %v2371
        %2418 = vmatpush.bf16.xpose.msra.mxu0 %v2368
        %2419 = vmatpush.bf16.xpose.msra.mxu0 %v2365
        %2420 = vmatmul.bf16.gmra.mxu0 %v2317
        %v2421 = vpop.f32.mrf.mxu0
        %v2422 = vadd.f32 0.0, %v2421
        %v2423 = vpop.f32.mrf.mxu0
        %v2424 = vadd.f32 0.0, %v2423
        %2425 = vmatmul.bf16.gmra.mxu0 %v2320
        %v2426 = vpop.f32.mrf.mxu0
        %v2427 = vadd.f32 0.0, %v2426
        %v2428 = vpop.f32.mrf.mxu0
        %v2429 = vadd.f32 0.0, %v2428
        %2430 = vmatmul.bf16.gmra.mxu0 %v2323
        %v2431 = vpop.f32.mrf.mxu0
        %v2432 = vadd.f32 0.0, %v2431
        %v2433 = vpop.f32.mrf.mxu0
        %v2434 = vadd.f32 0.0, %v2433
        %2435 = vmatmul.bf16.gmra.mxu0 %v2326
        %v2436 = vpop.f32.mrf.mxu0
        %v2437 = vadd.f32 0.0, %v2436
        %v2438 = vpop.f32.mrf.mxu0
        %v2439 = vadd.f32 0.0, %v2438
        %2440 = vmatmul.bf16.gmra.mxu0 %v2329
        %v2441 = vpop.f32.mrf.mxu0
        %v2442 = vadd.f32 0.0, %v2441
        %v2443 = vpop.f32.mrf.mxu0
        %v2444 = vadd.f32 0.0, %v2443
        %2445 = vmatmul.bf16.gmra.mxu0 %v2332
        %v2446 = vpop.f32.mrf.mxu0
        %v2447 = vadd.f32 0.0, %v2446
        %v2448 = vpop.f32.mrf.mxu0
        %v2449 = vadd.f32 0.0, %v2448
        %2450 = vmatmul.bf16.gmra.mxu0 %v2335
        %v2451 = vpop.f32.mrf.mxu0
        %v2452 = vadd.f32 0.0, %v2451
        %v2453 = vpop.f32.mrf.mxu0
        %v2454 = vadd.f32 0.0, %v2453
        %2455 = vmatmul.bf16.gmra.mxu0 %v2338
        %v2456 = vpop.f32.mrf.mxu0
        %v2457 = vadd.f32 0.0, %v2456
        %v2458 = vpop.f32.mrf.mxu0
        %v2459 = vadd.f32 0.0, %v2458
        %2460 = vmatmul.bf16.gmra.mxu0 %v2341
        %v2461 = vpop.f32.mrf.mxu0
        %v2462 = vadd.f32 0.0, %v2461
        %v2463 = vpop.f32.mrf.mxu0
        %v2464 = vadd.f32 0.0, %v2463
        %2465 = vmatmul.bf16.gmra.mxu0 %v2344
        %v2466 = vpop.f32.mrf.mxu0
        %v2467 = vadd.f32 0.0, %v2466
        %v2468 = vpop.f32.mrf.mxu0
        %v2469 = vadd.f32 0.0, %v2468
        %2470 = vmatmul.bf16.gmra.mxu0 %v2347
        %v2471 = vpop.f32.mrf.mxu0
        %v2472 = vadd.f32 0.0, %v2471
        %v2473 = vpop.f32.mrf.mxu0
        %v2474 = vadd.f32 0.0, %v2473
        %2475 = vmatmul.bf16.gmra.mxu0 %v2350
        %v2476 = vpop.f32.mrf.mxu0
        %v2477 = vadd.f32 0.0, %v2476
        %v2478 = vpop.f32.mrf.mxu0
        %v2479 = vadd.f32 0.0, %v2478
        %2480 = vmatmul.bf16.gmra.mxu0 %v2353
        %v2481 = vpop.f32.mrf.mxu0
        %v2482 = vadd.f32 0.0, %v2481
        %v2483 = vpop.f32.mrf.mxu0
        %v2484 = vadd.f32 0.0, %v2483
        %2485 = vmatmul.bf16.gmra.mxu0 %v2356
        %v2486 = vpop.f32.mrf.mxu0
        %v2487 = vadd.f32 0.0, %v2486
        %v2488 = vpop.f32.mrf.mxu0
        %v2489 = vadd.f32 0.0, %v2488
        %2490 = vmatmul.bf16.gmra.mxu0 %v2359
        %v2491 = vpop.f32.mrf.mxu0
        %v2492 = vadd.f32 0.0, %v2491
        %v2493 = vpop.f32.mrf.mxu0
        %v2494 = vadd.f32 0.0, %v2493
        %2495 = vmatmul.bf16.gmra.mxu0 %v2362
        %v2496 = vpop.f32.mrf.mxu0
        %v2497 = vadd.f32 0.0, %v2496
        %v2498 = vpop.f32.mrf.mxu0
        %v2499 = vadd.f32 0.0, %v2498
        %2500 = vdwg.mxu0
        %2501 = vmatpush.bf16.xpose.msra.mxu0 %v2410
        %2502 = vmatpush.bf16.xpose.msra.mxu0 %v2407
        %2503 = vmatpush.bf16.xpose.msra.mxu0 %v2404
        %2504 = vmatpush.bf16.xpose.msra.mxu0 %v2401
        %2505 = vmatpush.bf16.xpose.msra.mxu0 %v2398
        %2506 = vmatpush.bf16.xpose.msra.mxu0 %v2395
        %2507 = vmatpush.bf16.xpose.msra.mxu0 %v2392
        %2508 = vmatpush.bf16.xpose.msra.mxu0 %v2389
        %2509 = vmatmul.bf16.gmra.mxu0 %v2317
        %v2510 = vpop.f32.mrf.mxu0
        %v2511 = vadd.f32 0.0, %v2510
        %v2512 = vpop.f32.mrf.mxu0
        %v2513 = vadd.f32 0.0, %v2512
        %2514 = vmatmul.bf16.gmra.mxu0 %v2320
        %v2515 = vpop.f32.mrf.mxu0
        %v2516 = vadd.f32 0.0, %v2515
        %v2517 = vpop.f32.mrf.mxu0
        %v2518 = vadd.f32 0.0, %v2517
        %2519 = vmatmul.bf16.gmra.mxu0 %v2323
        %v2520 = vpop.f32.mrf.mxu0
        %v2521 = vadd.f32 0.0, %v2520
        %v2522 = vpop.f32.mrf.mxu0
        %v2523 = vadd.f32 0.0, %v2522
        %2524 = vmatmul.bf16.gmra.mxu0 %v2326
        %v2525 = vpop.f32.mrf.mxu0
        %v2526 = vadd.f32 0.0, %v2525
        %v2527 = vpop.f32.mrf.mxu0
        %v2528 = vadd.f32 0.0, %v2527
        %2529 = vmatmul.bf16.gmra.mxu0 %v2329
        %v2530 = vpop.f32.mrf.mxu0
        %v2531 = vadd.f32 0.0, %v2530
        %v2532 = vpop.f32.mrf.mxu0
        %v2533 = vadd.f32 0.0, %v2532
        %2534 = vmatmul.bf16.gmra.mxu0 %v2332
        %v2535 = vpop.f32.mrf.mxu0
        %v2536 = vadd.f32 0.0, %v2535
        %v2537 = vpop.f32.mrf.mxu0
        %v2538 = vadd.f32 0.0, %v2537
        %2539 = vmatmul.bf16.gmra.mxu0 %v2335
        %v2540 = vpop.f32.mrf.mxu0
        %v2541 = vadd.f32 0.0, %v2540
        %v2542 = vpop.f32.mrf.mxu0
        %v2543 = vadd.f32 0.0, %v2542
        %2544 = vmatmul.bf16.gmra.mxu0 %v2338
        %v2545 = vpop.f32.mrf.mxu0
        %v2546 = vadd.f32 0.0, %v2545
        %v2547 = vpop.f32.mrf.mxu0
        %v2548 = vadd.f32 0.0, %v2547
        %2549 = vmatmul.bf16.gmra.mxu0 %v2341
        %v2550 = vpop.f32.mrf.mxu0
        %v2551 = vadd.f32 0.0, %v2550
        %v2552 = vpop.f32.mrf.mxu0
        %v2553 = vadd.f32 0.0, %v2552
        %2554 = vmatmul.bf16.gmra.mxu0 %v2344
        %v2555 = vpop.f32.mrf.mxu0
        %v2556 = vadd.f32 0.0, %v2555
        %v2557 = vpop.f32.mrf.mxu0
        %v2558 = vadd.f32 0.0, %v2557
        %2559 = vmatmul.bf16.gmra.mxu0 %v2347
        %v2560 = vpop.f32.mrf.mxu0
        %v2561 = vadd.f32 0.0, %v2560
        %v2562 = vpop.f32.mrf.mxu0
        %v2563 = vadd.f32 0.0, %v2562
        %2564 = vmatmul.bf16.gmra.mxu0 %v2350
        %v2565 = vpop.f32.mrf.mxu0
        %v2566 = vadd.f32 0.0, %v2565
        %v2567 = vpop.f32.mrf.mxu0
        %v2568 = vadd.f32 0.0, %v2567
        %2569 = vmatmul.bf16.gmra.mxu0 %v2353
        %v2570 = vpop.f32.mrf.mxu0
        %v2571 = vadd.f32 0.0, %v2570
        %v2572 = vpop.f32.mrf.mxu0
        %v2573 = vadd.f32 0.0, %v2572
        %2574 = vmatmul.bf16.gmra.mxu0 %v2356
        %v2575 = vpop.f32.mrf.mxu0
        %v2576 = vadd.f32 0.0, %v2575
        %v2577 = vpop.f32.mrf.mxu0
        %v2578 = vadd.f32 0.0, %v2577
        %2579 = vmatmul.bf16.gmra.mxu0 %v2359
        %v2580 = vpop.f32.mrf.mxu0
        %v2581 = vadd.f32 0.0, %v2580
        %v2582 = vpop.f32.mrf.mxu0
        %v2583 = vadd.f32 0.0, %v2582
        %2584 = vmatmul.bf16.gmra.mxu0 %v2362
        %v2585 = vpop.f32.mrf.mxu0
        %v2586 = vadd.f32 0.0, %v2585
        %v2587 = vpop.f32.mrf.mxu0
        %v2588 = vadd.f32 0.0, %v2587
        %2589 = vdwg.mxu0
        %v2622 = vunpack.c.l.b16 %v1899
        %v2623 = vunpack.c.l.b16 %v1900
        %v2624 = vunpack.c.l.b16 %v1901
        %v2625 = vunpack.c.l.b16 %v1902
        %v2626 = vunpack.c.l.b16 %v1903
        %v2627 = vunpack.c.l.b16 %v1904
        %v2628 = vunpack.c.l.b16 %v1905
        %v2629 = vunpack.c.l.b16 %v1906
        %v2630 = vunpack.c.l.b16 %v1907
        %v2631 = vunpack.c.l.b16 %v1908
        %v2632 = vunpack.c.l.b16 %v1909
        %v2633 = vunpack.c.l.b16 %v1910
        %v2634 = vunpack.c.l.b16 %v1911
        %v2635 = vunpack.c.l.b16 %v1912
        %v2636 = vunpack.c.l.b16 %v1913
        %v2637 = vunpack.c.l.b16 %v1914
        %v2638 = vunpack.c.l.b16 %v1915
        %v2639 = vunpack.c.l.b16 %v1916
        %v2640 = vunpack.c.l.b16 %v1917
        %v2641 = vunpack.c.l.b16 %v1918
        %v2642 = vunpack.c.l.b16 %v1919
        %v2643 = vunpack.c.l.b16 %v1920
        %v2644 = vunpack.c.l.b16 %v1921
        %v2645 = vunpack.c.l.b16 %v1922
        %v2646 = vunpack.c.l.b16 %v1923
        %v2647 = vunpack.c.l.b16 %v1924
        %v2648 = vunpack.c.l.b16 %v1925
        %v2649 = vunpack.c.l.b16 %v1926
        %v2650 = vunpack.c.l.b16 %v1927
        %v2651 = vunpack.c.l.b16 %v1928
        %v2652 = vunpack.c.l.b16 %v1929
        %v2653 = vunpack.c.l.b16 %v1930
        %v2654 = vpack.c.b16 %v2623, %v2622
        %v2655 = vpack.c.b16 %v2625, %v2624
        %v2656 = vpack.c.b16 %v2627, %v2626
        %v2657 = vpack.c.b16 %v2629, %v2628
        %v2658 = vpack.c.b16 %v2631, %v2630
        %v2659 = vpack.c.b16 %v2633, %v2632
        %v2660 = vpack.c.b16 %v2635, %v2634
        %v2661 = vpack.c.b16 %v2637, %v2636
        %v2662 = vpack.c.b16 %v2639, %v2638
        %v2663 = vpack.c.b16 %v2641, %v2640
        %v2664 = vpack.c.b16 %v2643, %v2642
        %v2665 = vpack.c.b16 %v2645, %v2644
        %v2666 = vpack.c.b16 %v2647, %v2646
        %v2667 = vpack.c.b16 %v2649, %v2648
        %v2668 = vpack.c.b16 %v2651, %v2650
        %v2669 = vpack.c.b16 %v2653, %v2652
        %v2702 = vunpack.c.l.b16 %v1995
        %v2703 = vunpack.c.l.b16 %v1996
        %v2704 = vunpack.c.l.b16 %v1997
        %v2705 = vunpack.c.l.b16 %v1998
        %v2706 = vunpack.c.l.b16 %v1999
        %v2707 = vunpack.c.l.b16 %v2000
        %v2708 = vunpack.c.l.b16 %v2001
        %v2709 = vunpack.c.l.b16 %v2002
        %v2710 = vunpack.c.l.b16 %v2003
        %v2711 = vunpack.c.l.b16 %v2004
        %v2712 = vunpack.c.l.b16 %v2005
        %v2713 = vunpack.c.l.b16 %v2006
        %v2714 = vunpack.c.l.b16 %v2007
        %v2715 = vunpack.c.l.b16 %v2008
        %v2716 = vunpack.c.l.b16 %v2009
        %v2717 = vunpack.c.l.b16 %v2010
        %v2718 = vunpack.c.l.b16 %v2011
        %v2719 = vunpack.c.l.b16 %v2012
        %v2720 = vunpack.c.l.b16 %v2013
        %v2721 = vunpack.c.l.b16 %v2014
        %v2722 = vunpack.c.l.b16 %v2015
        %v2723 = vunpack.c.l.b16 %v2016
        %v2724 = vunpack.c.l.b16 %v2017
        %v2725 = vunpack.c.l.b16 %v2018
        %v2726 = vunpack.c.l.b16 %v2019
        %v2727 = vunpack.c.l.b16 %v2020
        %v2728 = vunpack.c.l.b16 %v2021
        %v2729 = vunpack.c.l.b16 %v2022
        %v2730 = vunpack.c.l.b16 %v2023
        %v2731 = vunpack.c.l.b16 %v2024
        %v2732 = vunpack.c.l.b16 %v2025
        %v2733 = vunpack.c.l.b16 %v2026
        %v2734 = vpack.c.b16 %v2703, %v2702
        %v2735 = vpack.c.b16 %v2705, %v2704
        %v2736 = vpack.c.b16 %v2707, %v2706
        %v2737 = vpack.c.b16 %v2709, %v2708
        %v2738 = vpack.c.b16 %v2711, %v2710
        %v2739 = vpack.c.b16 %v2713, %v2712
        %v2740 = vpack.c.b16 %v2715, %v2714
        %v2741 = vpack.c.b16 %v2717, %v2716
        %v2742 = vpack.c.b16 %v2719, %v2718
        %v2743 = vpack.c.b16 %v2721, %v2720
        %v2744 = vpack.c.b16 %v2723, %v2722
        %v2745 = vpack.c.b16 %v2725, %v2724
        %v2746 = vpack.c.b16 %v2727, %v2726
        %v2747 = vpack.c.b16 %v2729, %v2728
        %v2748 = vpack.c.b16 %v2731, %v2730
        %v2749 = vpack.c.b16 %v2733, %v2732
        %v2751 = vsel %vm2315, %v2654, 0
        %v2754 = vsel %vm2315, %v2655, 0
        %v2757 = vsel %vm2315, %v2656, 0
        %v2760 = vsel %vm2315, %v2657, 0
        %v2763 = vsel %vm2315, %v2658, 0
        %v2766 = vsel %vm2315, %v2659, 0
        %v2769 = vsel %vm2315, %v2660, 0
        %v2772 = vsel %vm2315, %v2661, 0
        %v2775 = vsel %vm2315, %v2662, 0
        %v2778 = vsel %vm2315, %v2663, 0
        %v2781 = vsel %vm2315, %v2664, 0
        %v2784 = vsel %vm2315, %v2665, 0
        %v2787 = vsel %vm2315, %v2666, 0
        %v2790 = vsel %vm2315, %v2667, 0
        %v2793 = vsel %vm2315, %v2668, 0
        %v2796 = vsel %vm2315, %v2669, 0
        %v2799 = vsel %vm2315, %v2734, 0
        %v2802 = vsel %vm2315, %v2735, 0
        %v2805 = vsel %vm2315, %v2736, 0
        %v2808 = vsel %vm2315, %v2737, 0
        %v2811 = vsel %vm2315, %v2738, 0
        %v2814 = vsel %vm2315, %v2739, 0
        %v2817 = vsel %vm2315, %v2740, 0
        %v2820 = vsel %vm2315, %v2741, 0
        %v2823 = vsel %vm2315, %v2742, 0
        %v2826 = vsel %vm2315, %v2743, 0
        %v2829 = vsel %vm2315, %v2744, 0
        %v2832 = vsel %vm2315, %v2745, 0
        %v2835 = vsel %vm2315, %v2746, 0
        %v2838 = vsel %vm2315, %v2747, 0
        %v2841 = vsel %vm2315, %v2748, 0
        %v2844 = vsel %vm2315, %v2749, 0
        %2846 = vmatpush.bf16.xpose.msra.mxu0 %v2820
        %2847 = vmatpush.bf16.xpose.msra.mxu0 %v2817
        %2848 = vmatpush.bf16.xpose.msra.mxu0 %v2814
        %2849 = vmatpush.bf16.xpose.msra.mxu0 %v2811
        %2850 = vmatpush.bf16.xpose.msra.mxu0 %v2808
        %2851 = vmatpush.bf16.xpose.msra.mxu0 %v2805
        %2852 = vmatpush.bf16.xpose.msra.mxu0 %v2802
        %2853 = vmatpush.bf16.xpose.msra.mxu0 %v2799
        %2854 = vmatmul.bf16.gmra.mxu0 %v2751
        %v2855 = vpop.f32.mrf.mxu0
        %v2856 = vadd.f32 0.0, %v2855
        %v2857 = vpop.f32.mrf.mxu0
        %v2858 = vadd.f32 0.0, %v2857
        %2859 = vmatmul.bf16.gmra.mxu0 %v2754
        %v2860 = vpop.f32.mrf.mxu0
        %v2861 = vadd.f32 0.0, %v2860
        %v2862 = vpop.f32.mrf.mxu0
        %v2863 = vadd.f32 0.0, %v2862
        %2864 = vmatmul.bf16.gmra.mxu0 %v2757
        %v2865 = vpop.f32.mrf.mxu0
        %v2866 = vadd.f32 0.0, %v2865
        %v2867 = vpop.f32.mrf.mxu0
        %v2868 = vadd.f32 0.0, %v2867
        %2869 = vmatmul.bf16.gmra.mxu0 %v2760
        %v2870 = vpop.f32.mrf.mxu0
        %v2871 = vadd.f32 0.0, %v2870
        %v2872 = vpop.f32.mrf.mxu0
        %v2873 = vadd.f32 0.0, %v2872
        %2874 = vmatmul.bf16.gmra.mxu0 %v2763
        %v2875 = vpop.f32.mrf.mxu0
        %v2876 = vadd.f32 0.0, %v2875
        %v2877 = vpop.f32.mrf.mxu0
        %v2878 = vadd.f32 0.0, %v2877
        %2879 = vmatmul.bf16.gmra.mxu0 %v2766
        %v2880 = vpop.f32.mrf.mxu0
        %v2881 = vadd.f32 0.0, %v2880
        %v2882 = vpop.f32.mrf.mxu0
        %v2883 = vadd.f32 0.0, %v2882
        %2884 = vmatmul.bf16.gmra.mxu0 %v2769
        %v2885 = vpop.f32.mrf.mxu0
        %v2886 = vadd.f32 0.0, %v2885
        %v2887 = vpop.f32.mrf.mxu0
        %v2888 = vadd.f32 0.0, %v2887
        %2889 = vmatmul.bf16.gmra.mxu0 %v2772
        %v2890 = vpop.f32.mrf.mxu0
        %v2891 = vadd.f32 0.0, %v2890
        %v2892 = vpop.f32.mrf.mxu0
        %v2893 = vadd.f32 0.0, %v2892
        %2894 = vmatmul.bf16.gmra.mxu0 %v2775
        %v2895 = vpop.f32.mrf.mxu0
        %v2896 = vadd.f32 0.0, %v2895
        %v2897 = vpop.f32.mrf.mxu0
        %v2898 = vadd.f32 0.0, %v2897
        %2899 = vmatmul.bf16.gmra.mxu0 %v2778
        %v2900 = vpop.f32.mrf.mxu0
        %v2901 = vadd.f32 0.0, %v2900
        %v2902 = vpop.f32.mrf.mxu0
        %v2903 = vadd.f32 0.0, %v2902
        %2904 = vmatmul.bf16.gmra.mxu0 %v2781
        %v2905 = vpop.f32.mrf.mxu0
        %v2906 = vadd.f32 0.0, %v2905
        %v2907 = vpop.f32.mrf.mxu0
        %v2908 = vadd.f32 0.0, %v2907
        %2909 = vmatmul.bf16.gmra.mxu0 %v2784
        %v2910 = vpop.f32.mrf.mxu0
        %v2911 = vadd.f32 0.0, %v2910
        %v2912 = vpop.f32.mrf.mxu0
        %v2913 = vadd.f32 0.0, %v2912
        %2914 = vmatmul.bf16.gmra.mxu0 %v2787
        %v2915 = vpop.f32.mrf.mxu0
        %v2916 = vadd.f32 0.0, %v2915
        %v2917 = vpop.f32.mrf.mxu0
        %v2918 = vadd.f32 0.0, %v2917
        %2919 = vmatmul.bf16.gmra.mxu0 %v2790
        %v2920 = vpop.f32.mrf.mxu0
        %v2921 = vadd.f32 0.0, %v2920
        %v2922 = vpop.f32.mrf.mxu0
        %v2923 = vadd.f32 0.0, %v2922
        %2924 = vmatmul.bf16.gmra.mxu0 %v2793
        %v2925 = vpop.f32.mrf.mxu0
        %v2926 = vadd.f32 0.0, %v2925
        %v2927 = vpop.f32.mrf.mxu0
        %v2928 = vadd.f32 0.0, %v2927
        %2929 = vmatmul.bf16.gmra.mxu0 %v2796
        %v2930 = vpop.f32.mrf.mxu0
        %v2931 = vadd.f32 0.0, %v2930
        %v2932 = vpop.f32.mrf.mxu0
        %v2933 = vadd.f32 0.0, %v2932
        %2934 = vdwg.mxu0
        %2935 = vmatpush.bf16.xpose.msra.mxu0 %v2844
        %2936 = vmatpush.bf16.xpose.msra.mxu0 %v2841
        %2937 = vmatpush.bf16.xpose.msra.mxu0 %v2838
        %2938 = vmatpush.bf16.xpose.msra.mxu0 %v2835
        %2939 = vmatpush.bf16.xpose.msra.mxu0 %v2832
        %2940 = vmatpush.bf16.xpose.msra.mxu0 %v2829
        %2941 = vmatpush.bf16.xpose.msra.mxu0 %v2826
        %2942 = vmatpush.bf16.xpose.msra.mxu0 %v2823
        %2943 = vmatmul.bf16.gmra.mxu0 %v2751
        %v2944 = vpop.f32.mrf.mxu0
        %v2945 = vadd.f32 0.0, %v2944
        %v2946 = vpop.f32.mrf.mxu0
        %v2947 = vadd.f32 0.0, %v2946
        %2948 = vmatmul.bf16.gmra.mxu0 %v2754
        %v2949 = vpop.f32.mrf.mxu0
        %v2950 = vadd.f32 0.0, %v2949
        %v2951 = vpop.f32.mrf.mxu0
        %v2952 = vadd.f32 0.0, %v2951
        %2953 = vmatmul.bf16.gmra.mxu0 %v2757
        %v2954 = vpop.f32.mrf.mxu0
        %v2955 = vadd.f32 0.0, %v2954
        %v2956 = vpop.f32.mrf.mxu0
        %v2957 = vadd.f32 0.0, %v2956
        %2958 = vmatmul.bf16.gmra.mxu0 %v2760
        %v2959 = vpop.f32.mrf.mxu0
        %v2960 = vadd.f32 0.0, %v2959
        %v2961 = vpop.f32.mrf.mxu0
        %v2962 = vadd.f32 0.0, %v2961
        %2963 = vmatmul.bf16.gmra.mxu0 %v2763
        %v2964 = vpop.f32.mrf.mxu0
        %v2965 = vadd.f32 0.0, %v2964
        %v2966 = vpop.f32.mrf.mxu0
        %v2967 = vadd.f32 0.0, %v2966
        %2968 = vmatmul.bf16.gmra.mxu0 %v2766
        %v2969 = vpop.f32.mrf.mxu0
        %v2970 = vadd.f32 0.0, %v2969
        %v2971 = vpop.f32.mrf.mxu0
        %v2972 = vadd.f32 0.0, %v2971
        %2973 = vmatmul.bf16.gmra.mxu0 %v2769
        %v2974 = vpop.f32.mrf.mxu0
        %v2975 = vadd.f32 0.0, %v2974
        %v2976 = vpop.f32.mrf.mxu0
        %v2977 = vadd.f32 0.0, %v2976
        %2978 = vmatmul.bf16.gmra.mxu0 %v2772
        %v2979 = vpop.f32.mrf.mxu0
        %v2980 = vadd.f32 0.0, %v2979
        %v2981 = vpop.f32.mrf.mxu0
        %v2982 = vadd.f32 0.0, %v2981
        %2983 = vmatmul.bf16.gmra.mxu0 %v2775
        %v2984 = vpop.f32.mrf.mxu0
        %v2985 = vadd.f32 0.0, %v2984
        %v2986 = vpop.f32.mrf.mxu0
        %v2987 = vadd.f32 0.0, %v2986
        %2988 = vmatmul.bf16.gmra.mxu0 %v2778
        %v2989 = vpop.f32.mrf.mxu0
        %v2990 = vadd.f32 0.0, %v2989
        %v2991 = vpop.f32.mrf.mxu0
        %v2992 = vadd.f32 0.0, %v2991
        %2993 = vmatmul.bf16.gmra.mxu0 %v2781
        %v2994 = vpop.f32.mrf.mxu0
        %v2995 = vadd.f32 0.0, %v2994
        %v2996 = vpop.f32.mrf.mxu0
        %v2997 = vadd.f32 0.0, %v2996
        %2998 = vmatmul.bf16.gmra.mxu0 %v2784
        %v2999 = vpop.f32.mrf.mxu0
        %v3000 = vadd.f32 0.0, %v2999
        %v3001 = vpop.f32.mrf.mxu0
        %v3002 = vadd.f32 0.0, %v3001
        %3003 = vmatmul.bf16.gmra.mxu0 %v2787
        %v3004 = vpop.f32.mrf.mxu0
        %v3005 = vadd.f32 0.0, %v3004
        %v3006 = vpop.f32.mrf.mxu0
        %v3007 = vadd.f32 0.0, %v3006
        %3008 = vmatmul.bf16.gmra.mxu0 %v2790
        %v3009 = vpop.f32.mrf.mxu0
        %v3010 = vadd.f32 0.0, %v3009
        %v3011 = vpop.f32.mrf.mxu0
        %v3012 = vadd.f32 0.0, %v3011
        %3013 = vmatmul.bf16.gmra.mxu0 %v2793
        %v3014 = vpop.f32.mrf.mxu0
        %v3015 = vadd.f32 0.0, %v3014
        %v3016 = vpop.f32.mrf.mxu0
        %v3017 = vadd.f32 0.0, %v3016
        %3018 = vmatmul.bf16.gmra.mxu0 %v2796
        %v3019 = vpop.f32.mrf.mxu0
        %v3020 = vadd.f32 0.0, %v3019
        %v3021 = vpop.f32.mrf.mxu0
        %v3022 = vadd.f32 0.0, %v3021
        %3023 = vdwg.mxu0
        %v3056 = vunpack.c.l.b16 %v1931
        %v3057 = vunpack.c.l.b16 %v1932
        %v3058 = vunpack.c.l.b16 %v1933
        %v3059 = vunpack.c.l.b16 %v1934
        %v3060 = vunpack.c.l.b16 %v1935
        %v3061 = vunpack.c.l.b16 %v1936
        %v3062 = vunpack.c.l.b16 %v1937
        %v3063 = vunpack.c.l.b16 %v1938
        %v3064 = vunpack.c.l.b16 %v1939
        %v3065 = vunpack.c.l.b16 %v1940
        %v3066 = vunpack.c.l.b16 %v1941
        %v3067 = vunpack.c.l.b16 %v1942
        %v3068 = vunpack.c.l.b16 %v1943
        %v3069 = vunpack.c.l.b16 %v1944
        %v3070 = vunpack.c.l.b16 %v1945
        %v3071 = vunpack.c.l.b16 %v1946
        %v3072 = vunpack.c.l.b16 %v1947
        %v3073 = vunpack.c.l.b16 %v1948
        %v3074 = vunpack.c.l.b16 %v1949
        %v3075 = vunpack.c.l.b16 %v1950
        %v3076 = vunpack.c.l.b16 %v1951
        %v3077 = vunpack.c.l.b16 %v1952
        %v3078 = vunpack.c.l.b16 %v1953
        %v3079 = vunpack.c.l.b16 %v1954
        %v3080 = vunpack.c.l.b16 %v1955
        %v3081 = vunpack.c.l.b16 %v1956
        %v3082 = vunpack.c.l.b16 %v1957
        %v3083 = vunpack.c.l.b16 %v1958
        %v3084 = vunpack.c.l.b16 %v1959
        %v3085 = vunpack.c.l.b16 %v1960
        %v3086 = vunpack.c.l.b16 %v1961
        %v3087 = vunpack.c.l.b16 %v1962
        %v3088 = vpack.c.b16 %v3057, %v3056
        %v3089 = vpack.c.b16 %v3059, %v3058
        %v3090 = vpack.c.b16 %v3061, %v3060
        %v3091 = vpack.c.b16 %v3063, %v3062
        %v3092 = vpack.c.b16 %v3065, %v3064
        %v3093 = vpack.c.b16 %v3067, %v3066
        %v3094 = vpack.c.b16 %v3069, %v3068
        %v3095 = vpack.c.b16 %v3071, %v3070
        %v3096 = vpack.c.b16 %v3073, %v3072
        %v3097 = vpack.c.b16 %v3075, %v3074
        %v3098 = vpack.c.b16 %v3077, %v3076
        %v3099 = vpack.c.b16 %v3079, %v3078
        %v3100 = vpack.c.b16 %v3081, %v3080
        %v3101 = vpack.c.b16 %v3083, %v3082
        %v3102 = vpack.c.b16 %v3085, %v3084
        %v3103 = vpack.c.b16 %v3087, %v3086
        %v3136 = vunpack.c.l.b16 %v2027
        %v3137 = vunpack.c.l.b16 %v2028
        %v3138 = vunpack.c.l.b16 %v2029
        %v3139 = vunpack.c.l.b16 %v2030
        %v3140 = vunpack.c.l.b16 %v2031
        %v3141 = vunpack.c.l.b16 %v2032
        %v3142 = vunpack.c.l.b16 %v2033
        %v3143 = vunpack.c.l.b16 %v2034
        %v3144 = vunpack.c.l.b16 %v2035
        %v3145 = vunpack.c.l.b16 %v2036
        %v3146 = vunpack.c.l.b16 %v2037
        %v3147 = vunpack.c.l.b16 %v2038
        %v3148 = vunpack.c.l.b16 %v2039
        %v3149 = vunpack.c.l.b16 %v2040
        %v3150 = vunpack.c.l.b16 %v2041
        %v3151 = vunpack.c.l.b16 %v2042
        %v3152 = vunpack.c.l.b16 %v2043
        %v3153 = vunpack.c.l.b16 %v2044
        %v3154 = vunpack.c.l.b16 %v2045
        %v3155 = vunpack.c.l.b16 %v2046
        %v3156 = vunpack.c.l.b16 %v2047
        %v3157 = vunpack.c.l.b16 %v2048
        %v3158 = vunpack.c.l.b16 %v2049
        %v3159 = vunpack.c.l.b16 %v2050
        %v3160 = vunpack.c.l.b16 %v2051
        %v3161 = vunpack.c.l.b16 %v2052
        %v3162 = vunpack.c.l.b16 %v2053
        %v3163 = vunpack.c.l.b16 %v2054
        %v3164 = vunpack.c.l.b16 %v2055
        %v3165 = vunpack.c.l.b16 %v2056
        %v3166 = vunpack.c.l.b16 %v2057
        %v3167 = vunpack.c.l.b16 %v2058
        %v3168 = vpack.c.b16 %v3137, %v3136
        %v3169 = vpack.c.b16 %v3139, %v3138
        %v3170 = vpack.c.b16 %v3141, %v3140
        %v3171 = vpack.c.b16 %v3143, %v3142
        %v3172 = vpack.c.b16 %v3145, %v3144
        %v3173 = vpack.c.b16 %v3147, %v3146
        %v3174 = vpack.c.b16 %v3149, %v3148
        %v3175 = vpack.c.b16 %v3151, %v3150
        %v3176 = vpack.c.b16 %v3153, %v3152
        %v3177 = vpack.c.b16 %v3155, %v3154
        %v3178 = vpack.c.b16 %v3157, %v3156
        %v3179 = vpack.c.b16 %v3159, %v3158
        %v3180 = vpack.c.b16 %v3161, %v3160
        %v3181 = vpack.c.b16 %v3163, %v3162
        %v3182 = vpack.c.b16 %v3165, %v3164
        %v3183 = vpack.c.b16 %v3167, %v3166
        %v3185 = vsel %vm2315, %v3088, 0
        %v3188 = vsel %vm2315, %v3089, 0
        %v3191 = vsel %vm2315, %v3090, 0
        %v3194 = vsel %vm2315, %v3091, 0
        %v3197 = vsel %vm2315, %v3092, 0
        %v3200 = vsel %vm2315, %v3093, 0
        %v3203 = vsel %vm2315, %v3094, 0
        %v3206 = vsel %vm2315, %v3095, 0
        %v3209 = vsel %vm2315, %v3096, 0
        %v3212 = vsel %vm2315, %v3097, 0
        %v3215 = vsel %vm2315, %v3098, 0
        %v3218 = vsel %vm2315, %v3099, 0
        %v3221 = vsel %vm2315, %v3100, 0
        %v3224 = vsel %vm2315, %v3101, 0
        %v3227 = vsel %vm2315, %v3102, 0
        %v3230 = vsel %vm2315, %v3103, 0
        %v3233 = vsel %vm2315, %v3168, 0
        %v3236 = vsel %vm2315, %v3169, 0
        %v3239 = vsel %vm2315, %v3170, 0
        %v3242 = vsel %vm2315, %v3171, 0
        %v3245 = vsel %vm2315, %v3172, 0
        %v3248 = vsel %vm2315, %v3173, 0
        %v3251 = vsel %vm2315, %v3174, 0
        %v3254 = vsel %vm2315, %v3175, 0
        %v3257 = vsel %vm2315, %v3176, 0
        %v3260 = vsel %vm2315, %v3177, 0
        %v3263 = vsel %vm2315, %v3178, 0
        %v3266 = vsel %vm2315, %v3179, 0
        %v3269 = vsel %vm2315, %v3180, 0
        %v3272 = vsel %vm2315, %v3181, 0
        %v3275 = vsel %vm2315, %v3182, 0
        %v3278 = vsel %vm2315, %v3183, 0
        %3280 = vmatpush.bf16.xpose.msra.mxu0 %v3254
        %3281 = vmatpush.bf16.xpose.msra.mxu0 %v3251
        %3282 = vmatpush.bf16.xpose.msra.mxu0 %v3248
        %3283 = vmatpush.bf16.xpose.msra.mxu0 %v3245
        %3284 = vmatpush.bf16.xpose.msra.mxu0 %v3242
        %3285 = vmatpush.bf16.xpose.msra.mxu0 %v3239
        %3286 = vmatpush.bf16.xpose.msra.mxu0 %v3236
        %3287 = vmatpush.bf16.xpose.msra.mxu0 %v3233
        %3288 = vmatmul.bf16.gmra.mxu0 %v3185
        %v3289 = vpop.f32.mrf.mxu0
        %v3290 = vadd.f32 0.0, %v3289
        %v3291 = vpop.f32.mrf.mxu0
        %v3292 = vadd.f32 0.0, %v3291
        %3293 = vmatmul.bf16.gmra.mxu0 %v3188
        %v3294 = vpop.f32.mrf.mxu0
        %v3295 = vadd.f32 0.0, %v3294
        %v3296 = vpop.f32.mrf.mxu0
        %v3297 = vadd.f32 0.0, %v3296
        %3298 = vmatmul.bf16.gmra.mxu0 %v3191
        %v3299 = vpop.f32.mrf.mxu0
        %v3300 = vadd.f32 0.0, %v3299
        %v3301 = vpop.f32.mrf.mxu0
        %v3302 = vadd.f32 0.0, %v3301
        %3303 = vmatmul.bf16.gmra.mxu0 %v3194
        %v3304 = vpop.f32.mrf.mxu0
        %v3305 = vadd.f32 0.0, %v3304
        %v3306 = vpop.f32.mrf.mxu0
        %v3307 = vadd.f32 0.0, %v3306
        %3308 = vmatmul.bf16.gmra.mxu0 %v3197
        %v3309 = vpop.f32.mrf.mxu0
        %v3310 = vadd.f32 0.0, %v3309
        %v3311 = vpop.f32.mrf.mxu0
        %v3312 = vadd.f32 0.0, %v3311
        %3313 = vmatmul.bf16.gmra.mxu0 %v3200
        %v3314 = vpop.f32.mrf.mxu0
        %v3315 = vadd.f32 0.0, %v3314
        %v3316 = vpop.f32.mrf.mxu0
        %v3317 = vadd.f32 0.0, %v3316
        %3318 = vmatmul.bf16.gmra.mxu0 %v3203
        %v3319 = vpop.f32.mrf.mxu0
        %v3320 = vadd.f32 0.0, %v3319
        %v3321 = vpop.f32.mrf.mxu0
        %v3322 = vadd.f32 0.0, %v3321
        %3323 = vmatmul.bf16.gmra.mxu0 %v3206
        %v3324 = vpop.f32.mrf.mxu0
        %v3325 = vadd.f32 0.0, %v3324
        %v3326 = vpop.f32.mrf.mxu0
        %v3327 = vadd.f32 0.0, %v3326
        %3328 = vmatmul.bf16.gmra.mxu0 %v3209
        %v3329 = vpop.f32.mrf.mxu0
        %v3330 = vadd.f32 0.0, %v3329
        %v3331 = vpop.f32.mrf.mxu0
        %v3332 = vadd.f32 0.0, %v3331
        %3333 = vmatmul.bf16.gmra.mxu0 %v3212
        %v3334 = vpop.f32.mrf.mxu0
        %v3335 = vadd.f32 0.0, %v3334
        %v3336 = vpop.f32.mrf.mxu0
        %v3337 = vadd.f32 0.0, %v3336
        %3338 = vmatmul.bf16.gmra.mxu0 %v3215
        %v3339 = vpop.f32.mrf.mxu0
        %v3340 = vadd.f32 0.0, %v3339
        %v3341 = vpop.f32.mrf.mxu0
        %v3342 = vadd.f32 0.0, %v3341
        %3343 = vmatmul.bf16.gmra.mxu0 %v3218
        %v3344 = vpop.f32.mrf.mxu0
        %v3345 = vadd.f32 0.0, %v3344
        %v3346 = vpop.f32.mrf.mxu0
        %v3347 = vadd.f32 0.0, %v3346
        %3348 = vmatmul.bf16.gmra.mxu0 %v3221
        %v3349 = vpop.f32.mrf.mxu0
        %v3350 = vadd.f32 0.0, %v3349
        %v3351 = vpop.f32.mrf.mxu0
        %v3352 = vadd.f32 0.0, %v3351
        %3353 = vmatmul.bf16.gmra.mxu0 %v3224
        %v3354 = vpop.f32.mrf.mxu0
        %v3355 = vadd.f32 0.0, %v3354
        %v3356 = vpop.f32.mrf.mxu0
        %v3357 = vadd.f32 0.0, %v3356
        %3358 = vmatmul.bf16.gmra.mxu0 %v3227
        %v3359 = vpop.f32.mrf.mxu0
        %v3360 = vadd.f32 0.0, %v3359
        %v3361 = vpop.f32.mrf.mxu0
        %v3362 = vadd.f32 0.0, %v3361
        %3363 = vmatmul.bf16.gmra.mxu0 %v3230
        %v3364 = vpop.f32.mrf.mxu0
        %v3365 = vadd.f32 0.0, %v3364
        %v3366 = vpop.f32.mrf.mxu0
        %v3367 = vadd.f32 0.0, %v3366
        %3368 = vdwg.mxu0
        %3369 = vmatpush.bf16.xpose.msra.mxu0 %v3278
        %3370 = vmatpush.bf16.xpose.msra.mxu0 %v3275
        %3371 = vmatpush.bf16.xpose.msra.mxu0 %v3272
        %3372 = vmatpush.bf16.xpose.msra.mxu0 %v3269
        %3373 = vmatpush.bf16.xpose.msra.mxu0 %v3266
        %3374 = vmatpush.bf16.xpose.msra.mxu0 %v3263
        %3375 = vmatpush.bf16.xpose.msra.mxu0 %v3260
        %3376 = vmatpush.bf16.xpose.msra.mxu0 %v3257
        %3377 = vmatmul.bf16.gmra.mxu0 %v3185
        %v3378 = vpop.f32.mrf.mxu0
        %v3379 = vadd.f32 0.0, %v3378
        %v3380 = vpop.f32.mrf.mxu0
        %v3381 = vadd.f32 0.0, %v3380
        %3382 = vmatmul.bf16.gmra.mxu0 %v3188
        %v3383 = vpop.f32.mrf.mxu0
        %v3384 = vadd.f32 0.0, %v3383
        %v3385 = vpop.f32.mrf.mxu0
        %v3386 = vadd.f32 0.0, %v3385
        %3387 = vmatmul.bf16.gmra.mxu0 %v3191
        %v3388 = vpop.f32.mrf.mxu0
        %v3389 = vadd.f32 0.0, %v3388
        %v3390 = vpop.f32.mrf.mxu0
        %v3391 = vadd.f32 0.0, %v3390
        %3392 = vmatmul.bf16.gmra.mxu0 %v3194
        %v3393 = vpop.f32.mrf.mxu0
        %v3394 = vadd.f32 0.0, %v3393
        %v3395 = vpop.f32.mrf.mxu0
        %v3396 = vadd.f32 0.0, %v3395
        %3397 = vmatmul.bf16.gmra.mxu0 %v3197
        %v3398 = vpop.f32.mrf.mxu0
        %v3399 = vadd.f32 0.0, %v3398
        %v3400 = vpop.f32.mrf.mxu0
        %v3401 = vadd.f32 0.0, %v3400
        %3402 = vmatmul.bf16.gmra.mxu0 %v3200
        %v3403 = vpop.f32.mrf.mxu0
        %v3404 = vadd.f32 0.0, %v3403
        %v3405 = vpop.f32.mrf.mxu0
        %v3406 = vadd.f32 0.0, %v3405
        %3407 = vmatmul.bf16.gmra.mxu0 %v3203
        %v3408 = vpop.f32.mrf.mxu0
        %v3409 = vadd.f32 0.0, %v3408
        %v3410 = vpop.f32.mrf.mxu0
        %v3411 = vadd.f32 0.0, %v3410
        %3412 = vmatmul.bf16.gmra.mxu0 %v3206
        %v3413 = vpop.f32.mrf.mxu0
        %v3414 = vadd.f32 0.0, %v3413
        %v3415 = vpop.f32.mrf.mxu0
        %v3416 = vadd.f32 0.0, %v3415
        %3417 = vmatmul.bf16.gmra.mxu0 %v3209
        %v3418 = vpop.f32.mrf.mxu0
        %v3419 = vadd.f32 0.0, %v3418
        %v3420 = vpop.f32.mrf.mxu0
        %v3421 = vadd.f32 0.0, %v3420
        %3422 = vmatmul.bf16.gmra.mxu0 %v3212
        %v3423 = vpop.f32.mrf.mxu0
        %v3424 = vadd.f32 0.0, %v3423
        %v3425 = vpop.f32.mrf.mxu0
        %v3426 = vadd.f32 0.0, %v3425
        %3427 = vmatmul.bf16.gmra.mxu0 %v3215
        %v3428 = vpop.f32.mrf.mxu0
        %v3429 = vadd.f32 0.0, %v3428
        %v3430 = vpop.f32.mrf.mxu0
        %v3431 = vadd.f32 0.0, %v3430
        %3432 = vmatmul.bf16.gmra.mxu0 %v3218
        %v3433 = vpop.f32.mrf.mxu0
        %v3434 = vadd.f32 0.0, %v3433
        %v3435 = vpop.f32.mrf.mxu0
        %v3436 = vadd.f32 0.0, %v3435
        %3437 = vmatmul.bf16.gmra.mxu0 %v3221
        %v3438 = vpop.f32.mrf.mxu0
        %v3439 = vadd.f32 0.0, %v3438
        %v3440 = vpop.f32.mrf.mxu0
        %v3441 = vadd.f32 0.0, %v3440
        %3442 = vmatmul.bf16.gmra.mxu0 %v3224
        %v3443 = vpop.f32.mrf.mxu0
        %v3444 = vadd.f32 0.0, %v3443
        %v3445 = vpop.f32.mrf.mxu0
        %v3446 = vadd.f32 0.0, %v3445
        %3447 = vmatmul.bf16.gmra.mxu0 %v3227
        %v3448 = vpop.f32.mrf.mxu0
        %v3449 = vadd.f32 0.0, %v3448
        %v3450 = vpop.f32.mrf.mxu0
        %v3451 = vadd.f32 0.0, %v3450
        %3452 = vmatmul.bf16.gmra.mxu0 %v3230
        %v3453 = vpop.f32.mrf.mxu0
        %v3454 = vadd.f32 0.0, %v3453
        %v3455 = vpop.f32.mrf.mxu0
        %v3456 = vadd.f32 0.0, %v3455
        %3457 = vdwg.mxu0
        %v3458 = vld [vmem:[#allocation2] sm:$0xff]
        %v3459 = vld [vmem:[#allocation2 + $0x8] sm:$0xff]
        %v3460 = vld [vmem:[#allocation2 + $0x10] sm:$0xff]
        %v3461 = vld [vmem:[#allocation2 + $0x18] sm:$0xff]
        %v3462 = vld [vmem:[#allocation2 + $0x20] sm:$0xff]
        %v3463 = vld [vmem:[#allocation2 + $0x28] sm:$0xff]
        %v3464 = vld [vmem:[#allocation2 + $0x30] sm:$0xff]
        %v3465 = vld [vmem:[#allocation2 + $0x38] sm:$0xff]
        %v3466 = vld [vmem:[#allocation2 + $0x40] sm:$0xff]
        %v3467 = vld [vmem:[#allocation2 + $0x48] sm:$0xff]
        %v3468 = vld [vmem:[#allocation2 + $0x50] sm:$0xff]
        %v3469 = vld [vmem:[#allocation2 + $0x58] sm:$0xff]
        %v3470 = vld [vmem:[#allocation2 + $0x60] sm:$0xff]
        %v3471 = vld [vmem:[#allocation2 + $0x68] sm:$0xff]
        %v3472 = vld [vmem:[#allocation2 + $0x70] sm:$0xff]
        %v3473 = vld [vmem:[#allocation2 + $0x78] sm:$0xff]
        %v3474 = vld [vmem:[#allocation2 + $0x80] sm:$0xff]
        %v3475 = vld [vmem:[#allocation2 + $0x88] sm:$0xff]
        %v3476 = vld [vmem:[#allocation2 + $0x90] sm:$0xff]
        %v3477 = vld [vmem:[#allocation2 + $0x98] sm:$0xff]
        %v3478 = vld [vmem:[#allocation2 + $0xa0] sm:$0xff]
        %v3479 = vld [vmem:[#allocation2 + $0xa8] sm:$0xff]
        %v3480 = vld [vmem:[#allocation2 + $0xb0] sm:$0xff]
        %v3481 = vld [vmem:[#allocation2 + $0xb8] sm:$0xff]
        %v3482 = vld [vmem:[#allocation2 + $0xc0] sm:$0xff]
        %v3483 = vld [vmem:[#allocation2 + $0xc8] sm:$0xff]
        %v3484 = vld [vmem:[#allocation2 + $0xd0] sm:$0xff]
        %v3485 = vld [vmem:[#allocation2 + $0xd8] sm:$0xff]
        %v3486 = vld [vmem:[#allocation2 + $0xe0] sm:$0xff]
        %v3487 = vld [vmem:[#allocation2 + $0xe8] sm:$0xff]
        %v3488 = vld [vmem:[#allocation2 + $0xf0] sm:$0xff]
        %v3489 = vld [vmem:[#allocation2 + $0xf8] sm:$0xff]
        %v3490 = vld [vmem:[#allocation2 + $0x100] sm:$0xff]
        %v3491 = vld [vmem:[#allocation2 + $0x108] sm:$0xff]
        %v3492 = vld [vmem:[#allocation2 + $0x110] sm:$0xff]
        %v3493 = vld [vmem:[#allocation2 + $0x118] sm:$0xff]
        %v3494 = vld [vmem:[#allocation2 + $0x120] sm:$0xff]
        %v3495 = vld [vmem:[#allocation2 + $0x128] sm:$0xff]
        %v3496 = vld [vmem:[#allocation2 + $0x130] sm:$0xff]
        %v3497 = vld [vmem:[#allocation2 + $0x138] sm:$0xff]
        %v3498 = vld [vmem:[#allocation2 + $0x140] sm:$0xff]
        %v3499 = vld [vmem:[#allocation2 + $0x148] sm:$0xff]
        %v3500 = vld [vmem:[#allocation2 + $0x150] sm:$0xff]
        %v3501 = vld [vmem:[#allocation2 + $0x158] sm:$0xff]
        %v3502 = vld [vmem:[#allocation2 + $0x160] sm:$0xff]
        %v3503 = vld [vmem:[#allocation2 + $0x168] sm:$0xff]
        %v3504 = vld [vmem:[#allocation2 + $0x170] sm:$0xff]
        %v3505 = vld [vmem:[#allocation2 + $0x178] sm:$0xff]
        %v3506 = vld [vmem:[#allocation2 + $0x180] sm:$0xff]
        %v3507 = vld [vmem:[#allocation2 + $0x188] sm:$0xff]
        %v3508 = vld [vmem:[#allocation2 + $0x190] sm:$0xff]
        %v3509 = vld [vmem:[#allocation2 + $0x198] sm:$0xff]
        %v3510 = vld [vmem:[#allocation2 + $0x1a0] sm:$0xff]
        %v3511 = vld [vmem:[#allocation2 + $0x1a8] sm:$0xff]
        %v3512 = vld [vmem:[#allocation2 + $0x1b0] sm:$0xff]
        %v3513 = vld [vmem:[#allocation2 + $0x1b8] sm:$0xff]
        %v3514 = vld [vmem:[#allocation2 + $0x1c0] sm:$0xff]
        %v3515 = vld [vmem:[#allocation2 + $0x1c8] sm:$0xff]
        %v3516 = vld [vmem:[#allocation2 + $0x1d0] sm:$0xff]
        %v3517 = vld [vmem:[#allocation2 + $0x1d8] sm:$0xff]
        %v3518 = vld [vmem:[#allocation2 + $0x1e0] sm:$0xff]
        %v3519 = vld [vmem:[#allocation2 + $0x1e8] sm:$0xff]
        %v3520 = vld [vmem:[#allocation2 + $0x1f0] sm:$0xff]
        %v3521 = vld [vmem:[#allocation2 + $0x1f8] sm:$0xff]
        %v3522 = vld [vmem:[#allocation2 + $0x200] sm:$0xff]
        %v3523 = vld [vmem:[#allocation2 + $0x208] sm:$0xff]
        %v3524 = vld [vmem:[#allocation2 + $0x210] sm:$0xff]
        %v3525 = vld [vmem:[#allocation2 + $0x218] sm:$0xff]
        %v3526 = vld [vmem:[#allocation2 + $0x220] sm:$0xff]
        %v3527 = vld [vmem:[#allocation2 + $0x228] sm:$0xff]
        %v3528 = vld [vmem:[#allocation2 + $0x230] sm:$0xff]
        %v3529 = vld [vmem:[#allocation2 + $0x238] sm:$0xff]
        %v3530 = vld [vmem:[#allocation2 + $0x240] sm:$0xff]
        %v3531 = vld [vmem:[#allocation2 + $0x248] sm:$0xff]
        %v3532 = vld [vmem:[#allocation2 + $0x250] sm:$0xff]
        %v3533 = vld [vmem:[#allocation2 + $0x258] sm:$0xff]
        %v3534 = vld [vmem:[#allocation2 + $0x260] sm:$0xff]
        %v3535 = vld [vmem:[#allocation2 + $0x268] sm:$0xff]
        %v3536 = vld [vmem:[#allocation2 + $0x270] sm:$0xff]
        %v3537 = vld [vmem:[#allocation2 + $0x278] sm:$0xff]
        %v3538 = vld [vmem:[#allocation2 + $0x280] sm:$0xff]
        %v3539 = vld [vmem:[#allocation2 + $0x288] sm:$0xff]
        %v3540 = vld [vmem:[#allocation2 + $0x290] sm:$0xff]
        %v3541 = vld [vmem:[#allocation2 + $0x298] sm:$0xff]
        %v3542 = vld [vmem:[#allocation2 + $0x2a0] sm:$0xff]
        %v3543 = vld [vmem:[#allocation2 + $0x2a8] sm:$0xff]
        %v3544 = vld [vmem:[#allocation2 + $0x2b0] sm:$0xff]
        %v3545 = vld [vmem:[#allocation2 + $0x2b8] sm:$0xff]
        %v3546 = vld [vmem:[#allocation2 + $0x2c0] sm:$0xff]
        %v3547 = vld [vmem:[#allocation2 + $0x2c8] sm:$0xff]
        %v3548 = vld [vmem:[#allocation2 + $0x2d0] sm:$0xff]
        %v3549 = vld [vmem:[#allocation2 + $0x2d8] sm:$0xff]
        %v3550 = vld [vmem:[#allocation2 + $0x2e0] sm:$0xff]
        %v3551 = vld [vmem:[#allocation2 + $0x2e8] sm:$0xff]
        %v3552 = vld [vmem:[#allocation2 + $0x2f0] sm:$0xff]
        %v3553 = vld [vmem:[#allocation2 + $0x2f8] sm:$0xff]
        %v3554 = vmax.f32 %v2422, %v2511
        %3555 = vmax.xlane.f32.xlu0 %v3554
        %v3556 = vpop.xlane.xlu0 %3555
        %v3557 = vmax.f32 %v2424, %v2513
        %3558 = vmax.xlane.f32.xlu0 %v3557
        %v3559 = vpop.xlane.xlu0 %3558
        %v3560 = vmax.f32 %v2427, %v2516
        %3561 = vmax.xlane.f32.xlu0 %v3560
        %v3562 = vpop.xlane.xlu0 %3561
        %v3563 = vmax.f32 %v2429, %v2518
        %3564 = vmax.xlane.f32.xlu0 %v3563
        %v3565 = vpop.xlane.xlu0 %3564
        %v3566 = vmax.f32 %v2432, %v2521
        %3567 = vmax.xlane.f32.xlu0 %v3566
        %v3568 = vpop.xlane.xlu0 %3567
        %v3569 = vmax.f32 %v2434, %v2523
        %3570 = vmax.xlane.f32.xlu0 %v3569
        %v3571 = vpop.xlane.xlu0 %3570
        %v3572 = vmax.f32 %v2437, %v2526
        %3573 = vmax.xlane.f32.xlu0 %v3572
        %v3574 = vpop.xlane.xlu0 %3573
        %v3575 = vmax.f32 %v2439, %v2528
        %3576 = vmax.xlane.f32.xlu0 %v3575
        %v3577 = vpop.xlane.xlu0 %3576
        %v3578 = vmax.f32 %v2442, %v2531
        %3579 = vmax.xlane.f32.xlu0 %v3578
        %v3580 = vpop.xlane.xlu0 %3579
        %v3581 = vmax.f32 %v2444, %v2533
        %3582 = vmax.xlane.f32.xlu0 %v3581
        %v3583 = vpop.xlane.xlu0 %3582
        %v3584 = vmax.f32 %v2447, %v2536
        %3585 = vmax.xlane.f32.xlu0 %v3584
        %v3586 = vpop.xlane.xlu0 %3585
        %v3587 = vmax.f32 %v2449, %v2538
        %3588 = vmax.xlane.f32.xlu0 %v3587
        %v3589 = vpop.xlane.xlu0 %3588
        %v3590 = vmax.f32 %v2452, %v2541
        %3591 = vmax.xlane.f32.xlu0 %v3590
        %v3592 = vpop.xlane.xlu0 %3591
        %v3593 = vmax.f32 %v2454, %v2543
        %3594 = vmax.xlane.f32.xlu0 %v3593
        %v3595 = vpop.xlane.xlu0 %3594
        %v3596 = vmax.f32 %v2457, %v2546
        %3597 = vmax.xlane.f32.xlu0 %v3596
        %v3598 = vpop.xlane.xlu0 %3597
        %v3599 = vmax.f32 %v2459, %v2548
        %3600 = vmax.xlane.f32.xlu0 %v3599
        %v3601 = vpop.xlane.xlu0 %3600
        %v3602 = vmax.f32 %v2462, %v2551
        %3603 = vmax.xlane.f32.xlu0 %v3602
        %v3604 = vpop.xlane.xlu0 %3603
        %v3605 = vmax.f32 %v2464, %v2553
        %3606 = vmax.xlane.f32.xlu0 %v3605
        %v3607 = vpop.xlane.xlu0 %3606
        %v3608 = vmax.f32 %v2467, %v2556
        %3609 = vmax.xlane.f32.xlu0 %v3608
        %v3610 = vpop.xlane.xlu0 %3609
        %v3611 = vmax.f32 %v2469, %v2558
        %3612 = vmax.xlane.f32.xlu0 %v3611
        %v3613 = vpop.xlane.xlu0 %3612
        %v3614 = vmax.f32 %v2472, %v2561
        %3615 = vmax.xlane.f32.xlu0 %v3614
        %v3616 = vpop.xlane.xlu0 %3615
        %v3617 = vmax.f32 %v2474, %v2563
        %3618 = vmax.xlane.f32.xlu0 %v3617
        %v3619 = vpop.xlane.xlu0 %3618
        %v3620 = vmax.f32 %v2477, %v2566
        %3621 = vmax.xlane.f32.xlu0 %v3620
        %v3622 = vpop.xlane.xlu0 %3621
        %v3623 = vmax.f32 %v2479, %v2568
        %3624 = vmax.xlane.f32.xlu0 %v3623
        %v3625 = vpop.xlane.xlu0 %3624
        %v3626 = vmax.f32 %v2482, %v2571
        %3627 = vmax.xlane.f32.xlu0 %v3626
        %v3628 = vpop.xlane.xlu0 %3627
        %v3629 = vmax.f32 %v2484, %v2573
        %3630 = vmax.xlane.f32.xlu0 %v3629
        %v3631 = vpop.xlane.xlu0 %3630
        %v3632 = vmax.f32 %v2487, %v2576
        %3633 = vmax.xlane.f32.xlu0 %v3632
        %v3634 = vpop.xlane.xlu0 %3633
        %v3635 = vmax.f32 %v2489, %v2578
        %3636 = vmax.xlane.f32.xlu0 %v3635
        %v3637 = vpop.xlane.xlu0 %3636
        %v3638 = vmax.f32 %v2492, %v2581
        %3639 = vmax.xlane.f32.xlu0 %v3638
        %v3640 = vpop.xlane.xlu0 %3639
        %v3641 = vmax.f32 %v2494, %v2583
        %3642 = vmax.xlane.f32.xlu0 %v3641
        %v3643 = vpop.xlane.xlu0 %3642
        %v3644 = vmax.f32 %v2497, %v2586
        %3645 = vmax.xlane.f32.xlu0 %v3644
        %v3646 = vpop.xlane.xlu0 %3645
        %v3647 = vmax.f32 %v2499, %v2588
        %3648 = vmax.xlane.f32.xlu0 %v3647
        %v3649 = vpop.xlane.xlu0 %3648
        %v3650 = vmax.f32 %v2856, %v2945
        %3651 = vmax.xlane.f32.xlu0 %v3650
        %v3652 = vpop.xlane.xlu0 %3651
        %v3653 = vmax.f32 %v2858, %v2947
        %3654 = vmax.xlane.f32.xlu0 %v3653
        %v3655 = vpop.xlane.xlu0 %3654
        %v3656 = vmax.f32 %v2861, %v2950
        %3657 = vmax.xlane.f32.xlu0 %v3656
        %v3658 = vpop.xlane.xlu0 %3657
        %v3659 = vmax.f32 %v2863, %v2952
        %3660 = vmax.xlane.f32.xlu0 %v3659
        %v3661 = vpop.xlane.xlu0 %3660
        %v3662 = vmax.f32 %v2866, %v2955
        %3663 = vmax.xlane.f32.xlu0 %v3662
        %v3664 = vpop.xlane.xlu0 %3663
        %v3665 = vmax.f32 %v2868, %v2957
        %3666 = vmax.xlane.f32.xlu0 %v3665
        %v3667 = vpop.xlane.xlu0 %3666
        %v3668 = vmax.f32 %v2871, %v2960
        %3669 = vmax.xlane.f32.xlu0 %v3668
        %v3670 = vpop.xlane.xlu0 %3669
        %v3671 = vmax.f32 %v2873, %v2962
        %3672 = vmax.xlane.f32.xlu0 %v3671
        %v3673 = vpop.xlane.xlu0 %3672
        %v3674 = vmax.f32 %v2876, %v2965
        %3675 = vmax.xlane.f32.xlu0 %v3674
        %v3676 = vpop.xlane.xlu0 %3675
        %v3677 = vmax.f32 %v2878, %v2967
        %3678 = vmax.xlane.f32.xlu0 %v3677
        %v3679 = vpop.xlane.xlu0 %3678
        %v3680 = vmax.f32 %v2881, %v2970
        %3681 = vmax.xlane.f32.xlu0 %v3680
        %v3682 = vpop.xlane.xlu0 %3681
        %v3683 = vmax.f32 %v2883, %v2972
        %3684 = vmax.xlane.f32.xlu0 %v3683
        %v3685 = vpop.xlane.xlu0 %3684
        %v3686 = vmax.f32 %v2886, %v2975
        %3687 = vmax.xlane.f32.xlu0 %v3686
        %v3688 = vpop.xlane.xlu0 %3687
        %v3689 = vmax.f32 %v2888, %v2977
        %3690 = vmax.xlane.f32.xlu0 %v3689
        %v3691 = vpop.xlane.xlu0 %3690
        %v3692 = vmax.f32 %v2891, %v2980
        %3693 = vmax.xlane.f32.xlu0 %v3692
        %v3694 = vpop.xlane.xlu0 %3693
        %v3695 = vmax.f32 %v2893, %v2982
        %3696 = vmax.xlane.f32.xlu0 %v3695
        %v3697 = vpop.xlane.xlu0 %3696
        %v3698 = vmax.f32 %v2896, %v2985
        %3699 = vmax.xlane.f32.xlu0 %v3698
        %v3700 = vpop.xlane.xlu0 %3699
        %v3701 = vmax.f32 %v2898, %v2987
        %3702 = vmax.xlane.f32.xlu0 %v3701
        %v3703 = vpop.xlane.xlu0 %3702
        %v3704 = vmax.f32 %v2901, %v2990
        %3705 = vmax.xlane.f32.xlu0 %v3704
        %v3706 = vpop.xlane.xlu0 %3705
        %v3707 = vmax.f32 %v2903, %v2992
        %3708 = vmax.xlane.f32.xlu0 %v3707
        %v3709 = vpop.xlane.xlu0 %3708
        %v3710 = vmax.f32 %v2906, %v2995
        %3711 = vmax.xlane.f32.xlu0 %v3710
        %v3712 = vpop.xlane.xlu0 %3711
        %v3713 = vmax.f32 %v2908, %v2997
        %3714 = vmax.xlane.f32.xlu0 %v3713
        %v3715 = vpop.xlane.xlu0 %3714
        %v3716 = vmax.f32 %v2911, %v3000
        %3717 = vmax.xlane.f32.xlu0 %v3716
        %v3718 = vpop.xlane.xlu0 %3717
        %v3719 = vmax.f32 %v2913, %v3002
        %3720 = vmax.xlane.f32.xlu0 %v3719
        %v3721 = vpop.xlane.xlu0 %3720
        %v3722 = vmax.f32 %v2916, %v3005
        %3723 = vmax.xlane.f32.xlu0 %v3722
        %v3724 = vpop.xlane.xlu0 %3723
        %v3725 = vmax.f32 %v2918, %v3007
        %3726 = vmax.xlane.f32.xlu0 %v3725
        %v3727 = vpop.xlane.xlu0 %3726
        %v3728 = vmax.f32 %v2921, %v3010
        %3729 = vmax.xlane.f32.xlu0 %v3728
        %v3730 = vpop.xlane.xlu0 %3729
        %v3731 = vmax.f32 %v2923, %v3012
        %3732 = vmax.xlane.f32.xlu0 %v3731
        %v3733 = vpop.xlane.xlu0 %3732
        %v3734 = vmax.f32 %v2926, %v3015
        %3735 = vmax.xlane.f32.xlu0 %v3734
        %v3736 = vpop.xlane.xlu0 %3735
        %v3737 = vmax.f32 %v2928, %v3017
        %3738 = vmax.xlane.f32.xlu0 %v3737
        %v3739 = vpop.xlane.xlu0 %3738
        %v3740 = vmax.f32 %v2931, %v3020
        %3741 = vmax.xlane.f32.xlu0 %v3740
        %v3742 = vpop.xlane.xlu0 %3741
        %v3743 = vmax.f32 %v2933, %v3022
        %3744 = vmax.xlane.f32.xlu0 %v3743
        %v3745 = vpop.xlane.xlu0 %3744
        %v3746 = vmax.f32 %v3290, %v3379
        %3747 = vmax.xlane.f32.xlu0 %v3746
        %v3748 = vpop.xlane.xlu0 %3747
        %v3749 = vmax.f32 %v3292, %v3381
        %3750 = vmax.xlane.f32.xlu0 %v3749
        %v3751 = vpop.xlane.xlu0 %3750
        %v3752 = vmax.f32 %v3295, %v3384
        %3753 = vmax.xlane.f32.xlu0 %v3752
        %v3754 = vpop.xlane.xlu0 %3753
        %v3755 = vmax.f32 %v3297, %v3386
        %3756 = vmax.xlane.f32.xlu0 %v3755
        %v3757 = vpop.xlane.xlu0 %3756
        %v3758 = vmax.f32 %v3300, %v3389
        %3759 = vmax.xlane.f32.xlu0 %v3758
        %v3760 = vpop.xlane.xlu0 %3759
        %v3761 = vmax.f32 %v3302, %v3391
        %3762 = vmax.xlane.f32.xlu0 %v3761
        %v3763 = vpop.xlane.xlu0 %3762
        %v3764 = vmax.f32 %v3305, %v3394
        %3765 = vmax.xlane.f32.xlu0 %v3764
        %v3766 = vpop.xlane.xlu0 %3765
        %v3767 = vmax.f32 %v3307, %v3396
        %3768 = vmax.xlane.f32.xlu0 %v3767
        %v3769 = vpop.xlane.xlu0 %3768
        %v3770 = vmax.f32 %v3310, %v3399
        %3771 = vmax.xlane.f32.xlu0 %v3770
        %v3772 = vpop.xlane.xlu0 %3771
        %v3773 = vmax.f32 %v3312, %v3401
        %3774 = vmax.xlane.f32.xlu0 %v3773
        %v3775 = vpop.xlane.xlu0 %3774
        %v3776 = vmax.f32 %v3315, %v3404
        %3777 = vmax.xlane.f32.xlu0 %v3776
        %v3778 = vpop.xlane.xlu0 %3777
        %v3779 = vmax.f32 %v3317, %v3406
        %3780 = vmax.xlane.f32.xlu0 %v3779
        %v3781 = vpop.xlane.xlu0 %3780
        %v3782 = vmax.f32 %v3320, %v3409
        %3783 = vmax.xlane.f32.xlu0 %v3782
        %v3784 = vpop.xlane.xlu0 %3783
        %v3785 = vmax.f32 %v3322, %v3411
        %3786 = vmax.xlane.f32.xlu0 %v3785
        %v3787 = vpop.xlane.xlu0 %3786
        %v3788 = vmax.f32 %v3325, %v3414
        %3789 = vmax.xlane.f32.xlu0 %v3788
        %v3790 = vpop.xlane.xlu0 %3789
        %v3791 = vmax.f32 %v3327, %v3416
        %3792 = vmax.xlane.f32.xlu0 %v3791
        %v3793 = vpop.xlane.xlu0 %3792
        %v3794 = vmax.f32 %v3330, %v3419
        %3795 = vmax.xlane.f32.xlu0 %v3794
        %v3796 = vpop.xlane.xlu0 %3795
        %v3797 = vmax.f32 %v3332, %v3421
        %3798 = vmax.xlane.f32.xlu0 %v3797
        %v3799 = vpop.xlane.xlu0 %3798
        %v3800 = vmax.f32 %v3335, %v3424
        %3801 = vmax.xlane.f32.xlu0 %v3800
        %v3802 = vpop.xlane.xlu0 %3801
        %v3803 = vmax.f32 %v3337, %v3426
        %3804 = vmax.xlane.f32.xlu0 %v3803
        %v3805 = vpop.xlane.xlu0 %3804
        %v3806 = vmax.f32 %v3340, %v3429
        %3807 = vmax.xlane.f32.xlu0 %v3806
        %v3808 = vpop.xlane.xlu0 %3807
        %v3809 = vmax.f32 %v3342, %v3431
        %3810 = vmax.xlane.f32.xlu0 %v3809
        %v3811 = vpop.xlane.xlu0 %3810
        %v3812 = vmax.f32 %v3345, %v3434
        %3813 = vmax.xlane.f32.xlu0 %v3812
        %v3814 = vpop.xlane.xlu0 %3813
        %v3815 = vmax.f32 %v3347, %v3436
        %3816 = vmax.xlane.f32.xlu0 %v3815
        %v3817 = vpop.xlane.xlu0 %3816
        %v3818 = vmax.f32 %v3350, %v3439
        %3819 = vmax.xlane.f32.xlu0 %v3818
        %v3820 = vpop.xlane.xlu0 %3819
        %v3821 = vmax.f32 %v3352, %v3441
        %3822 = vmax.xlane.f32.xlu0 %v3821
        %v3823 = vpop.xlane.xlu0 %3822
        %v3824 = vmax.f32 %v3355, %v3444
        %3825 = vmax.xlane.f32.xlu0 %v3824
        %v3826 = vpop.xlane.xlu0 %3825
        %v3827 = vmax.f32 %v3357, %v3446
        %3828 = vmax.xlane.f32.xlu0 %v3827
        %v3829 = vpop.xlane.xlu0 %3828
        %v3830 = vmax.f32 %v3360, %v3449
        %3831 = vmax.xlane.f32.xlu0 %v3830
        %v3832 = vpop.xlane.xlu0 %3831
        %v3833 = vmax.f32 %v3362, %v3451
        %3834 = vmax.xlane.f32.xlu0 %v3833
        %v3835 = vpop.xlane.xlu0 %3834
        %v3836 = vmax.f32 %v3365, %v3454
        %3837 = vmax.xlane.f32.xlu0 %v3836
        %v3838 = vpop.xlane.xlu0 %3837
        %v3839 = vmax.f32 %v3367, %v3456
        %3840 = vmax.xlane.f32.xlu0 %v3839
        %v3841 = vpop.xlane.xlu0 %3840
        %v3842 = vmax.f32 %v3458, %v3556
        %v3843 = vmax.f32 %v3459, %v3559
        %v3844 = vmax.f32 %v3460, %v3562
        %v3845 = vmax.f32 %v3461, %v3565
        %v3846 = vmax.f32 %v3462, %v3568
        %v3847 = vmax.f32 %v3463, %v3571
        %v3848 = vmax.f32 %v3464, %v3574
        %v3849 = vmax.f32 %v3465, %v3577
        %v3850 = vmax.f32 %v3466, %v3580
        %v3851 = vmax.f32 %v3467, %v3583
        %v3852 = vmax.f32 %v3468, %v3586
        %v3853 = vmax.f32 %v3469, %v3589
        %v3854 = vmax.f32 %v3470, %v3592
        %v3855 = vmax.f32 %v3471, %v3595
        %v3856 = vmax.f32 %v3472, %v3598
        %v3857 = vmax.f32 %v3473, %v3601
        %v3858 = vmax.f32 %v3474, %v3604
        %v3859 = vmax.f32 %v3475, %v3607
        %v3860 = vmax.f32 %v3476, %v3610
        %v3861 = vmax.f32 %v3477, %v3613
        %v3862 = vmax.f32 %v3478, %v3616
        %v3863 = vmax.f32 %v3479, %v3619
        %v3864 = vmax.f32 %v3480, %v3622
        %v3865 = vmax.f32 %v3481, %v3625
        %v3866 = vmax.f32 %v3482, %v3628
        %v3867 = vmax.f32 %v3483, %v3631
        %v3868 = vmax.f32 %v3484, %v3634
        %v3869 = vmax.f32 %v3485, %v3637
        %v3870 = vmax.f32 %v3486, %v3640
        %v3871 = vmax.f32 %v3487, %v3643
        %v3872 = vmax.f32 %v3488, %v3646
        %v3873 = vmax.f32 %v3489, %v3649
        %v3874 = vmax.f32 %v3490, %v3652
        %v3875 = vmax.f32 %v3491, %v3655
        %v3876 = vmax.f32 %v3492, %v3658
        %v3877 = vmax.f32 %v3493, %v3661
        %v3878 = vmax.f32 %v3494, %v3664
        %v3879 = vmax.f32 %v3495, %v3667
        %v3880 = vmax.f32 %v3496, %v3670
        %v3881 = vmax.f32 %v3497, %v3673
        %v3882 = vmax.f32 %v3498, %v3676
        %v3883 = vmax.f32 %v3499, %v3679
        %v3884 = vmax.f32 %v3500, %v3682
        %v3885 = vmax.f32 %v3501, %v3685
        %v3886 = vmax.f32 %v3502, %v3688
        %v3887 = vmax.f32 %v3503, %v3691
        %v3888 = vmax.f32 %v3504, %v3694
        %v3889 = vmax.f32 %v3505, %v3697
        %v3890 = vmax.f32 %v3506, %v3700
        %v3891 = vmax.f32 %v3507, %v3703
        %v3892 = vmax.f32 %v3508, %v3706
        %v3893 = vmax.f32 %v3509, %v3709
        %v3894 = vmax.f32 %v3510, %v3712
        %v3895 = vmax.f32 %v3511, %v3715
        %v3896 = vmax.f32 %v3512, %v3718
        %v3897 = vmax.f32 %v3513, %v3721
        %v3898 = vmax.f32 %v3514, %v3724
        %v3899 = vmax.f32 %v3515, %v3727
        %v3900 = vmax.f32 %v3516, %v3730
        %v3901 = vmax.f32 %v3517, %v3733
        %v3902 = vmax.f32 %v3518, %v3736
        %v3903 = vmax.f32 %v3519, %v3739
        %v3904 = vmax.f32 %v3520, %v3742
        %v3905 = vmax.f32 %v3521, %v3745
        %v3906 = vmax.f32 %v3522, %v3748
        %v3907 = vmax.f32 %v3523, %v3751
        %v3908 = vmax.f32 %v3524, %v3754
        %v3909 = vmax.f32 %v3525, %v3757
        %v3910 = vmax.f32 %v3526, %v3760
        %v3911 = vmax.f32 %v3527, %v3763
        %v3912 = vmax.f32 %v3528, %v3766
        %v3913 = vmax.f32 %v3529, %v3769
        %v3914 = vmax.f32 %v3530, %v3772
        %v3915 = vmax.f32 %v3531, %v3775
        %v3916 = vmax.f32 %v3532, %v3778
        %v3917 = vmax.f32 %v3533, %v3781
        %v3918 = vmax.f32 %v3534, %v3784
        %v3919 = vmax.f32 %v3535, %v3787
        %v3920 = vmax.f32 %v3536, %v3790
        %v3921 = vmax.f32 %v3537, %v3793
        %v3922 = vmax.f32 %v3538, %v3796
        %v3923 = vmax.f32 %v3539, %v3799
        %v3924 = vmax.f32 %v3540, %v3802
        %v3925 = vmax.f32 %v3541, %v3805
        %v3926 = vmax.f32 %v3542, %v3808
        %v3927 = vmax.f32 %v3543, %v3811
        %v3928 = vmax.f32 %v3544, %v3814
        %v3929 = vmax.f32 %v3545, %v3817
        %v3930 = vmax.f32 %v3546, %v3820
        %v3931 = vmax.f32 %v3547, %v3823
        %v3932 = vmax.f32 %v3548, %v3826
        %v3933 = vmax.f32 %v3549, %v3829
        %v3934 = vmax.f32 %v3550, %v3832
        %v3935 = vmax.f32 %v3551, %v3835
        %v3936 = vmax.f32 %v3552, %v3838
        %v3937 = vmax.f32 %v3553, %v3841
        %v3938 = vsub.f32 %v3458, %v3842
        %v3939 = vsub.f32 %v3459, %v3843
        %v3940 = vsub.f32 %v3460, %v3844
        %v3941 = vsub.f32 %v3461, %v3845
        %v3942 = vsub.f32 %v3462, %v3846
        %v3943 = vsub.f32 %v3463, %v3847
        %v3944 = vsub.f32 %v3464, %v3848
        %v3945 = vsub.f32 %v3465, %v3849
        %v3946 = vsub.f32 %v3466, %v3850
        %v3947 = vsub.f32 %v3467, %v3851
        %v3948 = vsub.f32 %v3468, %v3852
        %v3949 = vsub.f32 %v3469, %v3853
        %v3950 = vsub.f32 %v3470, %v3854
        %v3951 = vsub.f32 %v3471, %v3855
        %v3952 = vsub.f32 %v3472, %v3856
        %v3953 = vsub.f32 %v3473, %v3857
        %v3954 = vsub.f32 %v3474, %v3858
        %v3955 = vsub.f32 %v3475, %v3859
        %v3956 = vsub.f32 %v3476, %v3860
        %v3957 = vsub.f32 %v3477, %v3861
        %v3958 = vsub.f32 %v3478, %v3862
        %v3959 = vsub.f32 %v3479, %v3863
        %v3960 = vsub.f32 %v3480, %v3864
        %v3961 = vsub.f32 %v3481, %v3865
        %v3962 = vsub.f32 %v3482, %v3866
        %v3963 = vsub.f32 %v3483, %v3867
        %v3964 = vsub.f32 %v3484, %v3868
        %v3965 = vsub.f32 %v3485, %v3869
        %v3966 = vsub.f32 %v3486, %v3870
        %v3967 = vsub.f32 %v3487, %v3871
        %v3968 = vsub.f32 %v3488, %v3872
        %v3969 = vsub.f32 %v3489, %v3873
        %v3970 = vsub.f32 %v3490, %v3874
        %v3971 = vsub.f32 %v3491, %v3875
        %v3972 = vsub.f32 %v3492, %v3876
        %v3973 = vsub.f32 %v3493, %v3877
        %v3974 = vsub.f32 %v3494, %v3878
        %v3975 = vsub.f32 %v3495, %v3879
        %v3976 = vsub.f32 %v3496, %v3880
        %v3977 = vsub.f32 %v3497, %v3881
        %v3978 = vsub.f32 %v3498, %v3882
        %v3979 = vsub.f32 %v3499, %v3883
        %v3980 = vsub.f32 %v3500, %v3884
        %v3981 = vsub.f32 %v3501, %v3885
        %v3982 = vsub.f32 %v3502, %v3886
        %v3983 = vsub.f32 %v3503, %v3887
        %v3984 = vsub.f32 %v3504, %v3888
        %v3985 = vsub.f32 %v3505, %v3889
        %v3986 = vsub.f32 %v3506, %v3890
        %v3987 = vsub.f32 %v3507, %v3891
        %v3988 = vsub.f32 %v3508, %v3892
        %v3989 = vsub.f32 %v3509, %v3893
        %v3990 = vsub.f32 %v3510, %v3894
        %v3991 = vsub.f32 %v3511, %v3895
        %v3992 = vsub.f32 %v3512, %v3896
        %v3993 = vsub.f32 %v3513, %v3897
        %v3994 = vsub.f32 %v3514, %v3898
        %v3995 = vsub.f32 %v3515, %v3899
        %v3996 = vsub.f32 %v3516, %v3900
        %v3997 = vsub.f32 %v3517, %v3901
        %v3998 = vsub.f32 %v3518, %v3902
        %v3999 = vsub.f32 %v3519, %v3903
        %v4000 = vsub.f32 %v3520, %v3904
        %v4001 = vsub.f32 %v3521, %v3905
        %v4002 = vsub.f32 %v3522, %v3906
        %v4003 = vsub.f32 %v3523, %v3907
        %v4004 = vsub.f32 %v3524, %v3908
        %v4005 = vsub.f32 %v3525, %v3909
        %v4006 = vsub.f32 %v3526, %v3910
        %v4007 = vsub.f32 %v3527, %v3911
        %v4008 = vsub.f32 %v3528, %v3912
        %v4009 = vsub.f32 %v3529, %v3913
        %v4010 = vsub.f32 %v3530, %v3914
        %v4011 = vsub.f32 %v3531, %v3915
        %v4012 = vsub.f32 %v3532, %v3916
        %v4013 = vsub.f32 %v3533, %v3917
        %v4014 = vsub.f32 %v3534, %v3918
        %v4015 = vsub.f32 %v3535, %v3919
        %v4016 = vsub.f32 %v3536, %v3920
        %v4017 = vsub.f32 %v3537, %v3921
        %v4018 = vsub.f32 %v3538, %v3922
        %v4019 = vsub.f32 %v3539, %v3923
        %v4020 = vsub.f32 %v3540, %v3924
        %v4021 = vsub.f32 %v3541, %v3925
        %v4022 = vsub.f32 %v3542, %v3926
        %v4023 = vsub.f32 %v3543, %v3927
        %v4024 = vsub.f32 %v3544, %v3928
        %v4025 = vsub.f32 %v3545, %v3929
        %v4026 = vsub.f32 %v3546, %v3930
        %v4027 = vsub.f32 %v3547, %v3931
        %v4028 = vsub.f32 %v3548, %v3932
        %v4029 = vsub.f32 %v3549, %v3933
        %v4030 = vsub.f32 %v3550, %v3934
        %v4031 = vsub.f32 %v3551, %v3935
        %v4032 = vsub.f32 %v3552, %v3936
        %v4033 = vsub.f32 %v3553, %v3937
        %v4034 = vmul.f32 %v3938, 1.442695
        %v4035 = vpow.pop %v4034
        %v4036 = vmul.f32 %v3939, 1.442695
        %v4037 = vpow.pop %v4036
        %v4038 = vmul.f32 %v3940, 1.442695
        %v4039 = vpow.pop %v4038
        %v4040 = vmul.f32 %v3941, 1.442695
        %v4041 = vpow.pop %v4040
        %v4042 = vmul.f32 %v3942, 1.442695
        %v4043 = vpow.pop %v4042
        %v4044 = vmul.f32 %v3943, 1.442695
        %v4045 = vpow.pop %v4044
        %v4046 = vmul.f32 %v3944, 1.442695
        %v4047 = vpow.pop %v4046
        %v4048 = vmul.f32 %v3945, 1.442695
        %v4049 = vpow.pop %v4048
        %v4050 = vmul.f32 %v3946, 1.442695
        %v4051 = vpow.pop %v4050
        %v4052 = vmul.f32 %v3947, 1.442695
        %v4053 = vpow.pop %v4052
        %v4054 = vmul.f32 %v3948, 1.442695
        %v4055 = vpow.pop %v4054
        %v4056 = vmul.f32 %v3949, 1.442695
        %v4057 = vpow.pop %v4056
        %v4058 = vmul.f32 %v3950, 1.442695
        %v4059 = vpow.pop %v4058
        %v4060 = vmul.f32 %v3951, 1.442695
        %v4061 = vpow.pop %v4060
        %v4062 = vmul.f32 %v3952, 1.442695
        %v4063 = vpow.pop %v4062
        %v4064 = vmul.f32 %v3953, 1.442695
        %v4065 = vpow.pop %v4064
        %v4066 = vmul.f32 %v3954, 1.442695
        %v4067 = vpow.pop %v4066
        %v4068 = vmul.f32 %v3955, 1.442695
        %v4069 = vpow.pop %v4068
        %v4070 = vmul.f32 %v3956, 1.442695
        %v4071 = vpow.pop %v4070
        %v4072 = vmul.f32 %v3957, 1.442695
        %v4073 = vpow.pop %v4072
        %v4074 = vmul.f32 %v3958, 1.442695
        %v4075 = vpow.pop %v4074
        %v4076 = vmul.f32 %v3959, 1.442695
        %v4077 = vpow.pop %v4076
        %v4078 = vmul.f32 %v3960, 1.442695
        %v4079 = vpow.pop %v4078
        %v4080 = vmul.f32 %v3961, 1.442695
        %v4081 = vpow.pop %v4080
        %v4082 = vmul.f32 %v3962, 1.442695
        %v4083 = vpow.pop %v4082
        %v4084 = vmul.f32 %v3963, 1.442695
        %v4085 = vpow.pop %v4084
        %v4086 = vmul.f32 %v3964, 1.442695
        %v4087 = vpow.pop %v4086
        %v4088 = vmul.f32 %v3965, 1.442695
        %v4089 = vpow.pop %v4088
        %v4090 = vmul.f32 %v3966, 1.442695
        %v4091 = vpow.pop %v4090
        %v4092 = vmul.f32 %v3967, 1.442695
        %v4093 = vpow.pop %v4092
        %v4094 = vmul.f32 %v3968, 1.442695
        %v4095 = vpow.pop %v4094
        %v4096 = vmul.f32 %v3969, 1.442695
        %v4097 = vpow.pop %v4096
        %v4098 = vmul.f32 %v3970, 1.442695
        %v4099 = vpow.pop %v4098
        %v4100 = vmul.f32 %v3971, 1.442695
        %v4101 = vpow.pop %v4100
        %v4102 = vmul.f32 %v3972, 1.442695
        %v4103 = vpow.pop %v4102
        %v4104 = vmul.f32 %v3973, 1.442695
        %v4105 = vpow.pop %v4104
        %v4106 = vmul.f32 %v3974, 1.442695
        %v4107 = vpow.pop %v4106
        %v4108 = vmul.f32 %v3975, 1.442695
        %v4109 = vpow.pop %v4108
        %v4110 = vmul.f32 %v3976, 1.442695
        %v4111 = vpow.pop %v4110
        %v4112 = vmul.f32 %v3977, 1.442695
        %v4113 = vpow.pop %v4112
        %v4114 = vmul.f32 %v3978, 1.442695
        %v4115 = vpow.pop %v4114
        %v4116 = vmul.f32 %v3979, 1.442695
        %v4117 = vpow.pop %v4116
        %v4118 = vmul.f32 %v3980, 1.442695
        %v4119 = vpow.pop %v4118
        %v4120 = vmul.f32 %v3981, 1.442695
        %v4121 = vpow.pop %v4120
        %v4122 = vmul.f32 %v3982, 1.442695
        %v4123 = vpow.pop %v4122
        %v4124 = vmul.f32 %v3983, 1.442695
        %v4125 = vpow.pop %v4124
        %v4126 = vmul.f32 %v3984, 1.442695
        %v4127 = vpow.pop %v4126
        %v4128 = vmul.f32 %v3985, 1.442695
        %v4129 = vpow.pop %v4128
        %v4130 = vmul.f32 %v3986, 1.442695
        %v4131 = vpow.pop %v4130
        %v4132 = vmul.f32 %v3987, 1.442695
        %v4133 = vpow.pop %v4132
        %v4134 = vmul.f32 %v3988, 1.442695
        %v4135 = vpow.pop %v4134
        %v4136 = vmul.f32 %v3989, 1.442695
        %v4137 = vpow.pop %v4136
        %v4138 = vmul.f32 %v3990, 1.442695
        %v4139 = vpow.pop %v4138
        %v4140 = vmul.f32 %v3991, 1.442695
        %v4141 = vpow.pop %v4140
        %v4142 = vmul.f32 %v3992, 1.442695
        %v4143 = vpow.pop %v4142
        %v4144 = vmul.f32 %v3993, 1.442695
        %v4145 = vpow.pop %v4144
        %v4146 = vmul.f32 %v3994, 1.442695
        %v4147 = vpow.pop %v4146
        %v4148 = vmul.f32 %v3995, 1.442695
        %v4149 = vpow.pop %v4148
        %v4150 = vmul.f32 %v3996, 1.442695
        %v4151 = vpow.pop %v4150
        %v4152 = vmul.f32 %v3997, 1.442695
        %v4153 = vpow.pop %v4152
        %v4154 = vmul.f32 %v3998, 1.442695
        %v4155 = vpow.pop %v4154
        %v4156 = vmul.f32 %v3999, 1.442695
        %v4157 = vpow.pop %v4156
        %v4158 = vmul.f32 %v4000, 1.442695
        %v4159 = vpow.pop %v4158
        %v4160 = vmul.f32 %v4001, 1.442695
        %v4161 = vpow.pop %v4160
        %v4162 = vmul.f32 %v4002, 1.442695
        %v4163 = vpow.pop %v4162
        %v4164 = vmul.f32 %v4003, 1.442695
        %v4165 = vpow.pop %v4164
        %v4166 = vmul.f32 %v4004, 1.442695
        %v4167 = vpow.pop %v4166
        %v4168 = vmul.f32 %v4005, 1.442695
        %v4169 = vpow.pop %v4168
        %v4170 = vmul.f32 %v4006, 1.442695
        %v4171 = vpow.pop %v4170
        %v4172 = vmul.f32 %v4007, 1.442695
        %v4173 = vpow.pop %v4172
        %v4174 = vmul.f32 %v4008, 1.442695
        %v4175 = vpow.pop %v4174
        %v4176 = vmul.f32 %v4009, 1.442695
        %v4177 = vpow.pop %v4176
        %v4178 = vmul.f32 %v4010, 1.442695
        %v4179 = vpow.pop %v4178
        %v4180 = vmul.f32 %v4011, 1.442695
        %v4181 = vpow.pop %v4180
        %v4182 = vmul.f32 %v4012, 1.442695
        %v4183 = vpow.pop %v4182
        %v4184 = vmul.f32 %v4013, 1.442695
        %v4185 = vpow.pop %v4184
        %v4186 = vmul.f32 %v4014, 1.442695
        %v4187 = vpow.pop %v4186
        %v4188 = vmul.f32 %v4015, 1.442695
        %v4189 = vpow.pop %v4188
        %v4190 = vmul.f32 %v4016, 1.442695
        %v4191 = vpow.pop %v4190
        %v4192 = vmul.f32 %v4017, 1.442695
        %v4193 = vpow.pop %v4192
        %v4194 = vmul.f32 %v4018, 1.442695
        %v4195 = vpow.pop %v4194
        %v4196 = vmul.f32 %v4019, 1.442695
        %v4197 = vpow.pop %v4196
        %v4198 = vmul.f32 %v4020, 1.442695
        %v4199 = vpow.pop %v4198
        %v4200 = vmul.f32 %v4021, 1.442695
        %v4201 = vpow.pop %v4200
        %v4202 = vmul.f32 %v4022, 1.442695
        %v4203 = vpow.pop %v4202
        %v4204 = vmul.f32 %v4023, 1.442695
        %v4205 = vpow.pop %v4204
        %v4206 = vmul.f32 %v4024, 1.442695
        %v4207 = vpow.pop %v4206
        %v4208 = vmul.f32 %v4025, 1.442695
        %v4209 = vpow.pop %v4208
        %v4210 = vmul.f32 %v4026, 1.442695
        %v4211 = vpow.pop %v4210
        %v4212 = vmul.f32 %v4027, 1.442695
        %v4213 = vpow.pop %v4212
        %v4214 = vmul.f32 %v4028, 1.442695
        %v4215 = vpow.pop %v4214
        %v4216 = vmul.f32 %v4029, 1.442695
        %v4217 = vpow.pop %v4216
        %v4218 = vmul.f32 %v4030, 1.442695
        %v4219 = vpow.pop %v4218
        %v4220 = vmul.f32 %v4031, 1.442695
        %v4221 = vpow.pop %v4220
        %v4222 = vmul.f32 %v4032, 1.442695
        %v4223 = vpow.pop %v4222
        %v4224 = vmul.f32 %v4033, 1.442695
        %v4225 = vpow.pop %v4224
        %4227 = vset.pattern.permute.xlu0 0
        %4228 = vperm.xlu0 %4227, %v3842
        %v4229 = vpop.permute.xlu0 %4228
        %4232 = vset.pattern.permute.xlu0 0
        %4233 = vperm.xlu0 %4232, %v3843
        %v4234 = vpop.permute.xlu0 %4233
        %4237 = vset.pattern.permute.xlu0 0
        %4238 = vperm.xlu0 %4237, %v3844
        %v4239 = vpop.permute.xlu0 %4238
        %4242 = vset.pattern.permute.xlu0 0
        %4243 = vperm.xlu0 %4242, %v3845
        %v4244 = vpop.permute.xlu0 %4243
        %4247 = vset.pattern.permute.xlu0 0
        %4248 = vperm.xlu0 %4247, %v3846
        %v4249 = vpop.permute.xlu0 %4248
        %4252 = vset.pattern.permute.xlu0 0
        %4253 = vperm.xlu0 %4252, %v3847
        %v4254 = vpop.permute.xlu0 %4253
        %4257 = vset.pattern.permute.xlu0 0
        %4258 = vperm.xlu0 %4257, %v3848
        %v4259 = vpop.permute.xlu0 %4258
        %4262 = vset.pattern.permute.xlu0 0
        %4263 = vperm.xlu0 %4262, %v3849
        %v4264 = vpop.permute.xlu0 %4263
        %4267 = vset.pattern.permute.xlu0 0
        %4268 = vperm.xlu0 %4267, %v3850
        %v4269 = vpop.permute.xlu0 %4268
        %4272 = vset.pattern.permute.xlu0 0
        %4273 = vperm.xlu0 %4272, %v3851
        %v4274 = vpop.permute.xlu0 %4273
        %4277 = vset.pattern.permute.xlu0 0
        %4278 = vperm.xlu0 %4277, %v3852
        %v4279 = vpop.permute.xlu0 %4278
        %4282 = vset.pattern.permute.xlu0 0
        %4283 = vperm.xlu0 %4282, %v3853
        %v4284 = vpop.permute.xlu0 %4283
        %4287 = vset.pattern.permute.xlu0 0
        %4288 = vperm.xlu0 %4287, %v3854
        %v4289 = vpop.permute.xlu0 %4288
        %4292 = vset.pattern.permute.xlu0 0
        %4293 = vperm.xlu0 %4292, %v3855
        %v4294 = vpop.permute.xlu0 %4293
        %4297 = vset.pattern.permute.xlu0 0
        %4298 = vperm.xlu0 %4297, %v3856
        %v4299 = vpop.permute.xlu0 %4298
        %4302 = vset.pattern.permute.xlu0 0
        %4303 = vperm.xlu0 %4302, %v3857
        %v4304 = vpop.permute.xlu0 %4303
        %4307 = vset.pattern.permute.xlu0 0
        %4308 = vperm.xlu0 %4307, %v3858
        %v4309 = vpop.permute.xlu0 %4308
        %4312 = vset.pattern.permute.xlu0 0
        %4313 = vperm.xlu0 %4312, %v3859
        %v4314 = vpop.permute.xlu0 %4313
        %4317 = vset.pattern.permute.xlu0 0
        %4318 = vperm.xlu0 %4317, %v3860
        %v4319 = vpop.permute.xlu0 %4318
        %4322 = vset.pattern.permute.xlu0 0
        %4323 = vperm.xlu0 %4322, %v3861
        %v4324 = vpop.permute.xlu0 %4323
        %4327 = vset.pattern.permute.xlu0 0
        %4328 = vperm.xlu0 %4327, %v3862
        %v4329 = vpop.permute.xlu0 %4328
        %4332 = vset.pattern.permute.xlu0 0
        %4333 = vperm.xlu0 %4332, %v3863
        %v4334 = vpop.permute.xlu0 %4333
        %4337 = vset.pattern.permute.xlu0 0
        %4338 = vperm.xlu0 %4337, %v3864
        %v4339 = vpop.permute.xlu0 %4338
        %4342 = vset.pattern.permute.xlu0 0
        %4343 = vperm.xlu0 %4342, %v3865
        %v4344 = vpop.permute.xlu0 %4343
        %4347 = vset.pattern.permute.xlu0 0
        %4348 = vperm.xlu0 %4347, %v3866
        %v4349 = vpop.permute.xlu0 %4348
        %4352 = vset.pattern.permute.xlu0 0
        %4353 = vperm.xlu0 %4352, %v3867
        %v4354 = vpop.permute.xlu0 %4353
        %4357 = vset.pattern.permute.xlu0 0
        %4358 = vperm.xlu0 %4357, %v3868
        %v4359 = vpop.permute.xlu0 %4358
        %4362 = vset.pattern.permute.xlu0 0
        %4363 = vperm.xlu0 %4362, %v3869
        %v4364 = vpop.permute.xlu0 %4363
        %4367 = vset.pattern.permute.xlu0 0
        %4368 = vperm.xlu0 %4367, %v3870
        %v4369 = vpop.permute.xlu0 %4368
        %4372 = vset.pattern.permute.xlu0 0
        %4373 = vperm.xlu0 %4372, %v3871
        %v4374 = vpop.permute.xlu0 %4373
        %4377 = vset.pattern.permute.xlu0 0
        %4378 = vperm.xlu0 %4377, %v3872
        %v4379 = vpop.permute.xlu0 %4378
        %4382 = vset.pattern.permute.xlu0 0
        %4383 = vperm.xlu0 %4382, %v3873
        %v4384 = vpop.permute.xlu0 %4383
        %4387 = vset.pattern.permute.xlu0 0
        %4388 = vperm.xlu0 %4387, %v3874
        %v4389 = vpop.permute.xlu0 %4388
        %4392 = vset.pattern.permute.xlu0 0
        %4393 = vperm.xlu0 %4392, %v3875
        %v4394 = vpop.permute.xlu0 %4393
        %4397 = vset.pattern.permute.xlu0 0
        %4398 = vperm.xlu0 %4397, %v3876
        %v4399 = vpop.permute.xlu0 %4398
        %4402 = vset.pattern.permute.xlu0 0
        %4403 = vperm.xlu0 %4402, %v3877
        %v4404 = vpop.permute.xlu0 %4403
        %4407 = vset.pattern.permute.xlu0 0
        %4408 = vperm.xlu0 %4407, %v3878
        %v4409 = vpop.permute.xlu0 %4408
        %4412 = vset.pattern.permute.xlu0 0
        %4413 = vperm.xlu0 %4412, %v3879
        %v4414 = vpop.permute.xlu0 %4413
        %4417 = vset.pattern.permute.xlu0 0
        %4418 = vperm.xlu0 %4417, %v3880
        %v4419 = vpop.permute.xlu0 %4418
        %4422 = vset.pattern.permute.xlu0 0
        %4423 = vperm.xlu0 %4422, %v3881
        %v4424 = vpop.permute.xlu0 %4423
        %4427 = vset.pattern.permute.xlu0 0
        %4428 = vperm.xlu0 %4427, %v3882
        %v4429 = vpop.permute.xlu0 %4428
        %4432 = vset.pattern.permute.xlu0 0
        %4433 = vperm.xlu0 %4432, %v3883
        %v4434 = vpop.permute.xlu0 %4433
        %4437 = vset.pattern.permute.xlu0 0
        %4438 = vperm.xlu0 %4437, %v3884
        %v4439 = vpop.permute.xlu0 %4438
        %4442 = vset.pattern.permute.xlu0 0
        %4443 = vperm.xlu0 %4442, %v3885
        %v4444 = vpop.permute.xlu0 %4443
        %4447 = vset.pattern.permute.xlu0 0
        %4448 = vperm.xlu0 %4447, %v3886
        %v4449 = vpop.permute.xlu0 %4448
        %4452 = vset.pattern.permute.xlu0 0
        %4453 = vperm.xlu0 %4452, %v3887
        %v4454 = vpop.permute.xlu0 %4453
        %4457 = vset.pattern.permute.xlu0 0
        %4458 = vperm.xlu0 %4457, %v3888
        %v4459 = vpop.permute.xlu0 %4458
        %4462 = vset.pattern.permute.xlu0 0
        %4463 = vperm.xlu0 %4462, %v3889
        %v4464 = vpop.permute.xlu0 %4463
        %4467 = vset.pattern.permute.xlu0 0
        %4468 = vperm.xlu0 %4467, %v3890
        %v4469 = vpop.permute.xlu0 %4468
        %4472 = vset.pattern.permute.xlu0 0
        %4473 = vperm.xlu0 %4472, %v3891
        %v4474 = vpop.permute.xlu0 %4473
        %4477 = vset.pattern.permute.xlu0 0
        %4478 = vperm.xlu0 %4477, %v3892
        %v4479 = vpop.permute.xlu0 %4478
        %4482 = vset.pattern.permute.xlu0 0
        %4483 = vperm.xlu0 %4482, %v3893
        %v4484 = vpop.permute.xlu0 %4483
        %4487 = vset.pattern.permute.xlu0 0
        %4488 = vperm.xlu0 %4487, %v3894
        %v4489 = vpop.permute.xlu0 %4488
        %4492 = vset.pattern.permute.xlu0 0
        %4493 = vperm.xlu0 %4492, %v3895
        %v4494 = vpop.permute.xlu0 %4493
        %4497 = vset.pattern.permute.xlu0 0
        %4498 = vperm.xlu0 %4497, %v3896
        %v4499 = vpop.permute.xlu0 %4498
        %4502 = vset.pattern.permute.xlu0 0
        %4503 = vperm.xlu0 %4502, %v3897
        %v4504 = vpop.permute.xlu0 %4503
        %4507 = vset.pattern.permute.xlu0 0
        %4508 = vperm.xlu0 %4507, %v3898
        %v4509 = vpop.permute.xlu0 %4508
        %4512 = vset.pattern.permute.xlu0 0
        %4513 = vperm.xlu0 %4512, %v3899
        %v4514 = vpop.permute.xlu0 %4513
        %4517 = vset.pattern.permute.xlu0 0
        %4518 = vperm.xlu0 %4517, %v3900
        %v4519 = vpop.permute.xlu0 %4518
        %4522 = vset.pattern.permute.xlu0 0
        %4523 = vperm.xlu0 %4522, %v3901
        %v4524 = vpop.permute.xlu0 %4523
        %4527 = vset.pattern.permute.xlu0 0
        %4528 = vperm.xlu0 %4527, %v3902
        %v4529 = vpop.permute.xlu0 %4528
        %4532 = vset.pattern.permute.xlu0 0
        %4533 = vperm.xlu0 %4532, %v3903
        %v4534 = vpop.permute.xlu0 %4533
        %4537 = vset.pattern.permute.xlu0 0
        %4538 = vperm.xlu0 %4537, %v3904
        %v4539 = vpop.permute.xlu0 %4538
        %4542 = vset.pattern.permute.xlu0 0
        %4543 = vperm.xlu0 %4542, %v3905
        %v4544 = vpop.permute.xlu0 %4543
        %4547 = vset.pattern.permute.xlu0 0
        %4548 = vperm.xlu0 %4547, %v3906
        %v4549 = vpop.permute.xlu0 %4548
        %4552 = vset.pattern.permute.xlu0 0
        %4553 = vperm.xlu0 %4552, %v3907
        %v4554 = vpop.permute.xlu0 %4553
        %4557 = vset.pattern.permute.xlu0 0
        %4558 = vperm.xlu0 %4557, %v3908
        %v4559 = vpop.permute.xlu0 %4558
        %4562 = vset.pattern.permute.xlu0 0
        %4563 = vperm.xlu0 %4562, %v3909
        %v4564 = vpop.permute.xlu0 %4563
        %4567 = vset.pattern.permute.xlu0 0
        %4568 = vperm.xlu0 %4567, %v3910
        %v4569 = vpop.permute.xlu0 %4568
        %4572 = vset.pattern.permute.xlu0 0
        %4573 = vperm.xlu0 %4572, %v3911
        %v4574 = vpop.permute.xlu0 %4573
        %4577 = vset.pattern.permute.xlu0 0
        %4578 = vperm.xlu0 %4577, %v3912
        %v4579 = vpop.permute.xlu0 %4578
        %4582 = vset.pattern.permute.xlu0 0
        %4583 = vperm.xlu0 %4582, %v3913
        %v4584 = vpop.permute.xlu0 %4583
        %4587 = vset.pattern.permute.xlu0 0
        %4588 = vperm.xlu0 %4587, %v3914
        %v4589 = vpop.permute.xlu0 %4588
        %4592 = vset.pattern.permute.xlu0 0
        %4593 = vperm.xlu0 %4592, %v3915
        %v4594 = vpop.permute.xlu0 %4593
        %4597 = vset.pattern.permute.xlu0 0
        %4598 = vperm.xlu0 %4597, %v3916
        %v4599 = vpop.permute.xlu0 %4598
        %4602 = vset.pattern.permute.xlu0 0
        %4603 = vperm.xlu0 %4602, %v3917
        %v4604 = vpop.permute.xlu0 %4603
        %4607 = vset.pattern.permute.xlu0 0
        %4608 = vperm.xlu0 %4607, %v3918
        %v4609 = vpop.permute.xlu0 %4608
        %4612 = vset.pattern.permute.xlu0 0
        %4613 = vperm.xlu0 %4612, %v3919
        %v4614 = vpop.permute.xlu0 %4613
        %4617 = vset.pattern.permute.xlu0 0
        %4618 = vperm.xlu0 %4617, %v3920
        %v4619 = vpop.permute.xlu0 %4618
        %4622 = vset.pattern.permute.xlu0 0
        %4623 = vperm.xlu0 %4622, %v3921
        %v4624 = vpop.permute.xlu0 %4623
        %4627 = vset.pattern.permute.xlu0 0
        %4628 = vperm.xlu0 %4627, %v3922
        %v4629 = vpop.permute.xlu0 %4628
        %4632 = vset.pattern.permute.xlu0 0
        %4633 = vperm.xlu0 %4632, %v3923
        %v4634 = vpop.permute.xlu0 %4633
        %4637 = vset.pattern.permute.xlu0 0
        %4638 = vperm.xlu0 %4637, %v3924
        %v4639 = vpop.permute.xlu0 %4638
        %4642 = vset.pattern.permute.xlu0 0
        %4643 = vperm.xlu0 %4642, %v3925
        %v4644 = vpop.permute.xlu0 %4643
        %4647 = vset.pattern.permute.xlu0 0
        %4648 = vperm.xlu0 %4647, %v3926
        %v4649 = vpop.permute.xlu0 %4648
        %4652 = vset.pattern.permute.xlu0 0
        %4653 = vperm.xlu0 %4652, %v3927
        %v4654 = vpop.permute.xlu0 %4653
        %4657 = vset.pattern.permute.xlu0 0
        %4658 = vperm.xlu0 %4657, %v3928
        %v4659 = vpop.permute.xlu0 %4658
        %4662 = vset.pattern.permute.xlu0 0
        %4663 = vperm.xlu0 %4662, %v3929
        %v4664 = vpop.permute.xlu0 %4663
        %4667 = vset.pattern.permute.xlu0 0
        %4668 = vperm.xlu0 %4667, %v3930
        %v4669 = vpop.permute.xlu0 %4668
        %4672 = vset.pattern.permute.xlu0 0
        %4673 = vperm.xlu0 %4672, %v3931
        %v4674 = vpop.permute.xlu0 %4673
        %4677 = vset.pattern.permute.xlu0 0
        %4678 = vperm.xlu0 %4677, %v3932
        %v4679 = vpop.permute.xlu0 %4678
        %4682 = vset.pattern.permute.xlu0 0
        %4683 = vperm.xlu0 %4682, %v3933
        %v4684 = vpop.permute.xlu0 %4683
        %4687 = vset.pattern.permute.xlu0 0
        %4688 = vperm.xlu0 %4687, %v3934
        %v4689 = vpop.permute.xlu0 %4688
        %4692 = vset.pattern.permute.xlu0 0
        %4693 = vperm.xlu0 %4692, %v3935
        %v4694 = vpop.permute.xlu0 %4693
        %4697 = vset.pattern.permute.xlu0 0
        %4698 = vperm.xlu0 %4697, %v3936
        %v4699 = vpop.permute.xlu0 %4698
        %4702 = vset.pattern.permute.xlu0 0
        %4703 = vperm.xlu0 %4702, %v3937
        %v4704 = vpop.permute.xlu0 %4703
        %v4706 = vsub.f32 %v2422, %v4229
        %v4707 = vsub.f32 %v2511, %v4229
        %v4708 = vsub.f32 %v2424, %v4234
        %v4709 = vsub.f32 %v2513, %v4234
        %v4710 = vsub.f32 %v2427, %v4239
        %v4711 = vsub.f32 %v2516, %v4239
        %v4712 = vsub.f32 %v2429, %v4244
        %v4713 = vsub.f32 %v2518, %v4244
        %v4714 = vsub.f32 %v2432, %v4249
        %v4715 = vsub.f32 %v2521, %v4249
        %v4716 = vsub.f32 %v2434, %v4254
        %v4717 = vsub.f32 %v2523, %v4254
        %v4718 = vsub.f32 %v2437, %v4259
        %v4719 = vsub.f32 %v2526, %v4259
        %v4720 = vsub.f32 %v2439, %v4264
        %v4721 = vsub.f32 %v2528, %v4264
        %v4722 = vsub.f32 %v2442, %v4269
        %v4723 = vsub.f32 %v2531, %v4269
        %v4724 = vsub.f32 %v2444, %v4274
        %v4725 = vsub.f32 %v2533, %v4274
        %v4726 = vsub.f32 %v2447, %v4279
        %v4727 = vsub.f32 %v2536, %v4279
        %v4728 = vsub.f32 %v2449, %v4284
        %v4729 = vsub.f32 %v2538, %v4284
        %v4730 = vsub.f32 %v2452, %v4289
        %v4731 = vsub.f32 %v2541, %v4289
        %v4732 = vsub.f32 %v2454, %v4294
        %v4733 = vsub.f32 %v2543, %v4294
        %v4734 = vsub.f32 %v2457, %v4299
        %v4735 = vsub.f32 %v2546, %v4299
        %v4736 = vsub.f32 %v2459, %v4304
        %v4737 = vsub.f32 %v2548, %v4304
        %v4738 = vsub.f32 %v2462, %v4309
        %v4739 = vsub.f32 %v2551, %v4309
        %v4740 = vsub.f32 %v2464, %v4314
        %v4741 = vsub.f32 %v2553, %v4314
        %v4742 = vsub.f32 %v2467, %v4319
        %v4743 = vsub.f32 %v2556, %v4319
        %v4744 = vsub.f32 %v2469, %v4324
        %v4745 = vsub.f32 %v2558, %v4324
        %v4746 = vsub.f32 %v2472, %v4329
        %v4747 = vsub.f32 %v2561, %v4329
        %v4748 = vsub.f32 %v2474, %v4334
        %v4749 = vsub.f32 %v2563, %v4334
        %v4750 = vsub.f32 %v2477, %v4339
        %v4751 = vsub.f32 %v2566, %v4339
        %v4752 = vsub.f32 %v2479, %v4344
        %v4753 = vsub.f32 %v2568, %v4344
        %v4754 = vsub.f32 %v2482, %v4349
        %v4755 = vsub.f32 %v2571, %v4349
        %v4756 = vsub.f32 %v2484, %v4354
        %v4757 = vsub.f32 %v2573, %v4354
        %v4758 = vsub.f32 %v2487, %v4359
        %v4759 = vsub.f32 %v2576, %v4359
        %v4760 = vsub.f32 %v2489, %v4364
        %v4761 = vsub.f32 %v2578, %v4364
        %v4762 = vsub.f32 %v2492, %v4369
        %v4763 = vsub.f32 %v2581, %v4369
        %v4764 = vsub.f32 %v2494, %v4374
        %v4765 = vsub.f32 %v2583, %v4374
        %v4766 = vsub.f32 %v2497, %v4379
        %v4767 = vsub.f32 %v2586, %v4379
        %v4768 = vsub.f32 %v2499, %v4384
        %v4769 = vsub.f32 %v2588, %v4384
        %v4770 = vsub.f32 %v2856, %v4389
        %v4771 = vsub.f32 %v2945, %v4389
        %v4772 = vsub.f32 %v2858, %v4394
        %v4773 = vsub.f32 %v2947, %v4394
        %v4774 = vsub.f32 %v2861, %v4399
        %v4775 = vsub.f32 %v2950, %v4399
        %v4776 = vsub.f32 %v2863, %v4404
        %v4777 = vsub.f32 %v2952, %v4404
        %v4778 = vsub.f32 %v2866, %v4409
        %v4779 = vsub.f32 %v2955, %v4409
        %v4780 = vsub.f32 %v2868, %v4414
        %v4781 = vsub.f32 %v2957, %v4414
        %v4782 = vsub.f32 %v2871, %v4419
        %v4783 = vsub.f32 %v2960, %v4419
        %v4784 = vsub.f32 %v2873, %v4424
        %v4785 = vsub.f32 %v2962, %v4424
        %v4786 = vsub.f32 %v2876, %v4429
        %v4787 = vsub.f32 %v2965, %v4429
        %v4788 = vsub.f32 %v2878, %v4434
        %v4789 = vsub.f32 %v2967, %v4434
        %v4790 = vsub.f32 %v2881, %v4439
        %v4791 = vsub.f32 %v2970, %v4439
        %v4792 = vsub.f32 %v2883, %v4444
        %v4793 = vsub.f32 %v2972, %v4444
        %v4794 = vsub.f32 %v2886, %v4449
        %v4795 = vsub.f32 %v2975, %v4449
        %v4796 = vsub.f32 %v2888, %v4454
        %v4797 = vsub.f32 %v2977, %v4454
        %v4798 = vsub.f32 %v2891, %v4459
        %v4799 = vsub.f32 %v2980, %v4459
        %v4800 = vsub.f32 %v2893, %v4464
        %v4801 = vsub.f32 %v2982, %v4464
        %v4802 = vsub.f32 %v2896, %v4469
        %v4803 = vsub.f32 %v2985, %v4469
        %v4804 = vsub.f32 %v2898, %v4474
        %v4805 = vsub.f32 %v2987, %v4474
        %v4806 = vsub.f32 %v2901, %v4479
        %v4807 = vsub.f32 %v2990, %v4479
        %v4808 = vsub.f32 %v2903, %v4484
        %v4809 = vsub.f32 %v2992, %v4484
        %v4810 = vsub.f32 %v2906, %v4489
        %v4811 = vsub.f32 %v2995, %v4489
        %v4812 = vsub.f32 %v2908, %v4494
        %v4813 = vsub.f32 %v2997, %v4494
        %v4814 = vsub.f32 %v2911, %v4499
        %v4815 = vsub.f32 %v3000, %v4499
        %v4816 = vsub.f32 %v2913, %v4504
        %v4817 = vsub.f32 %v3002, %v4504
        %v4818 = vsub.f32 %v2916, %v4509
        %v4819 = vsub.f32 %v3005, %v4509
        %v4820 = vsub.f32 %v2918, %v4514
        %v4821 = vsub.f32 %v3007, %v4514
        %v4822 = vsub.f32 %v2921, %v4519
        %v4823 = vsub.f32 %v3010, %v4519
        %v4824 = vsub.f32 %v2923, %v4524
        %v4825 = vsub.f32 %v3012, %v4524
        %v4826 = vsub.f32 %v2926, %v4529
        %v4827 = vsub.f32 %v3015, %v4529
        %v4828 = vsub.f32 %v2928, %v4534
        %v4829 = vsub.f32 %v3017, %v4534
        %v4830 = vsub.f32 %v2931, %v4539
        %v4831 = vsub.f32 %v3020, %v4539
        %v4832 = vsub.f32 %v2933, %v4544
        %v4833 = vsub.f32 %v3022, %v4544
        %v4834 = vsub.f32 %v3290, %v4549
        %v4835 = vsub.f32 %v3379, %v4549
        %v4836 = vsub.f32 %v3292, %v4554
        %v4837 = vsub.f32 %v3381, %v4554
        %v4838 = vsub.f32 %v3295, %v4559
        %v4839 = vsub.f32 %v3384, %v4559
        %v4840 = vsub.f32 %v3297, %v4564
        %v4841 = vsub.f32 %v3386, %v4564
        %v4842 = vsub.f32 %v3300, %v4569
        %v4843 = vsub.f32 %v3389, %v4569
        %v4844 = vsub.f32 %v3302, %v4574
        %v4845 = vsub.f32 %v3391, %v4574
        %v4846 = vsub.f32 %v3305, %v4579
        %v4847 = vsub.f32 %v3394, %v4579
        %v4848 = vsub.f32 %v3307, %v4584
        %v4849 = vsub.f32 %v3396, %v4584
        %v4850 = vsub.f32 %v3310, %v4589
        %v4851 = vsub.f32 %v3399, %v4589
        %v4852 = vsub.f32 %v3312, %v4594
        %v4853 = vsub.f32 %v3401, %v4594
        %v4854 = vsub.f32 %v3315, %v4599
        %v4855 = vsub.f32 %v3404, %v4599
        %v4856 = vsub.f32 %v3317, %v4604
        %v4857 = vsub.f32 %v3406, %v4604
        %v4858 = vsub.f32 %v3320, %v4609
        %v4859 = vsub.f32 %v3409, %v4609
        %v4860 = vsub.f32 %v3322, %v4614
        %v4861 = vsub.f32 %v3411, %v4614
        %v4862 = vsub.f32 %v3325, %v4619
        %v4863 = vsub.f32 %v3414, %v4619
        %v4864 = vsub.f32 %v3327, %v4624
        %v4865 = vsub.f32 %v3416, %v4624
        %v4866 = vsub.f32 %v3330, %v4629
        %v4867 = vsub.f32 %v3419, %v4629
        %v4868 = vsub.f32 %v3332, %v4634
        %v4869 = vsub.f32 %v3421, %v4634
        %v4870 = vsub.f32 %v3335, %v4639
        %v4871 = vsub.f32 %v3424, %v4639
        %v4872 = vsub.f32 %v3337, %v4644
        %v4873 = vsub.f32 %v3426, %v4644
        %v4874 = vsub.f32 %v3340, %v4649
        %v4875 = vsub.f32 %v3429, %v4649
        %v4876 = vsub.f32 %v3342, %v4654
        %v4877 = vsub.f32 %v3431, %v4654
        %v4878 = vsub.f32 %v3345, %v4659
        %v4879 = vsub.f32 %v3434, %v4659
        %v4880 = vsub.f32 %v3347, %v4664
        %v4881 = vsub.f32 %v3436, %v4664
        %v4882 = vsub.f32 %v3350, %v4669
        %v4883 = vsub.f32 %v3439, %v4669
        %v4884 = vsub.f32 %v3352, %v4674
        %v4885 = vsub.f32 %v3441, %v4674
        %v4886 = vsub.f32 %v3355, %v4679
        %v4887 = vsub.f32 %v3444, %v4679
        %v4888 = vsub.f32 %v3357, %v4684
        %v4889 = vsub.f32 %v3446, %v4684
        %v4890 = vsub.f32 %v3360, %v4689
        %v4891 = vsub.f32 %v3449, %v4689
        %v4892 = vsub.f32 %v3362, %v4694
        %v4893 = vsub.f32 %v3451, %v4694
        %v4894 = vsub.f32 %v3365, %v4699
        %v4895 = vsub.f32 %v3454, %v4699
        %v4896 = vsub.f32 %v3367, %v4704
        %v4897 = vsub.f32 %v3456, %v4704
        %v4898 = vmul.f32 %v4706, 1.442695
        %v4899 = vpow.pop %v4898
        %v4900 = vmul.f32 %v4707, 1.442695
        %v4901 = vpow.pop %v4900
        %v4902 = vmul.f32 %v4708, 1.442695
        %v4903 = vpow.pop %v4902
        %v4904 = vmul.f32 %v4709, 1.442695
        %v4905 = vpow.pop %v4904
        %v4906 = vmul.f32 %v4710, 1.442695
        %v4907 = vpow.pop %v4906
        %v4908 = vmul.f32 %v4711, 1.442695
        %v4909 = vpow.pop %v4908
        %v4910 = vmul.f32 %v4712, 1.442695
        %v4911 = vpow.pop %v4910
        %v4912 = vmul.f32 %v4713, 1.442695
        %v4913 = vpow.pop %v4912
        %v4914 = vmul.f32 %v4714, 1.442695
        %v4915 = vpow.pop %v4914
        %v4916 = vmul.f32 %v4715, 1.442695
        %v4917 = vpow.pop %v4916
        %v4918 = vmul.f32 %v4716, 1.442695
        %v4919 = vpow.pop %v4918
        %v4920 = vmul.f32 %v4717, 1.442695
        %v4921 = vpow.pop %v4920
        %v4922 = vmul.f32 %v4718, 1.442695
        %v4923 = vpow.pop %v4922
        %v4924 = vmul.f32 %v4719, 1.442695
        %v4925 = vpow.pop %v4924
        %v4926 = vmul.f32 %v4720, 1.442695
        %v4927 = vpow.pop %v4926
        %v4928 = vmul.f32 %v4721, 1.442695
        %v4929 = vpow.pop %v4928
        %v4930 = vmul.f32 %v4722, 1.442695
        %v4931 = vpow.pop %v4930
        %v4932 = vmul.f32 %v4723, 1.442695
        %v4933 = vpow.pop %v4932
        %v4934 = vmul.f32 %v4724, 1.442695
        %v4935 = vpow.pop %v4934
        %v4936 = vmul.f32 %v4725, 1.442695
        %v4937 = vpow.pop %v4936
        %v4938 = vmul.f32 %v4726, 1.442695
        %v4939 = vpow.pop %v4938
        %v4940 = vmul.f32 %v4727, 1.442695
        %v4941 = vpow.pop %v4940
        %v4942 = vmul.f32 %v4728, 1.442695
        %v4943 = vpow.pop %v4942
        %v4944 = vmul.f32 %v4729, 1.442695
        %v4945 = vpow.pop %v4944
        %v4946 = vmul.f32 %v4730, 1.442695
        %v4947 = vpow.pop %v4946
        %v4948 = vmul.f32 %v4731, 1.442695
        %v4949 = vpow.pop %v4948
        %v4950 = vmul.f32 %v4732, 1.442695
        %v4951 = vpow.pop %v4950
        %v4952 = vmul.f32 %v4733, 1.442695
        %v4953 = vpow.pop %v4952
        %v4954 = vmul.f32 %v4734, 1.442695
        %v4955 = vpow.pop %v4954
        %v4956 = vmul.f32 %v4735, 1.442695
        %v4957 = vpow.pop %v4956
        %v4958 = vmul.f32 %v4736, 1.442695
        %v4959 = vpow.pop %v4958
        %v4960 = vmul.f32 %v4737, 1.442695
        %v4961 = vpow.pop %v4960
        %v4962 = vmul.f32 %v4738, 1.442695
        %v4963 = vpow.pop %v4962
        %v4964 = vmul.f32 %v4739, 1.442695
        %v4965 = vpow.pop %v4964
        %v4966 = vmul.f32 %v4740, 1.442695
        %v4967 = vpow.pop %v4966
        %v4968 = vmul.f32 %v4741, 1.442695
        %v4969 = vpow.pop %v4968
        %v4970 = vmul.f32 %v4742, 1.442695
        %v4971 = vpow.pop %v4970
        %v4972 = vmul.f32 %v4743, 1.442695
        %v4973 = vpow.pop %v4972
        %v4974 = vmul.f32 %v4744, 1.442695
        %v4975 = vpow.pop %v4974
        %v4976 = vmul.f32 %v4745, 1.442695
        %v4977 = vpow.pop %v4976
        %v4978 = vmul.f32 %v4746, 1.442695
        %v4979 = vpow.pop %v4978
        %v4980 = vmul.f32 %v4747, 1.442695
        %v4981 = vpow.pop %v4980
        %v4982 = vmul.f32 %v4748, 1.442695
        %v4983 = vpow.pop %v4982
        %v4984 = vmul.f32 %v4749, 1.442695
        %v4985 = vpow.pop %v4984
        %v4986 = vmul.f32 %v4750, 1.442695
        %v4987 = vpow.pop %v4986
        %v4988 = vmul.f32 %v4751, 1.442695
        %v4989 = vpow.pop %v4988
        %v4990 = vmul.f32 %v4752, 1.442695
        %v4991 = vpow.pop %v4990
        %v4992 = vmul.f32 %v4753, 1.442695
        %v4993 = vpow.pop %v4992
        %v4994 = vmul.f32 %v4754, 1.442695
        %v4995 = vpow.pop %v4994
        %v4996 = vmul.f32 %v4755, 1.442695
        %v4997 = vpow.pop %v4996
        %v4998 = vmul.f32 %v4756, 1.442695
        %v4999 = vpow.pop %v4998
        %v5000 = vmul.f32 %v4757, 1.442695
        %v5001 = vpow.pop %v5000
        %v5002 = vmul.f32 %v4758, 1.442695
        %v5003 = vpow.pop %v5002
        %v5004 = vmul.f32 %v4759, 1.442695
        %v5005 = vpow.pop %v5004
        %v5006 = vmul.f32 %v4760, 1.442695
        %v5007 = vpow.pop %v5006
        %v5008 = vmul.f32 %v4761, 1.442695
        %v5009 = vpow.pop %v5008
        %v5010 = vmul.f32 %v4762, 1.442695
        %v5011 = vpow.pop %v5010
        %v5012 = vmul.f32 %v4763, 1.442695
        %v5013 = vpow.pop %v5012
        %v5014 = vmul.f32 %v4764, 1.442695
        %v5015 = vpow.pop %v5014
        %v5016 = vmul.f32 %v4765, 1.442695
        %v5017 = vpow.pop %v5016
        %v5018 = vmul.f32 %v4766, 1.442695
        %v5019 = vpow.pop %v5018
        %v5020 = vmul.f32 %v4767, 1.442695
        %v5021 = vpow.pop %v5020
        %v5022 = vmul.f32 %v4768, 1.442695
        %v5023 = vpow.pop %v5022
        %v5024 = vmul.f32 %v4769, 1.442695
        %v5025 = vpow.pop %v5024
        %v5026 = vmul.f32 %v4770, 1.442695
        %v5027 = vpow.pop %v5026
        %v5028 = vmul.f32 %v4771, 1.442695
        %v5029 = vpow.pop %v5028
        %v5030 = vmul.f32 %v4772, 1.442695
        %v5031 = vpow.pop %v5030
        %v5032 = vmul.f32 %v4773, 1.442695
        %v5033 = vpow.pop %v5032
        %v5034 = vmul.f32 %v4774, 1.442695
        %v5035 = vpow.pop %v5034
        %v5036 = vmul.f32 %v4775, 1.442695
        %v5037 = vpow.pop %v5036
        %v5038 = vmul.f32 %v4776, 1.442695
        %v5039 = vpow.pop %v5038
        %v5040 = vmul.f32 %v4777, 1.442695
        %v5041 = vpow.pop %v5040
        %v5042 = vmul.f32 %v4778, 1.442695
        %v5043 = vpow.pop %v5042
        %v5044 = vmul.f32 %v4779, 1.442695
        %v5045 = vpow.pop %v5044
        %v5046 = vmul.f32 %v4780, 1.442695
        %v5047 = vpow.pop %v5046
        %v5048 = vmul.f32 %v4781, 1.442695
        %v5049 = vpow.pop %v5048
        %v5050 = vmul.f32 %v4782, 1.442695
        %v5051 = vpow.pop %v5050
        %v5052 = vmul.f32 %v4783, 1.442695
        %v5053 = vpow.pop %v5052
        %v5054 = vmul.f32 %v4784, 1.442695
        %v5055 = vpow.pop %v5054
        %v5056 = vmul.f32 %v4785, 1.442695
        %v5057 = vpow.pop %v5056
        %v5058 = vmul.f32 %v4786, 1.442695
        %v5059 = vpow.pop %v5058
        %v5060 = vmul.f32 %v4787, 1.442695
        %v5061 = vpow.pop %v5060
        %v5062 = vmul.f32 %v4788, 1.442695
        %v5063 = vpow.pop %v5062
        %v5064 = vmul.f32 %v4789, 1.442695
        %v5065 = vpow.pop %v5064
        %v5066 = vmul.f32 %v4790, 1.442695
        %v5067 = vpow.pop %v5066
        %v5068 = vmul.f32 %v4791, 1.442695
        %v5069 = vpow.pop %v5068
        %v5070 = vmul.f32 %v4792, 1.442695
        %v5071 = vpow.pop %v5070
        %v5072 = vmul.f32 %v4793, 1.442695
        %v5073 = vpow.pop %v5072
        %v5074 = vmul.f32 %v4794, 1.442695
        %v5075 = vpow.pop %v5074
        %v5076 = vmul.f32 %v4795, 1.442695
        %v5077 = vpow.pop %v5076
        %v5078 = vmul.f32 %v4796, 1.442695
        %v5079 = vpow.pop %v5078
        %v5080 = vmul.f32 %v4797, 1.442695
        %v5081 = vpow.pop %v5080
        %v5082 = vmul.f32 %v4798, 1.442695
        %v5083 = vpow.pop %v5082
        %v5084 = vmul.f32 %v4799, 1.442695
        %v5085 = vpow.pop %v5084
        %v5086 = vmul.f32 %v4800, 1.442695
        %v5087 = vpow.pop %v5086
        %v5088 = vmul.f32 %v4801, 1.442695
        %v5089 = vpow.pop %v5088
        %v5090 = vmul.f32 %v4802, 1.442695
        %v5091 = vpow.pop %v5090
        %v5092 = vmul.f32 %v4803, 1.442695
        %v5093 = vpow.pop %v5092
        %v5094 = vmul.f32 %v4804, 1.442695
        %v5095 = vpow.pop %v5094
        %v5096 = vmul.f32 %v4805, 1.442695
        %v5097 = vpow.pop %v5096
        %v5098 = vmul.f32 %v4806, 1.442695
        %v5099 = vpow.pop %v5098
        %v5100 = vmul.f32 %v4807, 1.442695
        %v5101 = vpow.pop %v5100
        %v5102 = vmul.f32 %v4808, 1.442695
        %v5103 = vpow.pop %v5102
        %v5104 = vmul.f32 %v4809, 1.442695
        %v5105 = vpow.pop %v5104
        %v5106 = vmul.f32 %v4810, 1.442695
        %v5107 = vpow.pop %v5106
        %v5108 = vmul.f32 %v4811, 1.442695
        %v5109 = vpow.pop %v5108
        %v5110 = vmul.f32 %v4812, 1.442695
        %v5111 = vpow.pop %v5110
        %v5112 = vmul.f32 %v4813, 1.442695
        %v5113 = vpow.pop %v5112
        %v5114 = vmul.f32 %v4814, 1.442695
        %v5115 = vpow.pop %v5114
        %v5116 = vmul.f32 %v4815, 1.442695
        %v5117 = vpow.pop %v5116
        %v5118 = vmul.f32 %v4816, 1.442695
        %v5119 = vpow.pop %v5118
        %v5120 = vmul.f32 %v4817, 1.442695
        %v5121 = vpow.pop %v5120
        %v5122 = vmul.f32 %v4818, 1.442695
        %v5123 = vpow.pop %v5122
        %v5124 = vmul.f32 %v4819, 1.442695
        %v5125 = vpow.pop %v5124
        %v5126 = vmul.f32 %v4820, 1.442695
        %v5127 = vpow.pop %v5126
        %v5128 = vmul.f32 %v4821, 1.442695
        %v5129 = vpow.pop %v5128
        %v5130 = vmul.f32 %v4822, 1.442695
        %v5131 = vpow.pop %v5130
        %v5132 = vmul.f32 %v4823, 1.442695
        %v5133 = vpow.pop %v5132
        %v5134 = vmul.f32 %v4824, 1.442695
        %v5135 = vpow.pop %v5134
        %v5136 = vmul.f32 %v4825, 1.442695
        %v5137 = vpow.pop %v5136
        %v5138 = vmul.f32 %v4826, 1.442695
        %v5139 = vpow.pop %v5138
        %v5140 = vmul.f32 %v4827, 1.442695
        %v5141 = vpow.pop %v5140
        %v5142 = vmul.f32 %v4828, 1.442695
        %v5143 = vpow.pop %v5142
        %v5144 = vmul.f32 %v4829, 1.442695
        %v5145 = vpow.pop %v5144
        %v5146 = vmul.f32 %v4830, 1.442695
        %v5147 = vpow.pop %v5146
        %v5148 = vmul.f32 %v4831, 1.442695
        %v5149 = vpow.pop %v5148
        %v5150 = vmul.f32 %v4832, 1.442695
        %v5151 = vpow.pop %v5150
        %v5152 = vmul.f32 %v4833, 1.442695
        %v5153 = vpow.pop %v5152
        %v5154 = vmul.f32 %v4834, 1.442695
        %v5155 = vpow.pop %v5154
        %v5156 = vmul.f32 %v4835, 1.442695
        %v5157 = vpow.pop %v5156
        %v5158 = vmul.f32 %v4836, 1.442695
        %v5159 = vpow.pop %v5158
        %v5160 = vmul.f32 %v4837, 1.442695
        %v5161 = vpow.pop %v5160
        %v5162 = vmul.f32 %v4838, 1.442695
        %v5163 = vpow.pop %v5162
        %v5164 = vmul.f32 %v4839, 1.442695
        %v5165 = vpow.pop %v5164
        %v5166 = vmul.f32 %v4840, 1.442695
        %v5167 = vpow.pop %v5166
        %v5168 = vmul.f32 %v4841, 1.442695
        %v5169 = vpow.pop %v5168
        %v5170 = vmul.f32 %v4842, 1.442695
        %v5171 = vpow.pop %v5170
        %v5172 = vmul.f32 %v4843, 1.442695
        %v5173 = vpow.pop %v5172
        %v5174 = vmul.f32 %v4844, 1.442695
        %v5175 = vpow.pop %v5174
        %v5176 = vmul.f32 %v4845, 1.442695
        %v5177 = vpow.pop %v5176
        %v5178 = vmul.f32 %v4846, 1.442695
        %v5179 = vpow.pop %v5178
        %v5180 = vmul.f32 %v4847, 1.442695
        %v5181 = vpow.pop %v5180
        %v5182 = vmul.f32 %v4848, 1.442695
        %v5183 = vpow.pop %v5182
        %v5184 = vmul.f32 %v4849, 1.442695
        %v5185 = vpow.pop %v5184
        %v5186 = vmul.f32 %v4850, 1.442695
        %v5187 = vpow.pop %v5186
        %v5188 = vmul.f32 %v4851, 1.442695
        %v5189 = vpow.pop %v5188
        %v5190 = vmul.f32 %v4852, 1.442695
        %v5191 = vpow.pop %v5190
        %v5192 = vmul.f32 %v4853, 1.442695
        %v5193 = vpow.pop %v5192
        %v5194 = vmul.f32 %v4854, 1.442695
        %v5195 = vpow.pop %v5194
        %v5196 = vmul.f32 %v4855, 1.442695
        %v5197 = vpow.pop %v5196
        %v5198 = vmul.f32 %v4856, 1.442695
        %v5199 = vpow.pop %v5198
        %v5200 = vmul.f32 %v4857, 1.442695
        %v5201 = vpow.pop %v5200
        %v5202 = vmul.f32 %v4858, 1.442695
        %v5203 = vpow.pop %v5202
        %v5204 = vmul.f32 %v4859, 1.442695
        %v5205 = vpow.pop %v5204
        %v5206 = vmul.f32 %v4860, 1.442695
        %v5207 = vpow.pop %v5206
        %v5208 = vmul.f32 %v4861, 1.442695
        %v5209 = vpow.pop %v5208
        %v5210 = vmul.f32 %v4862, 1.442695
        %v5211 = vpow.pop %v5210
        %v5212 = vmul.f32 %v4863, 1.442695
        %v5213 = vpow.pop %v5212
        %v5214 = vmul.f32 %v4864, 1.442695
        %v5215 = vpow.pop %v5214
        %v5216 = vmul.f32 %v4865, 1.442695
        %v5217 = vpow.pop %v5216
        %v5218 = vmul.f32 %v4866, 1.442695
        %v5219 = vpow.pop %v5218
        %v5220 = vmul.f32 %v4867, 1.442695
        %v5221 = vpow.pop %v5220
        %v5222 = vmul.f32 %v4868, 1.442695
        %v5223 = vpow.pop %v5222
        %v5224 = vmul.f32 %v4869, 1.442695
        %v5225 = vpow.pop %v5224
        %v5226 = vmul.f32 %v4870, 1.442695
        %v5227 = vpow.pop %v5226
        %v5228 = vmul.f32 %v4871, 1.442695
        %v5229 = vpow.pop %v5228
        %v5230 = vmul.f32 %v4872, 1.442695
        %v5231 = vpow.pop %v5230
        %v5232 = vmul.f32 %v4873, 1.442695
        %v5233 = vpow.pop %v5232
        %v5234 = vmul.f32 %v4874, 1.442695
        %v5235 = vpow.pop %v5234
        %v5236 = vmul.f32 %v4875, 1.442695
        %v5237 = vpow.pop %v5236
        %v5238 = vmul.f32 %v4876, 1.442695
        %v5239 = vpow.pop %v5238
        %v5240 = vmul.f32 %v4877, 1.442695
        %v5241 = vpow.pop %v5240
        %v5242 = vmul.f32 %v4878, 1.442695
        %v5243 = vpow.pop %v5242
        %v5244 = vmul.f32 %v4879, 1.442695
        %v5245 = vpow.pop %v5244
        %v5246 = vmul.f32 %v4880, 1.442695
        %v5247 = vpow.pop %v5246
        %v5248 = vmul.f32 %v4881, 1.442695
        %v5249 = vpow.pop %v5248
        %v5250 = vmul.f32 %v4882, 1.442695
        %v5251 = vpow.pop %v5250
        %v5252 = vmul.f32 %v4883, 1.442695
        %v5253 = vpow.pop %v5252
        %v5254 = vmul.f32 %v4884, 1.442695
        %v5255 = vpow.pop %v5254
        %v5256 = vmul.f32 %v4885, 1.442695
        %v5257 = vpow.pop %v5256
        %v5258 = vmul.f32 %v4886, 1.442695
        %v5259 = vpow.pop %v5258
        %v5260 = vmul.f32 %v4887, 1.442695
        %v5261 = vpow.pop %v5260
        %v5262 = vmul.f32 %v4888, 1.442695
        %v5263 = vpow.pop %v5262
        %v5264 = vmul.f32 %v4889, 1.442695
        %v5265 = vpow.pop %v5264
        %v5266 = vmul.f32 %v4890, 1.442695
        %v5267 = vpow.pop %v5266
        %v5268 = vmul.f32 %v4891, 1.442695
        %v5269 = vpow.pop %v5268
        %v5270 = vmul.f32 %v4892, 1.442695
        %v5271 = vpow.pop %v5270
        %v5272 = vmul.f32 %v4893, 1.442695
        %v5273 = vpow.pop %v5272
        %v5274 = vmul.f32 %v4894, 1.442695
        %v5275 = vpow.pop %v5274
        %v5276 = vmul.f32 %v4895, 1.442695
        %v5277 = vpow.pop %v5276
        %v5278 = vmul.f32 %v4896, 1.442695
        %v5279 = vpow.pop %v5278
        %v5280 = vmul.f32 %v4897, 1.442695
        %v5281 = vpow.pop %v5280
        %v5282 = vld [vmem:[#allocation3] sm:$0xff]
        %v5283 = vld [vmem:[#allocation3 + $0x8] sm:$0xff]
        %v5284 = vld [vmem:[#allocation3 + $0x10] sm:$0xff]
        %v5285 = vld [vmem:[#allocation3 + $0x18] sm:$0xff]
        %v5286 = vld [vmem:[#allocation3 + $0x20] sm:$0xff]
        %v5287 = vld [vmem:[#allocation3 + $0x28] sm:$0xff]
        %v5288 = vld [vmem:[#allocation3 + $0x30] sm:$0xff]
        %v5289 = vld [vmem:[#allocation3 + $0x38] sm:$0xff]
        %v5290 = vld [vmem:[#allocation3 + $0x40] sm:$0xff]
        %v5291 = vld [vmem:[#allocation3 + $0x48] sm:$0xff]
        %v5292 = vld [vmem:[#allocation3 + $0x50] sm:$0xff]
        %v5293 = vld [vmem:[#allocation3 + $0x58] sm:$0xff]
        %v5294 = vld [vmem:[#allocation3 + $0x60] sm:$0xff]
        %v5295 = vld [vmem:[#allocation3 + $0x68] sm:$0xff]
        %v5296 = vld [vmem:[#allocation3 + $0x70] sm:$0xff]
        %v5297 = vld [vmem:[#allocation3 + $0x78] sm:$0xff]
        %v5298 = vld [vmem:[#allocation3 + $0x80] sm:$0xff]
        %v5299 = vld [vmem:[#allocation3 + $0x88] sm:$0xff]
        %v5300 = vld [vmem:[#allocation3 + $0x90] sm:$0xff]
        %v5301 = vld [vmem:[#allocation3 + $0x98] sm:$0xff]
        %v5302 = vld [vmem:[#allocation3 + $0xa0] sm:$0xff]
        %v5303 = vld [vmem:[#allocation3 + $0xa8] sm:$0xff]
        %v5304 = vld [vmem:[#allocation3 + $0xb0] sm:$0xff]
        %v5305 = vld [vmem:[#allocation3 + $0xb8] sm:$0xff]
        %v5306 = vld [vmem:[#allocation3 + $0xc0] sm:$0xff]
        %v5307 = vld [vmem:[#allocation3 + $0xc8] sm:$0xff]
        %v5308 = vld [vmem:[#allocation3 + $0xd0] sm:$0xff]
        %v5309 = vld [vmem:[#allocation3 + $0xd8] sm:$0xff]
        %v5310 = vld [vmem:[#allocation3 + $0xe0] sm:$0xff]
        %v5311 = vld [vmem:[#allocation3 + $0xe8] sm:$0xff]
        %v5312 = vld [vmem:[#allocation3 + $0xf0] sm:$0xff]
        %v5313 = vld [vmem:[#allocation3 + $0xf8] sm:$0xff]
        %v5314 = vld [vmem:[#allocation3 + $0x100] sm:$0xff]
        %v5315 = vld [vmem:[#allocation3 + $0x108] sm:$0xff]
        %v5316 = vld [vmem:[#allocation3 + $0x110] sm:$0xff]
        %v5317 = vld [vmem:[#allocation3 + $0x118] sm:$0xff]
        %v5318 = vld [vmem:[#allocation3 + $0x120] sm:$0xff]
        %v5319 = vld [vmem:[#allocation3 + $0x128] sm:$0xff]
        %v5320 = vld [vmem:[#allocation3 + $0x130] sm:$0xff]
        %v5321 = vld [vmem:[#allocation3 + $0x138] sm:$0xff]
        %v5322 = vld [vmem:[#allocation3 + $0x140] sm:$0xff]
        %v5323 = vld [vmem:[#allocation3 + $0x148] sm:$0xff]
        %v5324 = vld [vmem:[#allocation3 + $0x150] sm:$0xff]
        %v5325 = vld [vmem:[#allocation3 + $0x158] sm:$0xff]
        %v5326 = vld [vmem:[#allocation3 + $0x160] sm:$0xff]
        %v5327 = vld [vmem:[#allocation3 + $0x168] sm:$0xff]
        %v5328 = vld [vmem:[#allocation3 + $0x170] sm:$0xff]
        %v5329 = vld [vmem:[#allocation3 + $0x178] sm:$0xff]
        %v5330 = vld [vmem:[#allocation3 + $0x180] sm:$0xff]
        %v5331 = vld [vmem:[#allocation3 + $0x188] sm:$0xff]
        %v5332 = vld [vmem:[#allocation3 + $0x190] sm:$0xff]
        %v5333 = vld [vmem:[#allocation3 + $0x198] sm:$0xff]
        %v5334 = vld [vmem:[#allocation3 + $0x1a0] sm:$0xff]
        %v5335 = vld [vmem:[#allocation3 + $0x1a8] sm:$0xff]
        %v5336 = vld [vmem:[#allocation3 + $0x1b0] sm:$0xff]
        %v5337 = vld [vmem:[#allocation3 + $0x1b8] sm:$0xff]
        %v5338 = vld [vmem:[#allocation3 + $0x1c0] sm:$0xff]
        %v5339 = vld [vmem:[#allocation3 + $0x1c8] sm:$0xff]
        %v5340 = vld [vmem:[#allocation3 + $0x1d0] sm:$0xff]
        %v5341 = vld [vmem:[#allocation3 + $0x1d8] sm:$0xff]
        %v5342 = vld [vmem:[#allocation3 + $0x1e0] sm:$0xff]
        %v5343 = vld [vmem:[#allocation3 + $0x1e8] sm:$0xff]
        %v5344 = vld [vmem:[#allocation3 + $0x1f0] sm:$0xff]
        %v5345 = vld [vmem:[#allocation3 + $0x1f8] sm:$0xff]
        %v5346 = vld [vmem:[#allocation3 + $0x200] sm:$0xff]
        %v5347 = vld [vmem:[#allocation3 + $0x208] sm:$0xff]
        %v5348 = vld [vmem:[#allocation3 + $0x210] sm:$0xff]
        %v5349 = vld [vmem:[#allocation3 + $0x218] sm:$0xff]
        %v5350 = vld [vmem:[#allocation3 + $0x220] sm:$0xff]
        %v5351 = vld [vmem:[#allocation3 + $0x228] sm:$0xff]
        %v5352 = vld [vmem:[#allocation3 + $0x230] sm:$0xff]
        %v5353 = vld [vmem:[#allocation3 + $0x238] sm:$0xff]
        %v5354 = vld [vmem:[#allocation3 + $0x240] sm:$0xff]
        %v5355 = vld [vmem:[#allocation3 + $0x248] sm:$0xff]
        %v5356 = vld [vmem:[#allocation3 + $0x250] sm:$0xff]
        %v5357 = vld [vmem:[#allocation3 + $0x258] sm:$0xff]
        %v5358 = vld [vmem:[#allocation3 + $0x260] sm:$0xff]
        %v5359 = vld [vmem:[#allocation3 + $0x268] sm:$0xff]
        %v5360 = vld [vmem:[#allocation3 + $0x270] sm:$0xff]
        %v5361 = vld [vmem:[#allocation3 + $0x278] sm:$0xff]
        %v5362 = vld [vmem:[#allocation3 + $0x280] sm:$0xff]
        %v5363 = vld [vmem:[#allocation3 + $0x288] sm:$0xff]
        %v5364 = vld [vmem:[#allocation3 + $0x290] sm:$0xff]
        %v5365 = vld [vmem:[#allocation3 + $0x298] sm:$0xff]
        %v5366 = vld [vmem:[#allocation3 + $0x2a0] sm:$0xff]
        %v5367 = vld [vmem:[#allocation3 + $0x2a8] sm:$0xff]
        %v5368 = vld [vmem:[#allocation3 + $0x2b0] sm:$0xff]
        %v5369 = vld [vmem:[#allocation3 + $0x2b8] sm:$0xff]
        %v5370 = vld [vmem:[#allocation3 + $0x2c0] sm:$0xff]
        %v5371 = vld [vmem:[#allocation3 + $0x2c8] sm:$0xff]
        %v5372 = vld [vmem:[#allocation3 + $0x2d0] sm:$0xff]
        %v5373 = vld [vmem:[#allocation3 + $0x2d8] sm:$0xff]
        %v5374 = vld [vmem:[#allocation3 + $0x2e0] sm:$0xff]
        %v5375 = vld [vmem:[#allocation3 + $0x2e8] sm:$0xff]
        %v5376 = vld [vmem:[#allocation3 + $0x2f0] sm:$0xff]
        %v5377 = vld [vmem:[#allocation3 + $0x2f8] sm:$0xff]
        %v5378 = vmul.f32 %v4035, %v5282
        %v5379 = vmul.f32 %v4037, %v5283
        %v5380 = vmul.f32 %v4039, %v5284
        %v5381 = vmul.f32 %v4041, %v5285
        %v5382 = vmul.f32 %v4043, %v5286
        %v5383 = vmul.f32 %v4045, %v5287
        %v5384 = vmul.f32 %v4047, %v5288
        %v5385 = vmul.f32 %v4049, %v5289
        %v5386 = vmul.f32 %v4051, %v5290
        %v5387 = vmul.f32 %v4053, %v5291
        %v5388 = vmul.f32 %v4055, %v5292
        %v5389 = vmul.f32 %v4057, %v5293
        %v5390 = vmul.f32 %v4059, %v5294
        %v5391 = vmul.f32 %v4061, %v5295
        %v5392 = vmul.f32 %v4063, %v5296
        %v5393 = vmul.f32 %v4065, %v5297
        %v5394 = vmul.f32 %v4067, %v5298
        %v5395 = vmul.f32 %v4069, %v5299
        %v5396 = vmul.f32 %v4071, %v5300
        %v5397 = vmul.f32 %v4073, %v5301
        %v5398 = vmul.f32 %v4075, %v5302
        %v5399 = vmul.f32 %v4077, %v5303
        %v5400 = vmul.f32 %v4079, %v5304
        %v5401 = vmul.f32 %v4081, %v5305
        %v5402 = vmul.f32 %v4083, %v5306
        %v5403 = vmul.f32 %v4085, %v5307
        %v5404 = vmul.f32 %v4087, %v5308
        %v5405 = vmul.f32 %v4089, %v5309
        %v5406 = vmul.f32 %v4091, %v5310
        %v5407 = vmul.f32 %v4093, %v5311
        %v5408 = vmul.f32 %v4095, %v5312
        %v5409 = vmul.f32 %v4097, %v5313
        %v5410 = vmul.f32 %v4099, %v5314
        %v5411 = vmul.f32 %v4101, %v5315
        %v5412 = vmul.f32 %v4103, %v5316
        %v5413 = vmul.f32 %v4105, %v5317
        %v5414 = vmul.f32 %v4107, %v5318
        %v5415 = vmul.f32 %v4109, %v5319
        %v5416 = vmul.f32 %v4111, %v5320
        %v5417 = vmul.f32 %v4113, %v5321
        %v5418 = vmul.f32 %v4115, %v5322
        %v5419 = vmul.f32 %v4117, %v5323
        %v5420 = vmul.f32 %v4119, %v5324
        %v5421 = vmul.f32 %v4121, %v5325
        %v5422 = vmul.f32 %v4123, %v5326
        %v5423 = vmul.f32 %v4125, %v5327
        %v5424 = vmul.f32 %v4127, %v5328
        %v5425 = vmul.f32 %v4129, %v5329
        %v5426 = vmul.f32 %v4131, %v5330
        %v5427 = vmul.f32 %v4133, %v5331
        %v5428 = vmul.f32 %v4135, %v5332
        %v5429 = vmul.f32 %v4137, %v5333
        %v5430 = vmul.f32 %v4139, %v5334
        %v5431 = vmul.f32 %v4141, %v5335
        %v5432 = vmul.f32 %v4143, %v5336
        %v5433 = vmul.f32 %v4145, %v5337
        %v5434 = vmul.f32 %v4147, %v5338
        %v5435 = vmul.f32 %v4149, %v5339
        %v5436 = vmul.f32 %v4151, %v5340
        %v5437 = vmul.f32 %v4153, %v5341
        %v5438 = vmul.f32 %v4155, %v5342
        %v5439 = vmul.f32 %v4157, %v5343
        %v5440 = vmul.f32 %v4159, %v5344
        %v5441 = vmul.f32 %v4161, %v5345
        %v5442 = vmul.f32 %v4163, %v5346
        %v5443 = vmul.f32 %v4165, %v5347
        %v5444 = vmul.f32 %v4167, %v5348
        %v5445 = vmul.f32 %v4169, %v5349
        %v5446 = vmul.f32 %v4171, %v5350
        %v5447 = vmul.f32 %v4173, %v5351
        %v5448 = vmul.f32 %v4175, %v5352
        %v5449 = vmul.f32 %v4177, %v5353
        %v5450 = vmul.f32 %v4179, %v5354
        %v5451 = vmul.f32 %v4181, %v5355
        %v5452 = vmul.f32 %v4183, %v5356
        %v5453 = vmul.f32 %v4185, %v5357
        %v5454 = vmul.f32 %v4187, %v5358
        %v5455 = vmul.f32 %v4189, %v5359
        %v5456 = vmul.f32 %v4191, %v5360
        %v5457 = vmul.f32 %v4193, %v5361
        %v5458 = vmul.f32 %v4195, %v5362
        %v5459 = vmul.f32 %v4197, %v5363
        %v5460 = vmul.f32 %v4199, %v5364
        %v5461 = vmul.f32 %v4201, %v5365
        %v5462 = vmul.f32 %v4203, %v5366
        %v5463 = vmul.f32 %v4205, %v5367
        %v5464 = vmul.f32 %v4207, %v5368
        %v5465 = vmul.f32 %v4209, %v5369
        %v5466 = vmul.f32 %v4211, %v5370
        %v5467 = vmul.f32 %v4213, %v5371
        %v5468 = vmul.f32 %v4215, %v5372
        %v5469 = vmul.f32 %v4217, %v5373
        %v5470 = vmul.f32 %v4219, %v5374
        %v5471 = vmul.f32 %v4221, %v5375
        %v5472 = vmul.f32 %v4223, %v5376
        %v5473 = vmul.f32 %v4225, %v5377
        %v5474 = vadd.f32 %v4899, %v4901
        %5475 = vadd.xlane.f32.xlu0 %v5474
        %v5476 = vpop.xlane.xlu0 %5475
        %v5477 = vadd.f32 %v4903, %v4905
        %5478 = vadd.xlane.f32.xlu0 %v5477
        %v5479 = vpop.xlane.xlu0 %5478
        %v5480 = vadd.f32 %v4907, %v4909
        %5481 = vadd.xlane.f32.xlu0 %v5480
        %v5482 = vpop.xlane.xlu0 %5481
        %v5483 = vadd.f32 %v4911, %v4913
        %5484 = vadd.xlane.f32.xlu0 %v5483
        %v5485 = vpop.xlane.xlu0 %5484
        %v5486 = vadd.f32 %v4915, %v4917
        %5487 = vadd.xlane.f32.xlu0 %v5486
        %v5488 = vpop.xlane.xlu0 %5487
        %v5489 = vadd.f32 %v4919, %v4921
        %5490 = vadd.xlane.f32.xlu0 %v5489
        %v5491 = vpop.xlane.xlu0 %5490
        %v5492 = vadd.f32 %v4923, %v4925
        %5493 = vadd.xlane.f32.xlu0 %v5492
        %v5494 = vpop.xlane.xlu0 %5493
        %v5495 = vadd.f32 %v4927, %v4929
        %5496 = vadd.xlane.f32.xlu0 %v5495
        %v5497 = vpop.xlane.xlu0 %5496
        %v5498 = vadd.f32 %v4931, %v4933
        %5499 = vadd.xlane.f32.xlu0 %v5498
        %v5500 = vpop.xlane.xlu0 %5499
        %v5501 = vadd.f32 %v4935, %v4937
        %5502 = vadd.xlane.f32.xlu0 %v5501
        %v5503 = vpop.xlane.xlu0 %5502
        %v5504 = vadd.f32 %v4939, %v4941
        %5505 = vadd.xlane.f32.xlu0 %v5504
        %v5506 = vpop.xlane.xlu0 %5505
        %v5507 = vadd.f32 %v4943, %v4945
        %5508 = vadd.xlane.f32.xlu0 %v5507
        %v5509 = vpop.xlane.xlu0 %5508
        %v5510 = vadd.f32 %v4947, %v4949
        %5511 = vadd.xlane.f32.xlu0 %v5510
        %v5512 = vpop.xlane.xlu0 %5511
        %v5513 = vadd.f32 %v4951, %v4953
        %5514 = vadd.xlane.f32.xlu0 %v5513
        %v5515 = vpop.xlane.xlu0 %5514
        %v5516 = vadd.f32 %v4955, %v4957
        %5517 = vadd.xlane.f32.xlu0 %v5516
        %v5518 = vpop.xlane.xlu0 %5517
        %v5519 = vadd.f32 %v4959, %v4961
        %5520 = vadd.xlane.f32.xlu0 %v5519
        %v5521 = vpop.xlane.xlu0 %5520
        %v5522 = vadd.f32 %v4963, %v4965
        %5523 = vadd.xlane.f32.xlu0 %v5522
        %v5524 = vpop.xlane.xlu0 %5523
        %v5525 = vadd.f32 %v4967, %v4969
        %5526 = vadd.xlane.f32.xlu0 %v5525
        %v5527 = vpop.xlane.xlu0 %5526
        %v5528 = vadd.f32 %v4971, %v4973
        %5529 = vadd.xlane.f32.xlu0 %v5528
        %v5530 = vpop.xlane.xlu0 %5529
        %v5531 = vadd.f32 %v4975, %v4977
        %5532 = vadd.xlane.f32.xlu0 %v5531
        %v5533 = vpop.xlane.xlu0 %5532
        %v5534 = vadd.f32 %v4979, %v4981
        %5535 = vadd.xlane.f32.xlu0 %v5534
        %v5536 = vpop.xlane.xlu0 %5535
        %v5537 = vadd.f32 %v4983, %v4985
        %5538 = vadd.xlane.f32.xlu0 %v5537
        %v5539 = vpop.xlane.xlu0 %5538
        %v5540 = vadd.f32 %v4987, %v4989
        %5541 = vadd.xlane.f32.xlu0 %v5540
        %v5542 = vpop.xlane.xlu0 %5541
        %v5543 = vadd.f32 %v4991, %v4993
        %5544 = vadd.xlane.f32.xlu0 %v5543
        %v5545 = vpop.xlane.xlu0 %5544
        %v5546 = vadd.f32 %v4995, %v4997
        %5547 = vadd.xlane.f32.xlu0 %v5546
        %v5548 = vpop.xlane.xlu0 %5547
        %v5549 = vadd.f32 %v4999, %v5001
        %5550 = vadd.xlane.f32.xlu0 %v5549
        %v5551 = vpop.xlane.xlu0 %5550
        %v5552 = vadd.f32 %v5003, %v5005
        %5553 = vadd.xlane.f32.xlu0 %v5552
        %v5554 = vpop.xlane.xlu0 %5553
        %v5555 = vadd.f32 %v5007, %v5009
        %5556 = vadd.xlane.f32.xlu0 %v5555
        %v5557 = vpop.xlane.xlu0 %5556
        %v5558 = vadd.f32 %v5011, %v5013
        %5559 = vadd.xlane.f32.xlu0 %v5558
        %v5560 = vpop.xlane.xlu0 %5559
        %v5561 = vadd.f32 %v5015, %v5017
        %5562 = vadd.xlane.f32.xlu0 %v5561
        %v5563 = vpop.xlane.xlu0 %5562
        %v5564 = vadd.f32 %v5019, %v5021
        %5565 = vadd.xlane.f32.xlu0 %v5564
        %v5566 = vpop.xlane.xlu0 %5565
        %v5567 = vadd.f32 %v5023, %v5025
        %5568 = vadd.xlane.f32.xlu0 %v5567
        %v5569 = vpop.xlane.xlu0 %5568
        %v5570 = vadd.f32 %v5027, %v5029
        %5571 = vadd.xlane.f32.xlu0 %v5570
        %v5572 = vpop.xlane.xlu0 %5571
        %v5573 = vadd.f32 %v5031, %v5033
        %5574 = vadd.xlane.f32.xlu0 %v5573
        %v5575 = vpop.xlane.xlu0 %5574
        %v5576 = vadd.f32 %v5035, %v5037
        %5577 = vadd.xlane.f32.xlu0 %v5576
        %v5578 = vpop.xlane.xlu0 %5577
        %v5579 = vadd.f32 %v5039, %v5041
        %5580 = vadd.xlane.f32.xlu0 %v5579
        %v5581 = vpop.xlane.xlu0 %5580
        %v5582 = vadd.f32 %v5043, %v5045
        %5583 = vadd.xlane.f32.xlu0 %v5582
        %v5584 = vpop.xlane.xlu0 %5583
        %v5585 = vadd.f32 %v5047, %v5049
        %5586 = vadd.xlane.f32.xlu0 %v5585
        %v5587 = vpop.xlane.xlu0 %5586
        %v5588 = vadd.f32 %v5051, %v5053
        %5589 = vadd.xlane.f32.xlu0 %v5588
        %v5590 = vpop.xlane.xlu0 %5589
        %v5591 = vadd.f32 %v5055, %v5057
        %5592 = vadd.xlane.f32.xlu0 %v5591
        %v5593 = vpop.xlane.xlu0 %5592
        %v5594 = vadd.f32 %v5059, %v5061
        %5595 = vadd.xlane.f32.xlu0 %v5594
        %v5596 = vpop.xlane.xlu0 %5595
        %v5597 = vadd.f32 %v5063, %v5065
        %5598 = vadd.xlane.f32.xlu0 %v5597
        %v5599 = vpop.xlane.xlu0 %5598
        %v5600 = vadd.f32 %v5067, %v5069
        %5601 = vadd.xlane.f32.xlu0 %v5600
        %v5602 = vpop.xlane.xlu0 %5601
        %v5603 = vadd.f32 %v5071, %v5073
        %5604 = vadd.xlane.f32.xlu0 %v5603
        %v5605 = vpop.xlane.xlu0 %5604
        %v5606 = vadd.f32 %v5075, %v5077
        %5607 = vadd.xlane.f32.xlu0 %v5606
        %v5608 = vpop.xlane.xlu0 %5607
        %v5609 = vadd.f32 %v5079, %v5081
        %5610 = vadd.xlane.f32.xlu0 %v5609
        %v5611 = vpop.xlane.xlu0 %5610
        %v5612 = vadd.f32 %v5083, %v5085
        %5613 = vadd.xlane.f32.xlu0 %v5612
        %v5614 = vpop.xlane.xlu0 %5613
        %v5615 = vadd.f32 %v5087, %v5089
        %5616 = vadd.xlane.f32.xlu0 %v5615
        %v5617 = vpop.xlane.xlu0 %5616
        %v5618 = vadd.f32 %v5091, %v5093
        %5619 = vadd.xlane.f32.xlu0 %v5618
        %v5620 = vpop.xlane.xlu0 %5619
        %v5621 = vadd.f32 %v5095, %v5097
        %5622 = vadd.xlane.f32.xlu0 %v5621
        %v5623 = vpop.xlane.xlu0 %5622
        %v5624 = vadd.f32 %v5099, %v5101
        %5625 = vadd.xlane.f32.xlu0 %v5624
        %v5626 = vpop.xlane.xlu0 %5625
        %v5627 = vadd.f32 %v5103, %v5105
        %5628 = vadd.xlane.f32.xlu0 %v5627
        %v5629 = vpop.xlane.xlu0 %5628
        %v5630 = vadd.f32 %v5107, %v5109
        %5631 = vadd.xlane.f32.xlu0 %v5630
        %v5632 = vpop.xlane.xlu0 %5631
        %v5633 = vadd.f32 %v5111, %v5113
        %5634 = vadd.xlane.f32.xlu0 %v5633
        %v5635 = vpop.xlane.xlu0 %5634
        %v5636 = vadd.f32 %v5115, %v5117
        %5637 = vadd.xlane.f32.xlu0 %v5636
        %v5638 = vpop.xlane.xlu0 %5637
        %v5639 = vadd.f32 %v5119, %v5121
        %5640 = vadd.xlane.f32.xlu0 %v5639
        %v5641 = vpop.xlane.xlu0 %5640
        %v5642 = vadd.f32 %v5123, %v5125
        %5643 = vadd.xlane.f32.xlu0 %v5642
        %v5644 = vpop.xlane.xlu0 %5643
        %v5645 = vadd.f32 %v5127, %v5129
        %5646 = vadd.xlane.f32.xlu0 %v5645
        %v5647 = vpop.xlane.xlu0 %5646
        %v5648 = vadd.f32 %v5131, %v5133
        %5649 = vadd.xlane.f32.xlu0 %v5648
        %v5650 = vpop.xlane.xlu0 %5649
        %v5651 = vadd.f32 %v5135, %v5137
        %5652 = vadd.xlane.f32.xlu0 %v5651
        %v5653 = vpop.xlane.xlu0 %5652
        %v5654 = vadd.f32 %v5139, %v5141
        %5655 = vadd.xlane.f32.xlu0 %v5654
        %v5656 = vpop.xlane.xlu0 %5655
        %v5657 = vadd.f32 %v5143, %v5145
        %5658 = vadd.xlane.f32.xlu0 %v5657
        %v5659 = vpop.xlane.xlu0 %5658
        %v5660 = vadd.f32 %v5147, %v5149
        %5661 = vadd.xlane.f32.xlu0 %v5660
        %v5662 = vpop.xlane.xlu0 %5661
        %v5663 = vadd.f32 %v5151, %v5153
        %5664 = vadd.xlane.f32.xlu0 %v5663
        %v5665 = vpop.xlane.xlu0 %5664
        %v5666 = vadd.f32 %v5155, %v5157
        %5667 = vadd.xlane.f32.xlu0 %v5666
        %v5668 = vpop.xlane.xlu0 %5667
        %v5669 = vadd.f32 %v5159, %v5161
        %5670 = vadd.xlane.f32.xlu0 %v5669
        %v5671 = vpop.xlane.xlu0 %5670
        %v5672 = vadd.f32 %v5163, %v5165
        %5673 = vadd.xlane.f32.xlu0 %v5672
        %v5674 = vpop.xlane.xlu0 %5673
        %v5675 = vadd.f32 %v5167, %v5169
        %5676 = vadd.xlane.f32.xlu0 %v5675
        %v5677 = vpop.xlane.xlu0 %5676
        %v5678 = vadd.f32 %v5171, %v5173
        %5679 = vadd.xlane.f32.xlu0 %v5678
        %v5680 = vpop.xlane.xlu0 %5679
        %v5681 = vadd.f32 %v5175, %v5177
        %5682 = vadd.xlane.f32.xlu0 %v5681
        %v5683 = vpop.xlane.xlu0 %5682
        %v5684 = vadd.f32 %v5179, %v5181
        %5685 = vadd.xlane.f32.xlu0 %v5684
        %v5686 = vpop.xlane.xlu0 %5685
        %v5687 = vadd.f32 %v5183, %v5185
        %5688 = vadd.xlane.f32.xlu0 %v5687
        %v5689 = vpop.xlane.xlu0 %5688
        %v5690 = vadd.f32 %v5187, %v5189
        %5691 = vadd.xlane.f32.xlu0 %v5690
        %v5692 = vpop.xlane.xlu0 %5691
        %v5693 = vadd.f32 %v5191, %v5193
        %5694 = vadd.xlane.f32.xlu0 %v5693
        %v5695 = vpop.xlane.xlu0 %5694
        %v5696 = vadd.f32 %v5195, %v5197
        %5697 = vadd.xlane.f32.xlu0 %v5696
        %v5698 = vpop.xlane.xlu0 %5697
        %v5699 = vadd.f32 %v5199, %v5201
        %5700 = vadd.xlane.f32.xlu0 %v5699
        %v5701 = vpop.xlane.xlu0 %5700
        %v5702 = vadd.f32 %v5203, %v5205
        %5703 = vadd.xlane.f32.xlu0 %v5702
        %v5704 = vpop.xlane.xlu0 %5703
        %v5705 = vadd.f32 %v5207, %v5209
        %5706 = vadd.xlane.f32.xlu0 %v5705
        %v5707 = vpop.xlane.xlu0 %5706
        %v5708 = vadd.f32 %v5211, %v5213
        %5709 = vadd.xlane.f32.xlu0 %v5708
        %v5710 = vpop.xlane.xlu0 %5709
        %v5711 = vadd.f32 %v5215, %v5217
        %5712 = vadd.xlane.f32.xlu0 %v5711
        %v5713 = vpop.xlane.xlu0 %5712
        %v5714 = vadd.f32 %v5219, %v5221
        %5715 = vadd.xlane.f32.xlu0 %v5714
        %v5716 = vpop.xlane.xlu0 %5715
        %v5717 = vadd.f32 %v5223, %v5225
        %5718 = vadd.xlane.f32.xlu0 %v5717
        %v5719 = vpop.xlane.xlu0 %5718
        %v5720 = vadd.f32 %v5227, %v5229
        %5721 = vadd.xlane.f32.xlu0 %v5720
        %v5722 = vpop.xlane.xlu0 %5721
        %v5723 = vadd.f32 %v5231, %v5233
        %5724 = vadd.xlane.f32.xlu0 %v5723
        %v5725 = vpop.xlane.xlu0 %5724
        %v5726 = vadd.f32 %v5235, %v5237
        %5727 = vadd.xlane.f32.xlu0 %v5726
        %v5728 = vpop.xlane.xlu0 %5727
        %v5729 = vadd.f32 %v5239, %v5241
        %5730 = vadd.xlane.f32.xlu0 %v5729
        %v5731 = vpop.xlane.xlu0 %5730
        %v5732 = vadd.f32 %v5243, %v5245
        %5733 = vadd.xlane.f32.xlu0 %v5732
        %v5734 = vpop.xlane.xlu0 %5733
        %v5735 = vadd.f32 %v5247, %v5249
        %5736 = vadd.xlane.f32.xlu0 %v5735
        %v5737 = vpop.xlane.xlu0 %5736
        %v5738 = vadd.f32 %v5251, %v5253
        %5739 = vadd.xlane.f32.xlu0 %v5738
        %v5740 = vpop.xlane.xlu0 %5739
        %v5741 = vadd.f32 %v5255, %v5257
        %5742 = vadd.xlane.f32.xlu0 %v5741
        %v5743 = vpop.xlane.xlu0 %5742
        %v5744 = vadd.f32 %v5259, %v5261
        %5745 = vadd.xlane.f32.xlu0 %v5744
        %v5746 = vpop.xlane.xlu0 %5745
        %v5747 = vadd.f32 %v5263, %v5265
        %5748 = vadd.xlane.f32.xlu0 %v5747
        %v5749 = vpop.xlane.xlu0 %5748
        %v5750 = vadd.f32 %v5267, %v5269
        %5751 = vadd.xlane.f32.xlu0 %v5750
        %v5752 = vpop.xlane.xlu0 %5751
        %v5753 = vadd.f32 %v5271, %v5273
        %5754 = vadd.xlane.f32.xlu0 %v5753
        %v5755 = vpop.xlane.xlu0 %5754
        %v5756 = vadd.f32 %v5275, %v5277
        %5757 = vadd.xlane.f32.xlu0 %v5756
        %v5758 = vpop.xlane.xlu0 %5757
        %v5759 = vadd.f32 %v5279, %v5281
        %5760 = vadd.xlane.f32.xlu0 %v5759
        %v5761 = vpop.xlane.xlu0 %5760
        %v5762 = vadd.f32 %v5378, %v5476
        %v5763 = vadd.f32 %v5379, %v5479
        %v5764 = vadd.f32 %v5380, %v5482
        %v5765 = vadd.f32 %v5381, %v5485
        %v5766 = vadd.f32 %v5382, %v5488
        %v5767 = vadd.f32 %v5383, %v5491
        %v5768 = vadd.f32 %v5384, %v5494
        %v5769 = vadd.f32 %v5385, %v5497
        %v5770 = vadd.f32 %v5386, %v5500
        %v5771 = vadd.f32 %v5387, %v5503
        %v5772 = vadd.f32 %v5388, %v5506
        %v5773 = vadd.f32 %v5389, %v5509
        %v5774 = vadd.f32 %v5390, %v5512
        %v5775 = vadd.f32 %v5391, %v5515
        %v5776 = vadd.f32 %v5392, %v5518
        %v5777 = vadd.f32 %v5393, %v5521
        %v5778 = vadd.f32 %v5394, %v5524
        %v5779 = vadd.f32 %v5395, %v5527
        %v5780 = vadd.f32 %v5396, %v5530
        %v5781 = vadd.f32 %v5397, %v5533
        %v5782 = vadd.f32 %v5398, %v5536
        %v5783 = vadd.f32 %v5399, %v5539
        %v5784 = vadd.f32 %v5400, %v5542
        %v5785 = vadd.f32 %v5401, %v5545
        %v5786 = vadd.f32 %v5402, %v5548
        %v5787 = vadd.f32 %v5403, %v5551
        %v5788 = vadd.f32 %v5404, %v5554
        %v5789 = vadd.f32 %v5405, %v5557
        %v5790 = vadd.f32 %v5406, %v5560
        %v5791 = vadd.f32 %v5407, %v5563
        %v5792 = vadd.f32 %v5408, %v5566
        %v5793 = vadd.f32 %v5409, %v5569
        %v5794 = vadd.f32 %v5410, %v5572
        %v5795 = vadd.f32 %v5411, %v5575
        %v5796 = vadd.f32 %v5412, %v5578
        %v5797 = vadd.f32 %v5413, %v5581
        %v5798 = vadd.f32 %v5414, %v5584
        %v5799 = vadd.f32 %v5415, %v5587
        %v5800 = vadd.f32 %v5416, %v5590
        %v5801 = vadd.f32 %v5417, %v5593
        %v5802 = vadd.f32 %v5418, %v5596
        %v5803 = vadd.f32 %v5419, %v5599
        %v5804 = vadd.f32 %v5420, %v5602
        %v5805 = vadd.f32 %v5421, %v5605
        %v5806 = vadd.f32 %v5422, %v5608
        %v5807 = vadd.f32 %v5423, %v5611
        %v5808 = vadd.f32 %v5424, %v5614
        %v5809 = vadd.f32 %v5425, %v5617
        %v5810 = vadd.f32 %v5426, %v5620
        %v5811 = vadd.f32 %v5427, %v5623
        %v5812 = vadd.f32 %v5428, %v5626
        %v5813 = vadd.f32 %v5429, %v5629
        %v5814 = vadd.f32 %v5430, %v5632
        %v5815 = vadd.f32 %v5431, %v5635
        %v5816 = vadd.f32 %v5432, %v5638
        %v5817 = vadd.f32 %v5433, %v5641
        %v5818 = vadd.f32 %v5434, %v5644
        %v5819 = vadd.f32 %v5435, %v5647
        %v5820 = vadd.f32 %v5436, %v5650
        %v5821 = vadd.f32 %v5437, %v5653
        %v5822 = vadd.f32 %v5438, %v5656
        %v5823 = vadd.f32 %v5439, %v5659
        %v5824 = vadd.f32 %v5440, %v5662
        %v5825 = vadd.f32 %v5441, %v5665
        %v5826 = vadd.f32 %v5442, %v5668
        %v5827 = vadd.f32 %v5443, %v5671
        %v5828 = vadd.f32 %v5444, %v5674
        %v5829 = vadd.f32 %v5445, %v5677
        %v5830 = vadd.f32 %v5446, %v5680
        %v5831 = vadd.f32 %v5447, %v5683
        %v5832 = vadd.f32 %v5448, %v5686
        %v5833 = vadd.f32 %v5449, %v5689
        %v5834 = vadd.f32 %v5450, %v5692
        %v5835 = vadd.f32 %v5451, %v5695
        %v5836 = vadd.f32 %v5452, %v5698
        %v5837 = vadd.f32 %v5453, %v5701
        %v5838 = vadd.f32 %v5454, %v5704
        %v5839 = vadd.f32 %v5455, %v5707
        %v5840 = vadd.f32 %v5456, %v5710
        %v5841 = vadd.f32 %v5457, %v5713
        %v5842 = vadd.f32 %v5458, %v5716
        %v5843 = vadd.f32 %v5459, %v5719
        %v5844 = vadd.f32 %v5460, %v5722
        %v5845 = vadd.f32 %v5461, %v5725
        %v5846 = vadd.f32 %v5462, %v5728
        %v5847 = vadd.f32 %v5463, %v5731
        %v5848 = vadd.f32 %v5464, %v5734
        %v5849 = vadd.f32 %v5465, %v5737
        %v5850 = vadd.f32 %v5466, %v5740
        %v5851 = vadd.f32 %v5467, %v5743
        %v5852 = vadd.f32 %v5468, %v5746
        %v5853 = vadd.f32 %v5469, %v5749
        %v5854 = vadd.f32 %v5470, %v5752
        %v5855 = vadd.f32 %v5471, %v5755
        %v5856 = vadd.f32 %v5472, %v5758
        %v5857 = vadd.f32 %v5473, %v5761
        %vm5858 = vcmask 7168
        %5859 = vst.msk [vmem:[#allocation3] sm:$0xff] %vm5858, %v5762
        %5860 = vst.msk [vmem:[#allocation3 + $0x8] sm:$0xff] %vm5858, %v5763
        %5861 = vst.msk [vmem:[#allocation3 + $0x10] sm:$0xff] %vm5858, %v5764
        %5862 = vst.msk [vmem:[#allocation3 + $0x18] sm:$0xff] %vm5858, %v5765
        %5863 = vst.msk [vmem:[#allocation3 + $0x20] sm:$0xff] %vm5858, %v5766
        %5864 = vst.msk [vmem:[#allocation3 + $0x28] sm:$0xff] %vm5858, %v5767
        %5865 = vst.msk [vmem:[#allocation3 + $0x30] sm:$0xff] %vm5858, %v5768
        %5866 = vst.msk [vmem:[#allocation3 + $0x38] sm:$0xff] %vm5858, %v5769
        %5867 = vst.msk [vmem:[#allocation3 + $0x40] sm:$0xff] %vm5858, %v5770
        %5868 = vst.msk [vmem:[#allocation3 + $0x48] sm:$0xff] %vm5858, %v5771
        %5869 = vst.msk [vmem:[#allocation3 + $0x50] sm:$0xff] %vm5858, %v5772
        %5870 = vst.msk [vmem:[#allocation3 + $0x58] sm:$0xff] %vm5858, %v5773
        %5871 = vst.msk [vmem:[#allocation3 + $0x60] sm:$0xff] %vm5858, %v5774
        %5872 = vst.msk [vmem:[#allocation3 + $0x68] sm:$0xff] %vm5858, %v5775
        %5873 = vst.msk [vmem:[#allocation3 + $0x70] sm:$0xff] %vm5858, %v5776
        %5874 = vst.msk [vmem:[#allocation3 + $0x78] sm:$0xff] %vm5858, %v5777
        %5875 = vst.msk [vmem:[#allocation3 + $0x80] sm:$0xff] %vm5858, %v5778
        %5876 = vst.msk [vmem:[#allocation3 + $0x88] sm:$0xff] %vm5858, %v5779
        %5877 = vst.msk [vmem:[#allocation3 + $0x90] sm:$0xff] %vm5858, %v5780
        %5878 = vst.msk [vmem:[#allocation3 + $0x98] sm:$0xff] %vm5858, %v5781
        %5879 = vst.msk [vmem:[#allocation3 + $0xa0] sm:$0xff] %vm5858, %v5782
        %5880 = vst.msk [vmem:[#allocation3 + $0xa8] sm:$0xff] %vm5858, %v5783
        %5881 = vst.msk [vmem:[#allocation3 + $0xb0] sm:$0xff] %vm5858, %v5784
        %5882 = vst.msk [vmem:[#allocation3 + $0xb8] sm:$0xff] %vm5858, %v5785
        %5883 = vst.msk [vmem:[#allocation3 + $0xc0] sm:$0xff] %vm5858, %v5786
        %5884 = vst.msk [vmem:[#allocation3 + $0xc8] sm:$0xff] %vm5858, %v5787
        %5885 = vst.msk [vmem:[#allocation3 + $0xd0] sm:$0xff] %vm5858, %v5788
        %5886 = vst.msk [vmem:[#allocation3 + $0xd8] sm:$0xff] %vm5858, %v5789
        %5887 = vst.msk [vmem:[#allocation3 + $0xe0] sm:$0xff] %vm5858, %v5790
        %5888 = vst.msk [vmem:[#allocation3 + $0xe8] sm:$0xff] %vm5858, %v5791
        %5889 = vst.msk [vmem:[#allocation3 + $0xf0] sm:$0xff] %vm5858, %v5792
        %5890 = vst.msk [vmem:[#allocation3 + $0xf8] sm:$0xff] %vm5858, %v5793
        %5891 = vst.msk [vmem:[#allocation3 + $0x100] sm:$0xff] %vm5858, %v5794
        %5892 = vst.msk [vmem:[#allocation3 + $0x108] sm:$0xff] %vm5858, %v5795
        %5893 = vst.msk [vmem:[#allocation3 + $0x110] sm:$0xff] %vm5858, %v5796
        %5894 = vst.msk [vmem:[#allocation3 + $0x118] sm:$0xff] %vm5858, %v5797
        %5895 = vst.msk [vmem:[#allocation3 + $0x120] sm:$0xff] %vm5858, %v5798
        %5896 = vst.msk [vmem:[#allocation3 + $0x128] sm:$0xff] %vm5858, %v5799
        %5897 = vst.msk [vmem:[#allocation3 + $0x130] sm:$0xff] %vm5858, %v5800
        %5898 = vst.msk [vmem:[#allocation3 + $0x138] sm:$0xff] %vm5858, %v5801
        %5899 = vst.msk [vmem:[#allocation3 + $0x140] sm:$0xff] %vm5858, %v5802
        %5900 = vst.msk [vmem:[#allocation3 + $0x148] sm:$0xff] %vm5858, %v5803
        %5901 = vst.msk [vmem:[#allocation3 + $0x150] sm:$0xff] %vm5858, %v5804
        %5902 = vst.msk [vmem:[#allocation3 + $0x158] sm:$0xff] %vm5858, %v5805
        %5903 = vst.msk [vmem:[#allocation3 + $0x160] sm:$0xff] %vm5858, %v5806
        %5904 = vst.msk [vmem:[#allocation3 + $0x168] sm:$0xff] %vm5858, %v5807
        %5905 = vst.msk [vmem:[#allocation3 + $0x170] sm:$0xff] %vm5858, %v5808
        %5906 = vst.msk [vmem:[#allocation3 + $0x178] sm:$0xff] %vm5858, %v5809
        %5907 = vst.msk [vmem:[#allocation3 + $0x180] sm:$0xff] %vm5858, %v5810
        %5908 = vst.msk [vmem:[#allocation3 + $0x188] sm:$0xff] %vm5858, %v5811
        %5909 = vst.msk [vmem:[#allocation3 + $0x190] sm:$0xff] %vm5858, %v5812
        %5910 = vst.msk [vmem:[#allocation3 + $0x198] sm:$0xff] %vm5858, %v5813
        %5911 = vst.msk [vmem:[#allocation3 + $0x1a0] sm:$0xff] %vm5858, %v5814
        %5912 = vst.msk [vmem:[#allocation3 + $0x1a8] sm:$0xff] %vm5858, %v5815
        %5913 = vst.msk [vmem:[#allocation3 + $0x1b0] sm:$0xff] %vm5858, %v5816
        %5914 = vst.msk [vmem:[#allocation3 + $0x1b8] sm:$0xff] %vm5858, %v5817
        %5915 = vst.msk [vmem:[#allocation3 + $0x1c0] sm:$0xff] %vm5858, %v5818
        %5916 = vst.msk [vmem:[#allocation3 + $0x1c8] sm:$0xff] %vm5858, %v5819
        %5917 = vst.msk [vmem:[#allocation3 + $0x1d0] sm:$0xff] %vm5858, %v5820
        %5918 = vst.msk [vmem:[#allocation3 + $0x1d8] sm:$0xff] %vm5858, %v5821
        %5919 = vst.msk [vmem:[#allocation3 + $0x1e0] sm:$0xff] %vm5858, %v5822
        %5920 = vst.msk [vmem:[#allocation3 + $0x1e8] sm:$0xff] %vm5858, %v5823
        %5921 = vst.msk [vmem:[#allocation3 + $0x1f0] sm:$0xff] %vm5858, %v5824
        %5922 = vst.msk [vmem:[#allocation3 + $0x1f8] sm:$0xff] %vm5858, %v5825
        %5923 = vst.msk [vmem:[#allocation3 + $0x200] sm:$0xff] %vm5858, %v5826
        %5924 = vst.msk [vmem:[#allocation3 + $0x208] sm:$0xff] %vm5858, %v5827
        %5925 = vst.msk [vmem:[#allocation3 + $0x210] sm:$0xff] %vm5858, %v5828
        %5926 = vst.msk [vmem:[#allocation3 + $0x218] sm:$0xff] %vm5858, %v5829
        %5927 = vst.msk [vmem:[#allocation3 + $0x220] sm:$0xff] %vm5858, %v5830
        %5928 = vst.msk [vmem:[#allocation3 + $0x228] sm:$0xff] %vm5858, %v5831
        %5929 = vst.msk [vmem:[#allocation3 + $0x230] sm:$0xff] %vm5858, %v5832
        %5930 = vst.msk [vmem:[#allocation3 + $0x238] sm:$0xff] %vm5858, %v5833
        %5931 = vst.msk [vmem:[#allocation3 + $0x240] sm:$0xff] %vm5858, %v5834
        %5932 = vst.msk [vmem:[#allocation3 + $0x248] sm:$0xff] %vm5858, %v5835
        %5933 = vst.msk [vmem:[#allocation3 + $0x250] sm:$0xff] %vm5858, %v5836
        %5934 = vst.msk [vmem:[#allocation3 + $0x258] sm:$0xff] %vm5858, %v5837
        %5935 = vst.msk [vmem:[#allocation3 + $0x260] sm:$0xff] %vm5858, %v5838
        %5936 = vst.msk [vmem:[#allocation3 + $0x268] sm:$0xff] %vm5858, %v5839
        %5937 = vst.msk [vmem:[#allocation3 + $0x270] sm:$0xff] %vm5858, %v5840
        %5938 = vst.msk [vmem:[#allocation3 + $0x278] sm:$0xff] %vm5858, %v5841
        %5939 = vst.msk [vmem:[#allocation3 + $0x280] sm:$0xff] %vm5858, %v5842
        %5940 = vst.msk [vmem:[#allocation3 + $0x288] sm:$0xff] %vm5858, %v5843
        %5941 = vst.msk [vmem:[#allocation3 + $0x290] sm:$0xff] %vm5858, %v5844
        %5942 = vst.msk [vmem:[#allocation3 + $0x298] sm:$0xff] %vm5858, %v5845
        %5943 = vst.msk [vmem:[#allocation3 + $0x2a0] sm:$0xff] %vm5858, %v5846
        %5944 = vst.msk [vmem:[#allocation3 + $0x2a8] sm:$0xff] %vm5858, %v5847
        %5945 = vst.msk [vmem:[#allocation3 + $0x2b0] sm:$0xff] %vm5858, %v5848
        %5946 = vst.msk [vmem:[#allocation3 + $0x2b8] sm:$0xff] %vm5858, %v5849
        %5947 = vst.msk [vmem:[#allocation3 + $0x2c0] sm:$0xff] %vm5858, %v5850
        %5948 = vst.msk [vmem:[#allocation3 + $0x2c8] sm:$0xff] %vm5858, %v5851
        %5949 = vst.msk [vmem:[#allocation3 + $0x2d0] sm:$0xff] %vm5858, %v5852
        %5950 = vst.msk [vmem:[#allocation3 + $0x2d8] sm:$0xff] %vm5858, %v5853
        %5951 = vst.msk [vmem:[#allocation3 + $0x2e0] sm:$0xff] %vm5858, %v5854
        %5952 = vst.msk [vmem:[#allocation3 + $0x2e8] sm:$0xff] %vm5858, %v5855
        %5953 = vst.msk [vmem:[#allocation3 + $0x2f0] sm:$0xff] %vm5858, %v5856
        %5954 = vst.msk [vmem:[#allocation3 + $0x2f8] sm:$0xff] %vm5858, %v5857
        %v5955 = vpack.c.bf16 %v4901, %v4899
        %v5956 = vpack.c.bf16 %v4905, %v4903
        %v5957 = vpack.c.bf16 %v4909, %v4907
        %v5958 = vpack.c.bf16 %v4913, %v4911
        %v5959 = vpack.c.bf16 %v4917, %v4915
        %v5960 = vpack.c.bf16 %v4921, %v4919
        %v5961 = vpack.c.bf16 %v4925, %v4923
        %v5962 = vpack.c.bf16 %v4929, %v4927
        %v5963 = vpack.c.bf16 %v4933, %v4931
        %v5964 = vpack.c.bf16 %v4937, %v4935
        %v5965 = vpack.c.bf16 %v4941, %v4939
        %v5966 = vpack.c.bf16 %v4945, %v4943
        %v5967 = vpack.c.bf16 %v4949, %v4947
        %v5968 = vpack.c.bf16 %v4953, %v4951
        %v5969 = vpack.c.bf16 %v4957, %v4955
        %v5970 = vpack.c.bf16 %v4961, %v4959
        %v5971 = vpack.c.bf16 %v4965, %v4963
        %v5972 = vpack.c.bf16 %v4969, %v4967
        %v5973 = vpack.c.bf16 %v4973, %v4971
        %v5974 = vpack.c.bf16 %v4977, %v4975
        %v5975 = vpack.c.bf16 %v4981, %v4979
        %v5976 = vpack.c.bf16 %v4985, %v4983
        %v5977 = vpack.c.bf16 %v4989, %v4987
        %v5978 = vpack.c.bf16 %v4993, %v4991
        %v5979 = vpack.c.bf16 %v4997, %v4995
        %v5980 = vpack.c.bf16 %v5001, %v4999
        %v5981 = vpack.c.bf16 %v5005, %v5003
        %v5982 = vpack.c.bf16 %v5009, %v5007
        %v5983 = vpack.c.bf16 %v5013, %v5011
        %v5984 = vpack.c.bf16 %v5017, %v5015
        %v5985 = vpack.c.bf16 %v5021, %v5019
        %v5986 = vpack.c.bf16 %v5025, %v5023
        %v5987 = vpack.c.bf16 %v5029, %v5027
        %v5988 = vpack.c.bf16 %v5033, %v5031
        %v5989 = vpack.c.bf16 %v5037, %v5035
        %v5990 = vpack.c.bf16 %v5041, %v5039
        %v5991 = vpack.c.bf16 %v5045, %v5043
        %v5992 = vpack.c.bf16 %v5049, %v5047
        %v5993 = vpack.c.bf16 %v5053, %v5051
        %v5994 = vpack.c.bf16 %v5057, %v5055
        %v5995 = vpack.c.bf16 %v5061, %v5059
        %v5996 = vpack.c.bf16 %v5065, %v5063
        %v5997 = vpack.c.bf16 %v5069, %v5067
        %v5998 = vpack.c.bf16 %v5073, %v5071
        %v5999 = vpack.c.bf16 %v5077, %v5075
        %v6000 = vpack.c.bf16 %v5081, %v5079
        %v6001 = vpack.c.bf16 %v5085, %v5083
        %v6002 = vpack.c.bf16 %v5089, %v5087
        %v6003 = vpack.c.bf16 %v5093, %v5091
        %v6004 = vpack.c.bf16 %v5097, %v5095
        %v6005 = vpack.c.bf16 %v5101, %v5099
        %v6006 = vpack.c.bf16 %v5105, %v5103
        %v6007 = vpack.c.bf16 %v5109, %v5107
        %v6008 = vpack.c.bf16 %v5113, %v5111
        %v6009 = vpack.c.bf16 %v5117, %v5115
        %v6010 = vpack.c.bf16 %v5121, %v5119
        %v6011 = vpack.c.bf16 %v5125, %v5123
        %v6012 = vpack.c.bf16 %v5129, %v5127
        %v6013 = vpack.c.bf16 %v5133, %v5131
        %v6014 = vpack.c.bf16 %v5137, %v5135
        %v6015 = vpack.c.bf16 %v5141, %v5139
        %v6016 = vpack.c.bf16 %v5145, %v5143
        %v6017 = vpack.c.bf16 %v5149, %v5147
        %v6018 = vpack.c.bf16 %v5153, %v5151
        %v6019 = vpack.c.bf16 %v5157, %v5155
        %v6020 = vpack.c.bf16 %v5161, %v5159
        %v6021 = vpack.c.bf16 %v5165, %v5163
        %v6022 = vpack.c.bf16 %v5169, %v5167
        %v6023 = vpack.c.bf16 %v5173, %v5171
        %v6024 = vpack.c.bf16 %v5177, %v5175
        %v6025 = vpack.c.bf16 %v5181, %v5179
        %v6026 = vpack.c.bf16 %v5185, %v5183
        %v6027 = vpack.c.bf16 %v5189, %v5187
        %v6028 = vpack.c.bf16 %v5193, %v5191
        %v6029 = vpack.c.bf16 %v5197, %v5195
        %v6030 = vpack.c.bf16 %v5201, %v5199
        %v6031 = vpack.c.bf16 %v5205, %v5203
        %v6032 = vpack.c.bf16 %v5209, %v5207
        %v6033 = vpack.c.bf16 %v5213, %v5211
        %v6034 = vpack.c.bf16 %v5217, %v5215
        %v6035 = vpack.c.bf16 %v5221, %v5219
        %v6036 = vpack.c.bf16 %v5225, %v5223
        %v6037 = vpack.c.bf16 %v5229, %v5227
        %v6038 = vpack.c.bf16 %v5233, %v5231
        %v6039 = vpack.c.bf16 %v5237, %v5235
        %v6040 = vpack.c.bf16 %v5241, %v5239
        %v6041 = vpack.c.bf16 %v5245, %v5243
        %v6042 = vpack.c.bf16 %v5249, %v5247
        %v6043 = vpack.c.bf16 %v5253, %v5251
        %v6044 = vpack.c.bf16 %v5257, %v5255
        %v6045 = vpack.c.bf16 %v5261, %v5259
        %v6046 = vpack.c.bf16 %v5265, %v5263
        %v6047 = vpack.c.bf16 %v5269, %v5267
        %v6048 = vpack.c.bf16 %v5273, %v5271
        %v6049 = vpack.c.bf16 %v5277, %v5275
        %v6050 = vpack.c.bf16 %v5281, %v5279
        %v6083 = vunpack.c.l.b16 %v5955
        %v6084 = vunpack.c.h.b16 %v5955
        %v6085 = vunpack.c.l.b16 %v5956
        %v6086 = vunpack.c.h.b16 %v5956
        %v6087 = vunpack.c.l.b16 %v5957
        %v6088 = vunpack.c.h.b16 %v5957
        %v6089 = vunpack.c.l.b16 %v5958
        %v6090 = vunpack.c.h.b16 %v5958
        %v6091 = vunpack.c.l.b16 %v5959
        %v6092 = vunpack.c.h.b16 %v5959
        %v6093 = vunpack.c.l.b16 %v5960
        %v6094 = vunpack.c.h.b16 %v5960
        %v6095 = vunpack.c.l.b16 %v5961
        %v6096 = vunpack.c.h.b16 %v5961
        %v6097 = vunpack.c.l.b16 %v5962
        %v6098 = vunpack.c.h.b16 %v5962
        %v6099 = vunpack.c.l.b16 %v5963
        %v6100 = vunpack.c.h.b16 %v5963
        %v6101 = vunpack.c.l.b16 %v5964
        %v6102 = vunpack.c.h.b16 %v5964
        %v6103 = vunpack.c.l.b16 %v5965
        %v6104 = vunpack.c.h.b16 %v5965
        %v6105 = vunpack.c.l.b16 %v5966
        %v6106 = vunpack.c.h.b16 %v5966
        %v6107 = vunpack.c.l.b16 %v5967
        %v6108 = vunpack.c.h.b16 %v5967
        %v6109 = vunpack.c.l.b16 %v5968
        %v6110 = vunpack.c.h.b16 %v5968
        %v6111 = vunpack.c.l.b16 %v5969
        %v6112 = vunpack.c.h.b16 %v5969
        %v6113 = vunpack.c.l.b16 %v5970
        %v6114 = vunpack.c.h.b16 %v5970
        %v6115 = vunpack.c.l.b16 %v5971
        %v6116 = vunpack.c.h.b16 %v5971
        %v6117 = vunpack.c.l.b16 %v5972
        %v6118 = vunpack.c.h.b16 %v5972
        %v6119 = vunpack.c.l.b16 %v5973
        %v6120 = vunpack.c.h.b16 %v5973
        %v6121 = vunpack.c.l.b16 %v5974
        %v6122 = vunpack.c.h.b16 %v5974
        %v6123 = vunpack.c.l.b16 %v5975
        %v6124 = vunpack.c.h.b16 %v5975
        %v6125 = vunpack.c.l.b16 %v5976
        %v6126 = vunpack.c.h.b16 %v5976
        %v6127 = vunpack.c.l.b16 %v5977
        %v6128 = vunpack.c.h.b16 %v5977
        %v6129 = vunpack.c.l.b16 %v5978
        %v6130 = vunpack.c.h.b16 %v5978
        %v6131 = vunpack.c.l.b16 %v5979
        %v6132 = vunpack.c.h.b16 %v5979
        %v6133 = vunpack.c.l.b16 %v5980
        %v6134 = vunpack.c.h.b16 %v5980
        %v6135 = vunpack.c.l.b16 %v5981
        %v6136 = vunpack.c.h.b16 %v5981
        %v6137 = vunpack.c.l.b16 %v5982
        %v6138 = vunpack.c.h.b16 %v5982
        %v6139 = vunpack.c.l.b16 %v5983
        %v6140 = vunpack.c.h.b16 %v5983
        %v6141 = vunpack.c.l.b16 %v5984
        %v6142 = vunpack.c.h.b16 %v5984
        %v6143 = vunpack.c.l.b16 %v5985
        %v6144 = vunpack.c.h.b16 %v5985
        %v6145 = vunpack.c.l.b16 %v5986
        %v6146 = vunpack.c.h.b16 %v5986
        %v6147 = vpack.c.b16 %v6085, %v6083
        %v6148 = vpack.c.b16 %v6086, %v6084
        %v6149 = vpack.c.b16 %v6089, %v6087
        %v6150 = vpack.c.b16 %v6090, %v6088
        %v6151 = vpack.c.b16 %v6093, %v6091
        %v6152 = vpack.c.b16 %v6094, %v6092
        %v6153 = vpack.c.b16 %v6097, %v6095
        %v6154 = vpack.c.b16 %v6098, %v6096
        %v6155 = vpack.c.b16 %v6101, %v6099
        %v6156 = vpack.c.b16 %v6102, %v6100
        %v6157 = vpack.c.b16 %v6105, %v6103
        %v6158 = vpack.c.b16 %v6106, %v6104
        %v6159 = vpack.c.b16 %v6109, %v6107
        %v6160 = vpack.c.b16 %v6110, %v6108
        %v6161 = vpack.c.b16 %v6113, %v6111
        %v6162 = vpack.c.b16 %v6114, %v6112
        %v6163 = vpack.c.b16 %v6117, %v6115
        %v6164 = vpack.c.b16 %v6118, %v6116
        %v6165 = vpack.c.b16 %v6121, %v6119
        %v6166 = vpack.c.b16 %v6122, %v6120
        %v6167 = vpack.c.b16 %v6125, %v6123
        %v6168 = vpack.c.b16 %v6126, %v6124
        %v6169 = vpack.c.b16 %v6129, %v6127
        %v6170 = vpack.c.b16 %v6130, %v6128
        %v6171 = vpack.c.b16 %v6133, %v6131
        %v6172 = vpack.c.b16 %v6134, %v6132
        %v6173 = vpack.c.b16 %v6137, %v6135
        %v6174 = vpack.c.b16 %v6138, %v6136
        %v6175 = vpack.c.b16 %v6141, %v6139
        %v6176 = vpack.c.b16 %v6142, %v6140
        %v6177 = vpack.c.b16 %v6145, %v6143
        %v6178 = vpack.c.b16 %v6146, %v6144
        %v6243 = vunpack.c.l.b16 %v2059
        %v6244 = vunpack.c.l.b16 %v2060
        %v6245 = vunpack.c.l.b16 %v2061
        %v6246 = vunpack.c.l.b16 %v2062
        %v6247 = vunpack.c.l.b16 %v2063
        %v6248 = vunpack.c.l.b16 %v2064
        %v6249 = vunpack.c.l.b16 %v2065
        %v6250 = vunpack.c.l.b16 %v2066
        %v6251 = vunpack.c.l.b16 %v2067
        %v6252 = vunpack.c.l.b16 %v2068
        %v6253 = vunpack.c.l.b16 %v2069
        %v6254 = vunpack.c.l.b16 %v2070
        %v6255 = vunpack.c.l.b16 %v2071
        %v6256 = vunpack.c.l.b16 %v2072
        %v6257 = vunpack.c.l.b16 %v2073
        %v6258 = vunpack.c.l.b16 %v2074
        %v6259 = vunpack.c.l.b16 %v2075
        %v6260 = vunpack.c.l.b16 %v2076
        %v6261 = vunpack.c.l.b16 %v2077
        %v6262 = vunpack.c.l.b16 %v2078
        %v6263 = vunpack.c.l.b16 %v2079
        %v6264 = vunpack.c.l.b16 %v2080
        %v6265 = vunpack.c.l.b16 %v2081
        %v6266 = vunpack.c.l.b16 %v2082
        %v6267 = vunpack.c.l.b16 %v2083
        %v6268 = vunpack.c.l.b16 %v2084
        %v6269 = vunpack.c.l.b16 %v2085
        %v6270 = vunpack.c.l.b16 %v2086
        %v6271 = vunpack.c.l.b16 %v2087
        %v6272 = vunpack.c.l.b16 %v2088
        %v6273 = vunpack.c.l.b16 %v2089
        %v6274 = vunpack.c.l.b16 %v2090
        %v6275 = vpack.c.b16 %v6244, %v6243
        %v6276 = vpack.c.b16 %v6246, %v6245
        %v6277 = vpack.c.b16 %v6248, %v6247
        %v6278 = vpack.c.b16 %v6250, %v6249
        %v6279 = vpack.c.b16 %v6252, %v6251
        %v6280 = vpack.c.b16 %v6254, %v6253
        %v6281 = vpack.c.b16 %v6256, %v6255
        %v6282 = vpack.c.b16 %v6258, %v6257
        %v6283 = vpack.c.b16 %v6260, %v6259
        %v6284 = vpack.c.b16 %v6262, %v6261
        %v6285 = vpack.c.b16 %v6264, %v6263
        %v6286 = vpack.c.b16 %v6266, %v6265
        %v6287 = vpack.c.b16 %v6268, %v6267
        %v6288 = vpack.c.b16 %v6270, %v6269
        %v6289 = vpack.c.b16 %v6272, %v6271
        %v6290 = vpack.c.b16 %v6274, %v6273
        %6307 = vmatpush.bf16.msra.mxu0 %v6282
        %6308 = vmatpush.bf16.msra.mxu0 %v6281
        %6309 = vmatpush.bf16.msra.mxu0 %v6280
        %6310 = vmatpush.bf16.msra.mxu0 %v6279
        %6311 = vmatpush.bf16.msra.mxu0 %v6278
        %6312 = vmatpush.bf16.msra.mxu0 %v6277
        %6313 = vmatpush.bf16.msra.mxu0 %v6276
        %6314 = vmatpush.bf16.msra.mxu0 %v6275
        %6315 = vmatmul.bf16.gmra.mxu0 %v6147
        %v6316 = vpop.f32.mrf.mxu0
        %v6317 = vadd.f32 0.0, %v6316
        %v6318 = vpop.f32.mrf.mxu0
        %v6319 = vadd.f32 0.0, %v6318
        %6320 = vmatmul.bf16.gmra.mxu0 %v6149
        %v6321 = vpop.f32.mrf.mxu0
        %v6322 = vadd.f32 0.0, %v6321
        %v6323 = vpop.f32.mrf.mxu0
        %v6324 = vadd.f32 0.0, %v6323
        %6325 = vmatmul.bf16.gmra.mxu0 %v6151
        %v6326 = vpop.f32.mrf.mxu0
        %v6327 = vadd.f32 0.0, %v6326
        %v6328 = vpop.f32.mrf.mxu0
        %v6329 = vadd.f32 0.0, %v6328
        %6330 = vmatmul.bf16.gmra.mxu0 %v6153
        %v6331 = vpop.f32.mrf.mxu0
        %v6332 = vadd.f32 0.0, %v6331
        %v6333 = vpop.f32.mrf.mxu0
        %v6334 = vadd.f32 0.0, %v6333
        %6335 = vmatmul.bf16.gmra.mxu0 %v6155
        %v6336 = vpop.f32.mrf.mxu0
        %v6337 = vadd.f32 0.0, %v6336
        %v6338 = vpop.f32.mrf.mxu0
        %v6339 = vadd.f32 0.0, %v6338
        %6340 = vmatmul.bf16.gmra.mxu0 %v6157
        %v6341 = vpop.f32.mrf.mxu0
        %v6342 = vadd.f32 0.0, %v6341
        %v6343 = vpop.f32.mrf.mxu0
        %v6344 = vadd.f32 0.0, %v6343
        %6345 = vmatmul.bf16.gmra.mxu0 %v6159
        %v6346 = vpop.f32.mrf.mxu0
        %v6347 = vadd.f32 0.0, %v6346
        %v6348 = vpop.f32.mrf.mxu0
        %v6349 = vadd.f32 0.0, %v6348
        %6350 = vmatmul.bf16.gmra.mxu0 %v6161
        %v6351 = vpop.f32.mrf.mxu0
        %v6352 = vadd.f32 0.0, %v6351
        %v6353 = vpop.f32.mrf.mxu0
        %v6354 = vadd.f32 0.0, %v6353
        %6355 = vmatmul.bf16.gmra.mxu0 %v6163
        %v6356 = vpop.f32.mrf.mxu0
        %v6357 = vadd.f32 0.0, %v6356
        %v6358 = vpop.f32.mrf.mxu0
        %v6359 = vadd.f32 0.0, %v6358
        %6360 = vmatmul.bf16.gmra.mxu0 %v6165
        %v6361 = vpop.f32.mrf.mxu0
        %v6362 = vadd.f32 0.0, %v6361
        %v6363 = vpop.f32.mrf.mxu0
        %v6364 = vadd.f32 0.0, %v6363
        %6365 = vmatmul.bf16.gmra.mxu0 %v6167
        %v6366 = vpop.f32.mrf.mxu0
        %v6367 = vadd.f32 0.0, %v6366
        %v6368 = vpop.f32.mrf.mxu0
        %v6369 = vadd.f32 0.0, %v6368
        %6370 = vmatmul.bf16.gmra.mxu0 %v6169
        %v6371 = vpop.f32.mrf.mxu0
        %v6372 = vadd.f32 0.0, %v6371
        %v6373 = vpop.f32.mrf.mxu0
        %v6374 = vadd.f32 0.0, %v6373
        %6375 = vmatmul.bf16.gmra.mxu0 %v6171
        %v6376 = vpop.f32.mrf.mxu0
        %v6377 = vadd.f32 0.0, %v6376
        %v6378 = vpop.f32.mrf.mxu0
        %v6379 = vadd.f32 0.0, %v6378
        %6380 = vmatmul.bf16.gmra.mxu0 %v6173
        %v6381 = vpop.f32.mrf.mxu0
        %v6382 = vadd.f32 0.0, %v6381
        %v6383 = vpop.f32.mrf.mxu0
        %v6384 = vadd.f32 0.0, %v6383
        %6385 = vmatmul.bf16.gmra.mxu0 %v6175
        %v6386 = vpop.f32.mrf.mxu0
        %v6387 = vadd.f32 0.0, %v6386
        %v6388 = vpop.f32.mrf.mxu0
        %v6389 = vadd.f32 0.0, %v6388
        %6390 = vmatmul.bf16.gmra.mxu0 %v6177
        %v6391 = vpop.f32.mrf.mxu0
        %v6392 = vadd.f32 0.0, %v6391
        %v6393 = vpop.f32.mrf.mxu0
        %v6394 = vadd.f32 0.0, %v6393
        %6395 = vdwg.mxu0
        %6396 = vmatpush.bf16.msra.mxu0 %v6290
        %6397 = vmatpush.bf16.msra.mxu0 %v6289
        %6398 = vmatpush.bf16.msra.mxu0 %v6288
        %6399 = vmatpush.bf16.msra.mxu0 %v6287
        %6400 = vmatpush.bf16.msra.mxu0 %v6286
        %6401 = vmatpush.bf16.msra.mxu0 %v6285
        %6402 = vmatpush.bf16.msra.mxu0 %v6284
        %6403 = vmatpush.bf16.msra.mxu0 %v6283
        %6404 = vmatmul.bf16.gmra.mxu0 %v6148
        %v6405 = vpop.f32.mrf.mxu0
        %v6406 = vadd.f32 %v6317, %v6405
        %v6407 = vpop.f32.mrf.mxu0
        %v6408 = vadd.f32 %v6319, %v6407
        %6409 = vmatmul.bf16.gmra.mxu0 %v6150
        %v6410 = vpop.f32.mrf.mxu0
        %v6411 = vadd.f32 %v6322, %v6410
        %v6412 = vpop.f32.mrf.mxu0
        %v6413 = vadd.f32 %v6324, %v6412
        %6414 = vmatmul.bf16.gmra.mxu0 %v6152
        %v6415 = vpop.f32.mrf.mxu0
        %v6416 = vadd.f32 %v6327, %v6415
        %v6417 = vpop.f32.mrf.mxu0
        %v6418 = vadd.f32 %v6329, %v6417
        %6419 = vmatmul.bf16.gmra.mxu0 %v6154
        %v6420 = vpop.f32.mrf.mxu0
        %v6421 = vadd.f32 %v6332, %v6420
        %v6422 = vpop.f32.mrf.mxu0
        %v6423 = vadd.f32 %v6334, %v6422
        %6424 = vmatmul.bf16.gmra.mxu0 %v6156
        %v6425 = vpop.f32.mrf.mxu0
        %v6426 = vadd.f32 %v6337, %v6425
        %v6427 = vpop.f32.mrf.mxu0
        %v6428 = vadd.f32 %v6339, %v6427
        %6429 = vmatmul.bf16.gmra.mxu0 %v6158
        %v6430 = vpop.f32.mrf.mxu0
        %v6431 = vadd.f32 %v6342, %v6430
        %v6432 = vpop.f32.mrf.mxu0
        %v6433 = vadd.f32 %v6344, %v6432
        %6434 = vmatmul.bf16.gmra.mxu0 %v6160
        %v6435 = vpop.f32.mrf.mxu0
        %v6436 = vadd.f32 %v6347, %v6435
        %v6437 = vpop.f32.mrf.mxu0
        %v6438 = vadd.f32 %v6349, %v6437
        %6439 = vmatmul.bf16.gmra.mxu0 %v6162
        %v6440 = vpop.f32.mrf.mxu0
        %v6441 = vadd.f32 %v6352, %v6440
        %v6442 = vpop.f32.mrf.mxu0
        %v6443 = vadd.f32 %v6354, %v6442
        %6444 = vmatmul.bf16.gmra.mxu0 %v6164
        %v6445 = vpop.f32.mrf.mxu0
        %v6446 = vadd.f32 %v6357, %v6445
        %v6447 = vpop.f32.mrf.mxu0
        %v6448 = vadd.f32 %v6359, %v6447
        %6449 = vmatmul.bf16.gmra.mxu0 %v6166
        %v6450 = vpop.f32.mrf.mxu0
        %v6451 = vadd.f32 %v6362, %v6450
        %v6452 = vpop.f32.mrf.mxu0
        %v6453 = vadd.f32 %v6364, %v6452
        %6454 = vmatmul.bf16.gmra.mxu0 %v6168
        %v6455 = vpop.f32.mrf.mxu0
        %v6456 = vadd.f32 %v6367, %v6455
        %v6457 = vpop.f32.mrf.mxu0
        %v6458 = vadd.f32 %v6369, %v6457
        %6459 = vmatmul.bf16.gmra.mxu0 %v6170
        %v6460 = vpop.f32.mrf.mxu0
        %v6461 = vadd.f32 %v6372, %v6460
        %v6462 = vpop.f32.mrf.mxu0
        %v6463 = vadd.f32 %v6374, %v6462
        %6464 = vmatmul.bf16.gmra.mxu0 %v6172
        %v6465 = vpop.f32.mrf.mxu0
        %v6466 = vadd.f32 %v6377, %v6465
        %v6467 = vpop.f32.mrf.mxu0
        %v6468 = vadd.f32 %v6379, %v6467
        %6469 = vmatmul.bf16.gmra.mxu0 %v6174
        %v6470 = vpop.f32.mrf.mxu0
        %v6471 = vadd.f32 %v6382, %v6470
        %v6472 = vpop.f32.mrf.mxu0
        %v6473 = vadd.f32 %v6384, %v6472
        %6474 = vmatmul.bf16.gmra.mxu0 %v6176
        %v6475 = vpop.f32.mrf.mxu0
        %v6476 = vadd.f32 %v6387, %v6475
        %v6477 = vpop.f32.mrf.mxu0
        %v6478 = vadd.f32 %v6389, %v6477
        %6479 = vmatmul.bf16.gmra.mxu0 %v6178
        %v6480 = vpop.f32.mrf.mxu0
        %v6481 = vadd.f32 %v6392, %v6480
        %v6482 = vpop.f32.mrf.mxu0
        %v6483 = vadd.f32 %v6394, %v6482
        %6484 = vdwg.mxu0
        %v6517 = vunpack.c.l.b16 %v5987
        %v6518 = vunpack.c.h.b16 %v5987
        %v6519 = vunpack.c.l.b16 %v5988
        %v6520 = vunpack.c.h.b16 %v5988
        %v6521 = vunpack.c.l.b16 %v5989
        %v6522 = vunpack.c.h.b16 %v5989
        %v6523 = vunpack.c.l.b16 %v5990
        %v6524 = vunpack.c.h.b16 %v5990
        %v6525 = vunpack.c.l.b16 %v5991
        %v6526 = vunpack.c.h.b16 %v5991
        %v6527 = vunpack.c.l.b16 %v5992
        %v6528 = vunpack.c.h.b16 %v5992
        %v6529 = vunpack.c.l.b16 %v5993
        %v6530 = vunpack.c.h.b16 %v5993
        %v6531 = vunpack.c.l.b16 %v5994
        %v6532 = vunpack.c.h.b16 %v5994
        %v6533 = vunpack.c.l.b16 %v5995
        %v6534 = vunpack.c.h.b16 %v5995
        %v6535 = vunpack.c.l.b16 %v5996
        %v6536 = vunpack.c.h.b16 %v5996
        %v6537 = vunpack.c.l.b16 %v5997
        %v6538 = vunpack.c.h.b16 %v5997
        %v6539 = vunpack.c.l.b16 %v5998
        %v6540 = vunpack.c.h.b16 %v5998
        %v6541 = vunpack.c.l.b16 %v5999
        %v6542 = vunpack.c.h.b16 %v5999
        %v6543 = vunpack.c.l.b16 %v6000
        %v6544 = vunpack.c.h.b16 %v6000
        %v6545 = vunpack.c.l.b16 %v6001
        %v6546 = vunpack.c.h.b16 %v6001
        %v6547 = vunpack.c.l.b16 %v6002
        %v6548 = vunpack.c.h.b16 %v6002
        %v6549 = vunpack.c.l.b16 %v6003
        %v6550 = vunpack.c.h.b16 %v6003
        %v6551 = vunpack.c.l.b16 %v6004
        %v6552 = vunpack.c.h.b16 %v6004
        %v6553 = vunpack.c.l.b16 %v6005
        %v6554 = vunpack.c.h.b16 %v6005
        %v6555 = vunpack.c.l.b16 %v6006
        %v6556 = vunpack.c.h.b16 %v6006
        %v6557 = vunpack.c.l.b16 %v6007
        %v6558 = vunpack.c.h.b16 %v6007
        %v6559 = vunpack.c.l.b16 %v6008
        %v6560 = vunpack.c.h.b16 %v6008
        %v6561 = vunpack.c.l.b16 %v6009
        %v6562 = vunpack.c.h.b16 %v6009
        %v6563 = vunpack.c.l.b16 %v6010
        %v6564 = vunpack.c.h.b16 %v6010
        %v6565 = vunpack.c.l.b16 %v6011
        %v6566 = vunpack.c.h.b16 %v6011
        %v6567 = vunpack.c.l.b16 %v6012
        %v6568 = vunpack.c.h.b16 %v6012
        %v6569 = vunpack.c.l.b16 %v6013
        %v6570 = vunpack.c.h.b16 %v6013
        %v6571 = vunpack.c.l.b16 %v6014
        %v6572 = vunpack.c.h.b16 %v6014
        %v6573 = vunpack.c.l.b16 %v6015
        %v6574 = vunpack.c.h.b16 %v6015
        %v6575 = vunpack.c.l.b16 %v6016
        %v6576 = vunpack.c.h.b16 %v6016
        %v6577 = vunpack.c.l.b16 %v6017
        %v6578 = vunpack.c.h.b16 %v6017
        %v6579 = vunpack.c.l.b16 %v6018
        %v6580 = vunpack.c.h.b16 %v6018
        %v6581 = vpack.c.b16 %v6519, %v6517
        %v6582 = vpack.c.b16 %v6520, %v6518
        %v6583 = vpack.c.b16 %v6523, %v6521
        %v6584 = vpack.c.b16 %v6524, %v6522
        %v6585 = vpack.c.b16 %v6527, %v6525
        %v6586 = vpack.c.b16 %v6528, %v6526
        %v6587 = vpack.c.b16 %v6531, %v6529
        %v6588 = vpack.c.b16 %v6532, %v6530
        %v6589 = vpack.c.b16 %v6535, %v6533
        %v6590 = vpack.c.b16 %v6536, %v6534
        %v6591 = vpack.c.b16 %v6539, %v6537
        %v6592 = vpack.c.b16 %v6540, %v6538
        %v6593 = vpack.c.b16 %v6543, %v6541
        %v6594 = vpack.c.b16 %v6544, %v6542
        %v6595 = vpack.c.b16 %v6547, %v6545
        %v6596 = vpack.c.b16 %v6548, %v6546
        %v6597 = vpack.c.b16 %v6551, %v6549
        %v6598 = vpack.c.b16 %v6552, %v6550
        %v6599 = vpack.c.b16 %v6555, %v6553
        %v6600 = vpack.c.b16 %v6556, %v6554
        %v6601 = vpack.c.b16 %v6559, %v6557
        %v6602 = vpack.c.b16 %v6560, %v6558
        %v6603 = vpack.c.b16 %v6563, %v6561
        %v6604 = vpack.c.b16 %v6564, %v6562
        %v6605 = vpack.c.b16 %v6567, %v6565
        %v6606 = vpack.c.b16 %v6568, %v6566
        %v6607 = vpack.c.b16 %v6571, %v6569
        %v6608 = vpack.c.b16 %v6572, %v6570
        %v6609 = vpack.c.b16 %v6575, %v6573
        %v6610 = vpack.c.b16 %v6576, %v6574
        %v6611 = vpack.c.b16 %v6579, %v6577
        %v6612 = vpack.c.b16 %v6580, %v6578
        %v6677 = vunpack.c.l.b16 %v2091
        %v6678 = vunpack.c.l.b16 %v2092
        %v6679 = vunpack.c.l.b16 %v2093
        %v6680 = vunpack.c.l.b16 %v2094
        %v6681 = vunpack.c.l.b16 %v2095
        %v6682 = vunpack.c.l.b16 %v2096
        %v6683 = vunpack.c.l.b16 %v2097
        %v6684 = vunpack.c.l.b16 %v2098
        %v6685 = vunpack.c.l.b16 %v2099
        %v6686 = vunpack.c.l.b16 %v2100
        %v6687 = vunpack.c.l.b16 %v2101
        %v6688 = vunpack.c.l.b16 %v2102
        %v6689 = vunpack.c.l.b16 %v2103
        %v6690 = vunpack.c.l.b16 %v2104
        %v6691 = vunpack.c.l.b16 %v2105
        %v6692 = vunpack.c.l.b16 %v2106
        %v6693 = vunpack.c.l.b16 %v2107
        %v6694 = vunpack.c.l.b16 %v2108
        %v6695 = vunpack.c.l.b16 %v2109
        %v6696 = vunpack.c.l.b16 %v2110
        %v6697 = vunpack.c.l.b16 %v2111
        %v6698 = vunpack.c.l.b16 %v2112
        %v6699 = vunpack.c.l.b16 %v2113
        %v6700 = vunpack.c.l.b16 %v2114
        %v6701 = vunpack.c.l.b16 %v2115
        %v6702 = vunpack.c.l.b16 %v2116
        %v6703 = vunpack.c.l.b16 %v2117
        %v6704 = vunpack.c.l.b16 %v2118
        %v6705 = vunpack.c.l.b16 %v2119
        %v6706 = vunpack.c.l.b16 %v2120
        %v6707 = vunpack.c.l.b16 %v2121
        %v6708 = vunpack.c.l.b16 %v2122
        %v6709 = vpack.c.b16 %v6678, %v6677
        %v6710 = vpack.c.b16 %v6680, %v6679
        %v6711 = vpack.c.b16 %v6682, %v6681
        %v6712 = vpack.c.b16 %v6684, %v6683
        %v6713 = vpack.c.b16 %v6686, %v6685
        %v6714 = vpack.c.b16 %v6688, %v6687
        %v6715 = vpack.c.b16 %v6690, %v6689
        %v6716 = vpack.c.b16 %v6692, %v6691
        %v6717 = vpack.c.b16 %v6694, %v6693
        %v6718 = vpack.c.b16 %v6696, %v6695
        %v6719 = vpack.c.b16 %v6698, %v6697
        %v6720 = vpack.c.b16 %v6700, %v6699
        %v6721 = vpack.c.b16 %v6702, %v6701
        %v6722 = vpack.c.b16 %v6704, %v6703
        %v6723 = vpack.c.b16 %v6706, %v6705
        %v6724 = vpack.c.b16 %v6708, %v6707
        %6741 = vmatpush.bf16.msra.mxu0 %v6716
        %6742 = vmatpush.bf16.msra.mxu0 %v6715
        %6743 = vmatpush.bf16.msra.mxu0 %v6714
        %6744 = vmatpush.bf16.msra.mxu0 %v6713
        %6745 = vmatpush.bf16.msra.mxu0 %v6712
        %6746 = vmatpush.bf16.msra.mxu0 %v6711
        %6747 = vmatpush.bf16.msra.mxu0 %v6710
        %6748 = vmatpush.bf16.msra.mxu0 %v6709
        %6749 = vmatmul.bf16.gmra.mxu0 %v6581
        %v6750 = vpop.f32.mrf.mxu0
        %v6751 = vadd.f32 0.0, %v6750
        %v6752 = vpop.f32.mrf.mxu0
        %v6753 = vadd.f32 0.0, %v6752
        %6754 = vmatmul.bf16.gmra.mxu0 %v6583
        %v6755 = vpop.f32.mrf.mxu0
        %v6756 = vadd.f32 0.0, %v6755
        %v6757 = vpop.f32.mrf.mxu0
        %v6758 = vadd.f32 0.0, %v6757
        %6759 = vmatmul.bf16.gmra.mxu0 %v6585
        %v6760 = vpop.f32.mrf.mxu0
        %v6761 = vadd.f32 0.0, %v6760
        %v6762 = vpop.f32.mrf.mxu0
        %v6763 = vadd.f32 0.0, %v6762
        %6764 = vmatmul.bf16.gmra.mxu0 %v6587
        %v6765 = vpop.f32.mrf.mxu0
        %v6766 = vadd.f32 0.0, %v6765
        %v6767 = vpop.f32.mrf.mxu0
        %v6768 = vadd.f32 0.0, %v6767
        %6769 = vmatmul.bf16.gmra.mxu0 %v6589
        %v6770 = vpop.f32.mrf.mxu0
        %v6771 = vadd.f32 0.0, %v6770
        %v6772 = vpop.f32.mrf.mxu0
        %v6773 = vadd.f32 0.0, %v6772
        %6774 = vmatmul.bf16.gmra.mxu0 %v6591
        %v6775 = vpop.f32.mrf.mxu0
        %v6776 = vadd.f32 0.0, %v6775
        %v6777 = vpop.f32.mrf.mxu0
        %v6778 = vadd.f32 0.0, %v6777
        %6779 = vmatmul.bf16.gmra.mxu0 %v6593
        %v6780 = vpop.f32.mrf.mxu0
        %v6781 = vadd.f32 0.0, %v6780
        %v6782 = vpop.f32.mrf.mxu0
        %v6783 = vadd.f32 0.0, %v6782
        %6784 = vmatmul.bf16.gmra.mxu0 %v6595
        %v6785 = vpop.f32.mrf.mxu0
        %v6786 = vadd.f32 0.0, %v6785
        %v6787 = vpop.f32.mrf.mxu0
        %v6788 = vadd.f32 0.0, %v6787
        %6789 = vmatmul.bf16.gmra.mxu0 %v6597
        %v6790 = vpop.f32.mrf.mxu0
        %v6791 = vadd.f32 0.0, %v6790
        %v6792 = vpop.f32.mrf.mxu0
        %v6793 = vadd.f32 0.0, %v6792
        %6794 = vmatmul.bf16.gmra.mxu0 %v6599
        %v6795 = vpop.f32.mrf.mxu0
        %v6796 = vadd.f32 0.0, %v6795
        %v6797 = vpop.f32.mrf.mxu0
        %v6798 = vadd.f32 0.0, %v6797
        %6799 = vmatmul.bf16.gmra.mxu0 %v6601
        %v6800 = vpop.f32.mrf.mxu0
        %v6801 = vadd.f32 0.0, %v6800
        %v6802 = vpop.f32.mrf.mxu0
        %v6803 = vadd.f32 0.0, %v6802
        %6804 = vmatmul.bf16.gmra.mxu0 %v6603
        %v6805 = vpop.f32.mrf.mxu0
        %v6806 = vadd.f32 0.0, %v6805
        %v6807 = vpop.f32.mrf.mxu0
        %v6808 = vadd.f32 0.0, %v6807
        %6809 = vmatmul.bf16.gmra.mxu0 %v6605
        %v6810 = vpop.f32.mrf.mxu0
        %v6811 = vadd.f32 0.0, %v6810
        %v6812 = vpop.f32.mrf.mxu0
        %v6813 = vadd.f32 0.0, %v6812
        %6814 = vmatmul.bf16.gmra.mxu0 %v6607
        %v6815 = vpop.f32.mrf.mxu0
        %v6816 = vadd.f32 0.0, %v6815
        %v6817 = vpop.f32.mrf.mxu0
        %v6818 = vadd.f32 0.0, %v6817
        %6819 = vmatmul.bf16.gmra.mxu0 %v6609
        %v6820 = vpop.f32.mrf.mxu0
        %v6821 = vadd.f32 0.0, %v6820
        %v6822 = vpop.f32.mrf.mxu0
        %v6823 = vadd.f32 0.0, %v6822
        %6824 = vmatmul.bf16.gmra.mxu0 %v6611
        %v6825 = vpop.f32.mrf.mxu0
        %v6826 = vadd.f32 0.0, %v6825
        %v6827 = vpop.f32.mrf.mxu0
        %v6828 = vadd.f32 0.0, %v6827
        %6829 = vdwg.mxu0
        %6830 = vmatpush.bf16.msra.mxu0 %v6724
        %6831 = vmatpush.bf16.msra.mxu0 %v6723
        %6832 = vmatpush.bf16.msra.mxu0 %v6722
        %6833 = vmatpush.bf16.msra.mxu0 %v6721
        %6834 = vmatpush.bf16.msra.mxu0 %v6720
        %6835 = vmatpush.bf16.msra.mxu0 %v6719
        %6836 = vmatpush.bf16.msra.mxu0 %v6718
        %6837 = vmatpush.bf16.msra.mxu0 %v6717
        %6838 = vmatmul.bf16.gmra.mxu0 %v6582
        %v6839 = vpop.f32.mrf.mxu0
        %v6840 = vadd.f32 %v6751, %v6839
        %v6841 = vpop.f32.mrf.mxu0
        %v6842 = vadd.f32 %v6753, %v6841
        %6843 = vmatmul.bf16.gmra.mxu0 %v6584
        %v6844 = vpop.f32.mrf.mxu0
        %v6845 = vadd.f32 %v6756, %v6844
        %v6846 = vpop.f32.mrf.mxu0
        %v6847 = vadd.f32 %v6758, %v6846
        %6848 = vmatmul.bf16.gmra.mxu0 %v6586
        %v6849 = vpop.f32.mrf.mxu0
        %v6850 = vadd.f32 %v6761, %v6849
        %v6851 = vpop.f32.mrf.mxu0
        %v6852 = vadd.f32 %v6763, %v6851
        %6853 = vmatmul.bf16.gmra.mxu0 %v6588
        %v6854 = vpop.f32.mrf.mxu0
        %v6855 = vadd.f32 %v6766, %v6854
        %v6856 = vpop.f32.mrf.mxu0
        %v6857 = vadd.f32 %v6768, %v6856
        %6858 = vmatmul.bf16.gmra.mxu0 %v6590
        %v6859 = vpop.f32.mrf.mxu0
        %v6860 = vadd.f32 %v6771, %v6859
        %v6861 = vpop.f32.mrf.mxu0
        %v6862 = vadd.f32 %v6773, %v6861
        %6863 = vmatmul.bf16.gmra.mxu0 %v6592
        %v6864 = vpop.f32.mrf.mxu0
        %v6865 = vadd.f32 %v6776, %v6864
        %v6866 = vpop.f32.mrf.mxu0
        %v6867 = vadd.f32 %v6778, %v6866
        %6868 = vmatmul.bf16.gmra.mxu0 %v6594
        %v6869 = vpop.f32.mrf.mxu0
        %v6870 = vadd.f32 %v6781, %v6869
        %v6871 = vpop.f32.mrf.mxu0
        %v6872 = vadd.f32 %v6783, %v6871
        %6873 = vmatmul.bf16.gmra.mxu0 %v6596
        %v6874 = vpop.f32.mrf.mxu0
        %v6875 = vadd.f32 %v6786, %v6874
        %v6876 = vpop.f32.mrf.mxu0
        %v6877 = vadd.f32 %v6788, %v6876
        %6878 = vmatmul.bf16.gmra.mxu0 %v6598
        %v6879 = vpop.f32.mrf.mxu0
        %v6880 = vadd.f32 %v6791, %v6879
        %v6881 = vpop.f32.mrf.mxu0
        %v6882 = vadd.f32 %v6793, %v6881
        %6883 = vmatmul.bf16.gmra.mxu0 %v6600
        %v6884 = vpop.f32.mrf.mxu0
        %v6885 = vadd.f32 %v6796, %v6884
        %v6886 = vpop.f32.mrf.mxu0
        %v6887 = vadd.f32 %v6798, %v6886
        %6888 = vmatmul.bf16.gmra.mxu0 %v6602
        %v6889 = vpop.f32.mrf.mxu0
        %v6890 = vadd.f32 %v6801, %v6889
        %v6891 = vpop.f32.mrf.mxu0
        %v6892 = vadd.f32 %v6803, %v6891
        %6893 = vmatmul.bf16.gmra.mxu0 %v6604
        %v6894 = vpop.f32.mrf.mxu0
        %v6895 = vadd.f32 %v6806, %v6894
        %v6896 = vpop.f32.mrf.mxu0
        %v6897 = vadd.f32 %v6808, %v6896
        %6898 = vmatmul.bf16.gmra.mxu0 %v6606
        %v6899 = vpop.f32.mrf.mxu0
        %v6900 = vadd.f32 %v6811, %v6899
        %v6901 = vpop.f32.mrf.mxu0
        %v6902 = vadd.f32 %v6813, %v6901
        %6903 = vmatmul.bf16.gmra.mxu0 %v6608
        %v6904 = vpop.f32.mrf.mxu0
        %v6905 = vadd.f32 %v6816, %v6904
        %v6906 = vpop.f32.mrf.mxu0
        %v6907 = vadd.f32 %v6818, %v6906
        %6908 = vmatmul.bf16.gmra.mxu0 %v6610
        %v6909 = vpop.f32.mrf.mxu0
        %v6910 = vadd.f32 %v6821, %v6909
        %v6911 = vpop.f32.mrf.mxu0
        %v6912 = vadd.f32 %v6823, %v6911
        %6913 = vmatmul.bf16.gmra.mxu0 %v6612
        %v6914 = vpop.f32.mrf.mxu0
        %v6915 = vadd.f32 %v6826, %v6914
        %v6916 = vpop.f32.mrf.mxu0
        %v6917 = vadd.f32 %v6828, %v6916
        %6918 = vdwg.mxu0
        %v6951 = vunpack.c.l.b16 %v6019
        %v6952 = vunpack.c.h.b16 %v6019
        %v6953 = vunpack.c.l.b16 %v6020
        %v6954 = vunpack.c.h.b16 %v6020
        %v6955 = vunpack.c.l.b16 %v6021
        %v6956 = vunpack.c.h.b16 %v6021
        %v6957 = vunpack.c.l.b16 %v6022
        %v6958 = vunpack.c.h.b16 %v6022
        %v6959 = vunpack.c.l.b16 %v6023
        %v6960 = vunpack.c.h.b16 %v6023
        %v6961 = vunpack.c.l.b16 %v6024
        %v6962 = vunpack.c.h.b16 %v6024
        %v6963 = vunpack.c.l.b16 %v6025
        %v6964 = vunpack.c.h.b16 %v6025
        %v6965 = vunpack.c.l.b16 %v6026
        %v6966 = vunpack.c.h.b16 %v6026
        %v6967 = vunpack.c.l.b16 %v6027
        %v6968 = vunpack.c.h.b16 %v6027
        %v6969 = vunpack.c.l.b16 %v6028
        %v6970 = vunpack.c.h.b16 %v6028
        %v6971 = vunpack.c.l.b16 %v6029
        %v6972 = vunpack.c.h.b16 %v6029
        %v6973 = vunpack.c.l.b16 %v6030
        %v6974 = vunpack.c.h.b16 %v6030
        %v6975 = vunpack.c.l.b16 %v6031
        %v6976 = vunpack.c.h.b16 %v6031
        %v6977 = vunpack.c.l.b16 %v6032
        %v6978 = vunpack.c.h.b16 %v6032
        %v6979 = vunpack.c.l.b16 %v6033
        %v6980 = vunpack.c.h.b16 %v6033
        %v6981 = vunpack.c.l.b16 %v6034
        %v6982 = vunpack.c.h.b16 %v6034
        %v6983 = vunpack.c.l.b16 %v6035
        %v6984 = vunpack.c.h.b16 %v6035
        %v6985 = vunpack.c.l.b16 %v6036
        %v6986 = vunpack.c.h.b16 %v6036
        %v6987 = vunpack.c.l.b16 %v6037
        %v6988 = vunpack.c.h.b16 %v6037
        %v6989 = vunpack.c.l.b16 %v6038
        %v6990 = vunpack.c.h.b16 %v6038
        %v6991 = vunpack.c.l.b16 %v6039
        %v6992 = vunpack.c.h.b16 %v6039
        %v6993 = vunpack.c.l.b16 %v6040
        %v6994 = vunpack.c.h.b16 %v6040
        %v6995 = vunpack.c.l.b16 %v6041
        %v6996 = vunpack.c.h.b16 %v6041
        %v6997 = vunpack.c.l.b16 %v6042
        %v6998 = vunpack.c.h.b16 %v6042
        %v6999 = vunpack.c.l.b16 %v6043
        %v7000 = vunpack.c.h.b16 %v6043
        %v7001 = vunpack.c.l.b16 %v6044
        %v7002 = vunpack.c.h.b16 %v6044
        %v7003 = vunpack.c.l.b16 %v6045
        %v7004 = vunpack.c.h.b16 %v6045
        %v7005 = vunpack.c.l.b16 %v6046
        %v7006 = vunpack.c.h.b16 %v6046
        %v7007 = vunpack.c.l.b16 %v6047
        %v7008 = vunpack.c.h.b16 %v6047
        %v7009 = vunpack.c.l.b16 %v6048
        %v7010 = vunpack.c.h.b16 %v6048
        %v7011 = vunpack.c.l.b16 %v6049
        %v7012 = vunpack.c.h.b16 %v6049
        %v7013 = vunpack.c.l.b16 %v6050
        %v7014 = vunpack.c.h.b16 %v6050
        %v7015 = vpack.c.b16 %v6953, %v6951
        %v7016 = vpack.c.b16 %v6954, %v6952
        %v7017 = vpack.c.b16 %v6957, %v6955
        %v7018 = vpack.c.b16 %v6958, %v6956
        %v7019 = vpack.c.b16 %v6961, %v6959
        %v7020 = vpack.c.b16 %v6962, %v6960
        %v7021 = vpack.c.b16 %v6965, %v6963
        %v7022 = vpack.c.b16 %v6966, %v6964
        %v7023 = vpack.c.b16 %v6969, %v6967
        %v7024 = vpack.c.b16 %v6970, %v6968
        %v7025 = vpack.c.b16 %v6973, %v6971
        %v7026 = vpack.c.b16 %v6974, %v6972
        %v7027 = vpack.c.b16 %v6977, %v6975
        %v7028 = vpack.c.b16 %v6978, %v6976
        %v7029 = vpack.c.b16 %v6981, %v6979
        %v7030 = vpack.c.b16 %v6982, %v6980
        %v7031 = vpack.c.b16 %v6985, %v6983
        %v7032 = vpack.c.b16 %v6986, %v6984
        %v7033 = vpack.c.b16 %v6989, %v6987
        %v7034 = vpack.c.b16 %v6990, %v6988
        %v7035 = vpack.c.b16 %v6993, %v6991
        %v7036 = vpack.c.b16 %v6994, %v6992
        %v7037 = vpack.c.b16 %v6997, %v6995
        %v7038 = vpack.c.b16 %v6998, %v6996
        %v7039 = vpack.c.b16 %v7001, %v6999
        %v7040 = vpack.c.b16 %v7002, %v7000
        %v7041 = vpack.c.b16 %v7005, %v7003
        %v7042 = vpack.c.b16 %v7006, %v7004
        %v7043 = vpack.c.b16 %v7009, %v7007
        %v7044 = vpack.c.b16 %v7010, %v7008
        %v7045 = vpack.c.b16 %v7013, %v7011
        %v7046 = vpack.c.b16 %v7014, %v7012
        %v7111 = vunpack.c.l.b16 %v2123
        %v7112 = vunpack.c.l.b16 %v2124
        %v7113 = vunpack.c.l.b16 %v2125
        %v7114 = vunpack.c.l.b16 %v2126
        %v7115 = vunpack.c.l.b16 %v2127
        %v7116 = vunpack.c.l.b16 %v2128
        %v7117 = vunpack.c.l.b16 %v2129
        %v7118 = vunpack.c.l.b16 %v2130
        %v7119 = vunpack.c.l.b16 %v2131
        %v7120 = vunpack.c.l.b16 %v2132
        %v7121 = vunpack.c.l.b16 %v2133
        %v7122 = vunpack.c.l.b16 %v2134
        %v7123 = vunpack.c.l.b16 %v2135
        %v7124 = vunpack.c.l.b16 %v2136
        %v7125 = vunpack.c.l.b16 %v2137
        %v7126 = vunpack.c.l.b16 %v2138
        %v7127 = vunpack.c.l.b16 %v2139
        %v7128 = vunpack.c.l.b16 %v2140
        %v7129 = vunpack.c.l.b16 %v2141
        %v7130 = vunpack.c.l.b16 %v2142
        %v7131 = vunpack.c.l.b16 %v2143
        %v7132 = vunpack.c.l.b16 %v2144
        %v7133 = vunpack.c.l.b16 %v2145
        %v7134 = vunpack.c.l.b16 %v2146
        %v7135 = vunpack.c.l.b16 %v2147
        %v7136 = vunpack.c.l.b16 %v2148
        %v7137 = vunpack.c.l.b16 %v2149
        %v7138 = vunpack.c.l.b16 %v2150
        %v7139 = vunpack.c.l.b16 %v2151
        %v7140 = vunpack.c.l.b16 %v2152
        %v7141 = vunpack.c.l.b16 %v2153
        %v7142 = vunpack.c.l.b16 %v2154
        %v7143 = vpack.c.b16 %v7112, %v7111
        %v7144 = vpack.c.b16 %v7114, %v7113
        %v7145 = vpack.c.b16 %v7116, %v7115
        %v7146 = vpack.c.b16 %v7118, %v7117
        %v7147 = vpack.c.b16 %v7120, %v7119
        %v7148 = vpack.c.b16 %v7122, %v7121
        %v7149 = vpack.c.b16 %v7124, %v7123
        %v7150 = vpack.c.b16 %v7126, %v7125
        %v7151 = vpack.c.b16 %v7128, %v7127
        %v7152 = vpack.c.b16 %v7130, %v7129
        %v7153 = vpack.c.b16 %v7132, %v7131
        %v7154 = vpack.c.b16 %v7134, %v7133
        %v7155 = vpack.c.b16 %v7136, %v7135
        %v7156 = vpack.c.b16 %v7138, %v7137
        %v7157 = vpack.c.b16 %v7140, %v7139
        %v7158 = vpack.c.b16 %v7142, %v7141
        %7175 = vmatpush.bf16.msra.mxu0 %v7150
        %7176 = vmatpush.bf16.msra.mxu0 %v7149
        %7177 = vmatpush.bf16.msra.mxu0 %v7148
        %7178 = vmatpush.bf16.msra.mxu0 %v7147
        %7179 = vmatpush.bf16.msra.mxu0 %v7146
        %7180 = vmatpush.bf16.msra.mxu0 %v7145
        %7181 = vmatpush.bf16.msra.mxu0 %v7144
        %7182 = vmatpush.bf16.msra.mxu0 %v7143
        %7183 = vmatmul.bf16.gmra.mxu0 %v7015
        %v7184 = vpop.f32.mrf.mxu0
        %v7185 = vadd.f32 0.0, %v7184
        %v7186 = vpop.f32.mrf.mxu0
        %v7187 = vadd.f32 0.0, %v7186
        %7188 = vmatmul.bf16.gmra.mxu0 %v7017
        %v7189 = vpop.f32.mrf.mxu0
        %v7190 = vadd.f32 0.0, %v7189
        %v7191 = vpop.f32.mrf.mxu0
        %v7192 = vadd.f32 0.0, %v7191
        %7193 = vmatmul.bf16.gmra.mxu0 %v7019
        %v7194 = vpop.f32.mrf.mxu0
        %v7195 = vadd.f32 0.0, %v7194
        %v7196 = vpop.f32.mrf.mxu0
        %v7197 = vadd.f32 0.0, %v7196
        %7198 = vmatmul.bf16.gmra.mxu0 %v7021
        %v7199 = vpop.f32.mrf.mxu0
        %v7200 = vadd.f32 0.0, %v7199
        %v7201 = vpop.f32.mrf.mxu0
        %v7202 = vadd.f32 0.0, %v7201
        %7203 = vmatmul.bf16.gmra.mxu0 %v7023
        %v7204 = vpop.f32.mrf.mxu0
        %v7205 = vadd.f32 0.0, %v7204
        %v7206 = vpop.f32.mrf.mxu0
        %v7207 = vadd.f32 0.0, %v7206
        %7208 = vmatmul.bf16.gmra.mxu0 %v7025
        %v7209 = vpop.f32.mrf.mxu0
        %v7210 = vadd.f32 0.0, %v7209
        %v7211 = vpop.f32.mrf.mxu0
        %v7212 = vadd.f32 0.0, %v7211
        %7213 = vmatmul.bf16.gmra.mxu0 %v7027
        %v7214 = vpop.f32.mrf.mxu0
        %v7215 = vadd.f32 0.0, %v7214
        %v7216 = vpop.f32.mrf.mxu0
        %v7217 = vadd.f32 0.0, %v7216
        %7218 = vmatmul.bf16.gmra.mxu0 %v7029
        %v7219 = vpop.f32.mrf.mxu0
        %v7220 = vadd.f32 0.0, %v7219
        %v7221 = vpop.f32.mrf.mxu0
        %v7222 = vadd.f32 0.0, %v7221
        %7223 = vmatmul.bf16.gmra.mxu0 %v7031
        %v7224 = vpop.f32.mrf.mxu0
        %v7225 = vadd.f32 0.0, %v7224
        %v7226 = vpop.f32.mrf.mxu0
        %v7227 = vadd.f32 0.0, %v7226
        %7228 = vmatmul.bf16.gmra.mxu0 %v7033
        %v7229 = vpop.f32.mrf.mxu0
        %v7230 = vadd.f32 0.0, %v7229
        %v7231 = vpop.f32.mrf.mxu0
        %v7232 = vadd.f32 0.0, %v7231
        %7233 = vmatmul.bf16.gmra.mxu0 %v7035
        %v7234 = vpop.f32.mrf.mxu0
        %v7235 = vadd.f32 0.0, %v7234
        %v7236 = vpop.f32.mrf.mxu0
        %v7237 = vadd.f32 0.0, %v7236
        %7238 = vmatmul.bf16.gmra.mxu0 %v7037
        %v7239 = vpop.f32.mrf.mxu0
        %v7240 = vadd.f32 0.0, %v7239
        %v7241 = vpop.f32.mrf.mxu0
        %v7242 = vadd.f32 0.0, %v7241
        %7243 = vmatmul.bf16.gmra.mxu0 %v7039
        %v7244 = vpop.f32.mrf.mxu0
        %v7245 = vadd.f32 0.0, %v7244
        %v7246 = vpop.f32.mrf.mxu0
        %v7247 = vadd.f32 0.0, %v7246
        %7248 = vmatmul.bf16.gmra.mxu0 %v7041
        %v7249 = vpop.f32.mrf.mxu0
        %v7250 = vadd.f32 0.0, %v7249
        %v7251 = vpop.f32.mrf.mxu0
        %v7252 = vadd.f32 0.0, %v7251
        %7253 = vmatmul.bf16.gmra.mxu0 %v7043
        %v7254 = vpop.f32.mrf.mxu0
        %v7255 = vadd.f32 0.0, %v7254
        %v7256 = vpop.f32.mrf.mxu0
        %v7257 = vadd.f32 0.0, %v7256
        %7258 = vmatmul.bf16.gmra.mxu0 %v7045
        %v7259 = vpop.f32.mrf.mxu0
        %v7260 = vadd.f32 0.0, %v7259
        %v7261 = vpop.f32.mrf.mxu0
        %v7262 = vadd.f32 0.0, %v7261
        %7263 = vdwg.mxu0
        %7264 = vmatpush.bf16.msra.mxu0 %v7158
        %7265 = vmatpush.bf16.msra.mxu0 %v7157
        %7266 = vmatpush.bf16.msra.mxu0 %v7156
        %7267 = vmatpush.bf16.msra.mxu0 %v7155
        %7268 = vmatpush.bf16.msra.mxu0 %v7154
        %7269 = vmatpush.bf16.msra.mxu0 %v7153
        %7270 = vmatpush.bf16.msra.mxu0 %v7152
        %7271 = vmatpush.bf16.msra.mxu0 %v7151
        %7272 = vmatmul.bf16.gmra.mxu0 %v7016
        %v7273 = vpop.f32.mrf.mxu0
        %v7274 = vadd.f32 %v7185, %v7273
        %v7275 = vpop.f32.mrf.mxu0
        %v7276 = vadd.f32 %v7187, %v7275
        %7277 = vmatmul.bf16.gmra.mxu0 %v7018
        %v7278 = vpop.f32.mrf.mxu0
        %v7279 = vadd.f32 %v7190, %v7278
        %v7280 = vpop.f32.mrf.mxu0
        %v7281 = vadd.f32 %v7192, %v7280
        %7282 = vmatmul.bf16.gmra.mxu0 %v7020
        %v7283 = vpop.f32.mrf.mxu0
        %v7284 = vadd.f32 %v7195, %v7283
        %v7285 = vpop.f32.mrf.mxu0
        %v7286 = vadd.f32 %v7197, %v7285
        %7287 = vmatmul.bf16.gmra.mxu0 %v7022
        %v7288 = vpop.f32.mrf.mxu0
        %v7289 = vadd.f32 %v7200, %v7288
        %v7290 = vpop.f32.mrf.mxu0
        %v7291 = vadd.f32 %v7202, %v7290
        %7292 = vmatmul.bf16.gmra.mxu0 %v7024
        %v7293 = vpop.f32.mrf.mxu0
        %v7294 = vadd.f32 %v7205, %v7293
        %v7295 = vpop.f32.mrf.mxu0
        %v7296 = vadd.f32 %v7207, %v7295
        %7297 = vmatmul.bf16.gmra.mxu0 %v7026
        %v7298 = vpop.f32.mrf.mxu0
        %v7299 = vadd.f32 %v7210, %v7298
        %v7300 = vpop.f32.mrf.mxu0
        %v7301 = vadd.f32 %v7212, %v7300
        %7302 = vmatmul.bf16.gmra.mxu0 %v7028
        %v7303 = vpop.f32.mrf.mxu0
        %v7304 = vadd.f32 %v7215, %v7303
        %v7305 = vpop.f32.mrf.mxu0
        %v7306 = vadd.f32 %v7217, %v7305
        %7307 = vmatmul.bf16.gmra.mxu0 %v7030
        %v7308 = vpop.f32.mrf.mxu0
        %v7309 = vadd.f32 %v7220, %v7308
        %v7310 = vpop.f32.mrf.mxu0
        %v7311 = vadd.f32 %v7222, %v7310
        %7312 = vmatmul.bf16.gmra.mxu0 %v7032
        %v7313 = vpop.f32.mrf.mxu0
        %v7314 = vadd.f32 %v7225, %v7313
        %v7315 = vpop.f32.mrf.mxu0
        %v7316 = vadd.f32 %v7227, %v7315
        %7317 = vmatmul.bf16.gmra.mxu0 %v7034
        %v7318 = vpop.f32.mrf.mxu0
        %v7319 = vadd.f32 %v7230, %v7318
        %v7320 = vpop.f32.mrf.mxu0
        %v7321 = vadd.f32 %v7232, %v7320
        %7322 = vmatmul.bf16.gmra.mxu0 %v7036
        %v7323 = vpop.f32.mrf.mxu0
        %v7324 = vadd.f32 %v7235, %v7323
        %v7325 = vpop.f32.mrf.mxu0
        %v7326 = vadd.f32 %v7237, %v7325
        %7327 = vmatmul.bf16.gmra.mxu0 %v7038
        %v7328 = vpop.f32.mrf.mxu0
        %v7329 = vadd.f32 %v7240, %v7328
        %v7330 = vpop.f32.mrf.mxu0
        %v7331 = vadd.f32 %v7242, %v7330
        %7332 = vmatmul.bf16.gmra.mxu0 %v7040
        %v7333 = vpop.f32.mrf.mxu0
        %v7334 = vadd.f32 %v7245, %v7333
        %v7335 = vpop.f32.mrf.mxu0
        %v7336 = vadd.f32 %v7247, %v7335
        %7337 = vmatmul.bf16.gmra.mxu0 %v7042
        %v7338 = vpop.f32.mrf.mxu0
        %v7339 = vadd.f32 %v7250, %v7338
        %v7340 = vpop.f32.mrf.mxu0
        %v7341 = vadd.f32 %v7252, %v7340
        %7342 = vmatmul.bf16.gmra.mxu0 %v7044
        %v7343 = vpop.f32.mrf.mxu0
        %v7344 = vadd.f32 %v7255, %v7343
        %v7345 = vpop.f32.mrf.mxu0
        %v7346 = vadd.f32 %v7257, %v7345
        %7347 = vmatmul.bf16.gmra.mxu0 %v7046
        %v7348 = vpop.f32.mrf.mxu0
        %v7349 = vadd.f32 %v7260, %v7348
        %v7350 = vpop.f32.mrf.mxu0
        %v7351 = vadd.f32 %v7262, %v7350
        %7352 = vdwg.mxu0
        %v7353 = vld [vmem:[#allocation4] sm:$0xff]
        %v7354 = vld [vmem:[#allocation4 + $0x8] sm:$0xff]
        %v7355 = vld [vmem:[#allocation4 + $0x10] sm:$0xff]
        %v7356 = vld [vmem:[#allocation4 + $0x18] sm:$0xff]
        %v7357 = vld [vmem:[#allocation4 + $0x20] sm:$0xff]
        %v7358 = vld [vmem:[#allocation4 + $0x28] sm:$0xff]
        %v7359 = vld [vmem:[#allocation4 + $0x30] sm:$0xff]
        %v7360 = vld [vmem:[#allocation4 + $0x38] sm:$0xff]
        %v7361 = vld [vmem:[#allocation4 + $0x40] sm:$0xff]
        %v7362 = vld [vmem:[#allocation4 + $0x48] sm:$0xff]
        %v7363 = vld [vmem:[#allocation4 + $0x50] sm:$0xff]
        %v7364 = vld [vmem:[#allocation4 + $0x58] sm:$0xff]
        %v7365 = vld [vmem:[#allocation4 + $0x60] sm:$0xff]
        %v7366 = vld [vmem:[#allocation4 + $0x68] sm:$0xff]
        %v7367 = vld [vmem:[#allocation4 + $0x70] sm:$0xff]
        %v7368 = vld [vmem:[#allocation4 + $0x78] sm:$0xff]
        %v7369 = vld [vmem:[#allocation4 + $0x80] sm:$0xff]
        %v7370 = vld [vmem:[#allocation4 + $0x88] sm:$0xff]
        %v7371 = vld [vmem:[#allocation4 + $0x90] sm:$0xff]
        %v7372 = vld [vmem:[#allocation4 + $0x98] sm:$0xff]
        %v7373 = vld [vmem:[#allocation4 + $0xa0] sm:$0xff]
        %v7374 = vld [vmem:[#allocation4 + $0xa8] sm:$0xff]
        %v7375 = vld [vmem:[#allocation4 + $0xb0] sm:$0xff]
        %v7376 = vld [vmem:[#allocation4 + $0xb8] sm:$0xff]
        %v7377 = vld [vmem:[#allocation4 + $0xc0] sm:$0xff]
        %v7378 = vld [vmem:[#allocation4 + $0xc8] sm:$0xff]
        %v7379 = vld [vmem:[#allocation4 + $0xd0] sm:$0xff]
        %v7380 = vld [vmem:[#allocation4 + $0xd8] sm:$0xff]
        %v7381 = vld [vmem:[#allocation4 + $0xe0] sm:$0xff]
        %v7382 = vld [vmem:[#allocation4 + $0xe8] sm:$0xff]
        %v7383 = vld [vmem:[#allocation4 + $0xf0] sm:$0xff]
        %v7384 = vld [vmem:[#allocation4 + $0xf8] sm:$0xff]
        %v7385 = vld [vmem:[#allocation4 + $0x100] sm:$0xff]
        %v7386 = vld [vmem:[#allocation4 + $0x108] sm:$0xff]
        %v7387 = vld [vmem:[#allocation4 + $0x110] sm:$0xff]
        %v7388 = vld [vmem:[#allocation4 + $0x118] sm:$0xff]
        %v7389 = vld [vmem:[#allocation4 + $0x120] sm:$0xff]
        %v7390 = vld [vmem:[#allocation4 + $0x128] sm:$0xff]
        %v7391 = vld [vmem:[#allocation4 + $0x130] sm:$0xff]
        %v7392 = vld [vmem:[#allocation4 + $0x138] sm:$0xff]
        %v7393 = vld [vmem:[#allocation4 + $0x140] sm:$0xff]
        %v7394 = vld [vmem:[#allocation4 + $0x148] sm:$0xff]
        %v7395 = vld [vmem:[#allocation4 + $0x150] sm:$0xff]
        %v7396 = vld [vmem:[#allocation4 + $0x158] sm:$0xff]
        %v7397 = vld [vmem:[#allocation4 + $0x160] sm:$0xff]
        %v7398 = vld [vmem:[#allocation4 + $0x168] sm:$0xff]
        %v7399 = vld [vmem:[#allocation4 + $0x170] sm:$0xff]
        %v7400 = vld [vmem:[#allocation4 + $0x178] sm:$0xff]
        %v7401 = vld [vmem:[#allocation4 + $0x180] sm:$0xff]
        %v7402 = vld [vmem:[#allocation4 + $0x188] sm:$0xff]
        %v7403 = vld [vmem:[#allocation4 + $0x190] sm:$0xff]
        %v7404 = vld [vmem:[#allocation4 + $0x198] sm:$0xff]
        %v7405 = vld [vmem:[#allocation4 + $0x1a0] sm:$0xff]
        %v7406 = vld [vmem:[#allocation4 + $0x1a8] sm:$0xff]
        %v7407 = vld [vmem:[#allocation4 + $0x1b0] sm:$0xff]
        %v7408 = vld [vmem:[#allocation4 + $0x1b8] sm:$0xff]
        %v7409 = vld [vmem:[#allocation4 + $0x1c0] sm:$0xff]
        %v7410 = vld [vmem:[#allocation4 + $0x1c8] sm:$0xff]
        %v7411 = vld [vmem:[#allocation4 + $0x1d0] sm:$0xff]
        %v7412 = vld [vmem:[#allocation4 + $0x1d8] sm:$0xff]
        %v7413 = vld [vmem:[#allocation4 + $0x1e0] sm:$0xff]
        %v7414 = vld [vmem:[#allocation4 + $0x1e8] sm:$0xff]
        %v7415 = vld [vmem:[#allocation4 + $0x1f0] sm:$0xff]
        %v7416 = vld [vmem:[#allocation4 + $0x1f8] sm:$0xff]
        %v7417 = vld [vmem:[#allocation4 + $0x200] sm:$0xff]
        %v7418 = vld [vmem:[#allocation4 + $0x208] sm:$0xff]
        %v7419 = vld [vmem:[#allocation4 + $0x210] sm:$0xff]
        %v7420 = vld [vmem:[#allocation4 + $0x218] sm:$0xff]
        %v7421 = vld [vmem:[#allocation4 + $0x220] sm:$0xff]
        %v7422 = vld [vmem:[#allocation4 + $0x228] sm:$0xff]
        %v7423 = vld [vmem:[#allocation4 + $0x230] sm:$0xff]
        %v7424 = vld [vmem:[#allocation4 + $0x238] sm:$0xff]
        %v7425 = vld [vmem:[#allocation4 + $0x240] sm:$0xff]
        %v7426 = vld [vmem:[#allocation4 + $0x248] sm:$0xff]
        %v7427 = vld [vmem:[#allocation4 + $0x250] sm:$0xff]
        %v7428 = vld [vmem:[#allocation4 + $0x258] sm:$0xff]
        %v7429 = vld [vmem:[#allocation4 + $0x260] sm:$0xff]
        %v7430 = vld [vmem:[#allocation4 + $0x268] sm:$0xff]
        %v7431 = vld [vmem:[#allocation4 + $0x270] sm:$0xff]
        %v7432 = vld [vmem:[#allocation4 + $0x278] sm:$0xff]
        %v7433 = vld [vmem:[#allocation4 + $0x280] sm:$0xff]
        %v7434 = vld [vmem:[#allocation4 + $0x288] sm:$0xff]
        %v7435 = vld [vmem:[#allocation4 + $0x290] sm:$0xff]
        %v7436 = vld [vmem:[#allocation4 + $0x298] sm:$0xff]
        %v7437 = vld [vmem:[#allocation4 + $0x2a0] sm:$0xff]
        %v7438 = vld [vmem:[#allocation4 + $0x2a8] sm:$0xff]
        %v7439 = vld [vmem:[#allocation4 + $0x2b0] sm:$0xff]
        %v7440 = vld [vmem:[#allocation4 + $0x2b8] sm:$0xff]
        %v7441 = vld [vmem:[#allocation4 + $0x2c0] sm:$0xff]
        %v7442 = vld [vmem:[#allocation4 + $0x2c8] sm:$0xff]
        %v7443 = vld [vmem:[#allocation4 + $0x2d0] sm:$0xff]
        %v7444 = vld [vmem:[#allocation4 + $0x2d8] sm:$0xff]
        %v7445 = vld [vmem:[#allocation4 + $0x2e0] sm:$0xff]
        %v7446 = vld [vmem:[#allocation4 + $0x2e8] sm:$0xff]
        %v7447 = vld [vmem:[#allocation4 + $0x2f0] sm:$0xff]
        %v7448 = vld [vmem:[#allocation4 + $0x2f8] sm:$0xff]
        %7450 = vset.pattern.permute.xlu0 0
        %7451 = vperm.xlu0 %7450, %v4035
        %v7452 = vpop.permute.xlu0 %7451
        %7455 = vset.pattern.permute.xlu0 0
        %7456 = vperm.xlu0 %7455, %v4037
        %v7457 = vpop.permute.xlu0 %7456
        %7460 = vset.pattern.permute.xlu0 0
        %7461 = vperm.xlu0 %7460, %v4039
        %v7462 = vpop.permute.xlu0 %7461
        %7465 = vset.pattern.permute.xlu0 0
        %7466 = vperm.xlu0 %7465, %v4041
        %v7467 = vpop.permute.xlu0 %7466
        %7470 = vset.pattern.permute.xlu0 0
        %7471 = vperm.xlu0 %7470, %v4043
        %v7472 = vpop.permute.xlu0 %7471
        %7475 = vset.pattern.permute.xlu0 0
        %7476 = vperm.xlu0 %7475, %v4045
        %v7477 = vpop.permute.xlu0 %7476
        %7480 = vset.pattern.permute.xlu0 0
        %7481 = vperm.xlu0 %7480, %v4047
        %v7482 = vpop.permute.xlu0 %7481
        %7485 = vset.pattern.permute.xlu0 0
        %7486 = vperm.xlu0 %7485, %v4049
        %v7487 = vpop.permute.xlu0 %7486
        %7490 = vset.pattern.permute.xlu0 0
        %7491 = vperm.xlu0 %7490, %v4051
        %v7492 = vpop.permute.xlu0 %7491
        %7495 = vset.pattern.permute.xlu0 0
        %7496 = vperm.xlu0 %7495, %v4053
        %v7497 = vpop.permute.xlu0 %7496
        %7500 = vset.pattern.permute.xlu0 0
        %7501 = vperm.xlu0 %7500, %v4055
        %v7502 = vpop.permute.xlu0 %7501
        %7505 = vset.pattern.permute.xlu0 0
        %7506 = vperm.xlu0 %7505, %v4057
        %v7507 = vpop.permute.xlu0 %7506
        %7510 = vset.pattern.permute.xlu0 0
        %7511 = vperm.xlu0 %7510, %v4059
        %v7512 = vpop.permute.xlu0 %7511
        %7515 = vset.pattern.permute.xlu0 0
        %7516 = vperm.xlu0 %7515, %v4061
        %v7517 = vpop.permute.xlu0 %7516
        %7520 = vset.pattern.permute.xlu0 0
        %7521 = vperm.xlu0 %7520, %v4063
        %v7522 = vpop.permute.xlu0 %7521
        %7525 = vset.pattern.permute.xlu0 0
        %7526 = vperm.xlu0 %7525, %v4065
        %v7527 = vpop.permute.xlu0 %7526
        %7530 = vset.pattern.permute.xlu0 0
        %7531 = vperm.xlu0 %7530, %v4067
        %v7532 = vpop.permute.xlu0 %7531
        %7535 = vset.pattern.permute.xlu0 0
        %7536 = vperm.xlu0 %7535, %v4069
        %v7537 = vpop.permute.xlu0 %7536
        %7540 = vset.pattern.permute.xlu0 0
        %7541 = vperm.xlu0 %7540, %v4071
        %v7542 = vpop.permute.xlu0 %7541
        %7545 = vset.pattern.permute.xlu0 0
        %7546 = vperm.xlu0 %7545, %v4073
        %v7547 = vpop.permute.xlu0 %7546
        %7550 = vset.pattern.permute.xlu0 0
        %7551 = vperm.xlu0 %7550, %v4075
        %v7552 = vpop.permute.xlu0 %7551
        %7555 = vset.pattern.permute.xlu0 0
        %7556 = vperm.xlu0 %7555, %v4077
        %v7557 = vpop.permute.xlu0 %7556
        %7560 = vset.pattern.permute.xlu0 0
        %7561 = vperm.xlu0 %7560, %v4079
        %v7562 = vpop.permute.xlu0 %7561
        %7565 = vset.pattern.permute.xlu0 0
        %7566 = vperm.xlu0 %7565, %v4081
        %v7567 = vpop.permute.xlu0 %7566
        %7570 = vset.pattern.permute.xlu0 0
        %7571 = vperm.xlu0 %7570, %v4083
        %v7572 = vpop.permute.xlu0 %7571
        %7575 = vset.pattern.permute.xlu0 0
        %7576 = vperm.xlu0 %7575, %v4085
        %v7577 = vpop.permute.xlu0 %7576
        %7580 = vset.pattern.permute.xlu0 0
        %7581 = vperm.xlu0 %7580, %v4087
        %v7582 = vpop.permute.xlu0 %7581
        %7585 = vset.pattern.permute.xlu0 0
        %7586 = vperm.xlu0 %7585, %v4089
        %v7587 = vpop.permute.xlu0 %7586
        %7590 = vset.pattern.permute.xlu0 0
        %7591 = vperm.xlu0 %7590, %v4091
        %v7592 = vpop.permute.xlu0 %7591
        %7595 = vset.pattern.permute.xlu0 0
        %7596 = vperm.xlu0 %7595, %v4093
        %v7597 = vpop.permute.xlu0 %7596
        %7600 = vset.pattern.permute.xlu0 0
        %7601 = vperm.xlu0 %7600, %v4095
        %v7602 = vpop.permute.xlu0 %7601
        %7605 = vset.pattern.permute.xlu0 0
        %7606 = vperm.xlu0 %7605, %v4097
        %v7607 = vpop.permute.xlu0 %7606
        %7610 = vset.pattern.permute.xlu0 0
        %7611 = vperm.xlu0 %7610, %v4099
        %v7612 = vpop.permute.xlu0 %7611
        %7615 = vset.pattern.permute.xlu0 0
        %7616 = vperm.xlu0 %7615, %v4101
        %v7617 = vpop.permute.xlu0 %7616
        %7620 = vset.pattern.permute.xlu0 0
        %7621 = vperm.xlu0 %7620, %v4103
        %v7622 = vpop.permute.xlu0 %7621
        %7625 = vset.pattern.permute.xlu0 0
        %7626 = vperm.xlu0 %7625, %v4105
        %v7627 = vpop.permute.xlu0 %7626
        %7630 = vset.pattern.permute.xlu0 0
        %7631 = vperm.xlu0 %7630, %v4107
        %v7632 = vpop.permute.xlu0 %7631
        %7635 = vset.pattern.permute.xlu0 0
        %7636 = vperm.xlu0 %7635, %v4109
        %v7637 = vpop.permute.xlu0 %7636
        %7640 = vset.pattern.permute.xlu0 0
        %7641 = vperm.xlu0 %7640, %v4111
        %v7642 = vpop.permute.xlu0 %7641
        %7645 = vset.pattern.permute.xlu0 0
        %7646 = vperm.xlu0 %7645, %v4113
        %v7647 = vpop.permute.xlu0 %7646
        %7650 = vset.pattern.permute.xlu0 0
        %7651 = vperm.xlu0 %7650, %v4115
        %v7652 = vpop.permute.xlu0 %7651
        %7655 = vset.pattern.permute.xlu0 0
        %7656 = vperm.xlu0 %7655, %v4117
        %v7657 = vpop.permute.xlu0 %7656
        %7660 = vset.pattern.permute.xlu0 0
        %7661 = vperm.xlu0 %7660, %v4119
        %v7662 = vpop.permute.xlu0 %7661
        %7665 = vset.pattern.permute.xlu0 0
        %7666 = vperm.xlu0 %7665, %v4121
        %v7667 = vpop.permute.xlu0 %7666
        %7670 = vset.pattern.permute.xlu0 0
        %7671 = vperm.xlu0 %7670, %v4123
        %v7672 = vpop.permute.xlu0 %7671
        %7675 = vset.pattern.permute.xlu0 0
        %7676 = vperm.xlu0 %7675, %v4125
        %v7677 = vpop.permute.xlu0 %7676
        %7680 = vset.pattern.permute.xlu0 0
        %7681 = vperm.xlu0 %7680, %v4127
        %v7682 = vpop.permute.xlu0 %7681
        %7685 = vset.pattern.permute.xlu0 0
        %7686 = vperm.xlu0 %7685, %v4129
        %v7687 = vpop.permute.xlu0 %7686
        %7690 = vset.pattern.permute.xlu0 0
        %7691 = vperm.xlu0 %7690, %v4131
        %v7692 = vpop.permute.xlu0 %7691
        %7695 = vset.pattern.permute.xlu0 0
        %7696 = vperm.xlu0 %7695, %v4133
        %v7697 = vpop.permute.xlu0 %7696
        %7700 = vset.pattern.permute.xlu0 0
        %7701 = vperm.xlu0 %7700, %v4135
        %v7702 = vpop.permute.xlu0 %7701
        %7705 = vset.pattern.permute.xlu0 0
        %7706 = vperm.xlu0 %7705, %v4137
        %v7707 = vpop.permute.xlu0 %7706
        %7710 = vset.pattern.permute.xlu0 0
        %7711 = vperm.xlu0 %7710, %v4139
        %v7712 = vpop.permute.xlu0 %7711
        %7715 = vset.pattern.permute.xlu0 0
        %7716 = vperm.xlu0 %7715, %v4141
        %v7717 = vpop.permute.xlu0 %7716
        %7720 = vset.pattern.permute.xlu0 0
        %7721 = vperm.xlu0 %7720, %v4143
        %v7722 = vpop.permute.xlu0 %7721
        %7725 = vset.pattern.permute.xlu0 0
        %7726 = vperm.xlu0 %7725, %v4145
        %v7727 = vpop.permute.xlu0 %7726
        %7730 = vset.pattern.permute.xlu0 0
        %7731 = vperm.xlu0 %7730, %v4147
        %v7732 = vpop.permute.xlu0 %7731
        %7735 = vset.pattern.permute.xlu0 0
        %7736 = vperm.xlu0 %7735, %v4149
        %v7737 = vpop.permute.xlu0 %7736
        %7740 = vset.pattern.permute.xlu0 0
        %7741 = vperm.xlu0 %7740, %v4151
        %v7742 = vpop.permute.xlu0 %7741
        %7745 = vset.pattern.permute.xlu0 0
        %7746 = vperm.xlu0 %7745, %v4153
        %v7747 = vpop.permute.xlu0 %7746
        %7750 = vset.pattern.permute.xlu0 0
        %7751 = vperm.xlu0 %7750, %v4155
        %v7752 = vpop.permute.xlu0 %7751
        %7755 = vset.pattern.permute.xlu0 0
        %7756 = vperm.xlu0 %7755, %v4157
        %v7757 = vpop.permute.xlu0 %7756
        %7760 = vset.pattern.permute.xlu0 0
        %7761 = vperm.xlu0 %7760, %v4159
        %v7762 = vpop.permute.xlu0 %7761
        %7765 = vset.pattern.permute.xlu0 0
        %7766 = vperm.xlu0 %7765, %v4161
        %v7767 = vpop.permute.xlu0 %7766
        %7770 = vset.pattern.permute.xlu0 0
        %7771 = vperm.xlu0 %7770, %v4163
        %v7772 = vpop.permute.xlu0 %7771
        %7775 = vset.pattern.permute.xlu0 0
        %7776 = vperm.xlu0 %7775, %v4165
        %v7777 = vpop.permute.xlu0 %7776
        %7780 = vset.pattern.permute.xlu0 0
        %7781 = vperm.xlu0 %7780, %v4167
        %v7782 = vpop.permute.xlu0 %7781
        %7785 = vset.pattern.permute.xlu0 0
        %7786 = vperm.xlu0 %7785, %v4169
        %v7787 = vpop.permute.xlu0 %7786
        %7790 = vset.pattern.permute.xlu0 0
        %7791 = vperm.xlu0 %7790, %v4171
        %v7792 = vpop.permute.xlu0 %7791
        %7795 = vset.pattern.permute.xlu0 0
        %7796 = vperm.xlu0 %7795, %v4173
        %v7797 = vpop.permute.xlu0 %7796
        %7800 = vset.pattern.permute.xlu0 0
        %7801 = vperm.xlu0 %7800, %v4175
        %v7802 = vpop.permute.xlu0 %7801
        %7805 = vset.pattern.permute.xlu0 0
        %7806 = vperm.xlu0 %7805, %v4177
        %v7807 = vpop.permute.xlu0 %7806
        %7810 = vset.pattern.permute.xlu0 0
        %7811 = vperm.xlu0 %7810, %v4179
        %v7812 = vpop.permute.xlu0 %7811
        %7815 = vset.pattern.permute.xlu0 0
        %7816 = vperm.xlu0 %7815, %v4181
        %v7817 = vpop.permute.xlu0 %7816
        %7820 = vset.pattern.permute.xlu0 0
        %7821 = vperm.xlu0 %7820, %v4183
        %v7822 = vpop.permute.xlu0 %7821
        %7825 = vset.pattern.permute.xlu0 0
        %7826 = vperm.xlu0 %7825, %v4185
        %v7827 = vpop.permute.xlu0 %7826
        %7830 = vset.pattern.permute.xlu0 0
        %7831 = vperm.xlu0 %7830, %v4187
        %v7832 = vpop.permute.xlu0 %7831
        %7835 = vset.pattern.permute.xlu0 0
        %7836 = vperm.xlu0 %7835, %v4189
        %v7837 = vpop.permute.xlu0 %7836
        %7840 = vset.pattern.permute.xlu0 0
        %7841 = vperm.xlu0 %7840, %v4191
        %v7842 = vpop.permute.xlu0 %7841
        %7845 = vset.pattern.permute.xlu0 0
        %7846 = vperm.xlu0 %7845, %v4193
        %v7847 = vpop.permute.xlu0 %7846
        %7850 = vset.pattern.permute.xlu0 0
        %7851 = vperm.xlu0 %7850, %v4195
        %v7852 = vpop.permute.xlu0 %7851
        %7855 = vset.pattern.permute.xlu0 0
        %7856 = vperm.xlu0 %7855, %v4197
        %v7857 = vpop.permute.xlu0 %7856
        %7860 = vset.pattern.permute.xlu0 0
        %7861 = vperm.xlu0 %7860, %v4199
        %v7862 = vpop.permute.xlu0 %7861
        %7865 = vset.pattern.permute.xlu0 0
        %7866 = vperm.xlu0 %7865, %v4201
        %v7867 = vpop.permute.xlu0 %7866
        %7870 = vset.pattern.permute.xlu0 0
        %7871 = vperm.xlu0 %7870, %v4203
        %v7872 = vpop.permute.xlu0 %7871
        %7875 = vset.pattern.permute.xlu0 0
        %7876 = vperm.xlu0 %7875, %v4205
        %v7877 = vpop.permute.xlu0 %7876
        %7880 = vset.pattern.permute.xlu0 0
        %7881 = vperm.xlu0 %7880, %v4207
        %v7882 = vpop.permute.xlu0 %7881
        %7885 = vset.pattern.permute.xlu0 0
        %7886 = vperm.xlu0 %7885, %v4209
        %v7887 = vpop.permute.xlu0 %7886
        %7890 = vset.pattern.permute.xlu0 0
        %7891 = vperm.xlu0 %7890, %v4211
        %v7892 = vpop.permute.xlu0 %7891
        %7895 = vset.pattern.permute.xlu0 0
        %7896 = vperm.xlu0 %7895, %v4213
        %v7897 = vpop.permute.xlu0 %7896
        %7900 = vset.pattern.permute.xlu0 0
        %7901 = vperm.xlu0 %7900, %v4215
        %v7902 = vpop.permute.xlu0 %7901
        %7905 = vset.pattern.permute.xlu0 0
        %7906 = vperm.xlu0 %7905, %v4217
        %v7907 = vpop.permute.xlu0 %7906
        %7910 = vset.pattern.permute.xlu0 0
        %7911 = vperm.xlu0 %7910, %v4219
        %v7912 = vpop.permute.xlu0 %7911
        %7915 = vset.pattern.permute.xlu0 0
        %7916 = vperm.xlu0 %7915, %v4221
        %v7917 = vpop.permute.xlu0 %7916
        %7920 = vset.pattern.permute.xlu0 0
        %7921 = vperm.xlu0 %7920, %v4223
        %v7922 = vpop.permute.xlu0 %7921
        %7925 = vset.pattern.permute.xlu0 0
        %7926 = vperm.xlu0 %7925, %v4225
        %v7927 = vpop.permute.xlu0 %7926
        %v7929 = vmul.f32 %v7452, %v7353
        %v7930 = vmul.f32 %v7457, %v7354
        %v7931 = vmul.f32 %v7462, %v7355
        %v7932 = vmul.f32 %v7467, %v7356
        %v7933 = vmul.f32 %v7472, %v7357
        %v7934 = vmul.f32 %v7477, %v7358
        %v7935 = vmul.f32 %v7482, %v7359
        %v7936 = vmul.f32 %v7487, %v7360
        %v7937 = vmul.f32 %v7492, %v7361
        %v7938 = vmul.f32 %v7497, %v7362
        %v7939 = vmul.f32 %v7502, %v7363
        %v7940 = vmul.f32 %v7507, %v7364
        %v7941 = vmul.f32 %v7512, %v7365
        %v7942 = vmul.f32 %v7517, %v7366
        %v7943 = vmul.f32 %v7522, %v7367
        %v7944 = vmul.f32 %v7527, %v7368
        %v7945 = vmul.f32 %v7532, %v7369
        %v7946 = vmul.f32 %v7537, %v7370
        %v7947 = vmul.f32 %v7542, %v7371
        %v7948 = vmul.f32 %v7547, %v7372
        %v7949 = vmul.f32 %v7552, %v7373
        %v7950 = vmul.f32 %v7557, %v7374
        %v7951 = vmul.f32 %v7562, %v7375
        %v7952 = vmul.f32 %v7567, %v7376
        %v7953 = vmul.f32 %v7572, %v7377
        %v7954 = vmul.f32 %v7577, %v7378
        %v7955 = vmul.f32 %v7582, %v7379
        %v7956 = vmul.f32 %v7587, %v7380
        %v7957 = vmul.f32 %v7592, %v7381
        %v7958 = vmul.f32 %v7597, %v7382
        %v7959 = vmul.f32 %v7602, %v7383
        %v7960 = vmul.f32 %v7607, %v7384
        %v7961 = vmul.f32 %v7612, %v7385
        %v7962 = vmul.f32 %v7617, %v7386
        %v7963 = vmul.f32 %v7622, %v7387
        %v7964 = vmul.f32 %v7627, %v7388
        %v7965 = vmul.f32 %v7632, %v7389
        %v7966 = vmul.f32 %v7637, %v7390
        %v7967 = vmul.f32 %v7642, %v7391
        %v7968 = vmul.f32 %v7647, %v7392
        %v7969 = vmul.f32 %v7652, %v7393
        %v7970 = vmul.f32 %v7657, %v7394
        %v7971 = vmul.f32 %v7662, %v7395
        %v7972 = vmul.f32 %v7667, %v7396
        %v7973 = vmul.f32 %v7672, %v7397
        %v7974 = vmul.f32 %v7677, %v7398
        %v7975 = vmul.f32 %v7682, %v7399
        %v7976 = vmul.f32 %v7687, %v7400
        %v7977 = vmul.f32 %v7692, %v7401
        %v7978 = vmul.f32 %v7697, %v7402
        %v7979 = vmul.f32 %v7702, %v7403
        %v7980 = vmul.f32 %v7707, %v7404
        %v7981 = vmul.f32 %v7712, %v7405
        %v7982 = vmul.f32 %v7717, %v7406
        %v7983 = vmul.f32 %v7722, %v7407
        %v7984 = vmul.f32 %v7727, %v7408
        %v7985 = vmul.f32 %v7732, %v7409
        %v7986 = vmul.f32 %v7737, %v7410
        %v7987 = vmul.f32 %v7742, %v7411
        %v7988 = vmul.f32 %v7747, %v7412
        %v7989 = vmul.f32 %v7752, %v7413
        %v7990 = vmul.f32 %v7757, %v7414
        %v7991 = vmul.f32 %v7762, %v7415
        %v7992 = vmul.f32 %v7767, %v7416
        %v7993 = vmul.f32 %v7772, %v7417
        %v7994 = vmul.f32 %v7777, %v7418
        %v7995 = vmul.f32 %v7782, %v7419
        %v7996 = vmul.f32 %v7787, %v7420
        %v7997 = vmul.f32 %v7792, %v7421
        %v7998 = vmul.f32 %v7797, %v7422
        %v7999 = vmul.f32 %v7802, %v7423
        %v8000 = vmul.f32 %v7807, %v7424
        %v8001 = vmul.f32 %v7812, %v7425
        %v8002 = vmul.f32 %v7817, %v7426
        %v8003 = vmul.f32 %v7822, %v7427
        %v8004 = vmul.f32 %v7827, %v7428
        %v8005 = vmul.f32 %v7832, %v7429
        %v8006 = vmul.f32 %v7837, %v7430
        %v8007 = vmul.f32 %v7842, %v7431
        %v8008 = vmul.f32 %v7847, %v7432
        %v8009 = vmul.f32 %v7852, %v7433
        %v8010 = vmul.f32 %v7857, %v7434
        %v8011 = vmul.f32 %v7862, %v7435
        %v8012 = vmul.f32 %v7867, %v7436
        %v8013 = vmul.f32 %v7872, %v7437
        %v8014 = vmul.f32 %v7877, %v7438
        %v8015 = vmul.f32 %v7882, %v7439
        %v8016 = vmul.f32 %v7887, %v7440
        %v8017 = vmul.f32 %v7892, %v7441
        %v8018 = vmul.f32 %v7897, %v7442
        %v8019 = vmul.f32 %v7902, %v7443
        %v8020 = vmul.f32 %v7907, %v7444
        %v8021 = vmul.f32 %v7912, %v7445
        %v8022 = vmul.f32 %v7917, %v7446
        %v8023 = vmul.f32 %v7922, %v7447
        %v8024 = vmul.f32 %v7927, %v7448
        %v8025 = vadd.f32 %v7929, %v6406
        %v8026 = vadd.f32 %v7930, %v6408
        %v8027 = vadd.f32 %v7931, %v6411
        %v8028 = vadd.f32 %v7932, %v6413
        %v8029 = vadd.f32 %v7933, %v6416
        %v8030 = vadd.f32 %v7934, %v6418
        %v8031 = vadd.f32 %v7935, %v6421
        %v8032 = vadd.f32 %v7936, %v6423
        %v8033 = vadd.f32 %v7937, %v6426
        %v8034 = vadd.f32 %v7938, %v6428
        %v8035 = vadd.f32 %v7939, %v6431
        %v8036 = vadd.f32 %v7940, %v6433
        %v8037 = vadd.f32 %v7941, %v6436
        %v8038 = vadd.f32 %v7942, %v6438
        %v8039 = vadd.f32 %v7943, %v6441
        %v8040 = vadd.f32 %v7944, %v6443
        %v8041 = vadd.f32 %v7945, %v6446
        %v8042 = vadd.f32 %v7946, %v6448
        %v8043 = vadd.f32 %v7947, %v6451
        %v8044 = vadd.f32 %v7948, %v6453
        %v8045 = vadd.f32 %v7949, %v6456
        %v8046 = vadd.f32 %v7950, %v6458
        %v8047 = vadd.f32 %v7951, %v6461
        %v8048 = vadd.f32 %v7952, %v6463
        %v8049 = vadd.f32 %v7953, %v6466
        %v8050 = vadd.f32 %v7954, %v6468
        %v8051 = vadd.f32 %v7955, %v6471
        %v8052 = vadd.f32 %v7956, %v6473
        %v8053 = vadd.f32 %v7957, %v6476
        %v8054 = vadd.f32 %v7958, %v6478
        %v8055 = vadd.f32 %v7959, %v6481
        %v8056 = vadd.f32 %v7960, %v6483
        %v8057 = vadd.f32 %v7961, %v6840
        %v8058 = vadd.f32 %v7962, %v6842
        %v8059 = vadd.f32 %v7963, %v6845
        %v8060 = vadd.f32 %v7964, %v6847
        %v8061 = vadd.f32 %v7965, %v6850
        %v8062 = vadd.f32 %v7966, %v6852
        %v8063 = vadd.f32 %v7967, %v6855
        %v8064 = vadd.f32 %v7968, %v6857
        %v8065 = vadd.f32 %v7969, %v6860
        %v8066 = vadd.f32 %v7970, %v6862
        %v8067 = vadd.f32 %v7971, %v6865
        %v8068 = vadd.f32 %v7972, %v6867
        %v8069 = vadd.f32 %v7973, %v6870
        %v8070 = vadd.f32 %v7974, %v6872
        %v8071 = vadd.f32 %v7975, %v6875
        %v8072 = vadd.f32 %v7976, %v6877
        %v8073 = vadd.f32 %v7977, %v6880
        %v8074 = vadd.f32 %v7978, %v6882
        %v8075 = vadd.f32 %v7979, %v6885
        %v8076 = vadd.f32 %v7980, %v6887
        %v8077 = vadd.f32 %v7981, %v6890
        %v8078 = vadd.f32 %v7982, %v6892
        %v8079 = vadd.f32 %v7983, %v6895
        %v8080 = vadd.f32 %v7984, %v6897
        %v8081 = vadd.f32 %v7985, %v6900
        %v8082 = vadd.f32 %v7986, %v6902
        %v8083 = vadd.f32 %v7987, %v6905
        %v8084 = vadd.f32 %v7988, %v6907
        %v8085 = vadd.f32 %v7989, %v6910
        %v8086 = vadd.f32 %v7990, %v6912
        %v8087 = vadd.f32 %v7991, %v6915
        %v8088 = vadd.f32 %v7992, %v6917
        %v8089 = vadd.f32 %v7993, %v7274
        %v8090 = vadd.f32 %v7994, %v7276
        %v8091 = vadd.f32 %v7995, %v7279
        %v8092 = vadd.f32 %v7996, %v7281
        %v8093 = vadd.f32 %v7997, %v7284
        %v8094 = vadd.f32 %v7998, %v7286
        %v8095 = vadd.f32 %v7999, %v7289
        %v8096 = vadd.f32 %v8000, %v7291
        %v8097 = vadd.f32 %v8001, %v7294
        %v8098 = vadd.f32 %v8002, %v7296
        %v8099 = vadd.f32 %v8003, %v7299
        %v8100 = vadd.f32 %v8004, %v7301
        %v8101 = vadd.f32 %v8005, %v7304
        %v8102 = vadd.f32 %v8006, %v7306
        %v8103 = vadd.f32 %v8007, %v7309
        %v8104 = vadd.f32 %v8008, %v7311
        %v8105 = vadd.f32 %v8009, %v7314
        %v8106 = vadd.f32 %v8010, %v7316
        %v8107 = vadd.f32 %v8011, %v7319
        %v8108 = vadd.f32 %v8012, %v7321
        %v8109 = vadd.f32 %v8013, %v7324
        %v8110 = vadd.f32 %v8014, %v7326
        %v8111 = vadd.f32 %v8015, %v7329
        %v8112 = vadd.f32 %v8016, %v7331
        %v8113 = vadd.f32 %v8017, %v7334
        %v8114 = vadd.f32 %v8018, %v7336
        %v8115 = vadd.f32 %v8019, %v7339
        %v8116 = vadd.f32 %v8020, %v7341
        %v8117 = vadd.f32 %v8021, %v7344
        %v8118 = vadd.f32 %v8022, %v7346
        %v8119 = vadd.f32 %v8023, %v7349
        %v8120 = vadd.f32 %v8024, %v7351
        %8121 = vst.msk [vmem:[#allocation4] sm:$0xff] %vm2315, %v8025
        %8122 = vst.msk [vmem:[#allocation4 + $0x8] sm:$0xff] %vm2315, %v8026
        %8123 = vst.msk [vmem:[#allocation4 + $0x10] sm:$0xff] %vm2315, %v8027
        %8124 = vst.msk [vmem:[#allocation4 + $0x18] sm:$0xff] %vm2315, %v8028
        %8125 = vst.msk [vmem:[#allocation4 + $0x20] sm:$0xff] %vm2315, %v8029
        %8126 = vst.msk [vmem:[#allocation4 + $0x28] sm:$0xff] %vm2315, %v8030
        %8127 = vst.msk [vmem:[#allocation4 + $0x30] sm:$0xff] %vm2315, %v8031
        %8128 = vst.msk [vmem:[#allocation4 + $0x38] sm:$0xff] %vm2315, %v8032
        %8129 = vst.msk [vmem:[#allocation4 + $0x40] sm:$0xff] %vm2315, %v8033
        %8130 = vst.msk [vmem:[#allocation4 + $0x48] sm:$0xff] %vm2315, %v8034
        %8131 = vst.msk [vmem:[#allocation4 + $0x50] sm:$0xff] %vm2315, %v8035
        %8132 = vst.msk [vmem:[#allocation4 + $0x58] sm:$0xff] %vm2315, %v8036
        %8133 = vst.msk [vmem:[#allocation4 + $0x60] sm:$0xff] %vm2315, %v8037
        %8134 = vst.msk [vmem:[#allocation4 + $0x68] sm:$0xff] %vm2315, %v8038
        %8135 = vst.msk [vmem:[#allocation4 + $0x70] sm:$0xff] %vm2315, %v8039
        %8136 = vst.msk [vmem:[#allocation4 + $0x78] sm:$0xff] %vm2315, %v8040
        %8137 = vst.msk [vmem:[#allocation4 + $0x80] sm:$0xff] %vm2315, %v8041
        %8138 = vst.msk [vmem:[#allocation4 + $0x88] sm:$0xff] %vm2315, %v8042
        %8139 = vst.msk [vmem:[#allocation4 + $0x90] sm:$0xff] %vm2315, %v8043
        %8140 = vst.msk [vmem:[#allocation4 + $0x98] sm:$0xff] %vm2315, %v8044
        %8141 = vst.msk [vmem:[#allocation4 + $0xa0] sm:$0xff] %vm2315, %v8045
        %8142 = vst.msk [vmem:[#allocation4 + $0xa8] sm:$0xff] %vm2315, %v8046
        %8143 = vst.msk [vmem:[#allocation4 + $0xb0] sm:$0xff] %vm2315, %v8047
        %8144 = vst.msk [vmem:[#allocation4 + $0xb8] sm:$0xff] %vm2315, %v8048
        %8145 = vst.msk [vmem:[#allocation4 + $0xc0] sm:$0xff] %vm2315, %v8049
        %8146 = vst.msk [vmem:[#allocation4 + $0xc8] sm:$0xff] %vm2315, %v8050
        %8147 = vst.msk [vmem:[#allocation4 + $0xd0] sm:$0xff] %vm2315, %v8051
        %8148 = vst.msk [vmem:[#allocation4 + $0xd8] sm:$0xff] %vm2315, %v8052
        %8149 = vst.msk [vmem:[#allocation4 + $0xe0] sm:$0xff] %vm2315, %v8053
        %8150 = vst.msk [vmem:[#allocation4 + $0xe8] sm:$0xff] %vm2315, %v8054
        %8151 = vst.msk [vmem:[#allocation4 + $0xf0] sm:$0xff] %vm2315, %v8055
        %8152 = vst.msk [vmem:[#allocation4 + $0xf8] sm:$0xff] %vm2315, %v8056
        %8153 = vst.msk [vmem:[#allocation4 + $0x100] sm:$0xff] %vm2315, %v8057
        %8154 = vst.msk [vmem:[#allocation4 + $0x108] sm:$0xff] %vm2315, %v8058
        %8155 = vst.msk [vmem:[#allocation4 + $0x110] sm:$0xff] %vm2315, %v8059
        %8156 = vst.msk [vmem:[#allocation4 + $0x118] sm:$0xff] %vm2315, %v8060
        %8157 = vst.msk [vmem:[#allocation4 + $0x120] sm:$0xff] %vm2315, %v8061
        %8158 = vst.msk [vmem:[#allocation4 + $0x128] sm:$0xff] %vm2315, %v8062
        %8159 = vst.msk [vmem:[#allocation4 + $0x130] sm:$0xff] %vm2315, %v8063
        %8160 = vst.msk [vmem:[#allocation4 + $0x138] sm:$0xff] %vm2315, %v8064
        %8161 = vst.msk [vmem:[#allocation4 + $0x140] sm:$0xff] %vm2315, %v8065
        %8162 = vst.msk [vmem:[#allocation4 + $0x148] sm:$0xff] %vm2315, %v8066
        %8163 = vst.msk [vmem:[#allocation4 + $0x150] sm:$0xff] %vm2315, %v8067
        %8164 = vst.msk [vmem:[#allocation4 + $0x158] sm:$0xff] %vm2315, %v8068
        %8165 = vst.msk [vmem:[#allocation4 + $0x160] sm:$0xff] %vm2315, %v8069
        %8166 = vst.msk [vmem:[#allocation4 + $0x168] sm:$0xff] %vm2315, %v8070
        %8167 = vst.msk [vmem:[#allocation4 + $0x170] sm:$0xff] %vm2315, %v8071
        %8168 = vst.msk [vmem:[#allocation4 + $0x178] sm:$0xff] %vm2315, %v8072
        %8169 = vst.msk [vmem:[#allocation4 + $0x180] sm:$0xff] %vm2315, %v8073
        %8170 = vst.msk [vmem:[#allocation4 + $0x188] sm:$0xff] %vm2315, %v8074
        %8171 = vst.msk [vmem:[#allocation4 + $0x190] sm:$0xff] %vm2315, %v8075
        %8172 = vst.msk [vmem:[#allocation4 + $0x198] sm:$0xff] %vm2315, %v8076
        %8173 = vst.msk [vmem:[#allocation4 + $0x1a0] sm:$0xff] %vm2315, %v8077
        %8174 = vst.msk [vmem:[#allocation4 + $0x1a8] sm:$0xff] %vm2315, %v8078
        %8175 = vst.msk [vmem:[#allocation4 + $0x1b0] sm:$0xff] %vm2315, %v8079
        %8176 = vst.msk [vmem:[#allocation4 + $0x1b8] sm:$0xff] %vm2315, %v8080
        %8177 = vst.msk [vmem:[#allocation4 + $0x1c0] sm:$0xff] %vm2315, %v8081
        %8178 = vst.msk [vmem:[#allocation4 + $0x1c8] sm:$0xff] %vm2315, %v8082
        %8179 = vst.msk [vmem:[#allocation4 + $0x1d0] sm:$0xff] %vm2315, %v8083
        %8180 = vst.msk [vmem:[#allocation4 + $0x1d8] sm:$0xff] %vm2315, %v8084
        %8181 = vst.msk [vmem:[#allocation4 + $0x1e0] sm:$0xff] %vm2315, %v8085
        %8182 = vst.msk [vmem:[#allocation4 + $0x1e8] sm:$0xff] %vm2315, %v8086
        %8183 = vst.msk [vmem:[#allocation4 + $0x1f0] sm:$0xff] %vm2315, %v8087
        %8184 = vst.msk [vmem:[#allocation4 + $0x1f8] sm:$0xff] %vm2315, %v8088
        %8185 = vst.msk [vmem:[#allocation4 + $0x200] sm:$0xff] %vm2315, %v8089
        %8186 = vst.msk [vmem:[#allocation4 + $0x208] sm:$0xff] %vm2315, %v8090
        %8187 = vst.msk [vmem:[#allocation4 + $0x210] sm:$0xff] %vm2315, %v8091
        %8188 = vst.msk [vmem:[#allocation4 + $0x218] sm:$0xff] %vm2315, %v8092
        %8189 = vst.msk [vmem:[#allocation4 + $0x220] sm:$0xff] %vm2315, %v8093
        %8190 = vst.msk [vmem:[#allocation4 + $0x228] sm:$0xff] %vm2315, %v8094
        %8191 = vst.msk [vmem:[#allocation4 + $0x230] sm:$0xff] %vm2315, %v8095
        %8192 = vst.msk [vmem:[#allocation4 + $0x238] sm:$0xff] %vm2315, %v8096
        %8193 = vst.msk [vmem:[#allocation4 + $0x240] sm:$0xff] %vm2315, %v8097
        %8194 = vst.msk [vmem:[#allocation4 + $0x248] sm:$0xff] %vm2315, %v8098
        %8195 = vst.msk [vmem:[#allocation4 + $0x250] sm:$0xff] %vm2315, %v8099
        %8196 = vst.msk [vmem:[#allocation4 + $0x258] sm:$0xff] %vm2315, %v8100
        %8197 = vst.msk [vmem:[#allocation4 + $0x260] sm:$0xff] %vm2315, %v8101
        %8198 = vst.msk [vmem:[#allocation4 + $0x268] sm:$0xff] %vm2315, %v8102
        %8199 = vst.msk [vmem:[#allocation4 + $0x270] sm:$0xff] %vm2315, %v8103
        %8200 = vst.msk [vmem:[#allocation4 + $0x278] sm:$0xff] %vm2315, %v8104
        %8201 = vst.msk [vmem:[#allocation4 + $0x280] sm:$0xff] %vm2315, %v8105
        %8202 = vst.msk [vmem:[#allocation4 + $0x288] sm:$0xff] %vm2315, %v8106
        %8203 = vst.msk [vmem:[#allocation4 + $0x290] sm:$0xff] %vm2315, %v8107
        %8204 = vst.msk [vmem:[#allocation4 + $0x298] sm:$0xff] %vm2315, %v8108
        %8205 = vst.msk [vmem:[#allocation4 + $0x2a0] sm:$0xff] %vm2315, %v8109
        %8206 = vst.msk [vmem:[#allocation4 + $0x2a8] sm:$0xff] %vm2315, %v8110
        %8207 = vst.msk [vmem:[#allocation4 + $0x2b0] sm:$0xff] %vm2315, %v8111
        %8208 = vst.msk [vmem:[#allocation4 + $0x2b8] sm:$0xff] %vm2315, %v8112
        %8209 = vst.msk [vmem:[#allocation4 + $0x2c0] sm:$0xff] %vm2315, %v8113
        %8210 = vst.msk [vmem:[#allocation4 + $0x2c8] sm:$0xff] %vm2315, %v8114
        %8211 = vst.msk [vmem:[#allocation4 + $0x2d0] sm:$0xff] %vm2315, %v8115
        %8212 = vst.msk [vmem:[#allocation4 + $0x2d8] sm:$0xff] %vm2315, %v8116
        %8213 = vst.msk [vmem:[#allocation4 + $0x2e0] sm:$0xff] %vm2315, %v8117
        %8214 = vst.msk [vmem:[#allocation4 + $0x2e8] sm:$0xff] %vm2315, %v8118
        %8215 = vst.msk [vmem:[#allocation4 + $0x2f0] sm:$0xff] %vm2315, %v8119
        %8216 = vst.msk [vmem:[#allocation4 + $0x2f8] sm:$0xff] %vm2315, %v8120
        %8217 = vst.msk [vmem:[#allocation2] sm:$0xff] %vm5858, %v3842
        %8218 = vst.msk [vmem:[#allocation2 + $0x8] sm:$0xff] %vm5858, %v3843
        %8219 = vst.msk [vmem:[#allocation2 + $0x10] sm:$0xff] %vm5858, %v3844
        %8220 = vst.msk [vmem:[#allocation2 + $0x18] sm:$0xff] %vm5858, %v3845
        %8221 = vst.msk [vmem:[#allocation2 + $0x20] sm:$0xff] %vm5858, %v3846
        %8222 = vst.msk [vmem:[#allocation2 + $0x28] sm:$0xff] %vm5858, %v3847
        %8223 = vst.msk [vmem:[#allocation2 + $0x30] sm:$0xff] %vm5858, %v3848
        %8224 = vst.msk [vmem:[#allocation2 + $0x38] sm:$0xff] %vm5858, %v3849
        %8225 = vst.msk [vmem:[#allocation2 + $0x40] sm:$0xff] %vm5858, %v3850
        %8226 = vst.msk [vmem:[#allocation2 + $0x48] sm:$0xff] %vm5858, %v3851
        %8227 = vst.msk [vmem:[#allocation2 + $0x50] sm:$0xff] %vm5858, %v3852
        %8228 = vst.msk [vmem:[#allocation2 + $0x58] sm:$0xff] %vm5858, %v3853
        %8229 = vst.msk [vmem:[#allocation2 + $0x60] sm:$0xff] %vm5858, %v3854
        %8230 = vst.msk [vmem:[#allocation2 + $0x68] sm:$0xff] %vm5858, %v3855
        %8231 = vst.msk [vmem:[#allocation2 + $0x70] sm:$0xff] %vm5858, %v3856
        %8232 = vst.msk [vmem:[#allocation2 + $0x78] sm:$0xff] %vm5858, %v3857
        %8233 = vst.msk [vmem:[#allocation2 + $0x80] sm:$0xff] %vm5858, %v3858
        %8234 = vst.msk [vmem:[#allocation2 + $0x88] sm:$0xff] %vm5858, %v3859
        %8235 = vst.msk [vmem:[#allocation2 + $0x90] sm:$0xff] %vm5858, %v3860
        %8236 = vst.msk [vmem:[#allocation2 + $0x98] sm:$0xff] %vm5858, %v3861
        %8237 = vst.msk [vmem:[#allocation2 + $0xa0] sm:$0xff] %vm5858, %v3862
        %8238 = vst.msk [vmem:[#allocation2 + $0xa8] sm:$0xff] %vm5858, %v3863
        %8239 = vst.msk [vmem:[#allocation2 + $0xb0] sm:$0xff] %vm5858, %v3864
        %8240 = vst.msk [vmem:[#allocation2 + $0xb8] sm:$0xff] %vm5858, %v3865
        %8241 = vst.msk [vmem:[#allocation2 + $0xc0] sm:$0xff] %vm5858, %v3866
        %8242 = vst.msk [vmem:[#allocation2 + $0xc8] sm:$0xff] %vm5858, %v3867
        %8243 = vst.msk [vmem:[#allocation2 + $0xd0] sm:$0xff] %vm5858, %v3868
        %8244 = vst.msk [vmem:[#allocation2 + $0xd8] sm:$0xff] %vm5858, %v3869
        %8245 = vst.msk [vmem:[#allocation2 + $0xe0] sm:$0xff] %vm5858, %v3870
        %8246 = vst.msk [vmem:[#allocation2 + $0xe8] sm:$0xff] %vm5858, %v3871
        %8247 = vst.msk [vmem:[#allocation2 + $0xf0] sm:$0xff] %vm5858, %v3872
        %8248 = vst.msk [vmem:[#allocation2 + $0xf8] sm:$0xff] %vm5858, %v3873
        %8249 = vst.msk [vmem:[#allocation2 + $0x100] sm:$0xff] %vm5858, %v3874
        %8250 = vst.msk [vmem:[#allocation2 + $0x108] sm:$0xff] %vm5858, %v3875
        %8251 = vst.msk [vmem:[#allocation2 + $0x110] sm:$0xff] %vm5858, %v3876
        %8252 = vst.msk [vmem:[#allocation2 + $0x118] sm:$0xff] %vm5858, %v3877
        %8253 = vst.msk [vmem:[#allocation2 + $0x120] sm:$0xff] %vm5858, %v3878
        %8254 = vst.msk [vmem:[#allocation2 + $0x128] sm:$0xff] %vm5858, %v3879
        %8255 = vst.msk [vmem:[#allocation2 + $0x130] sm:$0xff] %vm5858, %v3880
        %8256 = vst.msk [vmem:[#allocation2 + $0x138] sm:$0xff] %vm5858, %v3881
        %8257 = vst.msk [vmem:[#allocation2 + $0x140] sm:$0xff] %vm5858, %v3882
        %8258 = vst.msk [vmem:[#allocation2 + $0x148] sm:$0xff] %vm5858, %v3883
        %8259 = vst.msk [vmem:[#allocation2 + $0x150] sm:$0xff] %vm5858, %v3884
        %8260 = vst.msk [vmem:[#allocation2 + $0x158] sm:$0xff] %vm5858, %v3885
        %8261 = vst.msk [vmem:[#allocation2 + $0x160] sm:$0xff] %vm5858, %v3886
        %8262 = vst.msk [vmem:[#allocation2 + $0x168] sm:$0xff] %vm5858, %v3887
        %8263 = vst.msk [vmem:[#allocation2 + $0x170] sm:$0xff] %vm5858, %v3888
        %8264 = vst.msk [vmem:[#allocation2 + $0x178] sm:$0xff] %vm5858, %v3889
        %8265 = vst.msk [vmem:[#allocation2 + $0x180] sm:$0xff] %vm5858, %v3890
        %8266 = vst.msk [vmem:[#allocation2 + $0x188] sm:$0xff] %vm5858, %v3891
        %8267 = vst.msk [vmem:[#allocation2 + $0x190] sm:$0xff] %vm5858, %v3892
        %8268 = vst.msk [vmem:[#allocation2 + $0x198] sm:$0xff] %vm5858, %v3893
        %8269 = vst.msk [vmem:[#allocation2 + $0x1a0] sm:$0xff] %vm5858, %v3894
        %8270 = vst.msk [vmem:[#allocation2 + $0x1a8] sm:$0xff] %vm5858, %v3895
        %8271 = vst.msk [vmem:[#allocation2 + $0x1b0] sm:$0xff] %vm5858, %v3896
        %8272 = vst.msk [vmem:[#allocation2 + $0x1b8] sm:$0xff] %vm5858, %v3897
        %8273 = vst.msk [vmem:[#allocation2 + $0x1c0] sm:$0xff] %vm5858, %v3898
        %8274 = vst.msk [vmem:[#allocation2 + $0x1c8] sm:$0xff] %vm5858, %v3899
        %8275 = vst.msk [vmem:[#allocation2 + $0x1d0] sm:$0xff] %vm5858, %v3900
        %8276 = vst.msk [vmem:[#allocation2 + $0x1d8] sm:$0xff] %vm5858, %v3901
        %8277 = vst.msk [vmem:[#allocation2 + $0x1e0] sm:$0xff] %vm5858, %v3902
        %8278 = vst.msk [vmem:[#allocation2 + $0x1e8] sm:$0xff] %vm5858, %v3903
        %8279 = vst.msk [vmem:[#allocation2 + $0x1f0] sm:$0xff] %vm5858, %v3904
        %8280 = vst.msk [vmem:[#allocation2 + $0x1f8] sm:$0xff] %vm5858, %v3905
        %8281 = vst.msk [vmem:[#allocation2 + $0x200] sm:$0xff] %vm5858, %v3906
        %8282 = vst.msk [vmem:[#allocation2 + $0x208] sm:$0xff] %vm5858, %v3907
        %8283 = vst.msk [vmem:[#allocation2 + $0x210] sm:$0xff] %vm5858, %v3908
        %8284 = vst.msk [vmem:[#allocation2 + $0x218] sm:$0xff] %vm5858, %v3909
        %8285 = vst.msk [vmem:[#allocation2 + $0x220] sm:$0xff] %vm5858, %v3910
        %8286 = vst.msk [vmem:[#allocation2 + $0x228] sm:$0xff] %vm5858, %v3911
        %8287 = vst.msk [vmem:[#allocation2 + $0x230] sm:$0xff] %vm5858, %v3912
        %8288 = vst.msk [vmem:[#allocation2 + $0x238] sm:$0xff] %vm5858, %v3913
        %8289 = vst.msk [vmem:[#allocation2 + $0x240] sm:$0xff] %vm5858, %v3914
        %8290 = vst.msk [vmem:[#allocation2 + $0x248] sm:$0xff] %vm5858, %v3915
        %8291 = vst.msk [vmem:[#allocation2 + $0x250] sm:$0xff] %vm5858, %v3916
        %8292 = vst.msk [vmem:[#allocation2 + $0x258] sm:$0xff] %vm5858, %v3917
        %8293 = vst.msk [vmem:[#allocation2 + $0x260] sm:$0xff] %vm5858, %v3918
        %8294 = vst.msk [vmem:[#allocation2 + $0x268] sm:$0xff] %vm5858, %v3919
        %8295 = vst.msk [vmem:[#allocation2 + $0x270] sm:$0xff] %vm5858, %v3920
        %8296 = vst.msk [vmem:[#allocation2 + $0x278] sm:$0xff] %vm5858, %v3921
        %8297 = vst.msk [vmem:[#allocation2 + $0x280] sm:$0xff] %vm5858, %v3922
        %8298 = vst.msk [vmem:[#allocation2 + $0x288] sm:$0xff] %vm5858, %v3923
        %8299 = vst.msk [vmem:[#allocation2 + $0x290] sm:$0xff] %vm5858, %v3924
        %8300 = vst.msk [vmem:[#allocation2 + $0x298] sm:$0xff] %vm5858, %v3925
        %8301 = vst.msk [vmem:[#allocation2 + $0x2a0] sm:$0xff] %vm5858, %v3926
        %8302 = vst.msk [vmem:[#allocation2 + $0x2a8] sm:$0xff] %vm5858, %v3927
        %8303 = vst.msk [vmem:[#allocation2 + $0x2b0] sm:$0xff] %vm5858, %v3928
        %8304 = vst.msk [vmem:[#allocation2 + $0x2b8] sm:$0xff] %vm5858, %v3929
        %8305 = vst.msk [vmem:[#allocation2 + $0x2c0] sm:$0xff] %vm5858, %v3930
        %8306 = vst.msk [vmem:[#allocation2 + $0x2c8] sm:$0xff] %vm5858, %v3931
        %8307 = vst.msk [vmem:[#allocation2 + $0x2d0] sm:$0xff] %vm5858, %v3932
        %8308 = vst.msk [vmem:[#allocation2 + $0x2d8] sm:$0xff] %vm5858, %v3933
        %8309 = vst.msk [vmem:[#allocation2 + $0x2e0] sm:$0xff] %vm5858, %v3934
        %8310 = vst.msk [vmem:[#allocation2 + $0x2e8] sm:$0xff] %vm5858, %v3935
        %8311 = vst.msk [vmem:[#allocation2 + $0x2f0] sm:$0xff] %vm5858, %v3936
        %8312 = vst.msk [vmem:[#allocation2 + $0x2f8] sm:$0xff] %vm5858, %v3937
        %p8313 = scmp.eq.s32.totalorder %s26, 1
        // Predicated region
        $region168: #{tpu_custom_call.1} parent=150 // pred_check
          %p8314 = pneg %p8313
        $region169: #{tpu_custom_call.1} parent=150 // pred_check_branch
          %8316 = sbr.rel (%p8314) target = $region171
        $region170: #{tpu_custom_call.1} parent=150 // pred_region
          %v8317 = vld [vmem:[#allocation4] sm:$0xff]
          %v8318 = vld [vmem:[#allocation4 + $0x8] sm:$0xff]
          %v8319 = vld [vmem:[#allocation4 + $0x10] sm:$0xff]
          %v8320 = vld [vmem:[#allocation4 + $0x18] sm:$0xff]
          %v8321 = vld [vmem:[#allocation4 + $0x20] sm:$0xff]
          %v8322 = vld [vmem:[#allocation4 + $0x28] sm:$0xff]
          %v8323 = vld [vmem:[#allocation4 + $0x30] sm:$0xff]
          %v8324 = vld [vmem:[#allocation4 + $0x38] sm:$0xff]
          %v8325 = vld [vmem:[#allocation4 + $0x40] sm:$0xff]
          %v8326 = vld [vmem:[#allocation4 + $0x48] sm:$0xff]
          %v8327 = vld [vmem:[#allocation4 + $0x50] sm:$0xff]
          %v8328 = vld [vmem:[#allocation4 + $0x58] sm:$0xff]
          %v8329 = vld [vmem:[#allocation4 + $0x60] sm:$0xff]
          %v8330 = vld [vmem:[#allocation4 + $0x68] sm:$0xff]
          %v8331 = vld [vmem:[#allocation4 + $0x70] sm:$0xff]
          %v8332 = vld [vmem:[#allocation4 + $0x78] sm:$0xff]
          %v8333 = vld [vmem:[#allocation4 + $0x80] sm:$0xff]
          %v8334 = vld [vmem:[#allocation4 + $0x88] sm:$0xff]
          %v8335 = vld [vmem:[#allocation4 + $0x90] sm:$0xff]
          %v8336 = vld [vmem:[#allocation4 + $0x98] sm:$0xff]
          %v8337 = vld [vmem:[#allocation4 + $0xa0] sm:$0xff]
          %v8338 = vld [vmem:[#allocation4 + $0xa8] sm:$0xff]
          %v8339 = vld [vmem:[#allocation4 + $0xb0] sm:$0xff]
          %v8340 = vld [vmem:[#allocation4 + $0xb8] sm:$0xff]
          %v8341 = vld [vmem:[#allocation4 + $0xc0] sm:$0xff]
          %v8342 = vld [vmem:[#allocation4 + $0xc8] sm:$0xff]
          %v8343 = vld [vmem:[#allocation4 + $0xd0] sm:$0xff]
          %v8344 = vld [vmem:[#allocation4 + $0xd8] sm:$0xff]
          %v8345 = vld [vmem:[#allocation4 + $0xe0] sm:$0xff]
          %v8346 = vld [vmem:[#allocation4 + $0xe8] sm:$0xff]
          %v8347 = vld [vmem:[#allocation4 + $0xf0] sm:$0xff]
          %v8348 = vld [vmem:[#allocation4 + $0xf8] sm:$0xff]
          %v8349 = vld [vmem:[#allocation3] sm:$0xff]
          %v8350 = vld [vmem:[#allocation3 + $0x8] sm:$0xff]
          %v8351 = vld [vmem:[#allocation3 + $0x10] sm:$0xff]
          %v8352 = vld [vmem:[#allocation3 + $0x18] sm:$0xff]
          %v8353 = vld [vmem:[#allocation3 + $0x20] sm:$0xff]
          %v8354 = vld [vmem:[#allocation3 + $0x28] sm:$0xff]
          %v8355 = vld [vmem:[#allocation3 + $0x30] sm:$0xff]
          %v8356 = vld [vmem:[#allocation3 + $0x38] sm:$0xff]
          %v8357 = vld [vmem:[#allocation3 + $0x40] sm:$0xff]
          %v8358 = vld [vmem:[#allocation3 + $0x48] sm:$0xff]
          %v8359 = vld [vmem:[#allocation3 + $0x50] sm:$0xff]
          %v8360 = vld [vmem:[#allocation3 + $0x58] sm:$0xff]
          %v8361 = vld [vmem:[#allocation3 + $0x60] sm:$0xff]
          %v8362 = vld [vmem:[#allocation3 + $0x68] sm:$0xff]
          %v8363 = vld [vmem:[#allocation3 + $0x70] sm:$0xff]
          %v8364 = vld [vmem:[#allocation3 + $0x78] sm:$0xff]
          %v8365 = vld [vmem:[#allocation3 + $0x80] sm:$0xff]
          %v8366 = vld [vmem:[#allocation3 + $0x88] sm:$0xff]
          %v8367 = vld [vmem:[#allocation3 + $0x90] sm:$0xff]
          %v8368 = vld [vmem:[#allocation3 + $0x98] sm:$0xff]
          %v8369 = vld [vmem:[#allocation3 + $0xa0] sm:$0xff]
          %v8370 = vld [vmem:[#allocation3 + $0xa8] sm:$0xff]
          %v8371 = vld [vmem:[#allocation3 + $0xb0] sm:$0xff]
          %v8372 = vld [vmem:[#allocation3 + $0xb8] sm:$0xff]
          %v8373 = vld [vmem:[#allocation3 + $0xc0] sm:$0xff]
          %v8374 = vld [vmem:[#allocation3 + $0xc8] sm:$0xff]
          %v8375 = vld [vmem:[#allocation3 + $0xd0] sm:$0xff]
          %v8376 = vld [vmem:[#allocation3 + $0xd8] sm:$0xff]
          %v8377 = vld [vmem:[#allocation3 + $0xe0] sm:$0xff]
          %v8378 = vld [vmem:[#allocation3 + $0xe8] sm:$0xff]
          %v8379 = vld [vmem:[#allocation3 + $0xf0] sm:$0xff]
          %v8380 = vld [vmem:[#allocation3 + $0xf8] sm:$0xff]
          %v8381 = vrcp.pop %v8349
          %v8382 = vrcp.pop %v8350
          %v8383 = vrcp.pop %v8351
          %v8384 = vrcp.pop %v8352
          %v8385 = vrcp.pop %v8353
          %v8386 = vrcp.pop %v8354
          %v8387 = vrcp.pop %v8355
          %v8388 = vrcp.pop %v8356
          %v8389 = vrcp.pop %v8357
          %v8390 = vrcp.pop %v8358
          %v8391 = vrcp.pop %v8359
          %v8392 = vrcp.pop %v8360
          %v8393 = vrcp.pop %v8361
          %v8394 = vrcp.pop %v8362
          %v8395 = vrcp.pop %v8363
          %v8396 = vrcp.pop %v8364
          %v8397 = vrcp.pop %v8365
          %v8398 = vrcp.pop %v8366
          %v8399 = vrcp.pop %v8367
          %v8400 = vrcp.pop %v8368
          %v8401 = vrcp.pop %v8369
          %v8402 = vrcp.pop %v8370
          %v8403 = vrcp.pop %v8371
          %v8404 = vrcp.pop %v8372
          %v8405 = vrcp.pop %v8373
          %v8406 = vrcp.pop %v8374
          %v8407 = vrcp.pop %v8375
          %v8408 = vrcp.pop %v8376
          %v8409 = vrcp.pop %v8377
          %v8410 = vrcp.pop %v8378
          %v8411 = vrcp.pop %v8379
          %v8412 = vrcp.pop %v8380
          %8414 = vset.pattern.permute.xlu0 0
          %8415 = vperm.xlu0 %8414, %v8381
          %v8416 = vpop.permute.xlu0 %8415
          %8419 = vset.pattern.permute.xlu0 0
          %8420 = vperm.xlu0 %8419, %v8382
          %v8421 = vpop.permute.xlu0 %8420
          %8424 = vset.pattern.permute.xlu0 0
          %8425 = vperm.xlu0 %8424, %v8383
          %v8426 = vpop.permute.xlu0 %8425
          %8429 = vset.pattern.permute.xlu0 0
          %8430 = vperm.xlu0 %8429, %v8384
          %v8431 = vpop.permute.xlu0 %8430
          %8434 = vset.pattern.permute.xlu0 0
          %8435 = vperm.xlu0 %8434, %v8385
          %v8436 = vpop.permute.xlu0 %8435
          %8439 = vset.pattern.permute.xlu0 0
          %8440 = vperm.xlu0 %8439, %v8386
          %v8441 = vpop.permute.xlu0 %8440
          %8444 = vset.pattern.permute.xlu0 0
          %8445 = vperm.xlu0 %8444, %v8387
          %v8446 = vpop.permute.xlu0 %8445
          %8449 = vset.pattern.permute.xlu0 0
          %8450 = vperm.xlu0 %8449, %v8388
          %v8451 = vpop.permute.xlu0 %8450
          %8454 = vset.pattern.permute.xlu0 0
          %8455 = vperm.xlu0 %8454, %v8389
          %v8456 = vpop.permute.xlu0 %8455
          %8459 = vset.pattern.permute.xlu0 0
          %8460 = vperm.xlu0 %8459, %v8390
          %v8461 = vpop.permute.xlu0 %8460
          %8464 = vset.pattern.permute.xlu0 0
          %8465 = vperm.xlu0 %8464, %v8391
          %v8466 = vpop.permute.xlu0 %8465
          %8469 = vset.pattern.permute.xlu0 0
          %8470 = vperm.xlu0 %8469, %v8392
          %v8471 = vpop.permute.xlu0 %8470
          %8474 = vset.pattern.permute.xlu0 0
          %8475 = vperm.xlu0 %8474, %v8393
          %v8476 = vpop.permute.xlu0 %8475
          %8479 = vset.pattern.permute.xlu0 0
          %8480 = vperm.xlu0 %8479, %v8394
          %v8481 = vpop.permute.xlu0 %8480
          %8484 = vset.pattern.permute.xlu0 0
          %8485 = vperm.xlu0 %8484, %v8395
          %v8486 = vpop.permute.xlu0 %8485
          %8489 = vset.pattern.permute.xlu0 0
          %8490 = vperm.xlu0 %8489, %v8396
          %v8491 = vpop.permute.xlu0 %8490
          %8494 = vset.pattern.permute.xlu0 0
          %8495 = vperm.xlu0 %8494, %v8397
          %v8496 = vpop.permute.xlu0 %8495
          %8499 = vset.pattern.permute.xlu0 0
          %8500 = vperm.xlu0 %8499, %v8398
          %v8501 = vpop.permute.xlu0 %8500
          %8504 = vset.pattern.permute.xlu0 0
          %8505 = vperm.xlu0 %8504, %v8399
          %v8506 = vpop.permute.xlu0 %8505
          %8509 = vset.pattern.permute.xlu0 0
          %8510 = vperm.xlu0 %8509, %v8400
          %v8511 = vpop.permute.xlu0 %8510
          %8514 = vset.pattern.permute.xlu0 0
          %8515 = vperm.xlu0 %8514, %v8401
          %v8516 = vpop.permute.xlu0 %8515
          %8519 = vset.pattern.permute.xlu0 0
          %8520 = vperm.xlu0 %8519, %v8402
          %v8521 = vpop.permute.xlu0 %8520
          %8524 = vset.pattern.permute.xlu0 0
          %8525 = vperm.xlu0 %8524, %v8403
          %v8526 = vpop.permute.xlu0 %8525
          %8529 = vset.pattern.permute.xlu0 0
          %8530 = vperm.xlu0 %8529, %v8404
          %v8531 = vpop.permute.xlu0 %8530
          %8534 = vset.pattern.permute.xlu0 0
          %8535 = vperm.xlu0 %8534, %v8405
          %v8536 = vpop.permute.xlu0 %8535
          %8539 = vset.pattern.permute.xlu0 0
          %8540 = vperm.xlu0 %8539, %v8406
          %v8541 = vpop.permute.xlu0 %8540
          %8544 = vset.pattern.permute.xlu0 0
          %8545 = vperm.xlu0 %8544, %v8407
          %v8546 = vpop.permute.xlu0 %8545
          %8549 = vset.pattern.permute.xlu0 0
          %8550 = vperm.xlu0 %8549, %v8408
          %v8551 = vpop.permute.xlu0 %8550
          %8554 = vset.pattern.permute.xlu0 0
          %8555 = vperm.xlu0 %8554, %v8409
          %v8556 = vpop.permute.xlu0 %8555
          %8559 = vset.pattern.permute.xlu0 0
          %8560 = vperm.xlu0 %8559, %v8410
          %v8561 = vpop.permute.xlu0 %8560
          %8564 = vset.pattern.permute.xlu0 0
          %8565 = vperm.xlu0 %8564, %v8411
          %v8566 = vpop.permute.xlu0 %8565
          %8569 = vset.pattern.permute.xlu0 0
          %8570 = vperm.xlu0 %8569, %v8412
          %v8571 = vpop.permute.xlu0 %8570
          %v8573 = vmul.f32 %v8317, %v8416
          %v8574 = vmul.f32 %v8318, %v8421
          %v8575 = vmul.f32 %v8319, %v8426
          %v8576 = vmul.f32 %v8320, %v8431
          %v8577 = vmul.f32 %v8321, %v8436
          %v8578 = vmul.f32 %v8322, %v8441
          %v8579 = vmul.f32 %v8323, %v8446
          %v8580 = vmul.f32 %v8324, %v8451
          %v8581 = vmul.f32 %v8325, %v8456
          %v8582 = vmul.f32 %v8326, %v8461
          %v8583 = vmul.f32 %v8327, %v8466
          %v8584 = vmul.f32 %v8328, %v8471
          %v8585 = vmul.f32 %v8329, %v8476
          %v8586 = vmul.f32 %v8330, %v8481
          %v8587 = vmul.f32 %v8331, %v8486
          %v8588 = vmul.f32 %v8332, %v8491
          %v8589 = vmul.f32 %v8333, %v8496
          %v8590 = vmul.f32 %v8334, %v8501
          %v8591 = vmul.f32 %v8335, %v8506
          %v8592 = vmul.f32 %v8336, %v8511
          %v8593 = vmul.f32 %v8337, %v8516
          %v8594 = vmul.f32 %v8338, %v8521
          %v8595 = vmul.f32 %v8339, %v8526
          %v8596 = vmul.f32 %v8340, %v8531
          %v8597 = vmul.f32 %v8341, %v8536
          %v8598 = vmul.f32 %v8342, %v8541
          %v8599 = vmul.f32 %v8343, %v8546
          %v8600 = vmul.f32 %v8344, %v8551
          %v8601 = vmul.f32 %v8345, %v8556
          %v8602 = vmul.f32 %v8346, %v8561
          %v8603 = vmul.f32 %v8347, %v8566
          %v8604 = vmul.f32 %v8348, %v8571
          %v8605 = vpack.c.bf16 %v8574, %v8573
          %v8606 = vpack.c.bf16 %v8576, %v8575
          %v8607 = vpack.c.bf16 %v8578, %v8577
          %v8608 = vpack.c.bf16 %v8580, %v8579
          %v8609 = vpack.c.bf16 %v8582, %v8581
          %v8610 = vpack.c.bf16 %v8584, %v8583
          %v8611 = vpack.c.bf16 %v8586, %v8585
          %v8612 = vpack.c.bf16 %v8588, %v8587
          %v8613 = vpack.c.bf16 %v8590, %v8589
          %v8614 = vpack.c.bf16 %v8592, %v8591
          %v8615 = vpack.c.bf16 %v8594, %v8593
          %v8616 = vpack.c.bf16 %v8596, %v8595
          %v8617 = vpack.c.bf16 %v8598, %v8597
          %v8618 = vpack.c.bf16 %v8600, %v8599
          %v8619 = vpack.c.bf16 %v8602, %v8601
          %v8620 = vpack.c.bf16 %v8604, %v8603
          %v8621 = vld [vmem:[%s3] sm:$0xf]
          %v8622 = vld [vmem:[%s3 + $0x4] sm:$0xf]
          %v8623 = vld [vmem:[%s3 + $0x8] sm:$0xf]
          %v8624 = vld [vmem:[%s3 + $0xc] sm:$0xf]
          %v8625 = vld [vmem:[%s3 + $0x10] sm:$0xf]
          %v8626 = vld [vmem:[%s3 + $0x14] sm:$0xf]
          %v8627 = vld [vmem:[%s3 + $0x18] sm:$0xf]
          %v8628 = vld [vmem:[%s3 + $0x1c] sm:$0xf]
          %s8629 = scalar_lea.vmem [#allocation4], 256
          %v8630 = vld [vmem:[%s8629] sm:$0xff]
          %v8631 = vld [vmem:[%s8629 + $0x8] sm:$0xff]
          %v8632 = vld [vmem:[%s8629 + $0x10] sm:$0xff]
          %v8633 = vld [vmem:[%s8629 + $0x18] sm:$0xff]
          %v8634 = vld [vmem:[%s8629 + $0x20] sm:$0xff]
          %v8635 = vld [vmem:[%s8629 + $0x28] sm:$0xff]
          %v8636 = vld [vmem:[%s8629 + $0x30] sm:$0xff]
          %v8637 = vld [vmem:[%s8629 + $0x38] sm:$0xff]
          %v8638 = vld [vmem:[%s8629 + $0x40] sm:$0xff]
          %v8639 = vld [vmem:[%s8629 + $0x48] sm:$0xff]
          %v8640 = vld [vmem:[%s8629 + $0x50] sm:$0xff]
          %v8641 = vld [vmem:[%s8629 + $0x58] sm:$0xff]
          %v8642 = vld [vmem:[%s8629 + $0x60] sm:$0xff]
          %v8643 = vld [vmem:[%s8629 + $0x68] sm:$0xff]
          %v8644 = vld [vmem:[%s8629 + $0x70] sm:$0xff]
          %v8645 = vld [vmem:[%s8629 + $0x78] sm:$0xff]
          %v8646 = vld [vmem:[%s8629 + $0x80] sm:$0xff]
          %v8647 = vld [vmem:[%s8629 + $0x88] sm:$0xff]
          %v8648 = vld [vmem:[%s8629 + $0x90] sm:$0xff]
          %v8649 = vld [vmem:[%s8629 + $0x98] sm:$0xff]
          %v8650 = vld [vmem:[%s8629 + $0xa0] sm:$0xff]
          %v8651 = vld [vmem:[%s8629 + $0xa8] sm:$0xff]
          %v8652 = vld [vmem:[%s8629 + $0xb0] sm:$0xff]
          %v8653 = vld [vmem:[%s8629 + $0xb8] sm:$0xff]
          %v8654 = vld [vmem:[%s8629 + $0xc0] sm:$0xff]
          %v8655 = vld [vmem:[%s8629 + $0xc8] sm:$0xff]
          %v8656 = vld [vmem:[%s8629 + $0xd0] sm:$0xff]
          %v8657 = vld [vmem:[%s8629 + $0xd8] sm:$0xff]
          %v8658 = vld [vmem:[%s8629 + $0xe0] sm:$0xff]
          %v8659 = vld [vmem:[%s8629 + $0xe8] sm:$0xff]
          %v8660 = vld [vmem:[%s8629 + $0xf0] sm:$0xff]
          %v8661 = vld [vmem:[%s8629 + $0xf8] sm:$0xff]
          %s8662 = scalar_lea.vmem [#allocation3], 256
          %v8663 = vld [vmem:[%s8662] sm:$0xff]
          %v8664 = vld [vmem:[%s8662 + $0x8] sm:$0xff]
          %v8665 = vld [vmem:[%s8662 + $0x10] sm:$0xff]
          %v8666 = vld [vmem:[%s8662 + $0x18] sm:$0xff]
          %v8667 = vld [vmem:[%s8662 + $0x20] sm:$0xff]
          %v8668 = vld [vmem:[%s8662 + $0x28] sm:$0xff]
          %v8669 = vld [vmem:[%s8662 + $0x30] sm:$0xff]
          %v8670 = vld [vmem:[%s8662 + $0x38] sm:$0xff]
          %v8671 = vld [vmem:[%s8662 + $0x40] sm:$0xff]
          %v8672 = vld [vmem:[%s8662 + $0x48] sm:$0xff]
          %v8673 = vld [vmem:[%s8662 + $0x50] sm:$0xff]
          %v8674 = vld [vmem:[%s8662 + $0x58] sm:$0xff]
          %v8675 = vld [vmem:[%s8662 + $0x60] sm:$0xff]
          %v8676 = vld [vmem:[%s8662 + $0x68] sm:$0xff]
          %v8677 = vld [vmem:[%s8662 + $0x70] sm:$0xff]
          %v8678 = vld [vmem:[%s8662 + $0x78] sm:$0xff]
          %v8679 = vld [vmem:[%s8662 + $0x80] sm:$0xff]
          %v8680 = vld [vmem:[%s8662 + $0x88] sm:$0xff]
          %v8681 = vld [vmem:[%s8662 + $0x90] sm:$0xff]
          %v8682 = vld [vmem:[%s8662 + $0x98] sm:$0xff]
          %v8683 = vld [vmem:[%s8662 + $0xa0] sm:$0xff]
          %v8684 = vld [vmem:[%s8662 + $0xa8] sm:$0xff]
          %v8685 = vld [vmem:[%s8662 + $0xb0] sm:$0xff]
          %v8686 = vld [vmem:[%s8662 + $0xb8] sm:$0xff]
          %v8687 = vld [vmem:[%s8662 + $0xc0] sm:$0xff]
          %v8688 = vld [vmem:[%s8662 + $0xc8] sm:$0xff]
          %v8689 = vld [vmem:[%s8662 + $0xd0] sm:$0xff]
          %v8690 = vld [vmem:[%s8662 + $0xd8] sm:$0xff]
          %v8691 = vld [vmem:[%s8662 + $0xe0] sm:$0xff]
          %v8692 = vld [vmem:[%s8662 + $0xe8] sm:$0xff]
          %v8693 = vld [vmem:[%s8662 + $0xf0] sm:$0xff]
          %v8694 = vld [vmem:[%s8662 + $0xf8] sm:$0xff]
          %v8695 = vrcp.pop %v8663
          %v8696 = vrcp.pop %v8664
          %v8697 = vrcp.pop %v8665
          %v8698 = vrcp.pop %v8666
          %v8699 = vrcp.pop %v8667
          %v8700 = vrcp.pop %v8668
          %v8701 = vrcp.pop %v8669
          %v8702 = vrcp.pop %v8670
          %v8703 = vrcp.pop %v8671
          %v8704 = vrcp.pop %v8672
          %v8705 = vrcp.pop %v8673
          %v8706 = vrcp.pop %v8674
          %v8707 = vrcp.pop %v8675
          %v8708 = vrcp.pop %v8676
          %v8709 = vrcp.pop %v8677
          %v8710 = vrcp.pop %v8678
          %v8711 = vrcp.pop %v8679
          %v8712 = vrcp.pop %v8680
          %v8713 = vrcp.pop %v8681
          %v8714 = vrcp.pop %v8682
          %v8715 = vrcp.pop %v8683
          %v8716 = vrcp.pop %v8684
          %v8717 = vrcp.pop %v8685
          %v8718 = vrcp.pop %v8686
          %v8719 = vrcp.pop %v8687
          %v8720 = vrcp.pop %v8688
          %v8721 = vrcp.pop %v8689
          %v8722 = vrcp.pop %v8690
          %v8723 = vrcp.pop %v8691
          %v8724 = vrcp.pop %v8692
          %v8725 = vrcp.pop %v8693
          %v8726 = vrcp.pop %v8694
          %8728 = vset.pattern.permute.xlu0 0
          %8729 = vperm.xlu0 %8728, %v8695
          %v8730 = vpop.permute.xlu0 %8729
          %8733 = vset.pattern.permute.xlu0 0
          %8734 = vperm.xlu0 %8733, %v8696
          %v8735 = vpop.permute.xlu0 %8734
          %8738 = vset.pattern.permute.xlu0 0
          %8739 = vperm.xlu0 %8738, %v8697
          %v8740 = vpop.permute.xlu0 %8739
          %8743 = vset.pattern.permute.xlu0 0
          %8744 = vperm.xlu0 %8743, %v8698
          %v8745 = vpop.permute.xlu0 %8744
          %8748 = vset.pattern.permute.xlu0 0
          %8749 = vperm.xlu0 %8748, %v8699
          %v8750 = vpop.permute.xlu0 %8749
          %8753 = vset.pattern.permute.xlu0 0
          %8754 = vperm.xlu0 %8753, %v8700
          %v8755 = vpop.permute.xlu0 %8754
          %8758 = vset.pattern.permute.xlu0 0
          %8759 = vperm.xlu0 %8758, %v8701
          %v8760 = vpop.permute.xlu0 %8759
          %8763 = vset.pattern.permute.xlu0 0
          %8764 = vperm.xlu0 %8763, %v8702
          %v8765 = vpop.permute.xlu0 %8764
          %8768 = vset.pattern.permute.xlu0 0
          %8769 = vperm.xlu0 %8768, %v8703
          %v8770 = vpop.permute.xlu0 %8769
          %8773 = vset.pattern.permute.xlu0 0
          %8774 = vperm.xlu0 %8773, %v8704
          %v8775 = vpop.permute.xlu0 %8774
          %8778 = vset.pattern.permute.xlu0 0
          %8779 = vperm.xlu0 %8778, %v8705
          %v8780 = vpop.permute.xlu0 %8779
          %8783 = vset.pattern.permute.xlu0 0
          %8784 = vperm.xlu0 %8783, %v8706
          %v8785 = vpop.permute.xlu0 %8784
          %8788 = vset.pattern.permute.xlu0 0
          %8789 = vperm.xlu0 %8788, %v8707
          %v8790 = vpop.permute.xlu0 %8789
          %8793 = vset.pattern.permute.xlu0 0
          %8794 = vperm.xlu0 %8793, %v8708
          %v8795 = vpop.permute.xlu0 %8794
          %8798 = vset.pattern.permute.xlu0 0
          %8799 = vperm.xlu0 %8798, %v8709
          %v8800 = vpop.permute.xlu0 %8799
          %8803 = vset.pattern.permute.xlu0 0
          %8804 = vperm.xlu0 %8803, %v8710
          %v8805 = vpop.permute.xlu0 %8804
          %8808 = vset.pattern.permute.xlu0 0
          %8809 = vperm.xlu0 %8808, %v8711
          %v8810 = vpop.permute.xlu0 %8809
          %8813 = vset.pattern.permute.xlu0 0
          %8814 = vperm.xlu0 %8813, %v8712
          %v8815 = vpop.permute.xlu0 %8814
          %8818 = vset.pattern.permute.xlu0 0
          %8819 = vperm.xlu0 %8818, %v8713
          %v8820 = vpop.permute.xlu0 %8819
          %8823 = vset.pattern.permute.xlu0 0
          %8824 = vperm.xlu0 %8823, %v8714
          %v8825 = vpop.permute.xlu0 %8824
          %8828 = vset.pattern.permute.xlu0 0
          %8829 = vperm.xlu0 %8828, %v8715
          %v8830 = vpop.permute.xlu0 %8829
          %8833 = vset.pattern.permute.xlu0 0
          %8834 = vperm.xlu0 %8833, %v8716
          %v8835 = vpop.permute.xlu0 %8834
          %8838 = vset.pattern.permute.xlu0 0
          %8839 = vperm.xlu0 %8838, %v8717
          %v8840 = vpop.permute.xlu0 %8839
          %8843 = vset.pattern.permute.xlu0 0
          %8844 = vperm.xlu0 %8843, %v8718
          %v8845 = vpop.permute.xlu0 %8844
          %8848 = vset.pattern.permute.xlu0 0
          %8849 = vperm.xlu0 %8848, %v8719
          %v8850 = vpop.permute.xlu0 %8849
          %8853 = vset.pattern.permute.xlu0 0
          %8854 = vperm.xlu0 %8853, %v8720
          %v8855 = vpop.permute.xlu0 %8854
          %8858 = vset.pattern.permute.xlu0 0
          %8859 = vperm.xlu0 %8858, %v8721
          %v8860 = vpop.permute.xlu0 %8859
          %8863 = vset.pattern.permute.xlu0 0
          %8864 = vperm.xlu0 %8863, %v8722
          %v8865 = vpop.permute.xlu0 %8864
          %8868 = vset.pattern.permute.xlu0 0
          %8869 = vperm.xlu0 %8868, %v8723
          %v8870 = vpop.permute.xlu0 %8869
          %8873 = vset.pattern.permute.xlu0 0
          %8874 = vperm.xlu0 %8873, %v8724
          %v8875 = vpop.permute.xlu0 %8874
          %8878 = vset.pattern.permute.xlu0 0
          %8879 = vperm.xlu0 %8878, %v8725
          %v8880 = vpop.permute.xlu0 %8879
          %8883 = vset.pattern.permute.xlu0 0
          %8884 = vperm.xlu0 %8883, %v8726
          %v8885 = vpop.permute.xlu0 %8884
          %v8887 = vmul.f32 %v8630, %v8730
          %v8888 = vmul.f32 %v8631, %v8735
          %v8889 = vmul.f32 %v8632, %v8740
          %v8890 = vmul.f32 %v8633, %v8745
          %v8891 = vmul.f32 %v8634, %v8750
          %v8892 = vmul.f32 %v8635, %v8755
          %v8893 = vmul.f32 %v8636, %v8760
          %v8894 = vmul.f32 %v8637, %v8765
          %v8895 = vmul.f32 %v8638, %v8770
          %v8896 = vmul.f32 %v8639, %v8775
          %v8897 = vmul.f32 %v8640, %v8780
          %v8898 = vmul.f32 %v8641, %v8785
          %v8899 = vmul.f32 %v8642, %v8790
          %v8900 = vmul.f32 %v8643, %v8795
          %v8901 = vmul.f32 %v8644, %v8800
          %v8902 = vmul.f32 %v8645, %v8805
          %v8903 = vmul.f32 %v8646, %v8810
          %v8904 = vmul.f32 %v8647, %v8815
          %v8905 = vmul.f32 %v8648, %v8820
          %v8906 = vmul.f32 %v8649, %v8825
          %v8907 = vmul.f32 %v8650, %v8830
          %v8908 = vmul.f32 %v8651, %v8835
          %v8909 = vmul.f32 %v8652, %v8840
          %v8910 = vmul.f32 %v8653, %v8845
          %v8911 = vmul.f32 %v8654, %v8850
          %v8912 = vmul.f32 %v8655, %v8855
          %v8913 = vmul.f32 %v8656, %v8860
          %v8914 = vmul.f32 %v8657, %v8865
          %v8915 = vmul.f32 %v8658, %v8870
          %v8916 = vmul.f32 %v8659, %v8875
          %v8917 = vmul.f32 %v8660, %v8880
          %v8918 = vmul.f32 %v8661, %v8885
          %v8919 = vpack.c.bf16 %v8888, %v8887
          %v8920 = vpack.c.bf16 %v8890, %v8889
          %v8921 = vpack.c.bf16 %v8892, %v8891
          %v8922 = vpack.c.bf16 %v8894, %v8893
          %v8923 = vpack.c.bf16 %v8896, %v8895
          %v8924 = vpack.c.bf16 %v8898, %v8897
          %v8925 = vpack.c.bf16 %v8900, %v8899
          %v8926 = vpack.c.bf16 %v8902, %v8901
          %v8927 = vpack.c.bf16 %v8904, %v8903
          %v8928 = vpack.c.bf16 %v8906, %v8905
          %v8929 = vpack.c.bf16 %v8908, %v8907
          %v8930 = vpack.c.bf16 %v8910, %v8909
          %v8931 = vpack.c.bf16 %v8912, %v8911
          %v8932 = vpack.c.bf16 %v8914, %v8913
          %v8933 = vpack.c.bf16 %v8916, %v8915
          %v8934 = vpack.c.bf16 %v8918, %v8917
          %s8935 = scalar_lea.vmem %s3, 32
          %v8936 = vld [vmem:[%s8935] sm:$0xf]
          %v8937 = vld [vmem:[%s8935 + $0x4] sm:$0xf]
          %v8938 = vld [vmem:[%s8935 + $0x8] sm:$0xf]
          %v8939 = vld [vmem:[%s8935 + $0xc] sm:$0xf]
          %v8940 = vld [vmem:[%s8935 + $0x10] sm:$0xf]
          %v8941 = vld [vmem:[%s8935 + $0x14] sm:$0xf]
          %v8942 = vld [vmem:[%s8935 + $0x18] sm:$0xf]
          %v8943 = vld [vmem:[%s8935 + $0x1c] sm:$0xf]
          %v8952 = vunpack.c.l.b16 %v8936
          %v8953 = vunpack.c.l.b16 %v8937
          %v8954 = vunpack.c.l.b16 %v8938
          %v8955 = vunpack.c.l.b16 %v8939
          %v8956 = vunpack.c.l.b16 %v8940
          %v8957 = vunpack.c.l.b16 %v8941
          %v8958 = vunpack.c.l.b16 %v8942
          %v8959 = vunpack.c.l.b16 %v8943
          %v8960 = vpack.c.b16 %v8953, %v8952
          %v8961 = vpack.c.b16 %v8955, %v8954
          %v8962 = vpack.c.b16 %v8957, %v8956
          %v8963 = vpack.c.b16 %v8959, %v8958
          %v8969 = vsel %vm2315, %v8919, 0
          %v8972 = vsel %vm2315, %v8920, 0
          %v8975 = vsel %vm2315, %v8921, 0
          %v8978 = vsel %vm2315, %v8922, 0
          %v8981 = vsel %vm2315, %v8923, 0
          %v8984 = vsel %vm2315, %v8924, 0
          %v8987 = vsel %vm2315, %v8925, 0
          %v8990 = vsel %vm2315, %v8926, 0
          %v8993 = vsel %vm2315, %v8927, 0
          %v8996 = vsel %vm2315, %v8928, 0
          %v8999 = vsel %vm2315, %v8929, 0
          %v9002 = vsel %vm2315, %v8930, 0
          %v9005 = vsel %vm2315, %v8931, 0
          %v9008 = vsel %vm2315, %v8932, 0
          %v9011 = vsel %vm2315, %v8933, 0
          %v9014 = vsel %vm2315, %v8934, 0
          %9016 = vmatpush.bf16.msra.mxu0 0
          %9017 = vmatpush.bf16.msra.mxu0 0
          %9018 = vmatpush.bf16.msra.mxu0 0
          %9019 = vmatpush.bf16.msra.mxu0 0
          %9020 = vmatpush.bf16.msra.mxu0 %v8963
          %9021 = vmatpush.bf16.msra.mxu0 %v8962
          %9022 = vmatpush.bf16.msra.mxu0 %v8961
          %9023 = vmatpush.bf16.msra.mxu0 %v8960
          %9024 = vmatmul.bf16.gmra.mxu0 %v8969
          %v9025 = vpop.f32.mrf.mxu0
          %v9026 = vadd.f32 0.0, %v9025
          %v9027 = vpop.f32.mrf.mxu0
          %v9028 = vadd.f32 0.0, %v9027
          %9029 = vmatmul.bf16.gmra.mxu0 %v8972
          %v9030 = vpop.f32.mrf.mxu0
          %v9031 = vadd.f32 0.0, %v9030
          %v9032 = vpop.f32.mrf.mxu0
          %v9033 = vadd.f32 0.0, %v9032
          %9034 = vmatmul.bf16.gmra.mxu0 %v8975
          %v9035 = vpop.f32.mrf.mxu0
          %v9036 = vadd.f32 0.0, %v9035
          %v9037 = vpop.f32.mrf.mxu0
          %v9038 = vadd.f32 0.0, %v9037
          %9039 = vmatmul.bf16.gmra.mxu0 %v8978
          %v9040 = vpop.f32.mrf.mxu0
          %v9041 = vadd.f32 0.0, %v9040
          %v9042 = vpop.f32.mrf.mxu0
          %v9043 = vadd.f32 0.0, %v9042
          %9044 = vmatmul.bf16.gmra.mxu0 %v8981
          %v9045 = vpop.f32.mrf.mxu0
          %v9046 = vadd.f32 0.0, %v9045
          %v9047 = vpop.f32.mrf.mxu0
          %v9048 = vadd.f32 0.0, %v9047
          %9049 = vmatmul.bf16.gmra.mxu0 %v8984
          %v9050 = vpop.f32.mrf.mxu0
          %v9051 = vadd.f32 0.0, %v9050
          %v9052 = vpop.f32.mrf.mxu0
          %v9053 = vadd.f32 0.0, %v9052
          %9054 = vmatmul.bf16.gmra.mxu0 %v8987
          %v9055 = vpop.f32.mrf.mxu0
          %v9056 = vadd.f32 0.0, %v9055
          %v9057 = vpop.f32.mrf.mxu0
          %v9058 = vadd.f32 0.0, %v9057
          %9059 = vmatmul.bf16.gmra.mxu0 %v8990
          %v9060 = vpop.f32.mrf.mxu0
          %v9061 = vadd.f32 0.0, %v9060
          %v9062 = vpop.f32.mrf.mxu0
          %v9063 = vadd.f32 0.0, %v9062
          %9064 = vmatmul.bf16.gmra.mxu0 %v8993
          %v9065 = vpop.f32.mrf.mxu0
          %v9066 = vadd.f32 0.0, %v9065
          %v9067 = vpop.f32.mrf.mxu0
          %v9068 = vadd.f32 0.0, %v9067
          %9069 = vmatmul.bf16.gmra.mxu0 %v8996
          %v9070 = vpop.f32.mrf.mxu0
          %v9071 = vadd.f32 0.0, %v9070
          %v9072 = vpop.f32.mrf.mxu0
          %v9073 = vadd.f32 0.0, %v9072
          %9074 = vmatmul.bf16.gmra.mxu0 %v8999
          %v9075 = vpop.f32.mrf.mxu0
          %v9076 = vadd.f32 0.0, %v9075
          %v9077 = vpop.f32.mrf.mxu0
          %v9078 = vadd.f32 0.0, %v9077
          %9079 = vmatmul.bf16.gmra.mxu0 %v9002
          %v9080 = vpop.f32.mrf.mxu0
          %v9081 = vadd.f32 0.0, %v9080
          %v9082 = vpop.f32.mrf.mxu0
          %v9083 = vadd.f32 0.0, %v9082
          %9084 = vmatmul.bf16.gmra.mxu0 %v9005
          %v9085 = vpop.f32.mrf.mxu0
          %v9086 = vadd.f32 0.0, %v9085
          %v9087 = vpop.f32.mrf.mxu0
          %v9088 = vadd.f32 0.0, %v9087
          %9089 = vmatmul.bf16.gmra.mxu0 %v9008
          %v9090 = vpop.f32.mrf.mxu0
          %v9091 = vadd.f32 0.0, %v9090
          %v9092 = vpop.f32.mrf.mxu0
          %v9093 = vadd.f32 0.0, %v9092
          %9094 = vmatmul.bf16.gmra.mxu0 %v9011
          %v9095 = vpop.f32.mrf.mxu0
          %v9096 = vadd.f32 0.0, %v9095
          %v9097 = vpop.f32.mrf.mxu0
          %v9098 = vadd.f32 0.0, %v9097
          %9099 = vmatmul.bf16.gmra.mxu0 %v9014
          %v9100 = vpop.f32.mrf.mxu0
          %v9101 = vadd.f32 0.0, %v9100
          %v9102 = vpop.f32.mrf.mxu0
          %v9103 = vadd.f32 0.0, %v9102
          %9104 = vdwg.mxu0
          %v9113 = vunpack.c.l.b16 %v8621
          %v9114 = vunpack.c.l.b16 %v8622
          %v9115 = vunpack.c.l.b16 %v8623
          %v9116 = vunpack.c.l.b16 %v8624
          %v9117 = vunpack.c.l.b16 %v8625
          %v9118 = vunpack.c.l.b16 %v8626
          %v9119 = vunpack.c.l.b16 %v8627
          %v9120 = vunpack.c.l.b16 %v8628
          %v9121 = vpack.c.b16 %v9114, %v9113
          %v9122 = vpack.c.b16 %v9116, %v9115
          %v9123 = vpack.c.b16 %v9118, %v9117
          %v9124 = vpack.c.b16 %v9120, %v9119
          %v9130 = vsel %vm2315, %v8605, 0
          %v9133 = vsel %vm2315, %v8606, 0
          %v9136 = vsel %vm2315, %v8607, 0
          %v9139 = vsel %vm2315, %v8608, 0
          %v9142 = vsel %vm2315, %v8609, 0
          %v9145 = vsel %vm2315, %v8610, 0
          %v9148 = vsel %vm2315, %v8611, 0
          %v9151 = vsel %vm2315, %v8612, 0
          %v9154 = vsel %vm2315, %v8613, 0
          %v9157 = vsel %vm2315, %v8614, 0
          %v9160 = vsel %vm2315, %v8615, 0
          %v9163 = vsel %vm2315, %v8616, 0
          %v9166 = vsel %vm2315, %v8617, 0
          %v9169 = vsel %vm2315, %v8618, 0
          %v9172 = vsel %vm2315, %v8619, 0
          %v9175 = vsel %vm2315, %v8620, 0
          %9177 = vmatpush.bf16.msra.mxu0 0
          %9178 = vmatpush.bf16.msra.mxu0 0
          %9179 = vmatpush.bf16.msra.mxu0 0
          %9180 = vmatpush.bf16.msra.mxu0 0
          %9181 = vmatpush.bf16.msra.mxu0 %v9124
          %9182 = vmatpush.bf16.msra.mxu0 %v9123
          %9183 = vmatpush.bf16.msra.mxu0 %v9122
          %9184 = vmatpush.bf16.msra.mxu0 %v9121
          %9185 = vmatmul.bf16.gmra.mxu0 %v9130
          %v9186 = vpop.f32.mrf.mxu0
          %v9187 = vadd.f32 %v9026, %v9186
          %v9188 = vpop.f32.mrf.mxu0
          %v9189 = vadd.f32 %v9028, %v9188
          %9190 = vmatmul.bf16.gmra.mxu0 %v9133
          %v9191 = vpop.f32.mrf.mxu0
          %v9192 = vadd.f32 %v9031, %v9191
          %v9193 = vpop.f32.mrf.mxu0
          %v9194 = vadd.f32 %v9033, %v9193
          %9195 = vmatmul.bf16.gmra.mxu0 %v9136
          %v9196 = vpop.f32.mrf.mxu0
          %v9197 = vadd.f32 %v9036, %v9196
          %v9198 = vpop.f32.mrf.mxu0
          %v9199 = vadd.f32 %v9038, %v9198
          %9200 = vmatmul.bf16.gmra.mxu0 %v9139
          %v9201 = vpop.f32.mrf.mxu0
          %v9202 = vadd.f32 %v9041, %v9201
          %v9203 = vpop.f32.mrf.mxu0
          %v9204 = vadd.f32 %v9043, %v9203
          %9205 = vmatmul.bf16.gmra.mxu0 %v9142
          %v9206 = vpop.f32.mrf.mxu0
          %v9207 = vadd.f32 %v9046, %v9206
          %v9208 = vpop.f32.mrf.mxu0
          %v9209 = vadd.f32 %v9048, %v9208
          %9210 = vmatmul.bf16.gmra.mxu0 %v9145
          %v9211 = vpop.f32.mrf.mxu0
          %v9212 = vadd.f32 %v9051, %v9211
          %v9213 = vpop.f32.mrf.mxu0
          %v9214 = vadd.f32 %v9053, %v9213
          %9215 = vmatmul.bf16.gmra.mxu0 %v9148
          %v9216 = vpop.f32.mrf.mxu0
          %v9217 = vadd.f32 %v9056, %v9216
          %v9218 = vpop.f32.mrf.mxu0
          %v9219 = vadd.f32 %v9058, %v9218
          %9220 = vmatmul.bf16.gmra.mxu0 %v9151
          %v9221 = vpop.f32.mrf.mxu0
          %v9222 = vadd.f32 %v9061, %v9221
          %v9223 = vpop.f32.mrf.mxu0
          %v9224 = vadd.f32 %v9063, %v9223
          %9225 = vmatmul.bf16.gmra.mxu0 %v9154
          %v9226 = vpop.f32.mrf.mxu0
          %v9227 = vadd.f32 %v9066, %v9226
          %v9228 = vpop.f32.mrf.mxu0
          %v9229 = vadd.f32 %v9068, %v9228
          %9230 = vmatmul.bf16.gmra.mxu0 %v9157
          %v9231 = vpop.f32.mrf.mxu0
          %v9232 = vadd.f32 %v9071, %v9231
          %v9233 = vpop.f32.mrf.mxu0
          %v9234 = vadd.f32 %v9073, %v9233
          %9235 = vmatmul.bf16.gmra.mxu0 %v9160
          %v9236 = vpop.f32.mrf.mxu0
          %v9237 = vadd.f32 %v9076, %v9236
          %v9238 = vpop.f32.mrf.mxu0
          %v9239 = vadd.f32 %v9078, %v9238
          %9240 = vmatmul.bf16.gmra.mxu0 %v9163
          %v9241 = vpop.f32.mrf.mxu0
          %v9242 = vadd.f32 %v9081, %v9241
          %v9243 = vpop.f32.mrf.mxu0
          %v9244 = vadd.f32 %v9083, %v9243
          %9245 = vmatmul.bf16.gmra.mxu0 %v9166
          %v9246 = vpop.f32.mrf.mxu0
          %v9247 = vadd.f32 %v9086, %v9246
          %v9248 = vpop.f32.mrf.mxu0
          %v9249 = vadd.f32 %v9088, %v9248
          %9250 = vmatmul.bf16.gmra.mxu0 %v9169
          %v9251 = vpop.f32.mrf.mxu0
          %v9252 = vadd.f32 %v9091, %v9251
          %v9253 = vpop.f32.mrf.mxu0
          %v9254 = vadd.f32 %v9093, %v9253
          %9255 = vmatmul.bf16.gmra.mxu0 %v9172
          %v9256 = vpop.f32.mrf.mxu0
          %v9257 = vadd.f32 %v9096, %v9256
          %v9258 = vpop.f32.mrf.mxu0
          %v9259 = vadd.f32 %v9098, %v9258
          %9260 = vmatmul.bf16.gmra.mxu0 %v9175
          %v9261 = vpop.f32.mrf.mxu0
          %v9262 = vadd.f32 %v9101, %v9261
          %v9263 = vpop.f32.mrf.mxu0
          %v9264 = vadd.f32 %v9103, %v9263
          %9265 = vdwg.mxu0
          %s9266 = scalar_lea.vmem [#allocation4], 512
          %v9267 = vld [vmem:[%s9266] sm:$0xff]
          %v9268 = vld [vmem:[%s9266 + $0x8] sm:$0xff]
          %v9269 = vld [vmem:[%s9266 + $0x10] sm:$0xff]
          %v9270 = vld [vmem:[%s9266 + $0x18] sm:$0xff]
          %v9271 = vld [vmem:[%s9266 + $0x20] sm:$0xff]
          %v9272 = vld [vmem:[%s9266 + $0x28] sm:$0xff]
          %v9273 = vld [vmem:[%s9266 + $0x30] sm:$0xff]
          %v9274 = vld [vmem:[%s9266 + $0x38] sm:$0xff]
          %v9275 = vld [vmem:[%s9266 + $0x40] sm:$0xff]
          %v9276 = vld [vmem:[%s9266 + $0x48] sm:$0xff]
          %v9277 = vld [vmem:[%s9266 + $0x50] sm:$0xff]
          %v9278 = vld [vmem:[%s9266 + $0x58] sm:$0xff]
          %v9279 = vld [vmem:[%s9266 + $0x60] sm:$0xff]
          %v9280 = vld [vmem:[%s9266 + $0x68] sm:$0xff]
          %v9281 = vld [vmem:[%s9266 + $0x70] sm:$0xff]
          %v9282 = vld [vmem:[%s9266 + $0x78] sm:$0xff]
          %v9283 = vld [vmem:[%s9266 + $0x80] sm:$0xff]
          %v9284 = vld [vmem:[%s9266 + $0x88] sm:$0xff]
          %v9285 = vld [vmem:[%s9266 + $0x90] sm:$0xff]
          %v9286 = vld [vmem:[%s9266 + $0x98] sm:$0xff]
          %v9287 = vld [vmem:[%s9266 + $0xa0] sm:$0xff]
          %v9288 = vld [vmem:[%s9266 + $0xa8] sm:$0xff]
          %v9289 = vld [vmem:[%s9266 + $0xb0] sm:$0xff]
          %v9290 = vld [vmem:[%s9266 + $0xb8] sm:$0xff]
          %v9291 = vld [vmem:[%s9266 + $0xc0] sm:$0xff]
          %v9292 = vld [vmem:[%s9266 + $0xc8] sm:$0xff]
          %v9293 = vld [vmem:[%s9266 + $0xd0] sm:$0xff]
          %v9294 = vld [vmem:[%s9266 + $0xd8] sm:$0xff]
          %v9295 = vld [vmem:[%s9266 + $0xe0] sm:$0xff]
          %v9296 = vld [vmem:[%s9266 + $0xe8] sm:$0xff]
          %v9297 = vld [vmem:[%s9266 + $0xf0] sm:$0xff]
          %v9298 = vld [vmem:[%s9266 + $0xf8] sm:$0xff]
          %s9299 = scalar_lea.vmem [#allocation3], 512
          %v9300 = vld [vmem:[%s9299] sm:$0xff]
          %v9301 = vld [vmem:[%s9299 + $0x8] sm:$0xff]
          %v9302 = vld [vmem:[%s9299 + $0x10] sm:$0xff]
          %v9303 = vld [vmem:[%s9299 + $0x18] sm:$0xff]
          %v9304 = vld [vmem:[%s9299 + $0x20] sm:$0xff]
          %v9305 = vld [vmem:[%s9299 + $0x28] sm:$0xff]
          %v9306 = vld [vmem:[%s9299 + $0x30] sm:$0xff]
          %v9307 = vld [vmem:[%s9299 + $0x38] sm:$0xff]
          %v9308 = vld [vmem:[%s9299 + $0x40] sm:$0xff]
          %v9309 = vld [vmem:[%s9299 + $0x48] sm:$0xff]
          %v9310 = vld [vmem:[%s9299 + $0x50] sm:$0xff]
          %v9311 = vld [vmem:[%s9299 + $0x58] sm:$0xff]
          %v9312 = vld [vmem:[%s9299 + $0x60] sm:$0xff]
          %v9313 = vld [vmem:[%s9299 + $0x68] sm:$0xff]
          %v9314 = vld [vmem:[%s9299 + $0x70] sm:$0xff]
          %v9315 = vld [vmem:[%s9299 + $0x78] sm:$0xff]
          %v9316 = vld [vmem:[%s9299 + $0x80] sm:$0xff]
          %v9317 = vld [vmem:[%s9299 + $0x88] sm:$0xff]
          %v9318 = vld [vmem:[%s9299 + $0x90] sm:$0xff]
          %v9319 = vld [vmem:[%s9299 + $0x98] sm:$0xff]
          %v9320 = vld [vmem:[%s9299 + $0xa0] sm:$0xff]
          %v9321 = vld [vmem:[%s9299 + $0xa8] sm:$0xff]
          %v9322 = vld [vmem:[%s9299 + $0xb0] sm:$0xff]
          %v9323 = vld [vmem:[%s9299 + $0xb8] sm:$0xff]
          %v9324 = vld [vmem:[%s9299 + $0xc0] sm:$0xff]
          %v9325 = vld [vmem:[%s9299 + $0xc8] sm:$0xff]
          %v9326 = vld [vmem:[%s9299 + $0xd0] sm:$0xff]
          %v9327 = vld [vmem:[%s9299 + $0xd8] sm:$0xff]
          %v9328 = vld [vmem:[%s9299 + $0xe0] sm:$0xff]
          %v9329 = vld [vmem:[%s9299 + $0xe8] sm:$0xff]
          %v9330 = vld [vmem:[%s9299 + $0xf0] sm:$0xff]
          %v9331 = vld [vmem:[%s9299 + $0xf8] sm:$0xff]
          %v9332 = vrcp.pop %v9300
          %v9333 = vrcp.pop %v9301
          %v9334 = vrcp.pop %v9302
          %v9335 = vrcp.pop %v9303
          %v9336 = vrcp.pop %v9304
          %v9337 = vrcp.pop %v9305
          %v9338 = vrcp.pop %v9306
          %v9339 = vrcp.pop %v9307
          %v9340 = vrcp.pop %v9308
          %v9341 = vrcp.pop %v9309
          %v9342 = vrcp.pop %v9310
          %v9343 = vrcp.pop %v9311
          %v9344 = vrcp.pop %v9312
          %v9345 = vrcp.pop %v9313
          %v9346 = vrcp.pop %v9314
          %v9347 = vrcp.pop %v9315
          %v9348 = vrcp.pop %v9316
          %v9349 = vrcp.pop %v9317
          %v9350 = vrcp.pop %v9318
          %v9351 = vrcp.pop %v9319
          %v9352 = vrcp.pop %v9320
          %v9353 = vrcp.pop %v9321
          %v9354 = vrcp.pop %v9322
          %v9355 = vrcp.pop %v9323
          %v9356 = vrcp.pop %v9324
          %v9357 = vrcp.pop %v9325
          %v9358 = vrcp.pop %v9326
          %v9359 = vrcp.pop %v9327
          %v9360 = vrcp.pop %v9328
          %v9361 = vrcp.pop %v9329
          %v9362 = vrcp.pop %v9330
          %v9363 = vrcp.pop %v9331
          %9365 = vset.pattern.permute.xlu0 0
          %9366 = vperm.xlu0 %9365, %v9332
          %v9367 = vpop.permute.xlu0 %9366
          %9370 = vset.pattern.permute.xlu0 0
          %9371 = vperm.xlu0 %9370, %v9333
          %v9372 = vpop.permute.xlu0 %9371
          %9375 = vset.pattern.permute.xlu0 0
          %9376 = vperm.xlu0 %9375, %v9334
          %v9377 = vpop.permute.xlu0 %9376
          %9380 = vset.pattern.permute.xlu0 0
          %9381 = vperm.xlu0 %9380, %v9335
          %v9382 = vpop.permute.xlu0 %9381
          %9385 = vset.pattern.permute.xlu0 0
          %9386 = vperm.xlu0 %9385, %v9336
          %v9387 = vpop.permute.xlu0 %9386
          %9390 = vset.pattern.permute.xlu0 0
          %9391 = vperm.xlu0 %9390, %v9337
          %v9392 = vpop.permute.xlu0 %9391
          %9395 = vset.pattern.permute.xlu0 0
          %9396 = vperm.xlu0 %9395, %v9338
          %v9397 = vpop.permute.xlu0 %9396
          %9400 = vset.pattern.permute.xlu0 0
          %9401 = vperm.xlu0 %9400, %v9339
          %v9402 = vpop.permute.xlu0 %9401
          %9405 = vset.pattern.permute.xlu0 0
          %9406 = vperm.xlu0 %9405, %v9340
          %v9407 = vpop.permute.xlu0 %9406
          %9410 = vset.pattern.permute.xlu0 0
          %9411 = vperm.xlu0 %9410, %v9341
          %v9412 = vpop.permute.xlu0 %9411
          %9415 = vset.pattern.permute.xlu0 0
          %9416 = vperm.xlu0 %9415, %v9342
          %v9417 = vpop.permute.xlu0 %9416
          %9420 = vset.pattern.permute.xlu0 0
          %9421 = vperm.xlu0 %9420, %v9343
          %v9422 = vpop.permute.xlu0 %9421
          %9425 = vset.pattern.permute.xlu0 0
          %9426 = vperm.xlu0 %9425, %v9344
          %v9427 = vpop.permute.xlu0 %9426
          %9430 = vset.pattern.permute.xlu0 0
          %9431 = vperm.xlu0 %9430, %v9345
          %v9432 = vpop.permute.xlu0 %9431
          %9435 = vset.pattern.permute.xlu0 0
          %9436 = vperm.xlu0 %9435, %v9346
          %v9437 = vpop.permute.xlu0 %9436
          %9440 = vset.pattern.permute.xlu0 0
          %9441 = vperm.xlu0 %9440, %v9347
          %v9442 = vpop.permute.xlu0 %9441
          %9445 = vset.pattern.permute.xlu0 0
          %9446 = vperm.xlu0 %9445, %v9348
          %v9447 = vpop.permute.xlu0 %9446
          %9450 = vset.pattern.permute.xlu0 0
          %9451 = vperm.xlu0 %9450, %v9349
          %v9452 = vpop.permute.xlu0 %9451
          %9455 = vset.pattern.permute.xlu0 0
          %9456 = vperm.xlu0 %9455, %v9350
          %v9457 = vpop.permute.xlu0 %9456
          %9460 = vset.pattern.permute.xlu0 0
          %9461 = vperm.xlu0 %9460, %v9351
          %v9462 = vpop.permute.xlu0 %9461
          %9465 = vset.pattern.permute.xlu0 0
          %9466 = vperm.xlu0 %9465, %v9352
          %v9467 = vpop.permute.xlu0 %9466
          %9470 = vset.pattern.permute.xlu0 0
          %9471 = vperm.xlu0 %9470, %v9353
          %v9472 = vpop.permute.xlu0 %9471
          %9475 = vset.pattern.permute.xlu0 0
          %9476 = vperm.xlu0 %9475, %v9354
          %v9477 = vpop.permute.xlu0 %9476
          %9480 = vset.pattern.permute.xlu0 0
          %9481 = vperm.xlu0 %9480, %v9355
          %v9482 = vpop.permute.xlu0 %9481
          %9485 = vset.pattern.permute.xlu0 0
          %9486 = vperm.xlu0 %9485, %v9356
          %v9487 = vpop.permute.xlu0 %9486
          %9490 = vset.pattern.permute.xlu0 0
          %9491 = vperm.xlu0 %9490, %v9357
          %v9492 = vpop.permute.xlu0 %9491
          %9495 = vset.pattern.permute.xlu0 0
          %9496 = vperm.xlu0 %9495, %v9358
          %v9497 = vpop.permute.xlu0 %9496
          %9500 = vset.pattern.permute.xlu0 0
          %9501 = vperm.xlu0 %9500, %v9359
          %v9502 = vpop.permute.xlu0 %9501
          %9505 = vset.pattern.permute.xlu0 0
          %9506 = vperm.xlu0 %9505, %v9360
          %v9507 = vpop.permute.xlu0 %9506
          %9510 = vset.pattern.permute.xlu0 0
          %9511 = vperm.xlu0 %9510, %v9361
          %v9512 = vpop.permute.xlu0 %9511
          %9515 = vset.pattern.permute.xlu0 0
          %9516 = vperm.xlu0 %9515, %v9362
          %v9517 = vpop.permute.xlu0 %9516
          %9520 = vset.pattern.permute.xlu0 0
          %9521 = vperm.xlu0 %9520, %v9363
          %v9522 = vpop.permute.xlu0 %9521
          %v9524 = vmul.f32 %v9267, %v9367
          %v9525 = vmul.f32 %v9268, %v9372
          %v9526 = vmul.f32 %v9269, %v9377
          %v9527 = vmul.f32 %v9270, %v9382
          %v9528 = vmul.f32 %v9271, %v9387
          %v9529 = vmul.f32 %v9272, %v9392
          %v9530 = vmul.f32 %v9273, %v9397
          %v9531 = vmul.f32 %v9274, %v9402
          %v9532 = vmul.f32 %v9275, %v9407
          %v9533 = vmul.f32 %v9276, %v9412
          %v9534 = vmul.f32 %v9277, %v9417
          %v9535 = vmul.f32 %v9278, %v9422
          %v9536 = vmul.f32 %v9279, %v9427
          %v9537 = vmul.f32 %v9280, %v9432
          %v9538 = vmul.f32 %v9281, %v9437
          %v9539 = vmul.f32 %v9282, %v9442
          %v9540 = vmul.f32 %v9283, %v9447
          %v9541 = vmul.f32 %v9284, %v9452
          %v9542 = vmul.f32 %v9285, %v9457
          %v9543 = vmul.f32 %v9286, %v9462
          %v9544 = vmul.f32 %v9287, %v9467
          %v9545 = vmul.f32 %v9288, %v9472
          %v9546 = vmul.f32 %v9289, %v9477
          %v9547 = vmul.f32 %v9290, %v9482
          %v9548 = vmul.f32 %v9291, %v9487
          %v9549 = vmul.f32 %v9292, %v9492
          %v9550 = vmul.f32 %v9293, %v9497
          %v9551 = vmul.f32 %v9294, %v9502
          %v9552 = vmul.f32 %v9295, %v9507
          %v9553 = vmul.f32 %v9296, %v9512
          %v9554 = vmul.f32 %v9297, %v9517
          %v9555 = vmul.f32 %v9298, %v9522
          %v9556 = vpack.c.bf16 %v9525, %v9524
          %v9557 = vpack.c.bf16 %v9527, %v9526
          %v9558 = vpack.c.bf16 %v9529, %v9528
          %v9559 = vpack.c.bf16 %v9531, %v9530
          %v9560 = vpack.c.bf16 %v9533, %v9532
          %v9561 = vpack.c.bf16 %v9535, %v9534
          %v9562 = vpack.c.bf16 %v9537, %v9536
          %v9563 = vpack.c.bf16 %v9539, %v9538
          %v9564 = vpack.c.bf16 %v9541, %v9540
          %v9565 = vpack.c.bf16 %v9543, %v9542
          %v9566 = vpack.c.bf16 %v9545, %v9544
          %v9567 = vpack.c.bf16 %v9547, %v9546
          %v9568 = vpack.c.bf16 %v9549, %v9548
          %v9569 = vpack.c.bf16 %v9551, %v9550
          %v9570 = vpack.c.bf16 %v9553, %v9552
          %v9571 = vpack.c.bf16 %v9555, %v9554
          %s9572 = scalar_lea.vmem %s3, 64
          %v9573 = vld [vmem:[%s9572] sm:$0xf]
          %v9574 = vld [vmem:[%s9572 + $0x4] sm:$0xf]
          %v9575 = vld [vmem:[%s9572 + $0x8] sm:$0xf]
          %v9576 = vld [vmem:[%s9572 + $0xc] sm:$0xf]
          %v9577 = vld [vmem:[%s9572 + $0x10] sm:$0xf]
          %v9578 = vld [vmem:[%s9572 + $0x14] sm:$0xf]
          %v9579 = vld [vmem:[%s9572 + $0x18] sm:$0xf]
          %v9580 = vld [vmem:[%s9572 + $0x1c] sm:$0xf]
          %v9589 = vunpack.c.l.b16 %v9573
          %v9590 = vunpack.c.l.b16 %v9574
          %v9591 = vunpack.c.l.b16 %v9575
          %v9592 = vunpack.c.l.b16 %v9576
          %v9593 = vunpack.c.l.b16 %v9577
          %v9594 = vunpack.c.l.b16 %v9578
          %v9595 = vunpack.c.l.b16 %v9579
          %v9596 = vunpack.c.l.b16 %v9580
          %v9597 = vpack.c.b16 %v9590, %v9589
          %v9598 = vpack.c.b16 %v9592, %v9591
          %v9599 = vpack.c.b16 %v9594, %v9593
          %v9600 = vpack.c.b16 %v9596, %v9595
          %v9606 = vsel %vm2315, %v9556, 0
          %v9609 = vsel %vm2315, %v9557, 0
          %v9612 = vsel %vm2315, %v9558, 0
          %v9615 = vsel %vm2315, %v9559, 0
          %v9618 = vsel %vm2315, %v9560, 0
          %v9621 = vsel %vm2315, %v9561, 0
          %v9624 = vsel %vm2315, %v9562, 0
          %v9627 = vsel %vm2315, %v9563, 0
          %v9630 = vsel %vm2315, %v9564, 0
          %v9633 = vsel %vm2315, %v9565, 0
          %v9636 = vsel %vm2315, %v9566, 0
          %v9639 = vsel %vm2315, %v9567, 0
          %v9642 = vsel %vm2315, %v9568, 0
          %v9645 = vsel %vm2315, %v9569, 0
          %v9648 = vsel %vm2315, %v9570, 0
          %v9651 = vsel %vm2315, %v9571, 0
          %9653 = vmatpush.bf16.msra.mxu0 0
          %9654 = vmatpush.bf16.msra.mxu0 0
          %9655 = vmatpush.bf16.msra.mxu0 0
          %9656 = vmatpush.bf16.msra.mxu0 0
          %9657 = vmatpush.bf16.msra.mxu0 %v9600
          %9658 = vmatpush.bf16.msra.mxu0 %v9599
          %9659 = vmatpush.bf16.msra.mxu0 %v9598
          %9660 = vmatpush.bf16.msra.mxu0 %v9597
          %9661 = vmatmul.bf16.gmra.mxu0 %v9606
          %v9662 = vpop.f32.mrf.mxu0
          %v9663 = vadd.f32 0.0, %v9662
          %v9664 = vpop.f32.mrf.mxu0
          %v9665 = vadd.f32 0.0, %v9664
          %9666 = vmatmul.bf16.gmra.mxu0 %v9609
          %v9667 = vpop.f32.mrf.mxu0
          %v9668 = vadd.f32 0.0, %v9667
          %v9669 = vpop.f32.mrf.mxu0
          %v9670 = vadd.f32 0.0, %v9669
          %9671 = vmatmul.bf16.gmra.mxu0 %v9612
          %v9672 = vpop.f32.mrf.mxu0
          %v9673 = vadd.f32 0.0, %v9672
          %v9674 = vpop.f32.mrf.mxu0
          %v9675 = vadd.f32 0.0, %v9674
          %9676 = vmatmul.bf16.gmra.mxu0 %v9615
          %v9677 = vpop.f32.mrf.mxu0
          %v9678 = vadd.f32 0.0, %v9677
          %v9679 = vpop.f32.mrf.mxu0
          %v9680 = vadd.f32 0.0, %v9679
          %9681 = vmatmul.bf16.gmra.mxu0 %v9618
          %v9682 = vpop.f32.mrf.mxu0
          %v9683 = vadd.f32 0.0, %v9682
          %v9684 = vpop.f32.mrf.mxu0
          %v9685 = vadd.f32 0.0, %v9684
          %9686 = vmatmul.bf16.gmra.mxu0 %v9621
          %v9687 = vpop.f32.mrf.mxu0
          %v9688 = vadd.f32 0.0, %v9687
          %v9689 = vpop.f32.mrf.mxu0
          %v9690 = vadd.f32 0.0, %v9689
          %9691 = vmatmul.bf16.gmra.mxu0 %v9624
          %v9692 = vpop.f32.mrf.mxu0
          %v9693 = vadd.f32 0.0, %v9692
          %v9694 = vpop.f32.mrf.mxu0
          %v9695 = vadd.f32 0.0, %v9694
          %9696 = vmatmul.bf16.gmra.mxu0 %v9627
          %v9697 = vpop.f32.mrf.mxu0
          %v9698 = vadd.f32 0.0, %v9697
          %v9699 = vpop.f32.mrf.mxu0
          %v9700 = vadd.f32 0.0, %v9699
          %9701 = vmatmul.bf16.gmra.mxu0 %v9630
          %v9702 = vpop.f32.mrf.mxu0
          %v9703 = vadd.f32 0.0, %v9702
          %v9704 = vpop.f32.mrf.mxu0
          %v9705 = vadd.f32 0.0, %v9704
          %9706 = vmatmul.bf16.gmra.mxu0 %v9633
          %v9707 = vpop.f32.mrf.mxu0
          %v9708 = vadd.f32 0.0, %v9707
          %v9709 = vpop.f32.mrf.mxu0
          %v9710 = vadd.f32 0.0, %v9709
          %9711 = vmatmul.bf16.gmra.mxu0 %v9636
          %v9712 = vpop.f32.mrf.mxu0
          %v9713 = vadd.f32 0.0, %v9712
          %v9714 = vpop.f32.mrf.mxu0
          %v9715 = vadd.f32 0.0, %v9714
          %9716 = vmatmul.bf16.gmra.mxu0 %v9639
          %v9717 = vpop.f32.mrf.mxu0
          %v9718 = vadd.f32 0.0, %v9717
          %v9719 = vpop.f32.mrf.mxu0
          %v9720 = vadd.f32 0.0, %v9719
          %9721 = vmatmul.bf16.gmra.mxu0 %v9642
          %v9722 = vpop.f32.mrf.mxu0
          %v9723 = vadd.f32 0.0, %v9722
          %v9724 = vpop.f32.mrf.mxu0
          %v9725 = vadd.f32 0.0, %v9724
          %9726 = vmatmul.bf16.gmra.mxu0 %v9645
          %v9727 = vpop.f32.mrf.mxu0
          %v9728 = vadd.f32 0.0, %v9727
          %v9729 = vpop.f32.mrf.mxu0
          %v9730 = vadd.f32 0.0, %v9729
          %9731 = vmatmul.bf16.gmra.mxu0 %v9648
          %v9732 = vpop.f32.mrf.mxu0
          %v9733 = vadd.f32 0.0, %v9732
          %v9734 = vpop.f32.mrf.mxu0
          %v9735 = vadd.f32 0.0, %v9734
          %9736 = vmatmul.bf16.gmra.mxu0 %v9651
          %v9737 = vpop.f32.mrf.mxu0
          %v9738 = vadd.f32 0.0, %v9737
          %v9739 = vpop.f32.mrf.mxu0
          %v9740 = vadd.f32 0.0, %v9739
          %9741 = vdwg.mxu0
          %v9742 = vadd.f32 %v9187, %v9663
          %v9743 = vadd.f32 %v9189, %v9665
          %v9744 = vadd.f32 %v9192, %v9668
          %v9745 = vadd.f32 %v9194, %v9670
          %v9746 = vadd.f32 %v9197, %v9673
          %v9747 = vadd.f32 %v9199, %v9675
          %v9748 = vadd.f32 %v9202, %v9678
          %v9749 = vadd.f32 %v9204, %v9680
          %v9750 = vadd.f32 %v9207, %v9683
          %v9751 = vadd.f32 %v9209, %v9685
          %v9752 = vadd.f32 %v9212, %v9688
          %v9753 = vadd.f32 %v9214, %v9690
          %v9754 = vadd.f32 %v9217, %v9693
          %v9755 = vadd.f32 %v9219, %v9695
          %v9756 = vadd.f32 %v9222, %v9698
          %v9757 = vadd.f32 %v9224, %v9700
          %v9758 = vadd.f32 %v9227, %v9703
          %v9759 = vadd.f32 %v9229, %v9705
          %v9760 = vadd.f32 %v9232, %v9708
          %v9761 = vadd.f32 %v9234, %v9710
          %v9762 = vadd.f32 %v9237, %v9713
          %v9763 = vadd.f32 %v9239, %v9715
          %v9764 = vadd.f32 %v9242, %v9718
          %v9765 = vadd.f32 %v9244, %v9720
          %v9766 = vadd.f32 %v9247, %v9723
          %v9767 = vadd.f32 %v9249, %v9725
          %v9768 = vadd.f32 %v9252, %v9728
          %v9769 = vadd.f32 %v9254, %v9730
          %v9770 = vadd.f32 %v9257, %v9733
          %v9771 = vadd.f32 %v9259, %v9735
          %v9772 = vadd.f32 %v9262, %v9738
          %v9773 = vadd.f32 %v9264, %v9740
          %v9774 = vld [vmem:[%s4] sm:$0x1]
          %v9776 = vperm.slane %v9774, 0
          %v9778 = vadd.f32 %v9742, %v9776
          %v9779 = vadd.f32 %v9743, %v9776
          %v9780 = vadd.f32 %v9744, %v9776
          %v9781 = vadd.f32 %v9745, %v9776
          %v9782 = vadd.f32 %v9746, %v9776
          %v9783 = vadd.f32 %v9747, %v9776
          %v9784 = vadd.f32 %v9748, %v9776
          %v9785 = vadd.f32 %v9749, %v9776
          %v9786 = vadd.f32 %v9750, %v9776
          %v9787 = vadd.f32 %v9751, %v9776
          %v9788 = vadd.f32 %v9752, %v9776
          %v9789 = vadd.f32 %v9753, %v9776
          %v9790 = vadd.f32 %v9754, %v9776
          %v9791 = vadd.f32 %v9755, %v9776
          %v9792 = vadd.f32 %v9756, %v9776
          %v9793 = vadd.f32 %v9757, %v9776
          %v9794 = vadd.f32 %v9758, %v9776
          %v9795 = vadd.f32 %v9759, %v9776
          %v9796 = vadd.f32 %v9760, %v9776
          %v9797 = vadd.f32 %v9761, %v9776
          %v9798 = vadd.f32 %v9762, %v9776
          %v9799 = vadd.f32 %v9763, %v9776
          %v9800 = vadd.f32 %v9764, %v9776
          %v9801 = vadd.f32 %v9765, %v9776
          %v9802 = vadd.f32 %v9766, %v9776
          %v9803 = vadd.f32 %v9767, %v9776
          %v9804 = vadd.f32 %v9768, %v9776
          %v9805 = vadd.f32 %v9769, %v9776
          %v9806 = vadd.f32 %v9770, %v9776
          %v9807 = vadd.f32 %v9771, %v9776
          %v9808 = vadd.f32 %v9772, %v9776
          %v9809 = vadd.f32 %v9773, %v9776
          %9810 = vst [vmem:[%s1567] sm:$0xff] %v9778
          %9811 = vst [vmem:[%s1567 + $0x8] sm:$0xff] %v9779
          %9812 = vst [vmem:[%s1567 + $0x10] sm:$0xff] %v9780
          %9813 = vst [vmem:[%s1567 + $0x18] sm:$0xff] %v9781
          %9814 = vst [vmem:[%s1567 + $0x20] sm:$0xff] %v9782
          %9815 = vst [vmem:[%s1567 + $0x28] sm:$0xff] %v9783
          %9816 = vst [vmem:[%s1567 + $0x30] sm:$0xff] %v9784
          %9817 = vst [vmem:[%s1567 + $0x38] sm:$0xff] %v9785
          %9818 = vst [vmem:[%s1567 + $0x40] sm:$0xff] %v9786
          %9819 = vst [vmem:[%s1567 + $0x48] sm:$0xff] %v9787
          %9820 = vst [vmem:[%s1567 + $0x50] sm:$0xff] %v9788
          %9821 = vst [vmem:[%s1567 + $0x58] sm:$0xff] %v9789
          %9822 = vst [vmem:[%s1567 + $0x60] sm:$0xff] %v9790
          %9823 = vst [vmem:[%s1567 + $0x68] sm:$0xff] %v9791
          %9824 = vst [vmem:[%s1567 + $0x70] sm:$0xff] %v9792
          %9825 = vst [vmem:[%s1567 + $0x78] sm:$0xff] %v9793
          %9826 = vst [vmem:[%s1567 + $0x80] sm:$0xff] %v9794
          %9827 = vst [vmem:[%s1567 + $0x88] sm:$0xff] %v9795
          %9828 = vst [vmem:[%s1567 + $0x90] sm:$0xff] %v9796
          %9829 = vst [vmem:[%s1567 + $0x98] sm:$0xff] %v9797
          %9830 = vst [vmem:[%s1567 + $0xa0] sm:$0xff] %v9798
          %9831 = vst [vmem:[%s1567 + $0xa8] sm:$0xff] %v9799
          %9832 = vst [vmem:[%s1567 + $0xb0] sm:$0xff] %v9800
          %9833 = vst [vmem:[%s1567 + $0xb8] sm:$0xff] %v9801
          %9834 = vst [vmem:[%s1567 + $0xc0] sm:$0xff] %v9802
          %9835 = vst [vmem:[%s1567 + $0xc8] sm:$0xff] %v9803
          %9836 = vst [vmem:[%s1567 + $0xd0] sm:$0xff] %v9804
          %9837 = vst [vmem:[%s1567 + $0xd8] sm:$0xff] %v9805
          %9838 = vst [vmem:[%s1567 + $0xe0] sm:$0xff] %v9806
          %9839 = vst [vmem:[%s1567 + $0xe8] sm:$0xff] %v9807
          %9840 = vst [vmem:[%s1567 + $0xf0] sm:$0xff] %v9808
          %9841 = vst [vmem:[%s1567 + $0xf8] sm:$0xff] %v9809
        $region171: #{tpu_custom_call.1} parent=150 // pred_fallthru
          _
        %s9842 = sand.u32 %s174, 1
        %s9843 = scalar_lea.sflag [#allocation9], %s9842
        %s9844 = sand.u32 %s174, 1
        %s9845 = smul.addr %s9844, 256
        %s9846 = scalar_lea.vmem [#allocation8], %s9845
        // Predicated region
        $region172: #{tpu_custom_call.1} parent=150 // pred_check
          %p9847 = pneg %p184
        $region173: #{tpu_custom_call.1} parent=150 // pred_check_branch
          %9849 = sbr.rel (%p9847) target = $region175
        $region174: #{tpu_custom_call.1} parent=150 // pred_region
          %s9850 = smul.u32 32, %s25
          %9852 = vsyncadd %s9843, 0
          %s9853 = smul.addr %s24, 64
          %s9854 = sadd.s32 %s9850, %s9853
          %s9855 = smul.addr %s9854, 8
          %s9856 = scalar_lea.hbm %s5, %s9855
          %s9857 = sshll.u32 %s9846, 4
          %s9858 = int_to_ptr.vmem [resolvable:$true] %s9857
          %s9859 = sshll.u32 %s9856, 4
          %s9860 = int_to_ptr.hbm [resolvable:$true] %s9859
          %9865 = dma.vmem_to_hbm [thread:$0]  %s9858, 4096, %s9860, %s9843, 128, 128, 8
        $region175: #{tpu_custom_call.1} parent=150 // pred_fallthru
          _
      $region151: #{tpu_custom_call.1} parent=5 // pred_fallthru
        _
      %p9866 = scmp.le.s32.totalorder 2, %s14
      // Predicated region
      $region176: #{tpu_custom_call.1} parent=5 // pred_check
        %p9867 = pneg %p9866
      $region177: #{tpu_custom_call.1} parent=5 // pred_check_branch
        %9869 = sbr.rel (%p9867) target = $region179
      $region178: #{tpu_custom_call.1} parent=5 // pred_region
        %s9870 = ssub.s32 %s14, 2
        // Predicated region
        $region180: #{tpu_custom_call.1} parent=178 // pred_check
          %p9871 = pneg %p190
        $region181: #{tpu_custom_call.1} parent=178 // pred_check_branch
          %9873 = sbr.rel (%p9871) target = $region183
        $region182: #{tpu_custom_call.1} parent=178 // pred_region
          %s9874 = sand.u32 %s175, 1
          %s9875 = scalar_lea.sflag [#allocation9], %s9874
          %s9876 = sand.u32 %s175, 1
          %s9877 = smul.addr %s9876, 256
          %s9878 = scalar_lea.vmem [#allocation8], %s9877
          %9880 = dma.done %s9875, 4096
        $region183: #{tpu_custom_call.1} parent=178 // pred_fallthru
          _
      $region179: #{tpu_custom_call.1} parent=5 // pred_fallthru
        _
    $region6: #{tpu_custom_call.1} parent=1 // loop_footer
      %s18 = sadd.s32 1, %s14
    $region7: #{tpu_custom_call.1} parent=1 // loop_footer_branch
      %13 = sbr.rel target = $region3
    $region8: #{tpu_custom_call.1} parent=1 // loop_exit
      _
    %9881 = vsyncpa [#allocation9], 1
    %s9882 = scalar_lea.sflag [#allocation9], 1
    %9883 = vsyncpa %s9882, 1

</llo_original>
